<compile_context>
chip_gen: v5e
topology: v5e:2x2
jax: 0.10.0
libtpu: 0.0.40
codegen_flags: <defaults>
</compile_context>

<pallas_src>
import functools

import jax
import jax.numpy as jnp
from jax.experimental import pallas as pl
from jax.experimental.pallas import tpu as pltpu


_BN_EPS = 1e-5
_VMEM_LIMIT = 32 * 1024 * 1024
# (cin, cout, kernel, stride, pad)
CONV_CFG = [(1, 8, 5, 2, 2), (8, 32, 5, 2, 2), (32, 64, 3, 2, 1),
            (64, 64, 3, 2, 1), (64, 48, 3, 2, 1)]
# (fin, fout, has_bn_relu)
FC_CFG = [(48 * 4 * 4, 768, True), (768, 384, True), (384, 128, False)]


def _bn_fold(gamma, beta, mean, var, bias):
    s = gamma * jax.lax.rsqrt(var + _BN_EPS)
    return s, (bias - mean) * s + beta


# ----------------------------------------------------------------------------
# Kernel 1: fused matmul + BN affine  (conv1..conv5 on real-Cin im2col patches)
# ----------------------------------------------------------------------------
def _matmul_bn_kernel(x_ref, w_ref, s_ref, b_ref, o_ref):
    acc = jnp.dot(x_ref[...], w_ref[...], preferred_element_type=jnp.float32)
    o_ref[...] = (acc * s_ref[...] + b_ref[...]).astype(o_ref.dtype)


def _matmul_bn(x, w, s, b, *, tm_target=512, out_dtype=jnp.bfloat16):
    """x: (M, K) bf16, w: (K, Nout) bf16, s/b: (1, Nout) f32 -> (M, Nout)."""
    m, k = x.shape
    nout = w.shape[1]
    tm = min(tm_target, m)
    while m % tm:                     # M is always a multiple of 16 here
        tm //= 2
    return pl.pallas_call(
        _matmul_bn_kernel,
        out_shape=jax.ShapeDtypeStruct((m, nout), out_dtype),
        grid=(m // tm,),
        in_specs=[pl.BlockSpec((tm, k), lambda i: (i, 0)),
                  pl.BlockSpec((k, nout), lambda i: (0, 0)),
                  pl.BlockSpec((1, nout), lambda i: (0, 0)),
                  pl.BlockSpec((1, nout), lambda i: (0, 0))],
        out_specs=pl.BlockSpec((tm, nout), lambda i: (i, 0)),
        compiler_params=pltpu.CompilerParams(
            dimension_semantics=("parallel",),
            vmem_limit_bytes=_VMEM_LIMIT),
    )(x, w, s, b)


# ----------------------------------------------------------------------------
# Kernel 2: fused FC head = fc1+bn6+relu -> fc2+bn7+relu -> fc3
#   fc1's weight rows are pre-permuted so the (p, c)-ordered feature vector
#   (a free reshape of the conv5 NHWC output) reproduces torch's NCHW flatten.
# ----------------------------------------------------------------------------
def _head_kernel(x_ref, w1_ref, s6_ref, b6_ref, w2_ref, s7_ref, b7_ref,
                 w3_ref, b3_ref, o_ref):
    bf = jnp.bfloat16
    h = jnp.dot(x_ref[...], w1_ref[...], preferred_element_type=jnp.float32)
    h = jnp.maximum(h * s6_ref[...] + b6_ref[...], 0.0)
    h = jnp.dot(h.astype(bf), w2_ref[...], preferred_element_type=jnp.float32)
    h = jnp.maximum(h * s7_ref[...] + b7_ref[...], 0.0)
    h = jnp.dot(h.astype(bf), w3_ref[...], preferred_element_type=jnp.float32)
    o_ref[...] = h + b3_ref[...]


def _head_call(feat, kp, npad):
    tb = min(npad, 256)
    while npad % tb:                  # npad is always a multiple of 8
        tb //= 2
    args = (feat, kp["f1_w"], kp["f1_s"], kp["f1_b"],
            kp["f2_w"], kp["f2_s"], kp["f2_b"],
            kp["f3_w"], kp["f3_b"])
    in_specs = [pl.BlockSpec((tb, feat.shape[1]), lambda i: (i, 0))]
    in_specs += [pl.BlockSpec(a.shape, lambda i: (0, 0)) for a in args[1:]]
    return pl.pallas_call(
        _head_kernel,
        out_shape=jax.ShapeDtypeStruct((npad, 128), jnp.float32),
        grid=(npad // tb,),
        in_specs=in_specs,
        out_specs=pl.BlockSpec((tb, 128), lambda i: (i, 0)),
        compiler_params=pltpu.CompilerParams(
            dimension_semantics=("parallel",),
            vmem_limit_bytes=_VMEM_LIMIT),
    )(*args)


# ----------------------------------------------------------------------------
# Host-side im2col (real Cin; K ordered (ky, kx, c) to match weight packing)
# ----------------------------------------------------------------------------
def _im2col(a, k, stride, pad):
    """a: (N, H, W, C) -> patches (N*OH*OW, k*k*C), plus (OH, OW)."""
    n, h, w, c = a.shape
    oh = (h + 2 * pad - k) // stride + 1
    ow = (w + 2 * pad - k) // stride + 1
    ap = jnp.pad(a, ((0, 0), (pad, pad), (pad, pad), (0, 0)))
    taps = [ap[:, ky:ky + stride * (oh - 1) + 1:stride,
               kx:kx + stride * (ow - 1) + 1:stride, :]
            for ky in range(k) for kx in range(k)]
    p = jnp.stack(taps, axis=3)                   # (N, OH, OW, k*k, C)
    return p.reshape(n * oh * ow, k * k * c), oh, ow


# ----------------------------------------------------------------------------
# Parameters: raw (torch-layout) params + packing into kernel layouts
# ----------------------------------------------------------------------------
def init_raw_params(key):
    raw = {}
    for i, (cin, cout, k, _, _) in enumerate(CONV_CFG):
        key, kw, kb, kg, kbe, km, kv = jax.random.split(key, 7)
        raw[f"conv{i + 1}"] = dict(
            w=jax.random.normal(kw, (cout, cin, k, k), jnp.float32)
            / jnp.sqrt(cin * k * k),
            b=0.01 * jax.random.normal(kb, (cout,), jnp.float32),
            gamma=1.0 + 0.1 * jax.random.normal(kg, (cout,), jnp.float32),
            beta=0.1 * jax.random.normal(kbe, (cout,), jnp.float32),
            mean=0.1 * jax.random.normal(km, (cout,), jnp.float32),
            var=jax.random.uniform(kv, (cout,), jnp.float32,
                                   minval=0.5, maxval=1.5))
    for i, (fin, fout, has_bn) in enumerate(FC_CFG):
        key, kw, kb, kg, kbe, km, kv = jax.random.split(key, 7)
        d = dict(w=jax.random.normal(kw, (fin, fout), jnp.float32)
                 / jnp.sqrt(fin),
                 b=0.01 * jax.random.normal(kb, (fout,), jnp.float32))
        if has_bn:
            d.update(
                gamma=1.0 + 0.1 * jax.random.normal(kg, (fout,), jnp.float32),
                beta=0.1 * jax.random.normal(kbe, (fout,), jnp.float32),
                mean=0.1 * jax.random.normal(km, (fout,), jnp.float32),
                var=jax.random.uniform(kv, (fout,), jnp.float32,
                                       minval=0.5, maxval=1.5))
        raw[f"fc{i + 1}"] = d
    return raw


def pack_params(raw):
    bf = jnp.bfloat16
    kp = {}
    # convs: (cout, cin, k, k) -> (k*k*cin, cout), real channels (no padding)
    for i, (cin, cout, k, _, _) in enumerate(CONV_CFG):
        r = raw[f"conv{i + 1}"]
        w = jnp.transpose(r["w"], (2, 3, 1, 0)).reshape(k * k * cin, cout)
        kp[f"c{i + 1}_w"] = w.astype(bf)
        s, b = _bn_fold(r["gamma"], r["beta"], r["mean"], r["var"], r["b"])
        kp[f"c{i + 1}_s"] = s.reshape(1, -1)
        kp[f"c{i + 1}_b"] = b.reshape(1, -1)
    # fc1: torch flatten index j = c*16 + p; kernel features are (p*48 + c),
    # so permute the weight rows once at pack time: w1_perm[p*48+c] = w1[c*16+p]
    r = raw["fc1"]
    w1 = r["w"].reshape(48, 16, 768).transpose(1, 0, 2).reshape(768, 768)
    kp["f1_w"] = w1.astype(bf)
    s, b = _bn_fold(r["gamma"], r["beta"], r["mean"], r["var"], r["b"])
    kp["f1_s"] = s.reshape(1, -1)
    kp["f1_b"] = b.reshape(1, -1)
    # fc2
    r = raw["fc2"]
    kp["f2_w"] = r["w"].astype(bf)
    s, b = _bn_fold(r["gamma"], r["beta"], r["mean"], r["var"], r["b"])
    kp["f2_s"] = s.reshape(1, -1)
    kp["f2_b"] = b.reshape(1, -1)
    # fc3 (no BN)
    r = raw["fc3"]
    kp["f3_w"] = r["w"].astype(bf)
    kp["f3_b"] = r["b"].reshape(1, -1)
    return kp


# ----------------------------------------------------------------------------
# Full forward pass (matches AudioCNN.forward, eval-mode BN)
# ----------------------------------------------------------------------------
def audio_cnn_forward(x, kp):
    n = x.shape[0]
    bf = jnp.bfloat16
    a = jnp.transpose(x, (0, 2, 3, 1)).astype(bf)         # NHWC, C=1
    # conv1..conv5 (+bn): real-Cin im2col -> fused matmul+BN kernel
    for i, (_, cout, k, st, pd) in enumerate(CONV_CFG):
        patches, oh, ow = _im2col(a, k, st, pd)
        y = _matmul_bn(patches, kp[f"c{i + 1}_w"],
                       kp[f"c{i + 1}_s"], kp[f"c{i + 1}_b"])
        a = y.reshape(n, oh, ow, cout)
    # (N,4,4,48) -> (N,768) in (p, c) order; permutation is folded into f1_w.
    feat = a.reshape(n, 768)
    npad = ((n + 7) // 8) * 8
    feat = jnp.pad(feat, ((0, npad - n), (0, 0)))
    out = _head_call(feat, kp, npad)                       # (npad, 128) f32
    return out[:n]


# ----------------------------------------------------------------------------
# Plain-JAX reference (same eval-mode BN fold, same bf16 cast points)
# ----------------------------------------------------------------------------
def reference_forward(x, raw):
    bf = jnp.bfloat16
    h = x.astype(bf)
    for i, (_, _, _, s, p) in enumerate(CONV_CFG):
        r = raw[f"conv{i + 1}"]
        y = jax.lax.conv_general_dilated(
            h, r["w"].astype(bf), window_strides=(s, s),
            padding=[(p, p), (p, p)],
            dimension_numbers=("NCHW", "OIHW", "NCHW"),
            preferred_element_type=jnp.float32)
        sc, sh = _bn_fold(r["gamma"], r["beta"], r["mean"], r["var"], r["b"])
        h = (y * sc[None, :, None, None] + sh[None, :, None, None]).astype(bf)
    feat = h.reshape(x.shape[0], -1)                       # torch NCHW flatten
    r = raw["fc1"]
    z = jnp.dot(feat, r["w"].astype(bf), preferred_element_type=jnp.float32)
    sc, sh = _bn_fold(r["gamma"], r["beta"], r["mean"], r["var"], r["b"])
    h = jnp.maximum(z * sc + sh, 0.0).astype(bf)
    r = raw["fc2"]
    z = jnp.dot(h, r["w"].astype(bf), preferred_element_type=jnp.float32)
    sc, sh = _bn_fold(r["gamma"], r["beta"], r["mean"], r["var"], r["b"])
    h = jnp.maximum(z * sc + sh, 0.0).astype(bf)
    r = raw["fc3"]
    z = jnp.dot(h, r["w"].astype(bf), preferred_element_type=jnp.float32)
    return z + r["b"][None, :]


if __name__ == "__main__":
    key = jax.random.PRNGKey(0)
    kx, kparam = jax.random.split(key)
    N = 2
    # spatial must be 128x128 so that five stride-2 convs yield 48*4*4 features
    x = jax.random.normal(kx, (N, 1, 128, 128), dtype=jnp.float32)
    raw = init_raw_params(kparam)
    kp = pack_params(raw)

    fwd = jax.jit(audio_cnn_forward)
    out = jax.block_until_ready(fwd(x, kp))
    assert out.shape == (N, 128), out.shape
    assert bool(jnp.all(jnp.isfinite(out)))

    ref = jax.block_until_ready(jax.jit(reference_forward)(x, raw))
    err = float(jnp.max(jnp.abs(out - ref)))
    assert err < 2e-2, f"mismatch vs reference: max abs err {err}"

    print("KERNEL_OK")
</pallas_src>

<mosaic_0001>
module attributes {stable_mosaic.version = 11 : i64} {
  func.func @_matmul_bn_kernel(%arg0: i32, %arg1: memref<512x25xbf16, #tpu.memory_space<vmem>>, %arg2: memref<25x8xbf16, #tpu.memory_space<vmem>>, %arg3: memref<1x8xf32, #tpu.memory_space<vmem>>, %arg4: memref<1x8xf32, #tpu.memory_space<vmem>>, %arg5: memref<512x8xbf16, #tpu.memory_space<vmem>>) attributes {dimension_semantics = [#tpu.dimension_semantics<parallel>], iteration_bounds = array<i64: 16>, scalar_prefetch = 0 : i64, scratch_operands = 0 : i64, tpu.core_type = #tpu.core_type<tc>, window_params = [{transform_indices = @transform_0, window_bounds = array<i64: 512, 25>}, {pipeline_mode = #tpu.pipeline_mode<synchronous>, transform_indices = @transform_1, window_bounds = array<i64: 25, 8>}, {pipeline_mode = #tpu.pipeline_mode<synchronous>, transform_indices = @transform_2, window_bounds = array<i64: 1, 8>}, {pipeline_mode = #tpu.pipeline_mode<synchronous>, transform_indices = @transform_3, window_bounds = array<i64: 1, 8>}, {transform_indices = @transform_4, window_bounds = array<i64: 512, 8>}]} {
    %c0 = arith.constant 0 : index
    %c0_0 = arith.constant 0 : index
    %0 = vector.load %arg1[%c0, %c0_0] : memref<512x25xbf16, #tpu.memory_space<vmem>>, vector<512x25xbf16>
    %c0_1 = arith.constant 0 : index
    %c0_2 = arith.constant 0 : index
    %1 = vector.load %arg2[%c0_1, %c0_2] : memref<25x8xbf16, #tpu.memory_space<vmem>>, vector<25x8xbf16>
    %cst = arith.constant dense<0.000000e+00> : vector<512x8xf32>
    %2 = tpu.matmul %0, %1, %cst {dimension_numbers = #tpu.dot_dimension_numbers<[1], [0], [0], [1], [0, 0, 1, 1], [], []>} : vector<512x25xbf16>, vector<25x8xbf16>, vector<512x8xf32> -> vector<512x8xf32>
    %c0_3 = arith.constant 0 : index
    %c0_4 = arith.constant 0 : index
    %3 = vector.load %arg3[%c0_3, %c0_4] : memref<1x8xf32, #tpu.memory_space<vmem>>, vector<1x8xf32>
    %4 = vector.broadcast %3 : vector<1x8xf32> to vector<512x8xf32>
    %5 = arith.mulf %2, %4 : vector<512x8xf32>
    %c0_5 = arith.constant 0 : index
    %c0_6 = arith.constant 0 : index
    %6 = vector.load %arg4[%c0_5, %c0_6] : memref<1x8xf32, #tpu.memory_space<vmem>>, vector<1x8xf32>
    %7 = vector.broadcast %6 : vector<1x8xf32> to vector<512x8xf32>
    %8 = arith.addf %5, %7 : vector<512x8xf32>
    %9 = arith.truncf %8 : vector<512x8xf32> to vector<512x8xbf16>
    %c0_7 = arith.constant 0 : index
    %c0_8 = arith.constant 0 : index
    %10 = vector.load %arg5[%c0_7, %c0_8] : memref<512x8xbf16, #tpu.memory_space<vmem>>, vector<512x8xbf16>
    tpu.vector_store %arg5[%c0_7, %c0_8], %9 {strides = array<i32>} : memref<512x8xbf16, #tpu.memory_space<vmem>>, vector<512x8xbf16>,
    return
  }
  func.func @transform_0(%arg0: i32) -> (i32, i32) {
    %c0_i32 = arith.constant 0 : i32
    %c0_i32_0 = arith.constant 0 : i32
    return %arg0, %c0_i32 : i32, i32
  }
  func.func @transform_1(%arg0: i32) -> (i32, i32) {
    %c0_i32 = arith.constant 0 : i32
    %c0_i32_0 = arith.constant 0 : i32
    %c0_i32_1 = arith.constant 0 : i32
    return %c0_i32, %c0_i32_0 : i32, i32
  }
  func.func @transform_2(%arg0: i32) -> (i32, i32) {
    %c0_i32 = arith.constant 0 : i32
    %c0_i32_0 = arith.constant 0 : i32
    %c0_i32_1 = arith.constant 0 : i32
    return %c0_i32, %c0_i32_0 : i32, i32
  }
  func.func @transform_3(%arg0: i32) -> (i32, i32) {
    %c0_i32 = arith.constant 0 : i32
    %c0_i32_0 = arith.constant 0 : i32
    %c0_i32_1 = arith.constant 0 : i32
    return %c0_i32, %c0_i32_0 : i32, i32
  }
  func.func @transform_4(%arg0: i32) -> (i32, i32) {
    %c0_i32 = arith.constant 0 : i32
    %c0_i32_0 = arith.constant 0 : i32
    return %arg0, %c0_i32 : i32, i32
  }
}

module attributes {stable_mosaic.version = 11 : i64} {
  func.func @_matmul_bn_kernel(%arg0: i32, %arg1: memref<512x200xbf16, #tpu.memory_space<vmem>>, %arg2: memref<200x32xbf16, #tpu.memory_space<vmem>>, %arg3: memref<1x32xf32, #tpu.memory_space<vmem>>, %arg4: memref<1x32xf32, #tpu.memory_space<vmem>>, %arg5: memref<512x32xbf16, #tpu.memory_space<vmem>>) attributes {dimension_semantics = [#tpu.dimension_semantics<parallel>], iteration_bounds = array<i64: 4>, scalar_prefetch = 0 : i64, scratch_operands = 0 : i64, tpu.core_type = #tpu.core_type<tc>, window_params = [{transform_indices = @transform_0, window_bounds = array<i64: 512, 200>}, {pipeline_mode = #tpu.pipeline_mode<synchronous>, transform_indices = @transform_1, window_bounds = array<i64: 200, 32>}, {pipeline_mode = #tpu.pipeline_mode<synchronous>, transform_indices = @transform_2, window_bounds = array<i64: 1, 32>}, {pipeline_mode = #tpu.pipeline_mode<synchronous>, transform_indices = @transform_3, window_bounds = array<i64: 1, 32>}, {transform_indices = @transform_4, window_bounds = array<i64: 512, 32>}]} {
    %c0 = arith.constant 0 : index
    %c0_0 = arith.constant 0 : index
    %0 = vector.load %arg1[%c0, %c0_0] : memref<512x200xbf16, #tpu.memory_space<vmem>>, vector<512x200xbf16>
    %c0_1 = arith.constant 0 : index
    %c0_2 = arith.constant 0 : index
    %1 = vector.load %arg2[%c0_1, %c0_2] : memref<200x32xbf16, #tpu.memory_space<vmem>>, vector<200x32xbf16>
    %cst = arith.constant dense<0.000000e+00> : vector<512x32xf32>
    %2 = tpu.matmul %0, %1, %cst {dimension_numbers = #tpu.dot_dimension_numbers<[1], [0], [0], [1], [0, 0, 1, 1], [], []>} : vector<512x200xbf16>, vector<200x32xbf16>, vector<512x32xf32> -> vector<512x32xf32>
    %c0_3 = arith.constant 0 : index
    %c0_4 = arith.constant 0 : index
    %3 = vector.load %arg3[%c0_3, %c0_4] : memref<1x32xf32, #tpu.memory_space<vmem>>, vector<1x32xf32>
    %4 = vector.broadcast %3 : vector<1x32xf32> to vector<512x32xf32>
    %5 = arith.mulf %2, %4 : vector<512x32xf32>
    %c0_5 = arith.constant 0 : index
    %c0_6 = arith.constant 0 : index
    %6 = vector.load %arg4[%c0_5, %c0_6] : memref<1x32xf32, #tpu.memory_space<vmem>>, vector<1x32xf32>
    %7 = vector.broadcast %6 : vector<1x32xf32> to vector<512x32xf32>
    %8 = arith.addf %5, %7 : vector<512x32xf32>
    %9 = arith.truncf %8 : vector<512x32xf32> to vector<512x32xbf16>
    %c0_7 = arith.constant 0 : index
    %c0_8 = arith.constant 0 : index
    %10 = vector.load %arg5[%c0_7, %c0_8] : memref<512x32xbf16, #tpu.memory_space<vmem>>, vector<512x32xbf16>
    tpu.vector_store %arg5[%c0_7, %c0_8], %9 {strides = array<i32>} : memref<512x32xbf16, #tpu.memory_space<vmem>>, vector<512x32xbf16>,
    return
  }
  func.func @transform_0(%arg0: i32) -> (i32, i32) {
    %c0_i32 = arith.constant 0 : i32
    %c0_i32_0 = arith.constant 0 : i32
    return %arg0, %c0_i32 : i32, i32
  }
  func.func @transform_1(%arg0: i32) -> (i32, i32) {
    %c0_i32 = arith.constant 0 : i32
    %c0_i32_0 = arith.constant 0 : i32
    %c0_i32_1 = arith.constant 0 : i32
    return %c0_i32, %c0_i32_0 : i32, i32
  }
  func.func @transform_2(%arg0: i32) -> (i32, i32) {
    %c0_i32 = arith.constant 0 : i32
    %c0_i32_0 = arith.constant 0 : i32
    %c0_i32_1 = arith.constant 0 : i32
    return %c0_i32, %c0_i32_0 : i32, i32
  }
  func.func @transform_3(%arg0: i32) -> (i32, i32) {
    %c0_i32 = arith.constant 0 : i32
    %c0_i32_0 = arith.constant 0 : i32
    %c0_i32_1 = arith.constant 0 : i32
    return %c0_i32, %c0_i32_0 : i32, i32
  }
  func.func @transform_4(%arg0: i32) -> (i32, i32) {
    %c0_i32 = arith.constant 0 : i32
    %c0_i32_0 = arith.constant 0 : i32
    return %arg0, %c0_i32 : i32, i32
  }
}

module attributes {stable_mosaic.version = 11 : i64} {
  func.func @_matmul_bn_kernel(%arg0: i32, %arg1: memref<512x288xbf16, #tpu.memory_space<vmem>>, %arg2: memref<288x64xbf16, #tpu.memory_space<vmem>>, %arg3: memref<1x64xf32, #tpu.memory_space<vmem>>, %arg4: memref<1x64xf32, #tpu.memory_space<vmem>>, %arg5: memref<512x64xbf16, #tpu.memory_space<vmem>>) attributes {dimension_semantics = [#tpu.dimension_semantics<parallel>], iteration_bounds = array<i64: 1>, scalar_prefetch = 0 : i64, scratch_operands = 0 : i64, tpu.core_type = #tpu.core_type<tc>, window_params = [{transform_indices = @transform_0, window_bounds = array<i64: 512, 288>}, {pipeline_mode = #tpu.pipeline_mode<synchronous>, transform_indices = @transform_1, window_bounds = array<i64: 288, 64>}, {pipeline_mode = #tpu.pipeline_mode<synchronous>, transform_indices = @transform_2, window_bounds = array<i64: 1, 64>}, {pipeline_mode = #tpu.pipeline_mode<synchronous>, transform_indices = @transform_3, window_bounds = array<i64: 1, 64>}, {transform_indices = @transform_4, window_bounds = array<i64: 512, 64>}]} {
    %c0 = arith.constant 0 : index
    %c0_0 = arith.constant 0 : index
    %0 = vector.load %arg1[%c0, %c0_0] : memref<512x288xbf16, #tpu.memory_space<vmem>>, vector<512x288xbf16>
    %c0_1 = arith.constant 0 : index
    %c0_2 = arith.constant 0 : index
    %1 = vector.load %arg2[%c0_1, %c0_2] : memref<288x64xbf16, #tpu.memory_space<vmem>>, vector<288x64xbf16>
    %cst = arith.constant dense<0.000000e+00> : vector<512x64xf32>
    %2 = tpu.matmul %0, %1, %cst {dimension_numbers = #tpu.dot_dimension_numbers<[1], [0], [0], [1], [0, 0, 1, 1], [], []>} : vector<512x288xbf16>, vector<288x64xbf16>, vector<512x64xf32> -> vector<512x64xf32>
    %c0_3 = arith.constant 0 : index
    %c0_4 = arith.constant 0 : index
    %3 = vector.load %arg3[%c0_3, %c0_4] : memref<1x64xf32, #tpu.memory_space<vmem>>, vector<1x64xf32>
    %4 = vector.broadcast %3 : vector<1x64xf32> to vector<512x64xf32>
    %5 = arith.mulf %2, %4 : vector<512x64xf32>
    %c0_5 = arith.constant 0 : index
    %c0_6 = arith.constant 0 : index
    %6 = vector.load %arg4[%c0_5, %c0_6] : memref<1x64xf32, #tpu.memory_space<vmem>>, vector<1x64xf32>
    %7 = vector.broadcast %6 : vector<1x64xf32> to vector<512x64xf32>
    %8 = arith.addf %5, %7 : vector<512x64xf32>
    %9 = arith.truncf %8 : vector<512x64xf32> to vector<512x64xbf16>
    %c0_7 = arith.constant 0 : index
    %c0_8 = arith.constant 0 : index
    %10 = vector.load %arg5[%c0_7, %c0_8] : memref<512x64xbf16, #tpu.memory_space<vmem>>, vector<512x64xbf16>
    tpu.vector_store %arg5[%c0_7, %c0_8], %9 {strides = array<i32>} : memref<512x64xbf16, #tpu.memory_space<vmem>>, vector<512x64xbf16>,
    return
  }
  func.func @transform_0(%arg0: i32) -> (i32, i32) {
    %c0_i32 = arith.constant 0 : i32
    %c0_i32_0 = arith.constant 0 : i32
    return %arg0, %c0_i32 : i32, i32
  }
  func.func @transform_1(%arg0: i32) -> (i32, i32) {
    %c0_i32 = arith.constant 0 : i32
    %c0_i32_0 = arith.constant 0 : i32
    %c0_i32_1 = arith.constant 0 : i32
    return %c0_i32, %c0_i32_0 : i32, i32
  }
  func.func @transform_2(%arg0: i32) -> (i32, i32) {
    %c0_i32 = arith.constant 0 : i32
    %c0_i32_0 = arith.constant 0 : i32
    %c0_i32_1 = arith.constant 0 : i32
    return %c0_i32, %c0_i32_0 : i32, i32
  }
  func.func @transform_3(%arg0: i32) -> (i32, i32) {
    %c0_i32 = arith.constant 0 : i32
    %c0_i32_0 = arith.constant 0 : i32
    %c0_i32_1 = arith.constant 0 : i32
    return %c0_i32, %c0_i32_0 : i32, i32
  }
  func.func @transform_4(%arg0: i32) -> (i32, i32) {
    %c0_i32 = arith.constant 0 : i32
    %c0_i32_0 = arith.constant 0 : i32
    return %arg0, %c0_i32 : i32, i32
  }
}

module attributes {stable_mosaic.version = 11 : i64} {
  func.func @_matmul_bn_kernel(%arg0: i32, %arg1: memref<128x576xbf16, #tpu.memory_space<vmem>>, %arg2: memref<576x64xbf16, #tpu.memory_space<vmem>>, %arg3: memref<1x64xf32, #tpu.memory_space<vmem>>, %arg4: memref<1x64xf32, #tpu.memory_space<vmem>>, %arg5: memref<128x64xbf16, #tpu.memory_space<vmem>>) attributes {dimension_semantics = [#tpu.dimension_semantics<parallel>], iteration_bounds = array<i64: 1>, scalar_prefetch = 0 : i64, scratch_operands = 0 : i64, tpu.core_type = #tpu.core_type<tc>, window_params = [{transform_indices = @transform_0, window_bounds = array<i64: 128, 576>}, {pipeline_mode = #tpu.pipeline_mode<synchronous>, transform_indices = @transform_1, window_bounds = array<i64: 576, 64>}, {pipeline_mode = #tpu.pipeline_mode<synchronous>, transform_indices = @transform_2, window_bounds = array<i64: 1, 64>}, {pipeline_mode = #tpu.pipeline_mode<synchronous>, transform_indices = @transform_3, window_bounds = array<i64: 1, 64>}, {transform_indices = @transform_4, window_bounds = array<i64: 128, 64>}]} {
    %c0 = arith.constant 0 : index
    %c0_0 = arith.constant 0 : index
    %0 = vector.load %arg1[%c0, %c0_0] : memref<128x576xbf16, #tpu.memory_space<vmem>>, vector<128x576xbf16>
    %c0_1 = arith.constant 0 : index
    %c0_2 = arith.constant 0 : index
    %1 = vector.load %arg2[%c0_1, %c0_2] : memref<576x64xbf16, #tpu.memory_space<vmem>>, vector<576x64xbf16>
    %cst = arith.constant dense<0.000000e+00> : vector<128x64xf32>
    %2 = tpu.matmul %0, %1, %cst {dimension_numbers = #tpu.dot_dimension_numbers<[1], [0], [0], [1], [0, 0, 1, 1], [], []>} : vector<128x576xbf16>, vector<576x64xbf16>, vector<128x64xf32> -> vector<128x64xf32>
    %c0_3 = arith.constant 0 : index
    %c0_4 = arith.constant 0 : index
    %3 = vector.load %arg3[%c0_3, %c0_4] : memref<1x64xf32, #tpu.memory_space<vmem>>, vector<1x64xf32>
    %4 = vector.broadcast %3 : vector<1x64xf32> to vector<128x64xf32>
    %5 = arith.mulf %2, %4 : vector<128x64xf32>
    %c0_5 = arith.constant 0 : index
    %c0_6 = arith.constant 0 : index
    %6 = vector.load %arg4[%c0_5, %c0_6] : memref<1x64xf32, #tpu.memory_space<vmem>>, vector<1x64xf32>
    %7 = vector.broadcast %6 : vector<1x64xf32> to vector<128x64xf32>
    %8 = arith.addf %5, %7 : vector<128x64xf32>
    %9 = arith.truncf %8 : vector<128x64xf32> to vector<128x64xbf16>
    %c0_7 = arith.constant 0 : index
    %c0_8 = arith.constant 0 : index
    %10 = vector.load %arg5[%c0_7, %c0_8] : memref<128x64xbf16, #tpu.memory_space<vmem>>, vector<128x64xbf16>
    tpu.vector_store %arg5[%c0_7, %c0_8], %9 {strides = array<i32>} : memref<128x64xbf16, #tpu.memory_space<vmem>>, vector<128x64xbf16>,
    return
  }
  func.func @transform_0(%arg0: i32) -> (i32, i32) {
    %c0_i32 = arith.constant 0 : i32
    %c0_i32_0 = arith.constant 0 : i32
    return %arg0, %c0_i32 : i32, i32
  }
  func.func @transform_1(%arg0: i32) -> (i32, i32) {
    %c0_i32 = arith.constant 0 : i32
    %c0_i32_0 = arith.constant 0 : i32
    %c0_i32_1 = arith.constant 0 : i32
    return %c0_i32, %c0_i32_0 : i32, i32
  }
  func.func @transform_2(%arg0: i32) -> (i32, i32) {
    %c0_i32 = arith.constant 0 : i32
    %c0_i32_0 = arith.constant 0 : i32
    %c0_i32_1 = arith.constant 0 : i32
    return %c0_i32, %c0_i32_0 : i32, i32
  }
  func.func @transform_3(%arg0: i32) -> (i32, i32) {
    %c0_i32 = arith.constant 0 : i32
    %c0_i32_0 = arith.constant 0 : i32
    %c0_i32_1 = arith.constant 0 : i32
    return %c0_i32, %c0_i32_0 : i32, i32
  }
  func.func @transform_4(%arg0: i32) -> (i32, i32) {
    %c0_i32 = arith.constant 0 : i32
    %c0_i32_0 = arith.constant 0 : i32
    return %arg0, %c0_i32 : i32, i32
  }
}

module attributes {stable_mosaic.version = 11 : i64} {
  func.func @_matmul_bn_kernel(%arg0: i32, %arg1: memref<32x576xbf16, #tpu.memory_space<vmem>>, %arg2: memref<576x48xbf16, #tpu.memory_space<vmem>>, %arg3: memref<1x48xf32, #tpu.memory_space<vmem>>, %arg4: memref<1x48xf32, #tpu.memory_space<vmem>>, %arg5: memref<32x48xbf16, #tpu.memory_space<vmem>>) attributes {dimension_semantics = [#tpu.dimension_semantics<parallel>], iteration_bounds = array<i64: 1>, scalar_prefetch = 0 : i64, scratch_operands = 0 : i64, tpu.core_type = #tpu.core_type<tc>, window_params = [{transform_indices = @transform_0, window_bounds = array<i64: 32, 576>}, {pipeline_mode = #tpu.pipeline_mode<synchronous>, transform_indices = @transform_1, window_bounds = array<i64: 576, 48>}, {pipeline_mode = #tpu.pipeline_mode<synchronous>, transform_indices = @transform_2, window_bounds = array<i64: 1, 48>}, {pipeline_mode = #tpu.pipeline_mode<synchronous>, transform_indices = @transform_3, window_bounds = array<i64: 1, 48>}, {transform_indices = @transform_4, window_bounds = array<i64: 32, 48>}]} {
    %c0 = arith.constant 0 : index
    %c0_0 = arith.constant 0 : index
    %0 = vector.load %arg1[%c0, %c0_0] : memref<32x576xbf16, #tpu.memory_space<vmem>>, vector<32x576xbf16>
    %c0_1 = arith.constant 0 : index
    %c0_2 = arith.constant 0 : index
    %1 = vector.load %arg2[%c0_1, %c0_2] : memref<576x48xbf16, #tpu.memory_space<vmem>>, vector<576x48xbf16>
    %cst = arith.constant dense<0.000000e+00> : vector<32x48xf32>
    %2 = tpu.matmul %0, %1, %cst {dimension_numbers = #tpu.dot_dimension_numbers<[1], [0], [0], [1], [0, 0, 1, 1], [], []>} : vector<32x576xbf16>, vector<576x48xbf16>, vector<32x48xf32> -> vector<32x48xf32>
    %c0_3 = arith.constant 0 : index
    %c0_4 = arith.constant 0 : index
    %3 = vector.load %arg3[%c0_3, %c0_4] : memref<1x48xf32, #tpu.memory_space<vmem>>, vector<1x48xf32>
    %4 = vector.broadcast %3 : vector<1x48xf32> to vector<32x48xf32>
    %5 = arith.mulf %2, %4 : vector<32x48xf32>
    %c0_5 = arith.constant 0 : index
    %c0_6 = arith.constant 0 : index
    %6 = vector.load %arg4[%c0_5, %c0_6] : memref<1x48xf32, #tpu.memory_space<vmem>>, vector<1x48xf32>
    %7 = vector.broadcast %6 : vector<1x48xf32> to vector<32x48xf32>
    %8 = arith.addf %5, %7 : vector<32x48xf32>
    %9 = arith.truncf %8 : vector<32x48xf32> to vector<32x48xbf16>
    %c0_7 = arith.constant 0 : index
    %c0_8 = arith.constant 0 : index
    %10 = vector.load %arg5[%c0_7, %c0_8] : memref<32x48xbf16, #tpu.memory_space<vmem>>, vector<32x48xbf16>
    tpu.vector_store %arg5[%c0_7, %c0_8], %9 {strides = array<i32>} : memref<32x48xbf16, #tpu.memory_space<vmem>>, vector<32x48xbf16>,
    return
  }
  func.func @transform_0(%arg0: i32) -> (i32, i32) {
    %c0_i32 = arith.constant 0 : i32
    %c0_i32_0 = arith.constant 0 : i32
    return %arg0, %c0_i32 : i32, i32
  }
  func.func @transform_1(%arg0: i32) -> (i32, i32) {
    %c0_i32 = arith.constant 0 : i32
    %c0_i32_0 = arith.constant 0 : i32
    %c0_i32_1 = arith.constant 0 : i32
    return %c0_i32, %c0_i32_0 : i32, i32
  }
  func.func @transform_2(%arg0: i32) -> (i32, i32) {
    %c0_i32 = arith.constant 0 : i32
    %c0_i32_0 = arith.constant 0 : i32
    %c0_i32_1 = arith.constant 0 : i32
    return %c0_i32, %c0_i32_0 : i32, i32
  }
  func.func @transform_3(%arg0: i32) -> (i32, i32) {
    %c0_i32 = arith.constant 0 : i32
    %c0_i32_0 = arith.constant 0 : i32
    %c0_i32_1 = arith.constant 0 : i32
    return %c0_i32, %c0_i32_0 : i32, i32
  }
  func.func @transform_4(%arg0: i32) -> (i32, i32) {
    %c0_i32 = arith.constant 0 : i32
    %c0_i32_0 = arith.constant 0 : i32
    return %arg0, %c0_i32 : i32, i32
  }
}

module attributes {stable_mosaic.version = 11 : i64} {
  func.func @_head_kernel(%arg0: i32, %arg1: memref<8x768xbf16, #tpu.memory_space<vmem>>, %arg2: memref<768x768xbf16, #tpu.memory_space<vmem>>, %arg3: memref<1x768xf32, #tpu.memory_space<vmem>>, %arg4: memref<1x768xf32, #tpu.memory_space<vmem>>, %arg5: memref<768x384xbf16, #tpu.memory_space<vmem>>, %arg6: memref<1x384xf32, #tpu.memory_space<vmem>>, %arg7: memref<1x384xf32, #tpu.memory_space<vmem>>, %arg8: memref<384x128xbf16, #tpu.memory_space<vmem>>, %arg9: memref<1x128xf32, #tpu.memory_space<vmem>>, %arg10: memref<8x128xf32, #tpu.memory_space<vmem>>) attributes {dimension_semantics = [#tpu.dimension_semantics<parallel>], iteration_bounds = array<i64: 1>, scalar_prefetch = 0 : i64, scratch_operands = 0 : i64, tpu.core_type = #tpu.core_type<tc>, window_params = [{transform_indices = @transform_0, window_bounds = array<i64: 8, 768>}, {pipeline_mode = #tpu.pipeline_mode<synchronous>, transform_indices = @transform_1, window_bounds = array<i64: 768, 768>}, {pipeline_mode = #tpu.pipeline_mode<synchronous>, transform_indices = @transform_2, window_bounds = array<i64: 1, 768>}, {pipeline_mode = #tpu.pipeline_mode<synchronous>, transform_indices = @transform_3, window_bounds = array<i64: 1, 768>}, {pipeline_mode = #tpu.pipeline_mode<synchronous>, transform_indices = @transform_4, window_bounds = array<i64: 768, 384>}, {pipeline_mode = #tpu.pipeline_mode<synchronous>, transform_indices = @transform_5, window_bounds = array<i64: 1, 384>}, {pipeline_mode = #tpu.pipeline_mode<synchronous>, transform_indices = @transform_6, window_bounds = array<i64: 1, 384>}, {pipeline_mode = #tpu.pipeline_mode<synchronous>, transform_indices = @transform_7, window_bounds = array<i64: 384, 128>}, {pipeline_mode = #tpu.pipeline_mode<synchronous>, transform_indices = @transform_8, window_bounds = array<i64: 1, 128>}, {transform_indices = @transform_9, window_bounds = array<i64: 8, 128>}]} {
    %c0 = arith.constant 0 : index
    %c0_0 = arith.constant 0 : index
    %0 = vector.load %arg1[%c0, %c0_0] : memref<8x768xbf16, #tpu.memory_space<vmem>>, vector<8x768xbf16>
    %c0_1 = arith.constant 0 : index
    %c0_2 = arith.constant 0 : index
    %1 = vector.load %arg2[%c0_1, %c0_2] : memref<768x768xbf16, #tpu.memory_space<vmem>>, vector<768x768xbf16>
    %cst = arith.constant dense<0.000000e+00> : vector<8x768xf32>
    %2 = tpu.matmul %0, %1, %cst {dimension_numbers = #tpu.dot_dimension_numbers<[1], [0], [0], [1], [0, 0, 1, 1], [], []>} : vector<8x768xbf16>, vector<768x768xbf16>, vector<8x768xf32> -> vector<8x768xf32>
    %c0_3 = arith.constant 0 : index
    %c0_4 = arith.constant 0 : index
    %3 = vector.load %arg3[%c0_3, %c0_4] : memref<1x768xf32, #tpu.memory_space<vmem>>, vector<1x768xf32>
    %4 = vector.broadcast %3 : vector<1x768xf32> to vector<8x768xf32>
    %5 = arith.mulf %2, %4 : vector<8x768xf32>
    %c0_5 = arith.constant 0 : index
    %c0_6 = arith.constant 0 : index
    %6 = vector.load %arg4[%c0_5, %c0_6] : memref<1x768xf32, #tpu.memory_space<vmem>>, vector<1x768xf32>
    %7 = vector.broadcast %6 : vector<1x768xf32> to vector<8x768xf32>
    %8 = arith.addf %5, %7 : vector<8x768xf32>
    %cst_7 = arith.constant 0.000000e+00 : f32
    %9 = vector.broadcast %cst_7 : f32 to vector<8x768xf32>
    %10 = arith.maximumf %8, %9 : vector<8x768xf32>
    %11 = arith.truncf %10 : vector<8x768xf32> to vector<8x768xbf16>
    %c0_8 = arith.constant 0 : index
    %c0_9 = arith.constant 0 : index
    %12 = vector.load %arg5[%c0_8, %c0_9] : memref<768x384xbf16, #tpu.memory_space<vmem>>, vector<768x384xbf16>
    %cst_10 = arith.constant dense<0.000000e+00> : vector<8x384xf32>
    %13 = tpu.matmul %11, %12, %cst_10 {dimension_numbers = #tpu.dot_dimension_numbers<[1], [0], [0], [1], [0, 0, 1, 1], [], []>} : vector<8x768xbf16>, vector<768x384xbf16>, vector<8x384xf32> -> vector<8x384xf32>
    %c0_11 = arith.constant 0 : index
    %c0_12 = arith.constant 0 : index
    %14 = vector.load %arg6[%c0_11, %c0_12] : memref<1x384xf32, #tpu.memory_space<vmem>>, vector<1x384xf32>
    %15 = vector.broadcast %14 : vector<1x384xf32> to vector<8x384xf32>
    %16 = arith.mulf %13, %15 : vector<8x384xf32>
    %c0_13 = arith.constant 0 : index
    %c0_14 = arith.constant 0 : index
    %17 = vector.load %arg7[%c0_13, %c0_14] : memref<1x384xf32, #tpu.memory_space<vmem>>, vector<1x384xf32>
    %18 = vector.broadcast %17 : vector<1x384xf32> to vector<8x384xf32>
    %19 = arith.addf %16, %18 : vector<8x384xf32>
    %cst_15 = arith.constant 0.000000e+00 : f32
    %20 = vector.broadcast %cst_15 : f32 to vector<8x384xf32>
    %21 = arith.maximumf %19, %20 : vector<8x384xf32>
    %22 = arith.truncf %21 : vector<8x384xf32> to vector<8x384xbf16>
    %c0_16 = arith.constant 0 : index
    %c0_17 = arith.constant 0 : index
    %23 = vector.load %arg8[%c0_16, %c0_17] : memref<384x128xbf16, #tpu.memory_space<vmem>>, vector<384x128xbf16>
    %cst_18 = arith.constant dense<0.000000e+00> : vector<8x128xf32>
    %24 = tpu.matmul %22, %23, %cst_18 {dimension_numbers = #tpu.dot_dimension_numbers<[1], [0], [0], [1], [0, 0, 1, 1], [], []>} : vector<8x384xbf16>, vector<384x128xbf16>, vector<8x128xf32> -> vector<8x128xf32>
    %c0_19 = arith.constant 0 : index
    %c0_20 = arith.constant 0 : index
    %25 = vector.load %arg9[%c0_19, %c0_20] : memref<1x128xf32, #tpu.memory_space<vmem>>, vector<1x128xf32>
    %26 = vector.broadcast %25 : vector<1x128xf32> to vector<8x128xf32>
    %27 = arith.addf %24, %26 : vector<8x128xf32>
    %c0_21 = arith.constant 0 : index
    %c0_22 = arith.constant 0 : index
    %28 = vector.load %arg10[%c0_21, %c0_22] : memref<8x128xf32, #tpu.memory_space<vmem>>, vector<8x128xf32>
    tpu.vector_store %arg10[%c0_21, %c0_22], %27 {strides = array<i32>} : memref<8x128xf32, #tpu.memory_space<vmem>>, vector<8x128xf32>,
    return
  }
  func.func @transform_0(%arg0: i32) -> (i32, i32) {
    %c0_i32 = arith.constant 0 : i32
    %c0_i32_0 = arith.constant 0 : i32
    return %arg0, %c0_i32 : i32, i32
  }
  func.func @transform_1(%arg0: i32) -> (i32, i32) {
    %c0_i32 = arith.constant 0 : i32
    %c0_i32_0 = arith.constant 0 : i32
    %c0_i32_1 = arith.constant 0 : i32
    return %c0_i32, %c0_i32_0 : i32, i32
  }
  func.func @transform_2(%arg0: i32) -> (i32, i32) {
    %c0_i32 = arith.constant 0 : i32
    %c0_i32_0 = arith.constant 0 : i32
    %c0_i32_1 = arith.constant 0 : i32
    return %c0_i32, %c0_i32_0 : i32, i32
  }
  func.func @transform_3(%arg0: i32) -> (i32, i32) {
    %c0_i32 = arith.constant 0 : i32
    %c0_i32_0 = arith.constant 0 : i32
    %c0_i32_1 = arith.constant 0 : i32
    return %c0_i32, %c0_i32_0 : i32, i32
  }
  func.func @transform_4(%arg0: i32) -> (i32, i32) {
    %c0_i32 = arith.constant 0 : i32
    %c0_i32_0 = arith.constant 0 : i32
    %c0_i32_1 = arith.constant 0 : i32
    return %c0_i32, %c0_i32_0 : i32, i32
  }
  func.func @transform_5(%arg0: i32) -> (i32, i32) {
    %c0_i32 = arith.constant 0 : i32
    %c0_i32_0 = arith.constant 0 : i32
    %c0_i32_1 = arith.constant 0 : i32
    return %c0_i32, %c0_i32_0 : i32, i32
  }
  func.func @transform_6(%arg0: i32) -> (i32, i32) {
    %c0_i32 = arith.constant 0 : i32
    %c0_i32_0 = arith.constant 0 : i32
    %c0_i32_1 = arith.constant 0 : i32
    return %c0_i32, %c0_i32_0 : i32, i32
  }
  func.func @transform_7(%arg0: i32) -> (i32, i32) {
    %c0_i32 = arith.constant 0 : i32
    %c0_i32_0 = arith.constant 0 : i32
    %c0_i32_1 = arith.constant 0 : i32
    return %c0_i32, %c0_i32_0 : i32, i32
  }
  func.func @transform_8(%arg0: i32) -> (i32, i32) {
    %c0_i32 = arith.constant 0 : i32
    %c0_i32_0 = arith.constant 0 : i32
    %c0_i32_1 = arith.constant 0 : i32
    return %c0_i32, %c0_i32_0 : i32, i32
  }
  func.func @transform_9(%arg0: i32) -> (i32, i32) {
    %c0_i32 = arith.constant 0 : i32
    %c0_i32_0 = arith.constant 0 : i32
    return %arg0, %c0_i32 : i32, i32
  }
}

</mosaic_0001>

<llo_original>
// kernel: audio_cnn_forward.6
$region0: #{audio_cnn_forward.6}
  #allocation0 [shape = 'u32[]', space=smem, size = 0x4, offset = 0x4, fixed_abs, tag = 'smem constant byte address 0x4 - core index']
  #allocation1 [shape = 'u32[72,128]{1,0:T(1,128)}', space=vmem, size = 0x9000, scoped, tag = 'internal scratch']
  %s0 = inlined_call_operand.vmem [shape: bf16[8192,25], index: 0, kind: input, shape index: {}]
  %s1 = inlined_call_operand.vmem [shape: bf16[25,8], index: 1, kind: input, shape index: {}]
  %s2 = inlined_call_operand.vmem [shape: f32[1,8], index: 2, kind: input, shape index: {}]
  %s3 = inlined_call_operand.vmem [shape: f32[1,8], index: 3, kind: input, shape index: {}]
  %s4 = inlined_call_operand.vmem [shape: bf16[8192,8], index: 4, kind: output, shape index: {}]
  %s5 = sld [smem:[#allocation0]]
  $region49: #{audio_cnn_forward.6} parent=0
    _
  %s7 = ssub.s32 1, %s5
  %s8 = scalar_select 0, %s7, %s5
  loop: start=0, step=1, limit=18
  $region2: #{audio_cnn_forward.6} parent=0 // loop_pre_header
    _
  $region3: #{audio_cnn_forward.6} parent=0 // loop_header
    %s10 = sphi 0, %s14
    %p11 = scmp.ge.s32.totalorder %s10, 18
    %s20 = sphi 0, %s22
    %s23 = sphi 0, %s20
    %s24 = sphi 0, %s23
    %s40 = sphi 0, %s24
    %s44 = sphi 0, %s44
    %s46 = sphi 0, %s44
    %s47 = sphi 0, %s46
    %s61 = sphi 0, %s47
    %s65 = sphi 0, %s65
    %s67 = sphi 0, %s65
    %s68 = sphi 0, %s67
    %s82 = sphi 0, %s68
    %s86 = sphi 0, %s86
    %s88 = sphi 0, %s86
    %s89 = sphi 0, %s88
    %s103 = sphi 0, %s89
    %s109 = sphi 0, %s111
    %s112 = sphi 0, %s109
    %s113 = sphi 0, %s112
    %s129 = sphi 0, %s113
  $region4: #{audio_cnn_forward.6} parent=0 // loop_header_branch
    %13 = sbr.rel (%p11) target = $region8
  $region5: #{audio_cnn_forward.6} parent=0 // loop_body
    %s15 = ssub.s32 %s10, 1
    %s16 = ssub.s32 %s10, 2
    %s17 = sadd.s32 %s10, 1
    %s18 = ssub.s32 %s10, %s17
    %p19 = scmp.eq.s32.totalorder %s18, 0
    %s21 = sadd.s32 %s20, 1
    %s22 = scalar_select %p19, %s20, %s21
    %p25 = pneg %p19
    %p26 = scmp.eq.s32.totalorder %s10, 15
    %p27 = por %p25, %p26
    %p28 = scmp.ne.s32.totalorder %s20, %s23
    %p29 = scmp.eq.s32.totalorder %s10, 0
    %p30 = por %p28, %p29
    %p31 = scmp.ne.s32.totalorder %s20, %s23
    %p32 = scmp.eq.s32.totalorder %s15, 15
    %p33 = por %p31, %p32
    %p34 = scmp.ne.s32.totalorder %s23, %s24
    %p35 = scmp.eq.s32.totalorder %s15, 0
    %p36 = por %p34, %p35
    %p37 = scmp.ne.s32.totalorder %s23, %s24
    %p38 = scmp.eq.s32.totalorder %s16, 15
    %p39 = por %p37, %p38
    %p41 = scmp.ne.s32.totalorder %s24, %s40
    %p42 = scmp.eq.s32.totalorder %s16, 0
    %p43 = por %p41, %p42
    %s45 = sadd.s32 %s44, 1
    %p48 = scmp.eq.s32.totalorder %s10, 15
    %p49 = scmp.ne.s32.totalorder %s44, %s46
    %p50 = scmp.eq.s32.totalorder %s10, 0
    %p51 = por %p49, %p50
    %p52 = scmp.ne.s32.totalorder %s44, %s46
    %p53 = scmp.eq.s32.totalorder %s15, 15
    %p54 = por %p52, %p53
    %p55 = scmp.ne.s32.totalorder %s46, %s47
    %p56 = scmp.eq.s32.totalorder %s15, 0
    %p57 = por %p55, %p56
    %p58 = scmp.ne.s32.totalorder %s46, %s47
    %p59 = scmp.eq.s32.totalorder %s16, 15
    %p60 = por %p58, %p59
    %p62 = scmp.ne.s32.totalorder %s47, %s61
    %p63 = scmp.eq.s32.totalorder %s16, 0
    %p64 = por %p62, %p63
    %s66 = sadd.s32 %s65, 1
    %p69 = scmp.eq.s32.totalorder %s10, 15
    %p70 = scmp.ne.s32.totalorder %s65, %s67
    %p71 = scmp.eq.s32.totalorder %s10, 0
    %p72 = por %p70, %p71
    %p73 = scmp.ne.s32.totalorder %s65, %s67
    %p74 = scmp.eq.s32.totalorder %s15, 15
    %p75 = por %p73, %p74
    %p76 = scmp.ne.s32.totalorder %s67, %s68
    %p77 = scmp.eq.s32.totalorder %s15, 0
    %p78 = por %p76, %p77
    %p79 = scmp.ne.s32.totalorder %s67, %s68
    %p80 = scmp.eq.s32.totalorder %s16, 15
    %p81 = por %p79, %p80
    %p83 = scmp.ne.s32.totalorder %s68, %s82
    %p84 = scmp.eq.s32.totalorder %s16, 0
    %p85 = por %p83, %p84
    %s87 = sadd.s32 %s86, 1
    %p90 = scmp.eq.s32.totalorder %s10, 15
    %p91 = scmp.ne.s32.totalorder %s86, %s88
    %p92 = scmp.eq.s32.totalorder %s10, 0
    %p93 = por %p91, %p92
    %p94 = scmp.ne.s32.totalorder %s86, %s88
    %p95 = scmp.eq.s32.totalorder %s15, 15
    %p96 = por %p94, %p95
    %p97 = scmp.ne.s32.totalorder %s88, %s89
    %p98 = scmp.eq.s32.totalorder %s15, 0
    %p99 = por %p97, %p98
    %p100 = scmp.ne.s32.totalorder %s88, %s89
    %p101 = scmp.eq.s32.totalorder %s16, 15
    %p102 = por %p100, %p101
    %p104 = scmp.ne.s32.totalorder %s89, %s103
    %p105 = scmp.eq.s32.totalorder %s16, 0
    %p106 = por %p104, %p105
    %s107 = ssub.s32 %s10, %s17
    %p108 = scmp.eq.s32.totalorder %s107, 0
    %s110 = sadd.s32 %s109, 1
    %s111 = scalar_select %p108, %s109, %s110
    %p114 = pneg %p108
    %p115 = scmp.eq.s32.totalorder %s10, 15
    %p116 = por %p114, %p115
    %p117 = scmp.ne.s32.totalorder %s109, %s112
    %p118 = scmp.eq.s32.totalorder %s10, 0
    %p119 = por %p117, %p118
    %p120 = scmp.ne.s32.totalorder %s109, %s112
    %p121 = scmp.eq.s32.totalorder %s15, 15
    %p122 = por %p120, %p121
    %p123 = scmp.ne.s32.totalorder %s112, %s113
    %p124 = scmp.eq.s32.totalorder %s15, 0
    %p125 = por %p123, %p124
    %p126 = scmp.ne.s32.totalorder %s112, %s113
    %p127 = scmp.eq.s32.totalorder %s16, 15
    %p128 = por %p126, %p127
    %p130 = scmp.ne.s32.totalorder %s113, %s129
    %p131 = scmp.eq.s32.totalorder %s16, 0
    %p132 = por %p130, %p131
    %p133 = scmp.le.s32.totalorder 1, %s10
    %p134 = scmp.lt.s32.totalorder %s10, 17
    %p135 = pnand %p133, %p134
    %p136 = pneg %p135
    // Predicated region
    $region9: #{audio_cnn_forward.6} parent=5 // pred_check
      _
    $region10: #{audio_cnn_forward.6} parent=5 // pred_check_branch
      %138 = sbr.rel (%p135) target = $region12
    $region11: #{audio_cnn_forward.6} parent=5 // pred_region
      %s139 = ssub.s32 %s10, 1
      // Predicated region
      $region13: #{audio_cnn_forward.6} parent=11 // pred_check
        %p140 = pneg %p57
      $region14: #{audio_cnn_forward.6} parent=11 // pred_check_branch
        %142 = sbr.rel (%p140) target = $region16
      $region15: #{audio_cnn_forward.6} parent=11 // pred_region
        _
      $region16: #{audio_cnn_forward.6} parent=11 // pred_fallthru
        _
      // Predicated region
      $region17: #{audio_cnn_forward.6} parent=11 // pred_check
        %p143 = pneg %p78
      $region18: #{audio_cnn_forward.6} parent=11 // pred_check_branch
        %145 = sbr.rel (%p143) target = $region20
      $region19: #{audio_cnn_forward.6} parent=11 // pred_region
        _
      $region20: #{audio_cnn_forward.6} parent=11 // pred_fallthru
        _
      // Predicated region
      $region21: #{audio_cnn_forward.6} parent=11 // pred_check
        %p146 = pneg %p99
      $region22: #{audio_cnn_forward.6} parent=11 // pred_check_branch
        %148 = sbr.rel (%p146) target = $region24
      $region23: #{audio_cnn_forward.6} parent=11 // pred_region
        _
      $region24: #{audio_cnn_forward.6} parent=11 // pred_fallthru
        _
    $region12: #{audio_cnn_forward.6} parent=5 // pred_fallthru
      _
    %p149 = scmp.lt.s32.totalorder %s10, 16
    // Predicated region
    $region25: #{audio_cnn_forward.6} parent=5 // pred_check
      %p150 = pneg %p149
    $region26: #{audio_cnn_forward.6} parent=5 // pred_check_branch
      %152 = sbr.rel (%p150) target = $region28
    $region27: #{audio_cnn_forward.6} parent=5 // pred_region
      // Predicated region
      $region29: #{audio_cnn_forward.6} parent=27 // pred_check
        %p153 = pneg %p30
      $region30: #{audio_cnn_forward.6} parent=27 // pred_check_branch
        %155 = sbr.rel (%p153) target = $region32
      $region31: #{audio_cnn_forward.6} parent=27 // pred_region
        %s156 = smul.u32 64, %s10
        %p157 = scmp.lt.s32.totalorder %s156, 1023
        %s158 = scalar_select %p157, %s156, 1023
        %s159 = smul.addr %s158, 4
        %s160 = scalar_lea.vmem %s0, %s159
        %s161 = smul.u32 64, %s10
      $region32: #{audio_cnn_forward.6} parent=27 // pred_fallthru
        _
    $region28: #{audio_cnn_forward.6} parent=5 // pred_fallthru
      _
    %p162 = scmp.le.s32.totalorder 1, %s10
    %p163 = scmp.lt.s32.totalorder %s10, 17
    %p164 = pnand %p162, %p163
    %p165 = pneg %p164
    // Predicated region
    $region33: #{audio_cnn_forward.6} parent=5 // pred_check
      _
    $region34: #{audio_cnn_forward.6} parent=5 // pred_check_branch
      %167 = sbr.rel (%p164) target = $region36
    $region35: #{audio_cnn_forward.6} parent=5 // pred_region
      %s168 = ssub.s32 %s10, 1
      %s169 = smul.u32 64, %s15
      %p170 = scmp.lt.s32.totalorder %s169, 1023
      %s171 = scalar_select %p170, %s169, 1023
      %s172 = smul.addr %s171, 4
      %s173 = scalar_lea.vmem %s0, %s172
      %p174 = pneg %p36
      %p175 = pneg %p33
      %p176 = pneg %p57
      %p177 = pneg %p54
      %p178 = pneg %p78
      %p179 = pneg %p75
      %p180 = pneg %p99
      %p181 = pneg %p96
      %p182 = pneg %p125
      %p183 = pneg %p122
      %s184 = smul.u32 64, %s15
      %p185 = scmp.lt.s32.totalorder %s184, 1023
      %s186 = scalar_select %p185, %s184, 1023
      %s187 = smul.addr %s186, 4
      %s188 = scalar_lea.vmem %s4, %s187
      %s189 = smul.u32 64, %s15
      %p190 = scmp.lt.s32.totalorder %s189, 1023
      %s191 = scalar_select %p190, %s189, 1023
      %s192 = smul.addr %s191, 4
      %s193 = scalar_lea.vmem %s0, %s192
      %s194 = smul.u32 64, %s15
      %s195 = smul.u32 64, %s15
      %p196 = scmp.lt.s32.totalorder %s195, 1023
      %s197 = scalar_select %p196, %s195, 1023
      %s198 = smul.addr %s197, 4
      %s199 = scalar_lea.vmem %s4, %s198
      %s200 = smul.u32 64, %s15
      %v202 = vld [vmem:[%s193] sm:$0xf]
      %v203 = vld [vmem:[%s193 + $0x4] sm:$0xf]
      %v204 = vld [vmem:[%s193 + $0x8] sm:$0xf]
      %v205 = vld [vmem:[%s193 + $0xc] sm:$0xf]
      %v206 = vld [vmem:[%s193 + $0x10] sm:$0xf]
      %v207 = vld [vmem:[%s193 + $0x14] sm:$0xf]
      %v208 = vld [vmem:[%s193 + $0x18] sm:$0xf]
      %v209 = vld [vmem:[%s193 + $0x1c] sm:$0xf]
      %v210 = vld [vmem:[%s193 + $0x20] sm:$0xf]
      %v211 = vld [vmem:[%s193 + $0x24] sm:$0xf]
      %v212 = vld [vmem:[%s193 + $0x28] sm:$0xf]
      %v213 = vld [vmem:[%s193 + $0x2c] sm:$0xf]
      %v214 = vld [vmem:[%s193 + $0x30] sm:$0xf]
      %v215 = vld [vmem:[%s193 + $0x34] sm:$0xf]
      %v216 = vld [vmem:[%s193 + $0x38] sm:$0xf]
      %v217 = vld [vmem:[%s193 + $0x3c] sm:$0xf]
      %v218 = vld [vmem:[%s193 + $0x40] sm:$0xf]
      %v219 = vld [vmem:[%s193 + $0x44] sm:$0xf]
      %v220 = vld [vmem:[%s193 + $0x48] sm:$0xf]
      %v221 = vld [vmem:[%s193 + $0x4c] sm:$0xf]
      %v222 = vld [vmem:[%s193 + $0x50] sm:$0xf]
      %v223 = vld [vmem:[%s193 + $0x54] sm:$0xf]
      %v224 = vld [vmem:[%s193 + $0x58] sm:$0xf]
      %v225 = vld [vmem:[%s193 + $0x5c] sm:$0xf]
      %v226 = vld [vmem:[%s193 + $0x60] sm:$0xf]
      %v227 = vld [vmem:[%s193 + $0x64] sm:$0xf]
      %v228 = vld [vmem:[%s193 + $0x68] sm:$0xf]
      %v229 = vld [vmem:[%s193 + $0x6c] sm:$0xf]
      %v230 = vld [vmem:[%s193 + $0x70] sm:$0xf]
      %v231 = vld [vmem:[%s193 + $0x74] sm:$0xf]
      %v232 = vld [vmem:[%s193 + $0x78] sm:$0xf]
      %v233 = vld [vmem:[%s193 + $0x7c] sm:$0xf]
      %v234 = vld [vmem:[%s193 + $0x80] sm:$0xf]
      %v235 = vld [vmem:[%s193 + $0x84] sm:$0xf]
      %v236 = vld [vmem:[%s193 + $0x88] sm:$0xf]
      %v237 = vld [vmem:[%s193 + $0x8c] sm:$0xf]
      %v238 = vld [vmem:[%s193 + $0x90] sm:$0xf]
      %v239 = vld [vmem:[%s193 + $0x94] sm:$0xf]
      %v240 = vld [vmem:[%s193 + $0x98] sm:$0xf]
      %v241 = vld [vmem:[%s193 + $0x9c] sm:$0xf]
      %v242 = vld [vmem:[%s193 + $0xa0] sm:$0xf]
      %v243 = vld [vmem:[%s193 + $0xa4] sm:$0xf]
      %v244 = vld [vmem:[%s193 + $0xa8] sm:$0xf]
      %v245 = vld [vmem:[%s193 + $0xac] sm:$0xf]
      %v246 = vld [vmem:[%s193 + $0xb0] sm:$0xf]
      %v247 = vld [vmem:[%s193 + $0xb4] sm:$0xf]
      %v248 = vld [vmem:[%s193 + $0xb8] sm:$0xf]
      %v249 = vld [vmem:[%s193 + $0xbc] sm:$0xf]
      %v250 = vld [vmem:[%s193 + $0xc0] sm:$0xf]
      %v251 = vld [vmem:[%s193 + $0xc4] sm:$0xf]
      %v252 = vld [vmem:[%s193 + $0xc8] sm:$0xf]
      %v253 = vld [vmem:[%s193 + $0xcc] sm:$0xf]
      %v254 = vld [vmem:[%s193 + $0xd0] sm:$0xf]
      %v255 = vld [vmem:[%s193 + $0xd4] sm:$0xf]
      %v256 = vld [vmem:[%s193 + $0xd8] sm:$0xf]
      %v257 = vld [vmem:[%s193 + $0xdc] sm:$0xf]
      %v258 = vld [vmem:[%s193 + $0xe0] sm:$0xf]
      %v259 = vld [vmem:[%s193 + $0xe4] sm:$0xf]
      %v260 = vld [vmem:[%s193 + $0xe8] sm:$0xf]
      %v261 = vld [vmem:[%s193 + $0xec] sm:$0xf]
      %v262 = vld [vmem:[%s193 + $0xf0] sm:$0xf]
      %v263 = vld [vmem:[%s193 + $0xf4] sm:$0xf]
      %v264 = vld [vmem:[%s193 + $0xf8] sm:$0xf]
      %v265 = vld [vmem:[%s193 + $0xfc] sm:$0xf]
      %v266 = vld [vmem:[%s1] sm:$0xf]
      %v267 = vld [vmem:[%s1 + $0x4] sm:$0xf]
      %v268 = vld [vmem:[%s1 + $0x8] sm:$0xf]
      %v269 = vld [vmem:[%s1 + $0xc] sm:$0x1]
      %v334 = vunpack.c.l.b16 %v202
      %v335 = vunpack.c.l.b16 %v203
      %v336 = vunpack.c.l.b16 %v204
      %v337 = vunpack.c.l.b16 %v205
      %v338 = vunpack.c.l.b16 %v206
      %v339 = vunpack.c.l.b16 %v207
      %v340 = vunpack.c.l.b16 %v208
      %v341 = vunpack.c.l.b16 %v209
      %v342 = vunpack.c.l.b16 %v210
      %v343 = vunpack.c.l.b16 %v211
      %v344 = vunpack.c.l.b16 %v212
      %v345 = vunpack.c.l.b16 %v213
      %v346 = vunpack.c.l.b16 %v214
      %v347 = vunpack.c.l.b16 %v215
      %v348 = vunpack.c.l.b16 %v216
      %v349 = vunpack.c.l.b16 %v217
      %v350 = vunpack.c.l.b16 %v218
      %v351 = vunpack.c.l.b16 %v219
      %v352 = vunpack.c.l.b16 %v220
      %v353 = vunpack.c.l.b16 %v221
      %v354 = vunpack.c.l.b16 %v222
      %v355 = vunpack.c.l.b16 %v223
      %v356 = vunpack.c.l.b16 %v224
      %v357 = vunpack.c.l.b16 %v225
      %v358 = vunpack.c.l.b16 %v226
      %v359 = vunpack.c.l.b16 %v227
      %v360 = vunpack.c.l.b16 %v228
      %v361 = vunpack.c.l.b16 %v229
      %v362 = vunpack.c.l.b16 %v230
      %v363 = vunpack.c.l.b16 %v231
      %v364 = vunpack.c.l.b16 %v232
      %v365 = vunpack.c.l.b16 %v233
      %v366 = vunpack.c.l.b16 %v234
      %v367 = vunpack.c.l.b16 %v235
      %v368 = vunpack.c.l.b16 %v236
      %v369 = vunpack.c.l.b16 %v237
      %v370 = vunpack.c.l.b16 %v238
      %v371 = vunpack.c.l.b16 %v239
      %v372 = vunpack.c.l.b16 %v240
      %v373 = vunpack.c.l.b16 %v241
      %v374 = vunpack.c.l.b16 %v242
      %v375 = vunpack.c.l.b16 %v243
      %v376 = vunpack.c.l.b16 %v244
      %v377 = vunpack.c.l.b16 %v245
      %v378 = vunpack.c.l.b16 %v246
      %v379 = vunpack.c.l.b16 %v247
      %v380 = vunpack.c.l.b16 %v248
      %v381 = vunpack.c.l.b16 %v249
      %v382 = vunpack.c.l.b16 %v250
      %v383 = vunpack.c.l.b16 %v251
      %v384 = vunpack.c.l.b16 %v252
      %v385 = vunpack.c.l.b16 %v253
      %v386 = vunpack.c.l.b16 %v254
      %v387 = vunpack.c.l.b16 %v255
      %v388 = vunpack.c.l.b16 %v256
      %v389 = vunpack.c.l.b16 %v257
      %v390 = vunpack.c.l.b16 %v258
      %v391 = vunpack.c.l.b16 %v259
      %v392 = vunpack.c.l.b16 %v260
      %v393 = vunpack.c.l.b16 %v261
      %v394 = vunpack.c.l.b16 %v262
      %v395 = vunpack.c.l.b16 %v263
      %v396 = vunpack.c.l.b16 %v264
      %v397 = vunpack.c.l.b16 %v265
      %v398 = vpack.c.b16 %v335, %v334
      %v399 = vpack.c.b16 %v337, %v336
      %v400 = vpack.c.b16 %v339, %v338
      %v401 = vpack.c.b16 %v341, %v340
      %v402 = vpack.c.b16 %v343, %v342
      %v403 = vpack.c.b16 %v345, %v344
      %v404 = vpack.c.b16 %v347, %v346
      %v405 = vpack.c.b16 %v349, %v348
      %v406 = vpack.c.b16 %v351, %v350
      %v407 = vpack.c.b16 %v353, %v352
      %v408 = vpack.c.b16 %v355, %v354
      %v409 = vpack.c.b16 %v357, %v356
      %v410 = vpack.c.b16 %v359, %v358
      %v411 = vpack.c.b16 %v361, %v360
      %v412 = vpack.c.b16 %v363, %v362
      %v413 = vpack.c.b16 %v365, %v364
      %v414 = vpack.c.b16 %v367, %v366
      %v415 = vpack.c.b16 %v369, %v368
      %v416 = vpack.c.b16 %v371, %v370
      %v417 = vpack.c.b16 %v373, %v372
      %v418 = vpack.c.b16 %v375, %v374
      %v419 = vpack.c.b16 %v377, %v376
      %v420 = vpack.c.b16 %v379, %v378
      %v421 = vpack.c.b16 %v381, %v380
      %v422 = vpack.c.b16 %v383, %v382
      %v423 = vpack.c.b16 %v385, %v384
      %v424 = vpack.c.b16 %v387, %v386
      %v425 = vpack.c.b16 %v389, %v388
      %v426 = vpack.c.b16 %v391, %v390
      %v427 = vpack.c.b16 %v393, %v392
      %v428 = vpack.c.b16 %v395, %v394
      %v429 = vpack.c.b16 %v397, %v396
      %v434 = vunpack.c.l.b16 %v266
      %v435 = vunpack.c.l.b16 %v267
      %v436 = vunpack.c.l.b16 %v268
      %v437 = vunpack.c.l.b16 %v269
      %v438 = vpack.c.b16 %v435, %v434
      %v439 = vpack.c.b16 %v437, %v436
      %vm441 = vcmask 203776
      %v443 = vsel %vm441, %v398, 0
      %v446 = vsel %vm441, %v399, 0
      %v449 = vsel %vm441, %v400, 0
      %v452 = vsel %vm441, %v401, 0
      %v455 = vsel %vm441, %v402, 0
      %v458 = vsel %vm441, %v403, 0
      %v461 = vsel %vm441, %v404, 0
      %v464 = vsel %vm441, %v405, 0
      %v467 = vsel %vm441, %v406, 0
      %v470 = vsel %vm441, %v407, 0
      %v473 = vsel %vm441, %v408, 0
      %v476 = vsel %vm441, %v409, 0
      %v479 = vsel %vm441, %v410, 0
      %v482 = vsel %vm441, %v411, 0
      %v485 = vsel %vm441, %v412, 0
      %v488 = vsel %vm441, %v413, 0
      %v491 = vsel %vm441, %v414, 0
      %v494 = vsel %vm441, %v415, 0
      %v497 = vsel %vm441, %v416, 0
      %v500 = vsel %vm441, %v417, 0
      %v503 = vsel %vm441, %v418, 0
      %v506 = vsel %vm441, %v419, 0
      %v509 = vsel %vm441, %v420, 0
      %v512 = vsel %vm441, %v421, 0
      %v515 = vsel %vm441, %v422, 0
      %v518 = vsel %vm441, %v423, 0
      %v521 = vsel %vm441, %v424, 0
      %v524 = vsel %vm441, %v425, 0
      %v527 = vsel %vm441, %v426, 0
      %v530 = vsel %vm441, %v427, 0
      %v533 = vsel %vm441, %v428, 0
      %v536 = vsel %vm441, %v429, 0
      %vm538 = vcmask 1043456
      %vm539 = vcmask 1044480
      %v540 = vsel %vm538, 4294967295, 65535
      %v541 = vsel %vm539, %v540, 0
      %v543 = vand.u32 %v439, %v541
      %545 = vmatpush.bf16.msra.mxu0 0
      %546 = vmatpush.bf16.msra.mxu0 0
      %547 = vmatpush.bf16.msra.mxu0 0
      %548 = vmatpush.bf16.msra.mxu0 0
      %549 = vmatpush.bf16.msra.mxu0 0
      %550 = vmatpush.bf16.msra.mxu0 0
      %551 = vmatpush.bf16.msra.mxu0 %v543
      %552 = vmatpush.bf16.msra.mxu0 %v438
      %553 = vmatmul.bf16.gmra.mxu0 %v443
      %v554 = vpop.f32.mrf.mxu0
      %v555 = vadd.f32 0.0, %v554
      %v556 = vpop.f32.mrf.mxu0
      %v557 = vadd.f32 0.0, %v556
      %558 = vmatmul.bf16.gmra.mxu0 %v446
      %v559 = vpop.f32.mrf.mxu0
      %v560 = vadd.f32 0.0, %v559
      %v561 = vpop.f32.mrf.mxu0
      %v562 = vadd.f32 0.0, %v561
      %563 = vmatmul.bf16.gmra.mxu0 %v449
      %v564 = vpop.f32.mrf.mxu0
      %v565 = vadd.f32 0.0, %v564
      %v566 = vpop.f32.mrf.mxu0
      %v567 = vadd.f32 0.0, %v566
      %568 = vmatmul.bf16.gmra.mxu0 %v452
      %v569 = vpop.f32.mrf.mxu0
      %v570 = vadd.f32 0.0, %v569
      %v571 = vpop.f32.mrf.mxu0
      %v572 = vadd.f32 0.0, %v571
      %573 = vmatmul.bf16.gmra.mxu0 %v455
      %v574 = vpop.f32.mrf.mxu0
      %v575 = vadd.f32 0.0, %v574
      %v576 = vpop.f32.mrf.mxu0
      %v577 = vadd.f32 0.0, %v576
      %578 = vmatmul.bf16.gmra.mxu0 %v458
      %v579 = vpop.f32.mrf.mxu0
      %v580 = vadd.f32 0.0, %v579
      %v581 = vpop.f32.mrf.mxu0
      %v582 = vadd.f32 0.0, %v581
      %583 = vmatmul.bf16.gmra.mxu0 %v461
      %v584 = vpop.f32.mrf.mxu0
      %v585 = vadd.f32 0.0, %v584
      %v586 = vpop.f32.mrf.mxu0
      %v587 = vadd.f32 0.0, %v586
      %588 = vmatmul.bf16.gmra.mxu0 %v464
      %v589 = vpop.f32.mrf.mxu0
      %v590 = vadd.f32 0.0, %v589
      %v591 = vpop.f32.mrf.mxu0
      %v592 = vadd.f32 0.0, %v591
      %593 = vmatmul.bf16.gmra.mxu0 %v467
      %v594 = vpop.f32.mrf.mxu0
      %v595 = vadd.f32 0.0, %v594
      %v596 = vpop.f32.mrf.mxu0
      %v597 = vadd.f32 0.0, %v596
      %598 = vmatmul.bf16.gmra.mxu0 %v470
      %v599 = vpop.f32.mrf.mxu0
      %v600 = vadd.f32 0.0, %v599
      %v601 = vpop.f32.mrf.mxu0
      %v602 = vadd.f32 0.0, %v601
      %603 = vmatmul.bf16.gmra.mxu0 %v473
      %v604 = vpop.f32.mrf.mxu0
      %v605 = vadd.f32 0.0, %v604
      %v606 = vpop.f32.mrf.mxu0
      %v607 = vadd.f32 0.0, %v606
      %608 = vmatmul.bf16.gmra.mxu0 %v476
      %v609 = vpop.f32.mrf.mxu0
      %v610 = vadd.f32 0.0, %v609
      %v611 = vpop.f32.mrf.mxu0
      %v612 = vadd.f32 0.0, %v611
      %613 = vmatmul.bf16.gmra.mxu0 %v479
      %v614 = vpop.f32.mrf.mxu0
      %v615 = vadd.f32 0.0, %v614
      %v616 = vpop.f32.mrf.mxu0
      %v617 = vadd.f32 0.0, %v616
      %618 = vmatmul.bf16.gmra.mxu0 %v482
      %v619 = vpop.f32.mrf.mxu0
      %v620 = vadd.f32 0.0, %v619
      %v621 = vpop.f32.mrf.mxu0
      %v622 = vadd.f32 0.0, %v621
      %623 = vmatmul.bf16.gmra.mxu0 %v485
      %v624 = vpop.f32.mrf.mxu0
      %v625 = vadd.f32 0.0, %v624
      %v626 = vpop.f32.mrf.mxu0
      %v627 = vadd.f32 0.0, %v626
      %628 = vmatmul.bf16.gmra.mxu0 %v488
      %v629 = vpop.f32.mrf.mxu0
      %v630 = vadd.f32 0.0, %v629
      %v631 = vpop.f32.mrf.mxu0
      %v632 = vadd.f32 0.0, %v631
      %633 = vmatmul.bf16.gmra.mxu0 %v491
      %v634 = vpop.f32.mrf.mxu0
      %v635 = vadd.f32 0.0, %v634
      %v636 = vpop.f32.mrf.mxu0
      %v637 = vadd.f32 0.0, %v636
      %638 = vmatmul.bf16.gmra.mxu0 %v494
      %v639 = vpop.f32.mrf.mxu0
      %v640 = vadd.f32 0.0, %v639
      %v641 = vpop.f32.mrf.mxu0
      %v642 = vadd.f32 0.0, %v641
      %643 = vmatmul.bf16.gmra.mxu0 %v497
      %v644 = vpop.f32.mrf.mxu0
      %v645 = vadd.f32 0.0, %v644
      %v646 = vpop.f32.mrf.mxu0
      %v647 = vadd.f32 0.0, %v646
      %648 = vmatmul.bf16.gmra.mxu0 %v500
      %v649 = vpop.f32.mrf.mxu0
      %v650 = vadd.f32 0.0, %v649
      %v651 = vpop.f32.mrf.mxu0
      %v652 = vadd.f32 0.0, %v651
      %653 = vmatmul.bf16.gmra.mxu0 %v503
      %v654 = vpop.f32.mrf.mxu0
      %v655 = vadd.f32 0.0, %v654
      %v656 = vpop.f32.mrf.mxu0
      %v657 = vadd.f32 0.0, %v656
      %658 = vmatmul.bf16.gmra.mxu0 %v506
      %v659 = vpop.f32.mrf.mxu0
      %v660 = vadd.f32 0.0, %v659
      %v661 = vpop.f32.mrf.mxu0
      %v662 = vadd.f32 0.0, %v661
      %663 = vmatmul.bf16.gmra.mxu0 %v509
      %v664 = vpop.f32.mrf.mxu0
      %v665 = vadd.f32 0.0, %v664
      %v666 = vpop.f32.mrf.mxu0
      %v667 = vadd.f32 0.0, %v666
      %668 = vmatmul.bf16.gmra.mxu0 %v512
      %v669 = vpop.f32.mrf.mxu0
      %v670 = vadd.f32 0.0, %v669
      %v671 = vpop.f32.mrf.mxu0
      %v672 = vadd.f32 0.0, %v671
      %673 = vmatmul.bf16.gmra.mxu0 %v515
      %v674 = vpop.f32.mrf.mxu0
      %v675 = vadd.f32 0.0, %v674
      %v676 = vpop.f32.mrf.mxu0
      %v677 = vadd.f32 0.0, %v676
      %678 = vmatmul.bf16.gmra.mxu0 %v518
      %v679 = vpop.f32.mrf.mxu0
      %v680 = vadd.f32 0.0, %v679
      %v681 = vpop.f32.mrf.mxu0
      %v682 = vadd.f32 0.0, %v681
      %683 = vmatmul.bf16.gmra.mxu0 %v521
      %v684 = vpop.f32.mrf.mxu0
      %v685 = vadd.f32 0.0, %v684
      %v686 = vpop.f32.mrf.mxu0
      %v687 = vadd.f32 0.0, %v686
      %688 = vmatmul.bf16.gmra.mxu0 %v524
      %v689 = vpop.f32.mrf.mxu0
      %v690 = vadd.f32 0.0, %v689
      %v691 = vpop.f32.mrf.mxu0
      %v692 = vadd.f32 0.0, %v691
      %693 = vmatmul.bf16.gmra.mxu0 %v527
      %v694 = vpop.f32.mrf.mxu0
      %v695 = vadd.f32 0.0, %v694
      %v696 = vpop.f32.mrf.mxu0
      %v697 = vadd.f32 0.0, %v696
      %698 = vmatmul.bf16.gmra.mxu0 %v530
      %v699 = vpop.f32.mrf.mxu0
      %v700 = vadd.f32 0.0, %v699
      %v701 = vpop.f32.mrf.mxu0
      %v702 = vadd.f32 0.0, %v701
      %703 = vmatmul.bf16.gmra.mxu0 %v533
      %v704 = vpop.f32.mrf.mxu0
      %v705 = vadd.f32 0.0, %v704
      %v706 = vpop.f32.mrf.mxu0
      %v707 = vadd.f32 0.0, %v706
      %708 = vmatmul.bf16.gmra.mxu0 %v536
      %v709 = vpop.f32.mrf.mxu0
      %v710 = vadd.f32 0.0, %v709
      %v711 = vpop.f32.mrf.mxu0
      %v712 = vadd.f32 0.0, %v711
      %713 = vdwg.mxu0
      %v714 = vld [vmem:[%s2] sm:$0x1]
      %v716 = vperm.slane %v714, 0
      %v718 = vmul.f32 %v555, %v716
      %v719 = vmul.f32 %v557, %v716
      %v720 = vmul.f32 %v560, %v716
      %v721 = vmul.f32 %v562, %v716
      %v722 = vmul.f32 %v565, %v716
      %v723 = vmul.f32 %v567, %v716
      %v724 = vmul.f32 %v570, %v716
      %v725 = vmul.f32 %v572, %v716
      %v726 = vmul.f32 %v575, %v716
      %v727 = vmul.f32 %v577, %v716
      %v728 = vmul.f32 %v580, %v716
      %v729 = vmul.f32 %v582, %v716
      %v730 = vmul.f32 %v585, %v716
      %v731 = vmul.f32 %v587, %v716
      %v732 = vmul.f32 %v590, %v716
      %v733 = vmul.f32 %v592, %v716
      %v734 = vmul.f32 %v595, %v716
      %v735 = vmul.f32 %v597, %v716
      %v736 = vmul.f32 %v600, %v716
      %v737 = vmul.f32 %v602, %v716
      %v738 = vmul.f32 %v605, %v716
      %v739 = vmul.f32 %v607, %v716
      %v740 = vmul.f32 %v610, %v716
      %v741 = vmul.f32 %v612, %v716
      %v742 = vmul.f32 %v615, %v716
      %v743 = vmul.f32 %v617, %v716
      %v744 = vmul.f32 %v620, %v716
      %v745 = vmul.f32 %v622, %v716
      %v746 = vmul.f32 %v625, %v716
      %v747 = vmul.f32 %v627, %v716
      %v748 = vmul.f32 %v630, %v716
      %v749 = vmul.f32 %v632, %v716
      %v750 = vmul.f32 %v635, %v716
      %v751 = vmul.f32 %v637, %v716
      %v752 = vmul.f32 %v640, %v716
      %v753 = vmul.f32 %v642, %v716
      %v754 = vmul.f32 %v645, %v716
      %v755 = vmul.f32 %v647, %v716
      %v756 = vmul.f32 %v650, %v716
      %v757 = vmul.f32 %v652, %v716
      %v758 = vmul.f32 %v655, %v716
      %v759 = vmul.f32 %v657, %v716
      %v760 = vmul.f32 %v660, %v716
      %v761 = vmul.f32 %v662, %v716
      %v762 = vmul.f32 %v665, %v716
      %v763 = vmul.f32 %v667, %v716
      %v764 = vmul.f32 %v670, %v716
      %v765 = vmul.f32 %v672, %v716
      %v766 = vmul.f32 %v675, %v716
      %v767 = vmul.f32 %v677, %v716
      %v768 = vmul.f32 %v680, %v716
      %v769 = vmul.f32 %v682, %v716
      %v770 = vmul.f32 %v685, %v716
      %v771 = vmul.f32 %v687, %v716
      %v772 = vmul.f32 %v690, %v716
      %v773 = vmul.f32 %v692, %v716
      %v774 = vmul.f32 %v695, %v716
      %v775 = vmul.f32 %v697, %v716
      %v776 = vmul.f32 %v700, %v716
      %v777 = vmul.f32 %v702, %v716
      %v778 = vmul.f32 %v705, %v716
      %v779 = vmul.f32 %v707, %v716
      %v780 = vmul.f32 %v710, %v716
      %v781 = vmul.f32 %v712, %v716
      %v782 = vld [vmem:[%s3] sm:$0x1]
      %v784 = vperm.slane %v782, 0
      %v786 = vadd.f32 %v718, %v784
      %v787 = vadd.f32 %v719, %v784
      %v788 = vadd.f32 %v720, %v784
      %v789 = vadd.f32 %v721, %v784
      %v790 = vadd.f32 %v722, %v784
      %v791 = vadd.f32 %v723, %v784
      %v792 = vadd.f32 %v724, %v784
      %v793 = vadd.f32 %v725, %v784
      %v794 = vadd.f32 %v726, %v784
      %v795 = vadd.f32 %v727, %v784
      %v796 = vadd.f32 %v728, %v784
      %v797 = vadd.f32 %v729, %v784
      %v798 = vadd.f32 %v730, %v784
      %v799 = vadd.f32 %v731, %v784
      %v800 = vadd.f32 %v732, %v784
      %v801 = vadd.f32 %v733, %v784
      %v802 = vadd.f32 %v734, %v784
      %v803 = vadd.f32 %v735, %v784
      %v804 = vadd.f32 %v736, %v784
      %v805 = vadd.f32 %v737, %v784
      %v806 = vadd.f32 %v738, %v784
      %v807 = vadd.f32 %v739, %v784
      %v808 = vadd.f32 %v740, %v784
      %v809 = vadd.f32 %v741, %v784
      %v810 = vadd.f32 %v742, %v784
      %v811 = vadd.f32 %v743, %v784
      %v812 = vadd.f32 %v744, %v784
      %v813 = vadd.f32 %v745, %v784
      %v814 = vadd.f32 %v746, %v784
      %v815 = vadd.f32 %v747, %v784
      %v816 = vadd.f32 %v748, %v784
      %v817 = vadd.f32 %v749, %v784
      %v818 = vadd.f32 %v750, %v784
      %v819 = vadd.f32 %v751, %v784
      %v820 = vadd.f32 %v752, %v784
      %v821 = vadd.f32 %v753, %v784
      %v822 = vadd.f32 %v754, %v784
      %v823 = vadd.f32 %v755, %v784
      %v824 = vadd.f32 %v756, %v784
      %v825 = vadd.f32 %v757, %v784
      %v826 = vadd.f32 %v758, %v784
      %v827 = vadd.f32 %v759, %v784
      %v828 = vadd.f32 %v760, %v784
      %v829 = vadd.f32 %v761, %v784
      %v830 = vadd.f32 %v762, %v784
      %v831 = vadd.f32 %v763, %v784
      %v832 = vadd.f32 %v764, %v784
      %v833 = vadd.f32 %v765, %v784
      %v834 = vadd.f32 %v766, %v784
      %v835 = vadd.f32 %v767, %v784
      %v836 = vadd.f32 %v768, %v784
      %v837 = vadd.f32 %v769, %v784
      %v838 = vadd.f32 %v770, %v784
      %v839 = vadd.f32 %v771, %v784
      %v840 = vadd.f32 %v772, %v784
      %v841 = vadd.f32 %v773, %v784
      %v842 = vadd.f32 %v774, %v784
      %v843 = vadd.f32 %v775, %v784
      %v844 = vadd.f32 %v776, %v784
      %v845 = vadd.f32 %v777, %v784
      %v846 = vadd.f32 %v778, %v784
      %v847 = vadd.f32 %v779, %v784
      %v848 = vadd.f32 %v780, %v784
      %v849 = vadd.f32 %v781, %v784
      %v850 = vpack.c.bf16 %v786, %v786
      %v851 = vpack.c.bf16 %v787, %v787
      %v852 = vpack.c.bf16 %v788, %v788
      %v853 = vpack.c.bf16 %v789, %v789
      %v854 = vpack.c.bf16 %v790, %v790
      %v855 = vpack.c.bf16 %v791, %v791
      %v856 = vpack.c.bf16 %v792, %v792
      %v857 = vpack.c.bf16 %v793, %v793
      %v858 = vpack.c.bf16 %v794, %v794
      %v859 = vpack.c.bf16 %v795, %v795
      %v860 = vpack.c.bf16 %v796, %v796
      %v861 = vpack.c.bf16 %v797, %v797
      %v862 = vpack.c.bf16 %v798, %v798
      %v863 = vpack.c.bf16 %v799, %v799
      %v864 = vpack.c.bf16 %v800, %v800
      %v865 = vpack.c.bf16 %v801, %v801
      %v866 = vpack.c.bf16 %v802, %v802
      %v867 = vpack.c.bf16 %v803, %v803
      %v868 = vpack.c.bf16 %v804, %v804
      %v869 = vpack.c.bf16 %v805, %v805
      %v870 = vpack.c.bf16 %v806, %v806
      %v871 = vpack.c.bf16 %v807, %v807
      %v872 = vpack.c.bf16 %v808, %v808
      %v873 = vpack.c.bf16 %v809, %v809
      %v874 = vpack.c.bf16 %v810, %v810
      %v875 = vpack.c.bf16 %v811, %v811
      %v876 = vpack.c.bf16 %v812, %v812
      %v877 = vpack.c.bf16 %v813, %v813
      %v878 = vpack.c.bf16 %v814, %v814
      %v879 = vpack.c.bf16 %v815, %v815
      %v880 = vpack.c.bf16 %v816, %v816
      %v881 = vpack.c.bf16 %v817, %v817
      %v882 = vpack.c.bf16 %v818, %v818
      %v883 = vpack.c.bf16 %v819, %v819
      %v884 = vpack.c.bf16 %v820, %v820
      %v885 = vpack.c.bf16 %v821, %v821
      %v886 = vpack.c.bf16 %v822, %v822
      %v887 = vpack.c.bf16 %v823, %v823
      %v888 = vpack.c.bf16 %v824, %v824
      %v889 = vpack.c.bf16 %v825, %v825
      %v890 = vpack.c.bf16 %v826, %v826
      %v891 = vpack.c.bf16 %v827, %v827
      %v892 = vpack.c.bf16 %v828, %v828
      %v893 = vpack.c.bf16 %v829, %v829
      %v894 = vpack.c.bf16 %v830, %v830
      %v895 = vpack.c.bf16 %v831, %v831
      %v896 = vpack.c.bf16 %v832, %v832
      %v897 = vpack.c.bf16 %v833, %v833
      %v898 = vpack.c.bf16 %v834, %v834
      %v899 = vpack.c.bf16 %v835, %v835
      %v900 = vpack.c.bf16 %v836, %v836
      %v901 = vpack.c.bf16 %v837, %v837
      %v902 = vpack.c.bf16 %v838, %v838
      %v903 = vpack.c.bf16 %v839, %v839
      %v904 = vpack.c.bf16 %v840, %v840
      %v905 = vpack.c.bf16 %v841, %v841
      %v906 = vpack.c.bf16 %v842, %v842
      %v907 = vpack.c.bf16 %v843, %v843
      %v908 = vpack.c.bf16 %v844, %v844
      %v909 = vpack.c.bf16 %v845, %v845
      %v910 = vpack.c.bf16 %v846, %v846
      %v911 = vpack.c.bf16 %v847, %v847
      %v912 = vpack.c.bf16 %v848, %v848
      %v913 = vpack.c.bf16 %v849, %v849
      %vm914 = vcmask 60416
      %915 = vst.msk [vmem:[%s199] sm:$0xf] %vm914, %v850
      %916 = vst.msk [vmem:[%s199 + $0x4] sm:$0xf] %vm914, %v851
      %917 = vst.msk [vmem:[%s199 + $0x8] sm:$0xf] %vm914, %v852
      %918 = vst.msk [vmem:[%s199 + $0xc] sm:$0xf] %vm914, %v853
      %919 = vst.msk [vmem:[%s199 + $0x10] sm:$0xf] %vm914, %v854
      %920 = vst.msk [vmem:[%s199 + $0x14] sm:$0xf] %vm914, %v855
      %921 = vst.msk [vmem:[%s199 + $0x18] sm:$0xf] %vm914, %v856
      %922 = vst.msk [vmem:[%s199 + $0x1c] sm:$0xf] %vm914, %v857
      %923 = vst.msk [vmem:[%s199 + $0x20] sm:$0xf] %vm914, %v858
      %924 = vst.msk [vmem:[%s199 + $0x24] sm:$0xf] %vm914, %v859
      %925 = vst.msk [vmem:[%s199 + $0x28] sm:$0xf] %vm914, %v860
      %926 = vst.msk [vmem:[%s199 + $0x2c] sm:$0xf] %vm914, %v861
      %927 = vst.msk [vmem:[%s199 + $0x30] sm:$0xf] %vm914, %v862
      %928 = vst.msk [vmem:[%s199 + $0x34] sm:$0xf] %vm914, %v863
      %929 = vst.msk [vmem:[%s199 + $0x38] sm:$0xf] %vm914, %v864
      %930 = vst.msk [vmem:[%s199 + $0x3c] sm:$0xf] %vm914, %v865
      %931 = vst.msk [vmem:[%s199 + $0x40] sm:$0xf] %vm914, %v866
      %932 = vst.msk [vmem:[%s199 + $0x44] sm:$0xf] %vm914, %v867
      %933 = vst.msk [vmem:[%s199 + $0x48] sm:$0xf] %vm914, %v868
      %934 = vst.msk [vmem:[%s199 + $0x4c] sm:$0xf] %vm914, %v869
      %935 = vst.msk [vmem:[%s199 + $0x50] sm:$0xf] %vm914, %v870
      %936 = vst.msk [vmem:[%s199 + $0x54] sm:$0xf] %vm914, %v871
      %937 = vst.msk [vmem:[%s199 + $0x58] sm:$0xf] %vm914, %v872
      %938 = vst.msk [vmem:[%s199 + $0x5c] sm:$0xf] %vm914, %v873
      %939 = vst.msk [vmem:[%s199 + $0x60] sm:$0xf] %vm914, %v874
      %940 = vst.msk [vmem:[%s199 + $0x64] sm:$0xf] %vm914, %v875
      %941 = vst.msk [vmem:[%s199 + $0x68] sm:$0xf] %vm914, %v876
      %942 = vst.msk [vmem:[%s199 + $0x6c] sm:$0xf] %vm914, %v877
      %943 = vst.msk [vmem:[%s199 + $0x70] sm:$0xf] %vm914, %v878
      %944 = vst.msk [vmem:[%s199 + $0x74] sm:$0xf] %vm914, %v879
      %945 = vst.msk [vmem:[%s199 + $0x78] sm:$0xf] %vm914, %v880
      %946 = vst.msk [vmem:[%s199 + $0x7c] sm:$0xf] %vm914, %v881
      %947 = vst.msk [vmem:[%s199 + $0x80] sm:$0xf] %vm914, %v882
      %948 = vst.msk [vmem:[%s199 + $0x84] sm:$0xf] %vm914, %v883
      %949 = vst.msk [vmem:[%s199 + $0x88] sm:$0xf] %vm914, %v884
      %950 = vst.msk [vmem:[%s199 + $0x8c] sm:$0xf] %vm914, %v885
      %951 = vst.msk [vmem:[%s199 + $0x90] sm:$0xf] %vm914, %v886
      %952 = vst.msk [vmem:[%s199 + $0x94] sm:$0xf] %vm914, %v887
      %953 = vst.msk [vmem:[%s199 + $0x98] sm:$0xf] %vm914, %v888
      %954 = vst.msk [vmem:[%s199 + $0x9c] sm:$0xf] %vm914, %v889
      %955 = vst.msk [vmem:[%s199 + $0xa0] sm:$0xf] %vm914, %v890
      %956 = vst.msk [vmem:[%s199 + $0xa4] sm:$0xf] %vm914, %v891
      %957 = vst.msk [vmem:[%s199 + $0xa8] sm:$0xf] %vm914, %v892
      %958 = vst.msk [vmem:[%s199 + $0xac] sm:$0xf] %vm914, %v893
      %959 = vst.msk [vmem:[%s199 + $0xb0] sm:$0xf] %vm914, %v894
      %960 = vst.msk [vmem:[%s199 + $0xb4] sm:$0xf] %vm914, %v895
      %961 = vst.msk [vmem:[%s199 + $0xb8] sm:$0xf] %vm914, %v896
      %962 = vst.msk [vmem:[%s199 + $0xbc] sm:$0xf] %vm914, %v897
      %963 = vst.msk [vmem:[%s199 + $0xc0] sm:$0xf] %vm914, %v898
      %964 = vst.msk [vmem:[%s199 + $0xc4] sm:$0xf] %vm914, %v899
      %965 = vst.msk [vmem:[%s199 + $0xc8] sm:$0xf] %vm914, %v900
      %966 = vst.msk [vmem:[%s199 + $0xcc] sm:$0xf] %vm914, %v901
      %967 = vst.msk [vmem:[%s199 + $0xd0] sm:$0xf] %vm914, %v902
      %968 = vst.msk [vmem:[%s199 + $0xd4] sm:$0xf] %vm914, %v903
      %969 = vst.msk [vmem:[%s199 + $0xd8] sm:$0xf] %vm914, %v904
      %970 = vst.msk [vmem:[%s199 + $0xdc] sm:$0xf] %vm914, %v905
      %971 = vst.msk [vmem:[%s199 + $0xe0] sm:$0xf] %vm914, %v906
      %972 = vst.msk [vmem:[%s199 + $0xe4] sm:$0xf] %vm914, %v907
      %973 = vst.msk [vmem:[%s199 + $0xe8] sm:$0xf] %vm914, %v908
      %974 = vst.msk [vmem:[%s199 + $0xec] sm:$0xf] %vm914, %v909
      %975 = vst.msk [vmem:[%s199 + $0xf0] sm:$0xf] %vm914, %v910
      %976 = vst.msk [vmem:[%s199 + $0xf4] sm:$0xf] %vm914, %v911
      %977 = vst.msk [vmem:[%s199 + $0xf8] sm:$0xf] %vm914, %v912
      %978 = vst.msk [vmem:[%s199 + $0xfc] sm:$0xf] %vm914, %v913
      %s979 = smul.u32 64, %s15
      %p980 = scmp.lt.s32.totalorder %s979, 1023
      %s981 = scalar_select %p980, %s979, 1023
      %s982 = smul.addr %s981, 4
      %s983 = scalar_lea.vmem %s4, %s982
      // Predicated region
      $region37: #{audio_cnn_forward.6} parent=35 // pred_check
        %p984 = pneg %p122
      $region38: #{audio_cnn_forward.6} parent=35 // pred_check_branch
        %986 = sbr.rel (%p984) target = $region40
      $region39: #{audio_cnn_forward.6} parent=35 // pred_region
        %s987 = smul.u32 64, %s15
      $region40: #{audio_cnn_forward.6} parent=35 // pred_fallthru
        _
    $region36: #{audio_cnn_forward.6} parent=5 // pred_fallthru
      _
    %p988 = scmp.le.s32.totalorder 2, %s10
    // Predicated region
    $region41: #{audio_cnn_forward.6} parent=5 // pred_check
      %p989 = pneg %p988
    $region42: #{audio_cnn_forward.6} parent=5 // pred_check_branch
      %991 = sbr.rel (%p989) target = $region44
    $region43: #{audio_cnn_forward.6} parent=5 // pred_region
      %s992 = ssub.s32 %s10, 2
      // Predicated region
      $region45: #{audio_cnn_forward.6} parent=43 // pred_check
        %p993 = pneg %p128
      $region46: #{audio_cnn_forward.6} parent=43 // pred_check_branch
        %995 = sbr.rel (%p993) target = $region48
      $region47: #{audio_cnn_forward.6} parent=43 // pred_region
        %s996 = smul.u32 64, %s16
        %p997 = scmp.lt.s32.totalorder %s996, 1023
        %s998 = scalar_select %p997, %s996, 1023
        %s999 = smul.addr %s998, 4
        %s1000 = scalar_lea.vmem %s4, %s999
      $region48: #{audio_cnn_forward.6} parent=43 // pred_fallthru
        _
    $region44: #{audio_cnn_forward.6} parent=5 // pred_fallthru
      _
  $region6: #{audio_cnn_forward.6} parent=0 // loop_footer
    %s14 = sadd.s32 1, %s10
  $region7: #{audio_cnn_forward.6} parent=0 // loop_footer_branch
    %9 = sbr.rel target = $region3
  $region8: #{audio_cnn_forward.6} parent=0 // loop_exit
    _

// kernel: audio_cnn_forward.7
$region0: #{audio_cnn_forward.7}
  #allocation0 [shape = 'u32[]', space=smem, size = 0x4, offset = 0x4, fixed_abs, tag = 'smem constant byte address 0x4 - core index']
  #allocation1 [shape = 'u32[72,128]{1,0:T(1,128)}', space=vmem, size = 0x9000, scoped, tag = 'internal scratch']
  %s0 = inlined_call_operand.vmem [shape: bf16[2048,200], index: 0, kind: input, shape index: {}]
  %s1 = inlined_call_operand.vmem [shape: bf16[200,32], index: 1, kind: input, shape index: {}]
  %s2 = inlined_call_operand.vmem [shape: f32[1,32], index: 2, kind: input, shape index: {}]
  %s3 = inlined_call_operand.vmem [shape: f32[1,32], index: 3, kind: input, shape index: {}]
  %s4 = inlined_call_operand.vmem [shape: bf16[2048,32], index: 4, kind: output, shape index: {}]
  %s5 = sld [smem:[#allocation0]]
  $region49: #{audio_cnn_forward.7} parent=0
    _
  %s7 = ssub.s32 1, %s5
  %s8 = scalar_select 0, %s7, %s5
  loop: start=0, step=1, limit=6
  $region2: #{audio_cnn_forward.7} parent=0 // loop_pre_header
    _
  $region3: #{audio_cnn_forward.7} parent=0 // loop_header
    %s10 = sphi 0, %s14
    %p11 = scmp.ge.s32.totalorder %s10, 6
    %s20 = sphi 0, %s22
    %s23 = sphi 0, %s20
    %s24 = sphi 0, %s23
    %s40 = sphi 0, %s24
    %s44 = sphi 0, %s44
    %s46 = sphi 0, %s44
    %s47 = sphi 0, %s46
    %s61 = sphi 0, %s47
    %s65 = sphi 0, %s65
    %s67 = sphi 0, %s65
    %s68 = sphi 0, %s67
    %s82 = sphi 0, %s68
    %s86 = sphi 0, %s86
    %s88 = sphi 0, %s86
    %s89 = sphi 0, %s88
    %s103 = sphi 0, %s89
    %s109 = sphi 0, %s111
    %s112 = sphi 0, %s109
    %s113 = sphi 0, %s112
    %s129 = sphi 0, %s113
  $region4: #{audio_cnn_forward.7} parent=0 // loop_header_branch
    %13 = sbr.rel (%p11) target = $region8
  $region5: #{audio_cnn_forward.7} parent=0 // loop_body
    %s15 = ssub.s32 %s10, 1
    %s16 = ssub.s32 %s10, 2
    %s17 = sadd.s32 %s10, 1
    %s18 = ssub.s32 %s10, %s17
    %p19 = scmp.eq.s32.totalorder %s18, 0
    %s21 = sadd.s32 %s20, 1
    %s22 = scalar_select %p19, %s20, %s21
    %p25 = pneg %p19
    %p26 = scmp.eq.s32.totalorder %s10, 3
    %p27 = por %p25, %p26
    %p28 = scmp.ne.s32.totalorder %s20, %s23
    %p29 = scmp.eq.s32.totalorder %s10, 0
    %p30 = por %p28, %p29
    %p31 = scmp.ne.s32.totalorder %s20, %s23
    %p32 = scmp.eq.s32.totalorder %s15, 3
    %p33 = por %p31, %p32
    %p34 = scmp.ne.s32.totalorder %s23, %s24
    %p35 = scmp.eq.s32.totalorder %s15, 0
    %p36 = por %p34, %p35
    %p37 = scmp.ne.s32.totalorder %s23, %s24
    %p38 = scmp.eq.s32.totalorder %s16, 3
    %p39 = por %p37, %p38
    %p41 = scmp.ne.s32.totalorder %s24, %s40
    %p42 = scmp.eq.s32.totalorder %s16, 0
    %p43 = por %p41, %p42
    %s45 = sadd.s32 %s44, 1
    %p48 = scmp.eq.s32.totalorder %s10, 3
    %p49 = scmp.ne.s32.totalorder %s44, %s46
    %p50 = scmp.eq.s32.totalorder %s10, 0
    %p51 = por %p49, %p50
    %p52 = scmp.ne.s32.totalorder %s44, %s46
    %p53 = scmp.eq.s32.totalorder %s15, 3
    %p54 = por %p52, %p53
    %p55 = scmp.ne.s32.totalorder %s46, %s47
    %p56 = scmp.eq.s32.totalorder %s15, 0
    %p57 = por %p55, %p56
    %p58 = scmp.ne.s32.totalorder %s46, %s47
    %p59 = scmp.eq.s32.totalorder %s16, 3
    %p60 = por %p58, %p59
    %p62 = scmp.ne.s32.totalorder %s47, %s61
    %p63 = scmp.eq.s32.totalorder %s16, 0
    %p64 = por %p62, %p63
    %s66 = sadd.s32 %s65, 1
    %p69 = scmp.eq.s32.totalorder %s10, 3
    %p70 = scmp.ne.s32.totalorder %s65, %s67
    %p71 = scmp.eq.s32.totalorder %s10, 0
    %p72 = por %p70, %p71
    %p73 = scmp.ne.s32.totalorder %s65, %s67
    %p74 = scmp.eq.s32.totalorder %s15, 3
    %p75 = por %p73, %p74
    %p76 = scmp.ne.s32.totalorder %s67, %s68
    %p77 = scmp.eq.s32.totalorder %s15, 0
    %p78 = por %p76, %p77
    %p79 = scmp.ne.s32.totalorder %s67, %s68
    %p80 = scmp.eq.s32.totalorder %s16, 3
    %p81 = por %p79, %p80
    %p83 = scmp.ne.s32.totalorder %s68, %s82
    %p84 = scmp.eq.s32.totalorder %s16, 0
    %p85 = por %p83, %p84
    %s87 = sadd.s32 %s86, 1
    %p90 = scmp.eq.s32.totalorder %s10, 3
    %p91 = scmp.ne.s32.totalorder %s86, %s88
    %p92 = scmp.eq.s32.totalorder %s10, 0
    %p93 = por %p91, %p92
    %p94 = scmp.ne.s32.totalorder %s86, %s88
    %p95 = scmp.eq.s32.totalorder %s15, 3
    %p96 = por %p94, %p95
    %p97 = scmp.ne.s32.totalorder %s88, %s89
    %p98 = scmp.eq.s32.totalorder %s15, 0
    %p99 = por %p97, %p98
    %p100 = scmp.ne.s32.totalorder %s88, %s89
    %p101 = scmp.eq.s32.totalorder %s16, 3
    %p102 = por %p100, %p101
    %p104 = scmp.ne.s32.totalorder %s89, %s103
    %p105 = scmp.eq.s32.totalorder %s16, 0
    %p106 = por %p104, %p105
    %s107 = ssub.s32 %s10, %s17
    %p108 = scmp.eq.s32.totalorder %s107, 0
    %s110 = sadd.s32 %s109, 1
    %s111 = scalar_select %p108, %s109, %s110
    %p114 = pneg %p108
    %p115 = scmp.eq.s32.totalorder %s10, 3
    %p116 = por %p114, %p115
    %p117 = scmp.ne.s32.totalorder %s109, %s112
    %p118 = scmp.eq.s32.totalorder %s10, 0
    %p119 = por %p117, %p118
    %p120 = scmp.ne.s32.totalorder %s109, %s112
    %p121 = scmp.eq.s32.totalorder %s15, 3
    %p122 = por %p120, %p121
    %p123 = scmp.ne.s32.totalorder %s112, %s113
    %p124 = scmp.eq.s32.totalorder %s15, 0
    %p125 = por %p123, %p124
    %p126 = scmp.ne.s32.totalorder %s112, %s113
    %p127 = scmp.eq.s32.totalorder %s16, 3
    %p128 = por %p126, %p127
    %p130 = scmp.ne.s32.totalorder %s113, %s129
    %p131 = scmp.eq.s32.totalorder %s16, 0
    %p132 = por %p130, %p131
    %p133 = scmp.le.s32.totalorder 1, %s10
    %p134 = scmp.lt.s32.totalorder %s10, 5
    %p135 = pnand %p133, %p134
    %p136 = pneg %p135
    // Predicated region
    $region9: #{audio_cnn_forward.7} parent=5 // pred_check
      _
    $region10: #{audio_cnn_forward.7} parent=5 // pred_check_branch
      %138 = sbr.rel (%p135) target = $region12
    $region11: #{audio_cnn_forward.7} parent=5 // pred_region
      %s139 = ssub.s32 %s10, 1
      // Predicated region
      $region13: #{audio_cnn_forward.7} parent=11 // pred_check
        %p140 = pneg %p57
      $region14: #{audio_cnn_forward.7} parent=11 // pred_check_branch
        %142 = sbr.rel (%p140) target = $region16
      $region15: #{audio_cnn_forward.7} parent=11 // pred_region
        _
      $region16: #{audio_cnn_forward.7} parent=11 // pred_fallthru
        _
      // Predicated region
      $region17: #{audio_cnn_forward.7} parent=11 // pred_check
        %p143 = pneg %p78
      $region18: #{audio_cnn_forward.7} parent=11 // pred_check_branch
        %145 = sbr.rel (%p143) target = $region20
      $region19: #{audio_cnn_forward.7} parent=11 // pred_region
        _
      $region20: #{audio_cnn_forward.7} parent=11 // pred_fallthru
        _
      // Predicated region
      $region21: #{audio_cnn_forward.7} parent=11 // pred_check
        %p146 = pneg %p99
      $region22: #{audio_cnn_forward.7} parent=11 // pred_check_branch
        %148 = sbr.rel (%p146) target = $region24
      $region23: #{audio_cnn_forward.7} parent=11 // pred_region
        _
      $region24: #{audio_cnn_forward.7} parent=11 // pred_fallthru
        _
    $region12: #{audio_cnn_forward.7} parent=5 // pred_fallthru
      _
    %p149 = scmp.lt.s32.totalorder %s10, 4
    // Predicated region
    $region25: #{audio_cnn_forward.7} parent=5 // pred_check
      %p150 = pneg %p149
    $region26: #{audio_cnn_forward.7} parent=5 // pred_check_branch
      %152 = sbr.rel (%p150) target = $region28
    $region27: #{audio_cnn_forward.7} parent=5 // pred_region
      // Predicated region
      $region29: #{audio_cnn_forward.7} parent=27 // pred_check
        %p153 = pneg %p30
      $region30: #{audio_cnn_forward.7} parent=27 // pred_check_branch
        %155 = sbr.rel (%p153) target = $region32
      $region31: #{audio_cnn_forward.7} parent=27 // pred_region
        %s156 = smul.u32 64, %s10
        %p157 = scmp.lt.s32.totalorder %s156, 255
        %s158 = scalar_select %p157, %s156, 255
        %s159 = smul.addr %s158, 2
        %s160 = smul.addr %s159, 4
        %s161 = scalar_lea.vmem %s0, %s160
        %s162 = smul.u32 64, %s10
      $region32: #{audio_cnn_forward.7} parent=27 // pred_fallthru
        _
    $region28: #{audio_cnn_forward.7} parent=5 // pred_fallthru
      _
    %p163 = scmp.le.s32.totalorder 1, %s10
    %p164 = scmp.lt.s32.totalorder %s10, 5
    %p165 = pnand %p163, %p164
    %p166 = pneg %p165
    // Predicated region
    $region33: #{audio_cnn_forward.7} parent=5 // pred_check
      _
    $region34: #{audio_cnn_forward.7} parent=5 // pred_check_branch
      %168 = sbr.rel (%p165) target = $region36
    $region35: #{audio_cnn_forward.7} parent=5 // pred_region
      %s169 = ssub.s32 %s10, 1
      %s170 = smul.u32 64, %s15
      %p171 = scmp.lt.s32.totalorder %s170, 255
      %s172 = scalar_select %p171, %s170, 255
      %s173 = smul.addr %s172, 2
      %s174 = smul.addr %s173, 4
      %s175 = scalar_lea.vmem %s0, %s174
      %p176 = pneg %p36
      %p177 = pneg %p33
      %p178 = pneg %p57
      %p179 = pneg %p54
      %p180 = pneg %p78
      %p181 = pneg %p75
      %p182 = pneg %p99
      %p183 = pneg %p96
      %p184 = pneg %p125
      %p185 = pneg %p122
      %s186 = smul.u32 64, %s15
      %p187 = scmp.lt.s32.totalorder %s186, 255
      %s188 = scalar_select %p187, %s186, 255
      %s189 = smul.addr %s188, 4
      %s190 = scalar_lea.vmem %s4, %s189
      %s191 = smul.u32 64, %s15
      %p192 = scmp.lt.s32.totalorder %s191, 255
      %s193 = scalar_select %p192, %s191, 255
      %s194 = smul.addr %s193, 2
      %s195 = smul.addr %s194, 4
      %s196 = scalar_lea.vmem %s0, %s195
      %s197 = smul.u32 64, %s15
      %s198 = smul.u32 64, %s15
      %p199 = scmp.lt.s32.totalorder %s198, 255
      %s200 = scalar_select %p199, %s198, 255
      %s201 = smul.addr %s200, 4
      %s202 = scalar_lea.vmem %s4, %s201
      %s203 = smul.u32 64, %s15
      %v205 = vld [vmem:[%s196] sm:$0xff]
      %v206 = vld [vmem:[%s196 + $0x8] sm:$0xff]
      %v207 = vld [vmem:[%s196 + $0x10] sm:$0xff]
      %v208 = vld [vmem:[%s196 + $0x18] sm:$0xff]
      %v209 = vld [vmem:[%s196 + $0x20] sm:$0xff]
      %v210 = vld [vmem:[%s196 + $0x28] sm:$0xff]
      %v211 = vld [vmem:[%s196 + $0x30] sm:$0xff]
      %v212 = vld [vmem:[%s196 + $0x38] sm:$0xff]
      %v213 = vld [vmem:[%s196 + $0x40] sm:$0xff]
      %v214 = vld [vmem:[%s196 + $0x48] sm:$0xff]
      %v215 = vld [vmem:[%s196 + $0x50] sm:$0xff]
      %v216 = vld [vmem:[%s196 + $0x58] sm:$0xff]
      %v217 = vld [vmem:[%s196 + $0x60] sm:$0xff]
      %v218 = vld [vmem:[%s196 + $0x68] sm:$0xff]
      %v219 = vld [vmem:[%s196 + $0x70] sm:$0xff]
      %v220 = vld [vmem:[%s196 + $0x78] sm:$0xff]
      %v221 = vld [vmem:[%s196 + $0x80] sm:$0xff]
      %v222 = vld [vmem:[%s196 + $0x88] sm:$0xff]
      %v223 = vld [vmem:[%s196 + $0x90] sm:$0xff]
      %v224 = vld [vmem:[%s196 + $0x98] sm:$0xff]
      %v225 = vld [vmem:[%s196 + $0xa0] sm:$0xff]
      %v226 = vld [vmem:[%s196 + $0xa8] sm:$0xff]
      %v227 = vld [vmem:[%s196 + $0xb0] sm:$0xff]
      %v228 = vld [vmem:[%s196 + $0xb8] sm:$0xff]
      %v229 = vld [vmem:[%s196 + $0xc0] sm:$0xff]
      %v230 = vld [vmem:[%s196 + $0xc8] sm:$0xff]
      %v231 = vld [vmem:[%s196 + $0xd0] sm:$0xff]
      %v232 = vld [vmem:[%s196 + $0xd8] sm:$0xff]
      %v233 = vld [vmem:[%s196 + $0xe0] sm:$0xff]
      %v234 = vld [vmem:[%s196 + $0xe8] sm:$0xff]
      %v235 = vld [vmem:[%s196 + $0xf0] sm:$0xff]
      %v236 = vld [vmem:[%s196 + $0xf8] sm:$0xff]
      %v237 = vld [vmem:[%s196 + $0x100] sm:$0xff]
      %v238 = vld [vmem:[%s196 + $0x108] sm:$0xff]
      %v239 = vld [vmem:[%s196 + $0x110] sm:$0xff]
      %v240 = vld [vmem:[%s196 + $0x118] sm:$0xff]
      %v241 = vld [vmem:[%s196 + $0x120] sm:$0xff]
      %v242 = vld [vmem:[%s196 + $0x128] sm:$0xff]
      %v243 = vld [vmem:[%s196 + $0x130] sm:$0xff]
      %v244 = vld [vmem:[%s196 + $0x138] sm:$0xff]
      %v245 = vld [vmem:[%s196 + $0x140] sm:$0xff]
      %v246 = vld [vmem:[%s196 + $0x148] sm:$0xff]
      %v247 = vld [vmem:[%s196 + $0x150] sm:$0xff]
      %v248 = vld [vmem:[%s196 + $0x158] sm:$0xff]
      %v249 = vld [vmem:[%s196 + $0x160] sm:$0xff]
      %v250 = vld [vmem:[%s196 + $0x168] sm:$0xff]
      %v251 = vld [vmem:[%s196 + $0x170] sm:$0xff]
      %v252 = vld [vmem:[%s196 + $0x178] sm:$0xff]
      %v253 = vld [vmem:[%s196 + $0x180] sm:$0xff]
      %v254 = vld [vmem:[%s196 + $0x188] sm:$0xff]
      %v255 = vld [vmem:[%s196 + $0x190] sm:$0xff]
      %v256 = vld [vmem:[%s196 + $0x198] sm:$0xff]
      %v257 = vld [vmem:[%s196 + $0x1a0] sm:$0xff]
      %v258 = vld [vmem:[%s196 + $0x1a8] sm:$0xff]
      %v259 = vld [vmem:[%s196 + $0x1b0] sm:$0xff]
      %v260 = vld [vmem:[%s196 + $0x1b8] sm:$0xff]
      %v261 = vld [vmem:[%s196 + $0x1c0] sm:$0xff]
      %v262 = vld [vmem:[%s196 + $0x1c8] sm:$0xff]
      %v263 = vld [vmem:[%s196 + $0x1d0] sm:$0xff]
      %v264 = vld [vmem:[%s196 + $0x1d8] sm:$0xff]
      %v265 = vld [vmem:[%s196 + $0x1e0] sm:$0xff]
      %v266 = vld [vmem:[%s196 + $0x1e8] sm:$0xff]
      %v267 = vld [vmem:[%s196 + $0x1f0] sm:$0xff]
      %v268 = vld [vmem:[%s196 + $0x1f8] sm:$0xff]
      %v269 = vld [vmem:[%s1] sm:$0xf]
      %v270 = vld [vmem:[%s1 + $0x4] sm:$0xf]
      %v271 = vld [vmem:[%s1 + $0x8] sm:$0xf]
      %v272 = vld [vmem:[%s1 + $0xc] sm:$0xf]
      %v273 = vld [vmem:[%s1 + $0x10] sm:$0xf]
      %v274 = vld [vmem:[%s1 + $0x14] sm:$0xf]
      %v275 = vld [vmem:[%s1 + $0x18] sm:$0xf]
      %v276 = vld [vmem:[%s1 + $0x1c] sm:$0xf]
      %v277 = vld [vmem:[%s1 + $0x20] sm:$0xf]
      %v278 = vld [vmem:[%s1 + $0x24] sm:$0xf]
      %v279 = vld [vmem:[%s1 + $0x28] sm:$0xf]
      %v280 = vld [vmem:[%s1 + $0x2c] sm:$0xf]
      %v281 = vld [vmem:[%s1 + $0x30] sm:$0xf]
      %v282 = vld [vmem:[%s1 + $0x34] sm:$0xf]
      %v283 = vld [vmem:[%s1 + $0x38] sm:$0xf]
      %v284 = vld [vmem:[%s1 + $0x3c] sm:$0xf]
      %v285 = vld [vmem:[%s1 + $0x40] sm:$0xf]
      %v286 = vld [vmem:[%s1 + $0x44] sm:$0xf]
      %v287 = vld [vmem:[%s1 + $0x48] sm:$0xf]
      %v288 = vld [vmem:[%s1 + $0x4c] sm:$0xf]
      %v289 = vld [vmem:[%s1 + $0x50] sm:$0xf]
      %v290 = vld [vmem:[%s1 + $0x54] sm:$0xf]
      %v291 = vld [vmem:[%s1 + $0x58] sm:$0xf]
      %v292 = vld [vmem:[%s1 + $0x5c] sm:$0xf]
      %v293 = vld [vmem:[%s1 + $0x60] sm:$0xf]
      %v358 = vunpack.c.l.b16 %v205
      %v359 = vunpack.c.h.b16 %v205
      %v360 = vunpack.c.l.b16 %v206
      %v361 = vunpack.c.h.b16 %v206
      %v362 = vunpack.c.l.b16 %v207
      %v363 = vunpack.c.h.b16 %v207
      %v364 = vunpack.c.l.b16 %v208
      %v365 = vunpack.c.h.b16 %v208
      %v366 = vunpack.c.l.b16 %v209
      %v367 = vunpack.c.h.b16 %v209
      %v368 = vunpack.c.l.b16 %v210
      %v369 = vunpack.c.h.b16 %v210
      %v370 = vunpack.c.l.b16 %v211
      %v371 = vunpack.c.h.b16 %v211
      %v372 = vunpack.c.l.b16 %v212
      %v373 = vunpack.c.h.b16 %v212
      %v374 = vunpack.c.l.b16 %v213
      %v375 = vunpack.c.h.b16 %v213
      %v376 = vunpack.c.l.b16 %v214
      %v377 = vunpack.c.h.b16 %v214
      %v378 = vunpack.c.l.b16 %v215
      %v379 = vunpack.c.h.b16 %v215
      %v380 = vunpack.c.l.b16 %v216
      %v381 = vunpack.c.h.b16 %v216
      %v382 = vunpack.c.l.b16 %v217
      %v383 = vunpack.c.h.b16 %v217
      %v384 = vunpack.c.l.b16 %v218
      %v385 = vunpack.c.h.b16 %v218
      %v386 = vunpack.c.l.b16 %v219
      %v387 = vunpack.c.h.b16 %v219
      %v388 = vunpack.c.l.b16 %v220
      %v389 = vunpack.c.h.b16 %v220
      %v390 = vunpack.c.l.b16 %v221
      %v391 = vunpack.c.h.b16 %v221
      %v392 = vunpack.c.l.b16 %v222
      %v393 = vunpack.c.h.b16 %v222
      %v394 = vunpack.c.l.b16 %v223
      %v395 = vunpack.c.h.b16 %v223
      %v396 = vunpack.c.l.b16 %v224
      %v397 = vunpack.c.h.b16 %v224
      %v398 = vunpack.c.l.b16 %v225
      %v399 = vunpack.c.h.b16 %v225
      %v400 = vunpack.c.l.b16 %v226
      %v401 = vunpack.c.h.b16 %v226
      %v402 = vunpack.c.l.b16 %v227
      %v403 = vunpack.c.h.b16 %v227
      %v404 = vunpack.c.l.b16 %v228
      %v405 = vunpack.c.h.b16 %v228
      %v406 = vunpack.c.l.b16 %v229
      %v407 = vunpack.c.h.b16 %v229
      %v408 = vunpack.c.l.b16 %v230
      %v409 = vunpack.c.h.b16 %v230
      %v410 = vunpack.c.l.b16 %v231
      %v411 = vunpack.c.h.b16 %v231
      %v412 = vunpack.c.l.b16 %v232
      %v413 = vunpack.c.h.b16 %v232
      %v414 = vunpack.c.l.b16 %v233
      %v415 = vunpack.c.h.b16 %v233
      %v416 = vunpack.c.l.b16 %v234
      %v417 = vunpack.c.h.b16 %v234
      %v418 = vunpack.c.l.b16 %v235
      %v419 = vunpack.c.h.b16 %v235
      %v420 = vunpack.c.l.b16 %v236
      %v421 = vunpack.c.h.b16 %v236
      %v422 = vunpack.c.l.b16 %v237
      %v423 = vunpack.c.h.b16 %v237
      %v424 = vunpack.c.l.b16 %v238
      %v425 = vunpack.c.h.b16 %v238
      %v426 = vunpack.c.l.b16 %v239
      %v427 = vunpack.c.h.b16 %v239
      %v428 = vunpack.c.l.b16 %v240
      %v429 = vunpack.c.h.b16 %v240
      %v430 = vunpack.c.l.b16 %v241
      %v431 = vunpack.c.h.b16 %v241
      %v432 = vunpack.c.l.b16 %v242
      %v433 = vunpack.c.h.b16 %v242
      %v434 = vunpack.c.l.b16 %v243
      %v435 = vunpack.c.h.b16 %v243
      %v436 = vunpack.c.l.b16 %v244
      %v437 = vunpack.c.h.b16 %v244
      %v438 = vunpack.c.l.b16 %v245
      %v439 = vunpack.c.h.b16 %v245
      %v440 = vunpack.c.l.b16 %v246
      %v441 = vunpack.c.h.b16 %v246
      %v442 = vunpack.c.l.b16 %v247
      %v443 = vunpack.c.h.b16 %v247
      %v444 = vunpack.c.l.b16 %v248
      %v445 = vunpack.c.h.b16 %v248
      %v446 = vunpack.c.l.b16 %v249
      %v447 = vunpack.c.h.b16 %v249
      %v448 = vunpack.c.l.b16 %v250
      %v449 = vunpack.c.h.b16 %v250
      %v450 = vunpack.c.l.b16 %v251
      %v451 = vunpack.c.h.b16 %v251
      %v452 = vunpack.c.l.b16 %v252
      %v453 = vunpack.c.h.b16 %v252
      %v454 = vunpack.c.l.b16 %v253
      %v455 = vunpack.c.h.b16 %v253
      %v456 = vunpack.c.l.b16 %v254
      %v457 = vunpack.c.h.b16 %v254
      %v458 = vunpack.c.l.b16 %v255
      %v459 = vunpack.c.h.b16 %v255
      %v460 = vunpack.c.l.b16 %v256
      %v461 = vunpack.c.h.b16 %v256
      %v462 = vunpack.c.l.b16 %v257
      %v463 = vunpack.c.h.b16 %v257
      %v464 = vunpack.c.l.b16 %v258
      %v465 = vunpack.c.h.b16 %v258
      %v466 = vunpack.c.l.b16 %v259
      %v467 = vunpack.c.h.b16 %v259
      %v468 = vunpack.c.l.b16 %v260
      %v469 = vunpack.c.h.b16 %v260
      %v470 = vunpack.c.l.b16 %v261
      %v471 = vunpack.c.h.b16 %v261
      %v472 = vunpack.c.l.b16 %v262
      %v473 = vunpack.c.h.b16 %v262
      %v474 = vunpack.c.l.b16 %v263
      %v475 = vunpack.c.h.b16 %v263
      %v476 = vunpack.c.l.b16 %v264
      %v477 = vunpack.c.h.b16 %v264
      %v478 = vunpack.c.l.b16 %v265
      %v479 = vunpack.c.h.b16 %v265
      %v480 = vunpack.c.l.b16 %v266
      %v481 = vunpack.c.h.b16 %v266
      %v482 = vunpack.c.l.b16 %v267
      %v483 = vunpack.c.h.b16 %v267
      %v484 = vunpack.c.l.b16 %v268
      %v485 = vunpack.c.h.b16 %v268
      %v486 = vpack.c.b16 %v360, %v358
      %v487 = vpack.c.b16 %v361, %v359
      %v488 = vpack.c.b16 %v364, %v362
      %v489 = vpack.c.b16 %v365, %v363
      %v490 = vpack.c.b16 %v368, %v366
      %v491 = vpack.c.b16 %v369, %v367
      %v492 = vpack.c.b16 %v372, %v370
      %v493 = vpack.c.b16 %v373, %v371
      %v494 = vpack.c.b16 %v376, %v374
      %v495 = vpack.c.b16 %v377, %v375
      %v496 = vpack.c.b16 %v380, %v378
      %v497 = vpack.c.b16 %v381, %v379
      %v498 = vpack.c.b16 %v384, %v382
      %v499 = vpack.c.b16 %v385, %v383
      %v500 = vpack.c.b16 %v388, %v386
      %v501 = vpack.c.b16 %v389, %v387
      %v502 = vpack.c.b16 %v392, %v390
      %v503 = vpack.c.b16 %v393, %v391
      %v504 = vpack.c.b16 %v396, %v394
      %v505 = vpack.c.b16 %v397, %v395
      %v506 = vpack.c.b16 %v400, %v398
      %v507 = vpack.c.b16 %v401, %v399
      %v508 = vpack.c.b16 %v404, %v402
      %v509 = vpack.c.b16 %v405, %v403
      %v510 = vpack.c.b16 %v408, %v406
      %v511 = vpack.c.b16 %v409, %v407
      %v512 = vpack.c.b16 %v412, %v410
      %v513 = vpack.c.b16 %v413, %v411
      %v514 = vpack.c.b16 %v416, %v414
      %v515 = vpack.c.b16 %v417, %v415
      %v516 = vpack.c.b16 %v420, %v418
      %v517 = vpack.c.b16 %v421, %v419
      %v518 = vpack.c.b16 %v424, %v422
      %v519 = vpack.c.b16 %v425, %v423
      %v520 = vpack.c.b16 %v428, %v426
      %v521 = vpack.c.b16 %v429, %v427
      %v522 = vpack.c.b16 %v432, %v430
      %v523 = vpack.c.b16 %v433, %v431
      %v524 = vpack.c.b16 %v436, %v434
      %v525 = vpack.c.b16 %v437, %v435
      %v526 = vpack.c.b16 %v440, %v438
      %v527 = vpack.c.b16 %v441, %v439
      %v528 = vpack.c.b16 %v444, %v442
      %v529 = vpack.c.b16 %v445, %v443
      %v530 = vpack.c.b16 %v448, %v446
      %v531 = vpack.c.b16 %v449, %v447
      %v532 = vpack.c.b16 %v452, %v450
      %v533 = vpack.c.b16 %v453, %v451
      %v534 = vpack.c.b16 %v456, %v454
      %v535 = vpack.c.b16 %v457, %v455
      %v536 = vpack.c.b16 %v460, %v458
      %v537 = vpack.c.b16 %v461, %v459
      %v538 = vpack.c.b16 %v464, %v462
      %v539 = vpack.c.b16 %v465, %v463
      %v540 = vpack.c.b16 %v468, %v466
      %v541 = vpack.c.b16 %v469, %v467
      %v542 = vpack.c.b16 %v472, %v470
      %v543 = vpack.c.b16 %v473, %v471
      %v544 = vpack.c.b16 %v476, %v474
      %v545 = vpack.c.b16 %v477, %v475
      %v546 = vpack.c.b16 %v480, %v478
      %v547 = vpack.c.b16 %v481, %v479
      %v548 = vpack.c.b16 %v484, %v482
      %v549 = vpack.c.b16 %v485, %v483
      %v607 = vunpack.c.l.b16 %v269
      %v608 = vunpack.c.l.b16 %v270
      %v609 = vunpack.c.l.b16 %v271
      %v610 = vunpack.c.l.b16 %v272
      %v611 = vunpack.c.l.b16 %v273
      %v612 = vunpack.c.l.b16 %v274
      %v613 = vunpack.c.l.b16 %v275
      %v614 = vunpack.c.l.b16 %v276
      %v615 = vunpack.c.l.b16 %v277
      %v616 = vunpack.c.l.b16 %v278
      %v617 = vunpack.c.l.b16 %v279
      %v618 = vunpack.c.l.b16 %v280
      %v619 = vunpack.c.l.b16 %v281
      %v620 = vunpack.c.l.b16 %v282
      %v621 = vunpack.c.l.b16 %v283
      %v622 = vunpack.c.l.b16 %v284
      %v623 = vunpack.c.l.b16 %v285
      %v624 = vunpack.c.l.b16 %v286
      %v625 = vunpack.c.l.b16 %v287
      %v626 = vunpack.c.l.b16 %v288
      %v627 = vunpack.c.l.b16 %v289
      %v628 = vunpack.c.l.b16 %v290
      %v629 = vunpack.c.l.b16 %v291
      %v630 = vunpack.c.l.b16 %v292
      %v631 = vunpack.c.l.b16 %v293
      %v632 = vpack.c.b16 %v608, %v607
      %v633 = vpack.c.b16 %v610, %v609
      %v634 = vpack.c.b16 %v612, %v611
      %v635 = vpack.c.b16 %v614, %v613
      %v636 = vpack.c.b16 %v616, %v615
      %v637 = vpack.c.b16 %v618, %v617
      %v638 = vpack.c.b16 %v620, %v619
      %v639 = vpack.c.b16 %v622, %v621
      %v640 = vpack.c.b16 %v624, %v623
      %v641 = vpack.c.b16 %v626, %v625
      %v642 = vpack.c.b16 %v628, %v627
      %v643 = vpack.c.b16 %v630, %v629
      %v644 = vpack.c.b16 %v631, %v631
      %vm657 = vcmask 588800
      %v659 = vsel %vm657, %v487, 0
      %v662 = vsel %vm657, %v489, 0
      %v665 = vsel %vm657, %v491, 0
      %v668 = vsel %vm657, %v493, 0
      %v671 = vsel %vm657, %v495, 0
      %v674 = vsel %vm657, %v497, 0
      %v677 = vsel %vm657, %v499, 0
      %v680 = vsel %vm657, %v501, 0
      %v683 = vsel %vm657, %v503, 0
      %v686 = vsel %vm657, %v505, 0
      %v689 = vsel %vm657, %v507, 0
      %v692 = vsel %vm657, %v509, 0
      %v695 = vsel %vm657, %v511, 0
      %v698 = vsel %vm657, %v513, 0
      %v701 = vsel %vm657, %v515, 0
      %v704 = vsel %vm657, %v517, 0
      %v707 = vsel %vm657, %v519, 0
      %v710 = vsel %vm657, %v521, 0
      %v713 = vsel %vm657, %v523, 0
      %v716 = vsel %vm657, %v525, 0
      %v719 = vsel %vm657, %v527, 0
      %v722 = vsel %vm657, %v529, 0
      %v725 = vsel %vm657, %v531, 0
      %v728 = vsel %vm657, %v533, 0
      %v731 = vsel %vm657, %v535, 0
      %v734 = vsel %vm657, %v537, 0
      %v737 = vsel %vm657, %v539, 0
      %v740 = vsel %vm657, %v541, 0
      %v743 = vsel %vm657, %v543, 0
      %v746 = vsel %vm657, %v545, 0
      %v749 = vsel %vm657, %v547, 0
      %v752 = vsel %vm657, %v549, 0
      %vm754 = vcmask 1043456
      %v756 = vsel %vm754, %v644, 0
      %758 = vmatpush.bf16.msra.mxu0 %v639
      %759 = vmatpush.bf16.msra.mxu0 %v638
      %760 = vmatpush.bf16.msra.mxu0 %v637
      %761 = vmatpush.bf16.msra.mxu0 %v636
      %762 = vmatpush.bf16.msra.mxu0 %v635
      %763 = vmatpush.bf16.msra.mxu0 %v634
      %764 = vmatpush.bf16.msra.mxu0 %v633
      %765 = vmatpush.bf16.msra.mxu0 %v632
      %766 = vmatmul.bf16.gmra.mxu0 %v486
      %v767 = vpop.f32.mrf.mxu0
      %v768 = vadd.f32 0.0, %v767
      %v769 = vpop.f32.mrf.mxu0
      %v770 = vadd.f32 0.0, %v769
      %771 = vmatmul.bf16.gmra.mxu0 %v488
      %v772 = vpop.f32.mrf.mxu0
      %v773 = vadd.f32 0.0, %v772
      %v774 = vpop.f32.mrf.mxu0
      %v775 = vadd.f32 0.0, %v774
      %776 = vmatmul.bf16.gmra.mxu0 %v490
      %v777 = vpop.f32.mrf.mxu0
      %v778 = vadd.f32 0.0, %v777
      %v779 = vpop.f32.mrf.mxu0
      %v780 = vadd.f32 0.0, %v779
      %781 = vmatmul.bf16.gmra.mxu0 %v492
      %v782 = vpop.f32.mrf.mxu0
      %v783 = vadd.f32 0.0, %v782
      %v784 = vpop.f32.mrf.mxu0
      %v785 = vadd.f32 0.0, %v784
      %786 = vmatmul.bf16.gmra.mxu0 %v494
      %v787 = vpop.f32.mrf.mxu0
      %v788 = vadd.f32 0.0, %v787
      %v789 = vpop.f32.mrf.mxu0
      %v790 = vadd.f32 0.0, %v789
      %791 = vmatmul.bf16.gmra.mxu0 %v496
      %v792 = vpop.f32.mrf.mxu0
      %v793 = vadd.f32 0.0, %v792
      %v794 = vpop.f32.mrf.mxu0
      %v795 = vadd.f32 0.0, %v794
      %796 = vmatmul.bf16.gmra.mxu0 %v498
      %v797 = vpop.f32.mrf.mxu0
      %v798 = vadd.f32 0.0, %v797
      %v799 = vpop.f32.mrf.mxu0
      %v800 = vadd.f32 0.0, %v799
      %801 = vmatmul.bf16.gmra.mxu0 %v500
      %v802 = vpop.f32.mrf.mxu0
      %v803 = vadd.f32 0.0, %v802
      %v804 = vpop.f32.mrf.mxu0
      %v805 = vadd.f32 0.0, %v804
      %806 = vmatmul.bf16.gmra.mxu0 %v502
      %v807 = vpop.f32.mrf.mxu0
      %v808 = vadd.f32 0.0, %v807
      %v809 = vpop.f32.mrf.mxu0
      %v810 = vadd.f32 0.0, %v809
      %811 = vmatmul.bf16.gmra.mxu0 %v504
      %v812 = vpop.f32.mrf.mxu0
      %v813 = vadd.f32 0.0, %v812
      %v814 = vpop.f32.mrf.mxu0
      %v815 = vadd.f32 0.0, %v814
      %816 = vmatmul.bf16.gmra.mxu0 %v506
      %v817 = vpop.f32.mrf.mxu0
      %v818 = vadd.f32 0.0, %v817
      %v819 = vpop.f32.mrf.mxu0
      %v820 = vadd.f32 0.0, %v819
      %821 = vmatmul.bf16.gmra.mxu0 %v508
      %v822 = vpop.f32.mrf.mxu0
      %v823 = vadd.f32 0.0, %v822
      %v824 = vpop.f32.mrf.mxu0
      %v825 = vadd.f32 0.0, %v824
      %826 = vmatmul.bf16.gmra.mxu0 %v510
      %v827 = vpop.f32.mrf.mxu0
      %v828 = vadd.f32 0.0, %v827
      %v829 = vpop.f32.mrf.mxu0
      %v830 = vadd.f32 0.0, %v829
      %831 = vmatmul.bf16.gmra.mxu0 %v512
      %v832 = vpop.f32.mrf.mxu0
      %v833 = vadd.f32 0.0, %v832
      %v834 = vpop.f32.mrf.mxu0
      %v835 = vadd.f32 0.0, %v834
      %836 = vmatmul.bf16.gmra.mxu0 %v514
      %v837 = vpop.f32.mrf.mxu0
      %v838 = vadd.f32 0.0, %v837
      %v839 = vpop.f32.mrf.mxu0
      %v840 = vadd.f32 0.0, %v839
      %841 = vmatmul.bf16.gmra.mxu0 %v516
      %v842 = vpop.f32.mrf.mxu0
      %v843 = vadd.f32 0.0, %v842
      %v844 = vpop.f32.mrf.mxu0
      %v845 = vadd.f32 0.0, %v844
      %846 = vmatmul.bf16.gmra.mxu0 %v518
      %v847 = vpop.f32.mrf.mxu0
      %v848 = vadd.f32 0.0, %v847
      %v849 = vpop.f32.mrf.mxu0
      %v850 = vadd.f32 0.0, %v849
      %851 = vmatmul.bf16.gmra.mxu0 %v520
      %v852 = vpop.f32.mrf.mxu0
      %v853 = vadd.f32 0.0, %v852
      %v854 = vpop.f32.mrf.mxu0
      %v855 = vadd.f32 0.0, %v854
      %856 = vmatmul.bf16.gmra.mxu0 %v522
      %v857 = vpop.f32.mrf.mxu0
      %v858 = vadd.f32 0.0, %v857
      %v859 = vpop.f32.mrf.mxu0
      %v860 = vadd.f32 0.0, %v859
      %861 = vmatmul.bf16.gmra.mxu0 %v524
      %v862 = vpop.f32.mrf.mxu0
      %v863 = vadd.f32 0.0, %v862
      %v864 = vpop.f32.mrf.mxu0
      %v865 = vadd.f32 0.0, %v864
      %866 = vmatmul.bf16.gmra.mxu0 %v526
      %v867 = vpop.f32.mrf.mxu0
      %v868 = vadd.f32 0.0, %v867
      %v869 = vpop.f32.mrf.mxu0
      %v870 = vadd.f32 0.0, %v869
      %871 = vmatmul.bf16.gmra.mxu0 %v528
      %v872 = vpop.f32.mrf.mxu0
      %v873 = vadd.f32 0.0, %v872
      %v874 = vpop.f32.mrf.mxu0
      %v875 = vadd.f32 0.0, %v874
      %876 = vmatmul.bf16.gmra.mxu0 %v530
      %v877 = vpop.f32.mrf.mxu0
      %v878 = vadd.f32 0.0, %v877
      %v879 = vpop.f32.mrf.mxu0
      %v880 = vadd.f32 0.0, %v879
      %881 = vmatmul.bf16.gmra.mxu0 %v532
      %v882 = vpop.f32.mrf.mxu0
      %v883 = vadd.f32 0.0, %v882
      %v884 = vpop.f32.mrf.mxu0
      %v885 = vadd.f32 0.0, %v884
      %886 = vmatmul.bf16.gmra.mxu0 %v534
      %v887 = vpop.f32.mrf.mxu0
      %v888 = vadd.f32 0.0, %v887
      %v889 = vpop.f32.mrf.mxu0
      %v890 = vadd.f32 0.0, %v889
      %891 = vmatmul.bf16.gmra.mxu0 %v536
      %v892 = vpop.f32.mrf.mxu0
      %v893 = vadd.f32 0.0, %v892
      %v894 = vpop.f32.mrf.mxu0
      %v895 = vadd.f32 0.0, %v894
      %896 = vmatmul.bf16.gmra.mxu0 %v538
      %v897 = vpop.f32.mrf.mxu0
      %v898 = vadd.f32 0.0, %v897
      %v899 = vpop.f32.mrf.mxu0
      %v900 = vadd.f32 0.0, %v899
      %901 = vmatmul.bf16.gmra.mxu0 %v540
      %v902 = vpop.f32.mrf.mxu0
      %v903 = vadd.f32 0.0, %v902
      %v904 = vpop.f32.mrf.mxu0
      %v905 = vadd.f32 0.0, %v904
      %906 = vmatmul.bf16.gmra.mxu0 %v542
      %v907 = vpop.f32.mrf.mxu0
      %v908 = vadd.f32 0.0, %v907
      %v909 = vpop.f32.mrf.mxu0
      %v910 = vadd.f32 0.0, %v909
      %911 = vmatmul.bf16.gmra.mxu0 %v544
      %v912 = vpop.f32.mrf.mxu0
      %v913 = vadd.f32 0.0, %v912
      %v914 = vpop.f32.mrf.mxu0
      %v915 = vadd.f32 0.0, %v914
      %916 = vmatmul.bf16.gmra.mxu0 %v546
      %v917 = vpop.f32.mrf.mxu0
      %v918 = vadd.f32 0.0, %v917
      %v919 = vpop.f32.mrf.mxu0
      %v920 = vadd.f32 0.0, %v919
      %921 = vmatmul.bf16.gmra.mxu0 %v548
      %v922 = vpop.f32.mrf.mxu0
      %v923 = vadd.f32 0.0, %v922
      %v924 = vpop.f32.mrf.mxu0
      %v925 = vadd.f32 0.0, %v924
      %926 = vdwg.mxu0
      %927 = vmatpush.bf16.msra.mxu0 0
      %928 = vmatpush.bf16.msra.mxu0 0
      %929 = vmatpush.bf16.msra.mxu0 0
      %930 = vmatpush.bf16.msra.mxu0 %v756
      %931 = vmatpush.bf16.msra.mxu0 %v643
      %932 = vmatpush.bf16.msra.mxu0 %v642
      %933 = vmatpush.bf16.msra.mxu0 %v641
      %934 = vmatpush.bf16.msra.mxu0 %v640
      %935 = vmatmul.bf16.gmra.mxu0 %v659
      %v936 = vpop.f32.mrf.mxu0
      %v937 = vadd.f32 %v768, %v936
      %v938 = vpop.f32.mrf.mxu0
      %v939 = vadd.f32 %v770, %v938
      %940 = vmatmul.bf16.gmra.mxu0 %v662
      %v941 = vpop.f32.mrf.mxu0
      %v942 = vadd.f32 %v773, %v941
      %v943 = vpop.f32.mrf.mxu0
      %v944 = vadd.f32 %v775, %v943
      %945 = vmatmul.bf16.gmra.mxu0 %v665
      %v946 = vpop.f32.mrf.mxu0
      %v947 = vadd.f32 %v778, %v946
      %v948 = vpop.f32.mrf.mxu0
      %v949 = vadd.f32 %v780, %v948
      %950 = vmatmul.bf16.gmra.mxu0 %v668
      %v951 = vpop.f32.mrf.mxu0
      %v952 = vadd.f32 %v783, %v951
      %v953 = vpop.f32.mrf.mxu0
      %v954 = vadd.f32 %v785, %v953
      %955 = vmatmul.bf16.gmra.mxu0 %v671
      %v956 = vpop.f32.mrf.mxu0
      %v957 = vadd.f32 %v788, %v956
      %v958 = vpop.f32.mrf.mxu0
      %v959 = vadd.f32 %v790, %v958
      %960 = vmatmul.bf16.gmra.mxu0 %v674
      %v961 = vpop.f32.mrf.mxu0
      %v962 = vadd.f32 %v793, %v961
      %v963 = vpop.f32.mrf.mxu0
      %v964 = vadd.f32 %v795, %v963
      %965 = vmatmul.bf16.gmra.mxu0 %v677
      %v966 = vpop.f32.mrf.mxu0
      %v967 = vadd.f32 %v798, %v966
      %v968 = vpop.f32.mrf.mxu0
      %v969 = vadd.f32 %v800, %v968
      %970 = vmatmul.bf16.gmra.mxu0 %v680
      %v971 = vpop.f32.mrf.mxu0
      %v972 = vadd.f32 %v803, %v971
      %v973 = vpop.f32.mrf.mxu0
      %v974 = vadd.f32 %v805, %v973
      %975 = vmatmul.bf16.gmra.mxu0 %v683
      %v976 = vpop.f32.mrf.mxu0
      %v977 = vadd.f32 %v808, %v976
      %v978 = vpop.f32.mrf.mxu0
      %v979 = vadd.f32 %v810, %v978
      %980 = vmatmul.bf16.gmra.mxu0 %v686
      %v981 = vpop.f32.mrf.mxu0
      %v982 = vadd.f32 %v813, %v981
      %v983 = vpop.f32.mrf.mxu0
      %v984 = vadd.f32 %v815, %v983
      %985 = vmatmul.bf16.gmra.mxu0 %v689
      %v986 = vpop.f32.mrf.mxu0
      %v987 = vadd.f32 %v818, %v986
      %v988 = vpop.f32.mrf.mxu0
      %v989 = vadd.f32 %v820, %v988
      %990 = vmatmul.bf16.gmra.mxu0 %v692
      %v991 = vpop.f32.mrf.mxu0
      %v992 = vadd.f32 %v823, %v991
      %v993 = vpop.f32.mrf.mxu0
      %v994 = vadd.f32 %v825, %v993
      %995 = vmatmul.bf16.gmra.mxu0 %v695
      %v996 = vpop.f32.mrf.mxu0
      %v997 = vadd.f32 %v828, %v996
      %v998 = vpop.f32.mrf.mxu0
      %v999 = vadd.f32 %v830, %v998
      %1000 = vmatmul.bf16.gmra.mxu0 %v698
      %v1001 = vpop.f32.mrf.mxu0
      %v1002 = vadd.f32 %v833, %v1001
      %v1003 = vpop.f32.mrf.mxu0
      %v1004 = vadd.f32 %v835, %v1003
      %1005 = vmatmul.bf16.gmra.mxu0 %v701
      %v1006 = vpop.f32.mrf.mxu0
      %v1007 = vadd.f32 %v838, %v1006
      %v1008 = vpop.f32.mrf.mxu0
      %v1009 = vadd.f32 %v840, %v1008
      %1010 = vmatmul.bf16.gmra.mxu0 %v704
      %v1011 = vpop.f32.mrf.mxu0
      %v1012 = vadd.f32 %v843, %v1011
      %v1013 = vpop.f32.mrf.mxu0
      %v1014 = vadd.f32 %v845, %v1013
      %1015 = vmatmul.bf16.gmra.mxu0 %v707
      %v1016 = vpop.f32.mrf.mxu0
      %v1017 = vadd.f32 %v848, %v1016
      %v1018 = vpop.f32.mrf.mxu0
      %v1019 = vadd.f32 %v850, %v1018
      %1020 = vmatmul.bf16.gmra.mxu0 %v710
      %v1021 = vpop.f32.mrf.mxu0
      %v1022 = vadd.f32 %v853, %v1021
      %v1023 = vpop.f32.mrf.mxu0
      %v1024 = vadd.f32 %v855, %v1023
      %1025 = vmatmul.bf16.gmra.mxu0 %v713
      %v1026 = vpop.f32.mrf.mxu0
      %v1027 = vadd.f32 %v858, %v1026
      %v1028 = vpop.f32.mrf.mxu0
      %v1029 = vadd.f32 %v860, %v1028
      %1030 = vmatmul.bf16.gmra.mxu0 %v716
      %v1031 = vpop.f32.mrf.mxu0
      %v1032 = vadd.f32 %v863, %v1031
      %v1033 = vpop.f32.mrf.mxu0
      %v1034 = vadd.f32 %v865, %v1033
      %1035 = vmatmul.bf16.gmra.mxu0 %v719
      %v1036 = vpop.f32.mrf.mxu0
      %v1037 = vadd.f32 %v868, %v1036
      %v1038 = vpop.f32.mrf.mxu0
      %v1039 = vadd.f32 %v870, %v1038
      %1040 = vmatmul.bf16.gmra.mxu0 %v722
      %v1041 = vpop.f32.mrf.mxu0
      %v1042 = vadd.f32 %v873, %v1041
      %v1043 = vpop.f32.mrf.mxu0
      %v1044 = vadd.f32 %v875, %v1043
      %1045 = vmatmul.bf16.gmra.mxu0 %v725
      %v1046 = vpop.f32.mrf.mxu0
      %v1047 = vadd.f32 %v878, %v1046
      %v1048 = vpop.f32.mrf.mxu0
      %v1049 = vadd.f32 %v880, %v1048
      %1050 = vmatmul.bf16.gmra.mxu0 %v728
      %v1051 = vpop.f32.mrf.mxu0
      %v1052 = vadd.f32 %v883, %v1051
      %v1053 = vpop.f32.mrf.mxu0
      %v1054 = vadd.f32 %v885, %v1053
      %1055 = vmatmul.bf16.gmra.mxu0 %v731
      %v1056 = vpop.f32.mrf.mxu0
      %v1057 = vadd.f32 %v888, %v1056
      %v1058 = vpop.f32.mrf.mxu0
      %v1059 = vadd.f32 %v890, %v1058
      %1060 = vmatmul.bf16.gmra.mxu0 %v734
      %v1061 = vpop.f32.mrf.mxu0
      %v1062 = vadd.f32 %v893, %v1061
      %v1063 = vpop.f32.mrf.mxu0
      %v1064 = vadd.f32 %v895, %v1063
      %1065 = vmatmul.bf16.gmra.mxu0 %v737
      %v1066 = vpop.f32.mrf.mxu0
      %v1067 = vadd.f32 %v898, %v1066
      %v1068 = vpop.f32.mrf.mxu0
      %v1069 = vadd.f32 %v900, %v1068
      %1070 = vmatmul.bf16.gmra.mxu0 %v740
      %v1071 = vpop.f32.mrf.mxu0
      %v1072 = vadd.f32 %v903, %v1071
      %v1073 = vpop.f32.mrf.mxu0
      %v1074 = vadd.f32 %v905, %v1073
      %1075 = vmatmul.bf16.gmra.mxu0 %v743
      %v1076 = vpop.f32.mrf.mxu0
      %v1077 = vadd.f32 %v908, %v1076
      %v1078 = vpop.f32.mrf.mxu0
      %v1079 = vadd.f32 %v910, %v1078
      %1080 = vmatmul.bf16.gmra.mxu0 %v746
      %v1081 = vpop.f32.mrf.mxu0
      %v1082 = vadd.f32 %v913, %v1081
      %v1083 = vpop.f32.mrf.mxu0
      %v1084 = vadd.f32 %v915, %v1083
      %1085 = vmatmul.bf16.gmra.mxu0 %v749
      %v1086 = vpop.f32.mrf.mxu0
      %v1087 = vadd.f32 %v918, %v1086
      %v1088 = vpop.f32.mrf.mxu0
      %v1089 = vadd.f32 %v920, %v1088
      %1090 = vmatmul.bf16.gmra.mxu0 %v752
      %v1091 = vpop.f32.mrf.mxu0
      %v1092 = vadd.f32 %v923, %v1091
      %v1093 = vpop.f32.mrf.mxu0
      %v1094 = vadd.f32 %v925, %v1093
      %1095 = vdwg.mxu0
      %v1096 = vld [vmem:[%s2] sm:$0x1]
      %v1098 = vperm.slane %v1096, 0
      %v1100 = vmul.f32 %v937, %v1098
      %v1101 = vmul.f32 %v939, %v1098
      %v1102 = vmul.f32 %v942, %v1098
      %v1103 = vmul.f32 %v944, %v1098
      %v1104 = vmul.f32 %v947, %v1098
      %v1105 = vmul.f32 %v949, %v1098
      %v1106 = vmul.f32 %v952, %v1098
      %v1107 = vmul.f32 %v954, %v1098
      %v1108 = vmul.f32 %v957, %v1098
      %v1109 = vmul.f32 %v959, %v1098
      %v1110 = vmul.f32 %v962, %v1098
      %v1111 = vmul.f32 %v964, %v1098
      %v1112 = vmul.f32 %v967, %v1098
      %v1113 = vmul.f32 %v969, %v1098
      %v1114 = vmul.f32 %v972, %v1098
      %v1115 = vmul.f32 %v974, %v1098
      %v1116 = vmul.f32 %v977, %v1098
      %v1117 = vmul.f32 %v979, %v1098
      %v1118 = vmul.f32 %v982, %v1098
      %v1119 = vmul.f32 %v984, %v1098
      %v1120 = vmul.f32 %v987, %v1098
      %v1121 = vmul.f32 %v989, %v1098
      %v1122 = vmul.f32 %v992, %v1098
      %v1123 = vmul.f32 %v994, %v1098
      %v1124 = vmul.f32 %v997, %v1098
      %v1125 = vmul.f32 %v999, %v1098
      %v1126 = vmul.f32 %v1002, %v1098
      %v1127 = vmul.f32 %v1004, %v1098
      %v1128 = vmul.f32 %v1007, %v1098
      %v1129 = vmul.f32 %v1009, %v1098
      %v1130 = vmul.f32 %v1012, %v1098
      %v1131 = vmul.f32 %v1014, %v1098
      %v1132 = vmul.f32 %v1017, %v1098
      %v1133 = vmul.f32 %v1019, %v1098
      %v1134 = vmul.f32 %v1022, %v1098
      %v1135 = vmul.f32 %v1024, %v1098
      %v1136 = vmul.f32 %v1027, %v1098
      %v1137 = vmul.f32 %v1029, %v1098
      %v1138 = vmul.f32 %v1032, %v1098
      %v1139 = vmul.f32 %v1034, %v1098
      %v1140 = vmul.f32 %v1037, %v1098
      %v1141 = vmul.f32 %v1039, %v1098
      %v1142 = vmul.f32 %v1042, %v1098
      %v1143 = vmul.f32 %v1044, %v1098
      %v1144 = vmul.f32 %v1047, %v1098
      %v1145 = vmul.f32 %v1049, %v1098
      %v1146 = vmul.f32 %v1052, %v1098
      %v1147 = vmul.f32 %v1054, %v1098
      %v1148 = vmul.f32 %v1057, %v1098
      %v1149 = vmul.f32 %v1059, %v1098
      %v1150 = vmul.f32 %v1062, %v1098
      %v1151 = vmul.f32 %v1064, %v1098
      %v1152 = vmul.f32 %v1067, %v1098
      %v1153 = vmul.f32 %v1069, %v1098
      %v1154 = vmul.f32 %v1072, %v1098
      %v1155 = vmul.f32 %v1074, %v1098
      %v1156 = vmul.f32 %v1077, %v1098
      %v1157 = vmul.f32 %v1079, %v1098
      %v1158 = vmul.f32 %v1082, %v1098
      %v1159 = vmul.f32 %v1084, %v1098
      %v1160 = vmul.f32 %v1087, %v1098
      %v1161 = vmul.f32 %v1089, %v1098
      %v1162 = vmul.f32 %v1092, %v1098
      %v1163 = vmul.f32 %v1094, %v1098
      %v1164 = vld [vmem:[%s3] sm:$0x1]
      %v1166 = vperm.slane %v1164, 0
      %v1168 = vadd.f32 %v1100, %v1166
      %v1169 = vadd.f32 %v1101, %v1166
      %v1170 = vadd.f32 %v1102, %v1166
      %v1171 = vadd.f32 %v1103, %v1166
      %v1172 = vadd.f32 %v1104, %v1166
      %v1173 = vadd.f32 %v1105, %v1166
      %v1174 = vadd.f32 %v1106, %v1166
      %v1175 = vadd.f32 %v1107, %v1166
      %v1176 = vadd.f32 %v1108, %v1166
      %v1177 = vadd.f32 %v1109, %v1166
      %v1178 = vadd.f32 %v1110, %v1166
      %v1179 = vadd.f32 %v1111, %v1166
      %v1180 = vadd.f32 %v1112, %v1166
      %v1181 = vadd.f32 %v1113, %v1166
      %v1182 = vadd.f32 %v1114, %v1166
      %v1183 = vadd.f32 %v1115, %v1166
      %v1184 = vadd.f32 %v1116, %v1166
      %v1185 = vadd.f32 %v1117, %v1166
      %v1186 = vadd.f32 %v1118, %v1166
      %v1187 = vadd.f32 %v1119, %v1166
      %v1188 = vadd.f32 %v1120, %v1166
      %v1189 = vadd.f32 %v1121, %v1166
      %v1190 = vadd.f32 %v1122, %v1166
      %v1191 = vadd.f32 %v1123, %v1166
      %v1192 = vadd.f32 %v1124, %v1166
      %v1193 = vadd.f32 %v1125, %v1166
      %v1194 = vadd.f32 %v1126, %v1166
      %v1195 = vadd.f32 %v1127, %v1166
      %v1196 = vadd.f32 %v1128, %v1166
      %v1197 = vadd.f32 %v1129, %v1166
      %v1198 = vadd.f32 %v1130, %v1166
      %v1199 = vadd.f32 %v1131, %v1166
      %v1200 = vadd.f32 %v1132, %v1166
      %v1201 = vadd.f32 %v1133, %v1166
      %v1202 = vadd.f32 %v1134, %v1166
      %v1203 = vadd.f32 %v1135, %v1166
      %v1204 = vadd.f32 %v1136, %v1166
      %v1205 = vadd.f32 %v1137, %v1166
      %v1206 = vadd.f32 %v1138, %v1166
      %v1207 = vadd.f32 %v1139, %v1166
      %v1208 = vadd.f32 %v1140, %v1166
      %v1209 = vadd.f32 %v1141, %v1166
      %v1210 = vadd.f32 %v1142, %v1166
      %v1211 = vadd.f32 %v1143, %v1166
      %v1212 = vadd.f32 %v1144, %v1166
      %v1213 = vadd.f32 %v1145, %v1166
      %v1214 = vadd.f32 %v1146, %v1166
      %v1215 = vadd.f32 %v1147, %v1166
      %v1216 = vadd.f32 %v1148, %v1166
      %v1217 = vadd.f32 %v1149, %v1166
      %v1218 = vadd.f32 %v1150, %v1166
      %v1219 = vadd.f32 %v1151, %v1166
      %v1220 = vadd.f32 %v1152, %v1166
      %v1221 = vadd.f32 %v1153, %v1166
      %v1222 = vadd.f32 %v1154, %v1166
      %v1223 = vadd.f32 %v1155, %v1166
      %v1224 = vadd.f32 %v1156, %v1166
      %v1225 = vadd.f32 %v1157, %v1166
      %v1226 = vadd.f32 %v1158, %v1166
      %v1227 = vadd.f32 %v1159, %v1166
      %v1228 = vadd.f32 %v1160, %v1166
      %v1229 = vadd.f32 %v1161, %v1166
      %v1230 = vadd.f32 %v1162, %v1166
      %v1231 = vadd.f32 %v1163, %v1166
      %v1232 = vpack.c.bf16 %v1168, %v1168
      %v1233 = vpack.c.bf16 %v1169, %v1169
      %v1234 = vpack.c.bf16 %v1170, %v1170
      %v1235 = vpack.c.bf16 %v1171, %v1171
      %v1236 = vpack.c.bf16 %v1172, %v1172
      %v1237 = vpack.c.bf16 %v1173, %v1173
      %v1238 = vpack.c.bf16 %v1174, %v1174
      %v1239 = vpack.c.bf16 %v1175, %v1175
      %v1240 = vpack.c.bf16 %v1176, %v1176
      %v1241 = vpack.c.bf16 %v1177, %v1177
      %v1242 = vpack.c.bf16 %v1178, %v1178
      %v1243 = vpack.c.bf16 %v1179, %v1179
      %v1244 = vpack.c.bf16 %v1180, %v1180
      %v1245 = vpack.c.bf16 %v1181, %v1181
      %v1246 = vpack.c.bf16 %v1182, %v1182
      %v1247 = vpack.c.bf16 %v1183, %v1183
      %v1248 = vpack.c.bf16 %v1184, %v1184
      %v1249 = vpack.c.bf16 %v1185, %v1185
      %v1250 = vpack.c.bf16 %v1186, %v1186
      %v1251 = vpack.c.bf16 %v1187, %v1187
      %v1252 = vpack.c.bf16 %v1188, %v1188
      %v1253 = vpack.c.bf16 %v1189, %v1189
      %v1254 = vpack.c.bf16 %v1190, %v1190
      %v1255 = vpack.c.bf16 %v1191, %v1191
      %v1256 = vpack.c.bf16 %v1192, %v1192
      %v1257 = vpack.c.bf16 %v1193, %v1193
      %v1258 = vpack.c.bf16 %v1194, %v1194
      %v1259 = vpack.c.bf16 %v1195, %v1195
      %v1260 = vpack.c.bf16 %v1196, %v1196
      %v1261 = vpack.c.bf16 %v1197, %v1197
      %v1262 = vpack.c.bf16 %v1198, %v1198
      %v1263 = vpack.c.bf16 %v1199, %v1199
      %v1264 = vpack.c.bf16 %v1200, %v1200
      %v1265 = vpack.c.bf16 %v1201, %v1201
      %v1266 = vpack.c.bf16 %v1202, %v1202
      %v1267 = vpack.c.bf16 %v1203, %v1203
      %v1268 = vpack.c.bf16 %v1204, %v1204
      %v1269 = vpack.c.bf16 %v1205, %v1205
      %v1270 = vpack.c.bf16 %v1206, %v1206
      %v1271 = vpack.c.bf16 %v1207, %v1207
      %v1272 = vpack.c.bf16 %v1208, %v1208
      %v1273 = vpack.c.bf16 %v1209, %v1209
      %v1274 = vpack.c.bf16 %v1210, %v1210
      %v1275 = vpack.c.bf16 %v1211, %v1211
      %v1276 = vpack.c.bf16 %v1212, %v1212
      %v1277 = vpack.c.bf16 %v1213, %v1213
      %v1278 = vpack.c.bf16 %v1214, %v1214
      %v1279 = vpack.c.bf16 %v1215, %v1215
      %v1280 = vpack.c.bf16 %v1216, %v1216
      %v1281 = vpack.c.bf16 %v1217, %v1217
      %v1282 = vpack.c.bf16 %v1218, %v1218
      %v1283 = vpack.c.bf16 %v1219, %v1219
      %v1284 = vpack.c.bf16 %v1220, %v1220
      %v1285 = vpack.c.bf16 %v1221, %v1221
      %v1286 = vpack.c.bf16 %v1222, %v1222
      %v1287 = vpack.c.bf16 %v1223, %v1223
      %v1288 = vpack.c.bf16 %v1224, %v1224
      %v1289 = vpack.c.bf16 %v1225, %v1225
      %v1290 = vpack.c.bf16 %v1226, %v1226
      %v1291 = vpack.c.bf16 %v1227, %v1227
      %v1292 = vpack.c.bf16 %v1228, %v1228
      %v1293 = vpack.c.bf16 %v1229, %v1229
      %v1294 = vpack.c.bf16 %v1230, %v1230
      %v1295 = vpack.c.bf16 %v1231, %v1231
      %vm1296 = vcmask 257024
      %1297 = vst.msk [vmem:[%s202] sm:$0xf] %vm1296, %v1232
      %1298 = vst.msk [vmem:[%s202 + $0x4] sm:$0xf] %vm1296, %v1233
      %1299 = vst.msk [vmem:[%s202 + $0x8] sm:$0xf] %vm1296, %v1234
      %1300 = vst.msk [vmem:[%s202 + $0xc] sm:$0xf] %vm1296, %v1235
      %1301 = vst.msk [vmem:[%s202 + $0x10] sm:$0xf] %vm1296, %v1236
      %1302 = vst.msk [vmem:[%s202 + $0x14] sm:$0xf] %vm1296, %v1237
      %1303 = vst.msk [vmem:[%s202 + $0x18] sm:$0xf] %vm1296, %v1238
      %1304 = vst.msk [vmem:[%s202 + $0x1c] sm:$0xf] %vm1296, %v1239
      %1305 = vst.msk [vmem:[%s202 + $0x20] sm:$0xf] %vm1296, %v1240
      %1306 = vst.msk [vmem:[%s202 + $0x24] sm:$0xf] %vm1296, %v1241
      %1307 = vst.msk [vmem:[%s202 + $0x28] sm:$0xf] %vm1296, %v1242
      %1308 = vst.msk [vmem:[%s202 + $0x2c] sm:$0xf] %vm1296, %v1243
      %1309 = vst.msk [vmem:[%s202 + $0x30] sm:$0xf] %vm1296, %v1244
      %1310 = vst.msk [vmem:[%s202 + $0x34] sm:$0xf] %vm1296, %v1245
      %1311 = vst.msk [vmem:[%s202 + $0x38] sm:$0xf] %vm1296, %v1246
      %1312 = vst.msk [vmem:[%s202 + $0x3c] sm:$0xf] %vm1296, %v1247
      %1313 = vst.msk [vmem:[%s202 + $0x40] sm:$0xf] %vm1296, %v1248
      %1314 = vst.msk [vmem:[%s202 + $0x44] sm:$0xf] %vm1296, %v1249
      %1315 = vst.msk [vmem:[%s202 + $0x48] sm:$0xf] %vm1296, %v1250
      %1316 = vst.msk [vmem:[%s202 + $0x4c] sm:$0xf] %vm1296, %v1251
      %1317 = vst.msk [vmem:[%s202 + $0x50] sm:$0xf] %vm1296, %v1252
      %1318 = vst.msk [vmem:[%s202 + $0x54] sm:$0xf] %vm1296, %v1253
      %1319 = vst.msk [vmem:[%s202 + $0x58] sm:$0xf] %vm1296, %v1254
      %1320 = vst.msk [vmem:[%s202 + $0x5c] sm:$0xf] %vm1296, %v1255
      %1321 = vst.msk [vmem:[%s202 + $0x60] sm:$0xf] %vm1296, %v1256
      %1322 = vst.msk [vmem:[%s202 + $0x64] sm:$0xf] %vm1296, %v1257
      %1323 = vst.msk [vmem:[%s202 + $0x68] sm:$0xf] %vm1296, %v1258
      %1324 = vst.msk [vmem:[%s202 + $0x6c] sm:$0xf] %vm1296, %v1259
      %1325 = vst.msk [vmem:[%s202 + $0x70] sm:$0xf] %vm1296, %v1260
      %1326 = vst.msk [vmem:[%s202 + $0x74] sm:$0xf] %vm1296, %v1261
      %1327 = vst.msk [vmem:[%s202 + $0x78] sm:$0xf] %vm1296, %v1262
      %1328 = vst.msk [vmem:[%s202 + $0x7c] sm:$0xf] %vm1296, %v1263
      %1329 = vst.msk [vmem:[%s202 + $0x80] sm:$0xf] %vm1296, %v1264
      %1330 = vst.msk [vmem:[%s202 + $0x84] sm:$0xf] %vm1296, %v1265
      %1331 = vst.msk [vmem:[%s202 + $0x88] sm:$0xf] %vm1296, %v1266
      %1332 = vst.msk [vmem:[%s202 + $0x8c] sm:$0xf] %vm1296, %v1267
      %1333 = vst.msk [vmem:[%s202 + $0x90] sm:$0xf] %vm1296, %v1268
      %1334 = vst.msk [vmem:[%s202 + $0x94] sm:$0xf] %vm1296, %v1269
      %1335 = vst.msk [vmem:[%s202 + $0x98] sm:$0xf] %vm1296, %v1270
      %1336 = vst.msk [vmem:[%s202 + $0x9c] sm:$0xf] %vm1296, %v1271
      %1337 = vst.msk [vmem:[%s202 + $0xa0] sm:$0xf] %vm1296, %v1272
      %1338 = vst.msk [vmem:[%s202 + $0xa4] sm:$0xf] %vm1296, %v1273
      %1339 = vst.msk [vmem:[%s202 + $0xa8] sm:$0xf] %vm1296, %v1274
      %1340 = vst.msk [vmem:[%s202 + $0xac] sm:$0xf] %vm1296, %v1275
      %1341 = vst.msk [vmem:[%s202 + $0xb0] sm:$0xf] %vm1296, %v1276
      %1342 = vst.msk [vmem:[%s202 + $0xb4] sm:$0xf] %vm1296, %v1277
      %1343 = vst.msk [vmem:[%s202 + $0xb8] sm:$0xf] %vm1296, %v1278
      %1344 = vst.msk [vmem:[%s202 + $0xbc] sm:$0xf] %vm1296, %v1279
      %1345 = vst.msk [vmem:[%s202 + $0xc0] sm:$0xf] %vm1296, %v1280
      %1346 = vst.msk [vmem:[%s202 + $0xc4] sm:$0xf] %vm1296, %v1281
      %1347 = vst.msk [vmem:[%s202 + $0xc8] sm:$0xf] %vm1296, %v1282
      %1348 = vst.msk [vmem:[%s202 + $0xcc] sm:$0xf] %vm1296, %v1283
      %1349 = vst.msk [vmem:[%s202 + $0xd0] sm:$0xf] %vm1296, %v1284
      %1350 = vst.msk [vmem:[%s202 + $0xd4] sm:$0xf] %vm1296, %v1285
      %1351 = vst.msk [vmem:[%s202 + $0xd8] sm:$0xf] %vm1296, %v1286
      %1352 = vst.msk [vmem:[%s202 + $0xdc] sm:$0xf] %vm1296, %v1287
      %1353 = vst.msk [vmem:[%s202 + $0xe0] sm:$0xf] %vm1296, %v1288
      %1354 = vst.msk [vmem:[%s202 + $0xe4] sm:$0xf] %vm1296, %v1289
      %1355 = vst.msk [vmem:[%s202 + $0xe8] sm:$0xf] %vm1296, %v1290
      %1356 = vst.msk [vmem:[%s202 + $0xec] sm:$0xf] %vm1296, %v1291
      %1357 = vst.msk [vmem:[%s202 + $0xf0] sm:$0xf] %vm1296, %v1292
      %1358 = vst.msk [vmem:[%s202 + $0xf4] sm:$0xf] %vm1296, %v1293
      %1359 = vst.msk [vmem:[%s202 + $0xf8] sm:$0xf] %vm1296, %v1294
      %1360 = vst.msk [vmem:[%s202 + $0xfc] sm:$0xf] %vm1296, %v1295
      %s1361 = smul.u32 64, %s15
      %p1362 = scmp.lt.s32.totalorder %s1361, 255
      %s1363 = scalar_select %p1362, %s1361, 255
      %s1364 = smul.addr %s1363, 4
      %s1365 = scalar_lea.vmem %s4, %s1364
      // Predicated region
      $region37: #{audio_cnn_forward.7} parent=35 // pred_check
        %p1366 = pneg %p122
      $region38: #{audio_cnn_forward.7} parent=35 // pred_check_branch
        %1368 = sbr.rel (%p1366) target = $region40
      $region39: #{audio_cnn_forward.7} parent=35 // pred_region
        %s1369 = smul.u32 64, %s15
      $region40: #{audio_cnn_forward.7} parent=35 // pred_fallthru
        _
    $region36: #{audio_cnn_forward.7} parent=5 // pred_fallthru
      _
    %p1370 = scmp.le.s32.totalorder 2, %s10
    // Predicated region
    $region41: #{audio_cnn_forward.7} parent=5 // pred_check
      %p1371 = pneg %p1370
    $region42: #{audio_cnn_forward.7} parent=5 // pred_check_branch
      %1373 = sbr.rel (%p1371) target = $region44
    $region43: #{audio_cnn_forward.7} parent=5 // pred_region
      %s1374 = ssub.s32 %s10, 2
      // Predicated region
      $region45: #{audio_cnn_forward.7} parent=43 // pred_check
        %p1375 = pneg %p128
      $region46: #{audio_cnn_forward.7} parent=43 // pred_check_branch
        %1377 = sbr.rel (%p1375) target = $region48
      $region47: #{audio_cnn_forward.7} parent=43 // pred_region
        %s1378 = smul.u32 64, %s16
        %p1379 = scmp.lt.s32.totalorder %s1378, 255
        %s1380 = scalar_select %p1379, %s1378, 255
        %s1381 = smul.addr %s1380, 4
        %s1382 = scalar_lea.vmem %s4, %s1381
      $region48: #{audio_cnn_forward.7} parent=43 // pred_fallthru
        _
    $region44: #{audio_cnn_forward.7} parent=5 // pred_fallthru
      _
  $region6: #{audio_cnn_forward.7} parent=0 // loop_footer
    %s14 = sadd.s32 1, %s10
  $region7: #{audio_cnn_forward.7} parent=0 // loop_footer_branch
    %9 = sbr.rel target = $region3
  $region8: #{audio_cnn_forward.7} parent=0 // loop_exit
    _

// kernel: audio_cnn_forward.8
$region0: #{audio_cnn_forward.8}
  #allocation0 [shape = 'u32[]', space=smem, size = 0x4, offset = 0x4, fixed_abs, tag = 'smem constant byte address 0x4 - core index']
  #allocation1 [shape = 'u32[72,128]{1,0:T(1,128)}', space=vmem, size = 0x9000, scoped, tag = 'internal scratch']
  %s0 = inlined_call_operand.vmem [shape: bf16[512,288], index: 0, kind: input, shape index: {}]
  %s1 = inlined_call_operand.vmem [shape: bf16[288,64], index: 1, kind: input, shape index: {}]
  %s2 = inlined_call_operand.vmem [shape: f32[1,64], index: 2, kind: input, shape index: {}]
  %s3 = inlined_call_operand.vmem [shape: f32[1,64], index: 3, kind: input, shape index: {}]
  %s4 = inlined_call_operand.vmem [shape: bf16[512,64], index: 4, kind: output, shape index: {}]
  %s5 = sld [smem:[#allocation0]]
  $region26: #{audio_cnn_forward.8} parent=0
    _
  %s7 = ssub.s32 1, %s5
  %s8 = scalar_select 0, %s7, %s5
  // Predicated region
  $region2: #{audio_cnn_forward.8} parent=0 // pred_check
    _
  $region3: #{audio_cnn_forward.8} parent=0 // pred_check_branch
    %10 = sbr.rel (0) target = $region5
  $region4: #{audio_cnn_forward.8} parent=0 // pred_region
    _
  $region5: #{audio_cnn_forward.8} parent=0 // pred_fallthru
    _
  // Predicated region
  $region6: #{audio_cnn_forward.8} parent=0 // pred_check
    _
  $region7: #{audio_cnn_forward.8} parent=0 // pred_check_branch
    %12 = sbr.rel (0) target = $region9
  $region8: #{audio_cnn_forward.8} parent=0 // pred_region
    _
  $region9: #{audio_cnn_forward.8} parent=0 // pred_fallthru
    _
  // Predicated region
  $region10: #{audio_cnn_forward.8} parent=0 // pred_check
    _
  $region11: #{audio_cnn_forward.8} parent=0 // pred_check_branch
    %14 = sbr.rel (0) target = $region13
  $region12: #{audio_cnn_forward.8} parent=0 // pred_region
    _
  $region13: #{audio_cnn_forward.8} parent=0 // pred_fallthru
    _
  // Predicated region
  $region14: #{audio_cnn_forward.8} parent=0 // pred_check
    _
  $region15: #{audio_cnn_forward.8} parent=0 // pred_check_branch
    %16 = sbr.rel (0) target = $region17
  $region16: #{audio_cnn_forward.8} parent=0 // pred_region
    _
  $region17: #{audio_cnn_forward.8} parent=0 // pred_fallthru
    _
  %v18 = vld [vmem:[%s0] sm:$0xff]
  %v19 = vld [vmem:[%s0 + $0x8] sm:$0xf]
  %v20 = vld [vmem:[%s0 + $0xc] sm:$0xff]
  %v21 = vld [vmem:[%s0 + $0x14] sm:$0xf]
  %v22 = vld [vmem:[%s0 + $0x18] sm:$0xff]
  %v23 = vld [vmem:[%s0 + $0x20] sm:$0xf]
  %v24 = vld [vmem:[%s0 + $0x24] sm:$0xff]
  %v25 = vld [vmem:[%s0 + $0x2c] sm:$0xf]
  %v26 = vld [vmem:[%s0 + $0x30] sm:$0xff]
  %v27 = vld [vmem:[%s0 + $0x38] sm:$0xf]
  %v28 = vld [vmem:[%s0 + $0x3c] sm:$0xff]
  %v29 = vld [vmem:[%s0 + $0x44] sm:$0xf]
  %v30 = vld [vmem:[%s0 + $0x48] sm:$0xff]
  %v31 = vld [vmem:[%s0 + $0x50] sm:$0xf]
  %v32 = vld [vmem:[%s0 + $0x54] sm:$0xff]
  %v33 = vld [vmem:[%s0 + $0x5c] sm:$0xf]
  %v34 = vld [vmem:[%s0 + $0x60] sm:$0xff]
  %v35 = vld [vmem:[%s0 + $0x68] sm:$0xf]
  %v36 = vld [vmem:[%s0 + $0x6c] sm:$0xff]
  %v37 = vld [vmem:[%s0 + $0x74] sm:$0xf]
  %v38 = vld [vmem:[%s0 + $0x78] sm:$0xff]
  %v39 = vld [vmem:[%s0 + $0x80] sm:$0xf]
  %v40 = vld [vmem:[%s0 + $0x84] sm:$0xff]
  %v41 = vld [vmem:[%s0 + $0x8c] sm:$0xf]
  %v42 = vld [vmem:[%s0 + $0x90] sm:$0xff]
  %v43 = vld [vmem:[%s0 + $0x98] sm:$0xf]
  %v44 = vld [vmem:[%s0 + $0x9c] sm:$0xff]
  %v45 = vld [vmem:[%s0 + $0xa4] sm:$0xf]
  %v46 = vld [vmem:[%s0 + $0xa8] sm:$0xff]
  %v47 = vld [vmem:[%s0 + $0xb0] sm:$0xf]
  %v48 = vld [vmem:[%s0 + $0xb4] sm:$0xff]
  %v49 = vld [vmem:[%s0 + $0xbc] sm:$0xf]
  %v50 = vld [vmem:[%s0 + $0xc0] sm:$0xff]
  %v51 = vld [vmem:[%s0 + $0xc8] sm:$0xf]
  %v52 = vld [vmem:[%s0 + $0xcc] sm:$0xff]
  %v53 = vld [vmem:[%s0 + $0xd4] sm:$0xf]
  %v54 = vld [vmem:[%s0 + $0xd8] sm:$0xff]
  %v55 = vld [vmem:[%s0 + $0xe0] sm:$0xf]
  %v56 = vld [vmem:[%s0 + $0xe4] sm:$0xff]
  %v57 = vld [vmem:[%s0 + $0xec] sm:$0xf]
  %v58 = vld [vmem:[%s0 + $0xf0] sm:$0xff]
  %v59 = vld [vmem:[%s0 + $0xf8] sm:$0xf]
  %v60 = vld [vmem:[%s0 + $0xfc] sm:$0xff]
  %v61 = vld [vmem:[%s0 + $0x104] sm:$0xf]
  %v62 = vld [vmem:[%s0 + $0x108] sm:$0xff]
  %v63 = vld [vmem:[%s0 + $0x110] sm:$0xf]
  %v64 = vld [vmem:[%s0 + $0x114] sm:$0xff]
  %v65 = vld [vmem:[%s0 + $0x11c] sm:$0xf]
  %v66 = vld [vmem:[%s0 + $0x120] sm:$0xff]
  %v67 = vld [vmem:[%s0 + $0x128] sm:$0xf]
  %v68 = vld [vmem:[%s0 + $0x12c] sm:$0xff]
  %v69 = vld [vmem:[%s0 + $0x134] sm:$0xf]
  %v70 = vld [vmem:[%s0 + $0x138] sm:$0xff]
  %v71 = vld [vmem:[%s0 + $0x140] sm:$0xf]
  %v72 = vld [vmem:[%s0 + $0x144] sm:$0xff]
  %v73 = vld [vmem:[%s0 + $0x14c] sm:$0xf]
  %v74 = vld [vmem:[%s0 + $0x150] sm:$0xff]
  %v75 = vld [vmem:[%s0 + $0x158] sm:$0xf]
  %v76 = vld [vmem:[%s0 + $0x15c] sm:$0xff]
  %v77 = vld [vmem:[%s0 + $0x164] sm:$0xf]
  %v78 = vld [vmem:[%s0 + $0x168] sm:$0xff]
  %v79 = vld [vmem:[%s0 + $0x170] sm:$0xf]
  %v80 = vld [vmem:[%s0 + $0x174] sm:$0xff]
  %v81 = vld [vmem:[%s0 + $0x17c] sm:$0xf]
  %v82 = vld [vmem:[%s0 + $0x180] sm:$0xff]
  %v83 = vld [vmem:[%s0 + $0x188] sm:$0xf]
  %v84 = vld [vmem:[%s0 + $0x18c] sm:$0xff]
  %v85 = vld [vmem:[%s0 + $0x194] sm:$0xf]
  %v86 = vld [vmem:[%s0 + $0x198] sm:$0xff]
  %v87 = vld [vmem:[%s0 + $0x1a0] sm:$0xf]
  %v88 = vld [vmem:[%s0 + $0x1a4] sm:$0xff]
  %v89 = vld [vmem:[%s0 + $0x1ac] sm:$0xf]
  %v90 = vld [vmem:[%s0 + $0x1b0] sm:$0xff]
  %v91 = vld [vmem:[%s0 + $0x1b8] sm:$0xf]
  %v92 = vld [vmem:[%s0 + $0x1bc] sm:$0xff]
  %v93 = vld [vmem:[%s0 + $0x1c4] sm:$0xf]
  %v94 = vld [vmem:[%s0 + $0x1c8] sm:$0xff]
  %v95 = vld [vmem:[%s0 + $0x1d0] sm:$0xf]
  %v96 = vld [vmem:[%s0 + $0x1d4] sm:$0xff]
  %v97 = vld [vmem:[%s0 + $0x1dc] sm:$0xf]
  %v98 = vld [vmem:[%s0 + $0x1e0] sm:$0xff]
  %v99 = vld [vmem:[%s0 + $0x1e8] sm:$0xf]
  %v100 = vld [vmem:[%s0 + $0x1ec] sm:$0xff]
  %v101 = vld [vmem:[%s0 + $0x1f4] sm:$0xf]
  %v102 = vld [vmem:[%s0 + $0x1f8] sm:$0xff]
  %v103 = vld [vmem:[%s0 + $0x200] sm:$0xf]
  %v104 = vld [vmem:[%s0 + $0x204] sm:$0xff]
  %v105 = vld [vmem:[%s0 + $0x20c] sm:$0xf]
  %v106 = vld [vmem:[%s0 + $0x210] sm:$0xff]
  %v107 = vld [vmem:[%s0 + $0x218] sm:$0xf]
  %v108 = vld [vmem:[%s0 + $0x21c] sm:$0xff]
  %v109 = vld [vmem:[%s0 + $0x224] sm:$0xf]
  %v110 = vld [vmem:[%s0 + $0x228] sm:$0xff]
  %v111 = vld [vmem:[%s0 + $0x230] sm:$0xf]
  %v112 = vld [vmem:[%s0 + $0x234] sm:$0xff]
  %v113 = vld [vmem:[%s0 + $0x23c] sm:$0xf]
  %v114 = vld [vmem:[%s0 + $0x240] sm:$0xff]
  %v115 = vld [vmem:[%s0 + $0x248] sm:$0xf]
  %v116 = vld [vmem:[%s0 + $0x24c] sm:$0xff]
  %v117 = vld [vmem:[%s0 + $0x254] sm:$0xf]
  %v118 = vld [vmem:[%s0 + $0x258] sm:$0xff]
  %v119 = vld [vmem:[%s0 + $0x260] sm:$0xf]
  %v120 = vld [vmem:[%s0 + $0x264] sm:$0xff]
  %v121 = vld [vmem:[%s0 + $0x26c] sm:$0xf]
  %v122 = vld [vmem:[%s0 + $0x270] sm:$0xff]
  %v123 = vld [vmem:[%s0 + $0x278] sm:$0xf]
  %v124 = vld [vmem:[%s0 + $0x27c] sm:$0xff]
  %v125 = vld [vmem:[%s0 + $0x284] sm:$0xf]
  %v126 = vld [vmem:[%s0 + $0x288] sm:$0xff]
  %v127 = vld [vmem:[%s0 + $0x290] sm:$0xf]
  %v128 = vld [vmem:[%s0 + $0x294] sm:$0xff]
  %v129 = vld [vmem:[%s0 + $0x29c] sm:$0xf]
  %v130 = vld [vmem:[%s0 + $0x2a0] sm:$0xff]
  %v131 = vld [vmem:[%s0 + $0x2a8] sm:$0xf]
  %v132 = vld [vmem:[%s0 + $0x2ac] sm:$0xff]
  %v133 = vld [vmem:[%s0 + $0x2b4] sm:$0xf]
  %v134 = vld [vmem:[%s0 + $0x2b8] sm:$0xff]
  %v135 = vld [vmem:[%s0 + $0x2c0] sm:$0xf]
  %v136 = vld [vmem:[%s0 + $0x2c4] sm:$0xff]
  %v137 = vld [vmem:[%s0 + $0x2cc] sm:$0xf]
  %v138 = vld [vmem:[%s0 + $0x2d0] sm:$0xff]
  %v139 = vld [vmem:[%s0 + $0x2d8] sm:$0xf]
  %v140 = vld [vmem:[%s0 + $0x2dc] sm:$0xff]
  %v141 = vld [vmem:[%s0 + $0x2e4] sm:$0xf]
  %v142 = vld [vmem:[%s0 + $0x2e8] sm:$0xff]
  %v143 = vld [vmem:[%s0 + $0x2f0] sm:$0xf]
  %v144 = vld [vmem:[%s0 + $0x2f4] sm:$0xff]
  %v145 = vld [vmem:[%s0 + $0x2fc] sm:$0xf]
  %v146 = vld [vmem:[%s1] sm:$0xf]
  %v147 = vld [vmem:[%s1 + $0x4] sm:$0xf]
  %v148 = vld [vmem:[%s1 + $0x8] sm:$0xf]
  %v149 = vld [vmem:[%s1 + $0xc] sm:$0xf]
  %v150 = vld [vmem:[%s1 + $0x10] sm:$0xf]
  %v151 = vld [vmem:[%s1 + $0x14] sm:$0xf]
  %v152 = vld [vmem:[%s1 + $0x18] sm:$0xf]
  %v153 = vld [vmem:[%s1 + $0x1c] sm:$0xf]
  %v154 = vld [vmem:[%s1 + $0x20] sm:$0xf]
  %v155 = vld [vmem:[%s1 + $0x24] sm:$0xf]
  %v156 = vld [vmem:[%s1 + $0x28] sm:$0xf]
  %v157 = vld [vmem:[%s1 + $0x2c] sm:$0xf]
  %v158 = vld [vmem:[%s1 + $0x30] sm:$0xf]
  %v159 = vld [vmem:[%s1 + $0x34] sm:$0xf]
  %v160 = vld [vmem:[%s1 + $0x38] sm:$0xf]
  %v161 = vld [vmem:[%s1 + $0x3c] sm:$0xf]
  %v162 = vld [vmem:[%s1 + $0x40] sm:$0xf]
  %v163 = vld [vmem:[%s1 + $0x44] sm:$0xf]
  %v164 = vld [vmem:[%s1 + $0x48] sm:$0xf]
  %v165 = vld [vmem:[%s1 + $0x4c] sm:$0xf]
  %v166 = vld [vmem:[%s1 + $0x50] sm:$0xf]
  %v167 = vld [vmem:[%s1 + $0x54] sm:$0xf]
  %v168 = vld [vmem:[%s1 + $0x58] sm:$0xf]
  %v169 = vld [vmem:[%s1 + $0x5c] sm:$0xf]
  %v170 = vld [vmem:[%s1 + $0x60] sm:$0xf]
  %v171 = vld [vmem:[%s1 + $0x64] sm:$0xf]
  %v172 = vld [vmem:[%s1 + $0x68] sm:$0xf]
  %v173 = vld [vmem:[%s1 + $0x6c] sm:$0xf]
  %v174 = vld [vmem:[%s1 + $0x70] sm:$0xf]
  %v175 = vld [vmem:[%s1 + $0x74] sm:$0xf]
  %v176 = vld [vmem:[%s1 + $0x78] sm:$0xf]
  %v177 = vld [vmem:[%s1 + $0x7c] sm:$0xf]
  %v178 = vld [vmem:[%s1 + $0x80] sm:$0xf]
  %v179 = vld [vmem:[%s1 + $0x84] sm:$0xf]
  %v180 = vld [vmem:[%s1 + $0x88] sm:$0xf]
  %v181 = vld [vmem:[%s1 + $0x8c] sm:$0xf]
  %v310 = vunpack.c.l.b16 %v18
  %v311 = vunpack.c.h.b16 %v18
  %v312 = vunpack.c.l.b16 %v19
  %v313 = vunpack.c.l.b16 %v20
  %v314 = vunpack.c.h.b16 %v20
  %v315 = vunpack.c.l.b16 %v21
  %v316 = vunpack.c.l.b16 %v22
  %v317 = vunpack.c.h.b16 %v22
  %v318 = vunpack.c.l.b16 %v23
  %v319 = vunpack.c.l.b16 %v24
  %v320 = vunpack.c.h.b16 %v24
  %v321 = vunpack.c.l.b16 %v25
  %v322 = vunpack.c.l.b16 %v26
  %v323 = vunpack.c.h.b16 %v26
  %v324 = vunpack.c.l.b16 %v27
  %v325 = vunpack.c.l.b16 %v28
  %v326 = vunpack.c.h.b16 %v28
  %v327 = vunpack.c.l.b16 %v29
  %v328 = vunpack.c.l.b16 %v30
  %v329 = vunpack.c.h.b16 %v30
  %v330 = vunpack.c.l.b16 %v31
  %v331 = vunpack.c.l.b16 %v32
  %v332 = vunpack.c.h.b16 %v32
  %v333 = vunpack.c.l.b16 %v33
  %v334 = vunpack.c.l.b16 %v34
  %v335 = vunpack.c.h.b16 %v34
  %v336 = vunpack.c.l.b16 %v35
  %v337 = vunpack.c.l.b16 %v36
  %v338 = vunpack.c.h.b16 %v36
  %v339 = vunpack.c.l.b16 %v37
  %v340 = vunpack.c.l.b16 %v38
  %v341 = vunpack.c.h.b16 %v38
  %v342 = vunpack.c.l.b16 %v39
  %v343 = vunpack.c.l.b16 %v40
  %v344 = vunpack.c.h.b16 %v40
  %v345 = vunpack.c.l.b16 %v41
  %v346 = vunpack.c.l.b16 %v42
  %v347 = vunpack.c.h.b16 %v42
  %v348 = vunpack.c.l.b16 %v43
  %v349 = vunpack.c.l.b16 %v44
  %v350 = vunpack.c.h.b16 %v44
  %v351 = vunpack.c.l.b16 %v45
  %v352 = vunpack.c.l.b16 %v46
  %v353 = vunpack.c.h.b16 %v46
  %v354 = vunpack.c.l.b16 %v47
  %v355 = vunpack.c.l.b16 %v48
  %v356 = vunpack.c.h.b16 %v48
  %v357 = vunpack.c.l.b16 %v49
  %v358 = vunpack.c.l.b16 %v50
  %v359 = vunpack.c.h.b16 %v50
  %v360 = vunpack.c.l.b16 %v51
  %v361 = vunpack.c.l.b16 %v52
  %v362 = vunpack.c.h.b16 %v52
  %v363 = vunpack.c.l.b16 %v53
  %v364 = vunpack.c.l.b16 %v54
  %v365 = vunpack.c.h.b16 %v54
  %v366 = vunpack.c.l.b16 %v55
  %v367 = vunpack.c.l.b16 %v56
  %v368 = vunpack.c.h.b16 %v56
  %v369 = vunpack.c.l.b16 %v57
  %v370 = vunpack.c.l.b16 %v58
  %v371 = vunpack.c.h.b16 %v58
  %v372 = vunpack.c.l.b16 %v59
  %v373 = vunpack.c.l.b16 %v60
  %v374 = vunpack.c.h.b16 %v60
  %v375 = vunpack.c.l.b16 %v61
  %v376 = vunpack.c.l.b16 %v62
  %v377 = vunpack.c.h.b16 %v62
  %v378 = vunpack.c.l.b16 %v63
  %v379 = vunpack.c.l.b16 %v64
  %v380 = vunpack.c.h.b16 %v64
  %v381 = vunpack.c.l.b16 %v65
  %v382 = vunpack.c.l.b16 %v66
  %v383 = vunpack.c.h.b16 %v66
  %v384 = vunpack.c.l.b16 %v67
  %v385 = vunpack.c.l.b16 %v68
  %v386 = vunpack.c.h.b16 %v68
  %v387 = vunpack.c.l.b16 %v69
  %v388 = vunpack.c.l.b16 %v70
  %v389 = vunpack.c.h.b16 %v70
  %v390 = vunpack.c.l.b16 %v71
  %v391 = vunpack.c.l.b16 %v72
  %v392 = vunpack.c.h.b16 %v72
  %v393 = vunpack.c.l.b16 %v73
  %v394 = vunpack.c.l.b16 %v74
  %v395 = vunpack.c.h.b16 %v74
  %v396 = vunpack.c.l.b16 %v75
  %v397 = vunpack.c.l.b16 %v76
  %v398 = vunpack.c.h.b16 %v76
  %v399 = vunpack.c.l.b16 %v77
  %v400 = vunpack.c.l.b16 %v78
  %v401 = vunpack.c.h.b16 %v78
  %v402 = vunpack.c.l.b16 %v79
  %v403 = vunpack.c.l.b16 %v80
  %v404 = vunpack.c.h.b16 %v80
  %v405 = vunpack.c.l.b16 %v81
  %v406 = vunpack.c.l.b16 %v82
  %v407 = vunpack.c.h.b16 %v82
  %v408 = vunpack.c.l.b16 %v83
  %v409 = vunpack.c.l.b16 %v84
  %v410 = vunpack.c.h.b16 %v84
  %v411 = vunpack.c.l.b16 %v85
  %v412 = vunpack.c.l.b16 %v86
  %v413 = vunpack.c.h.b16 %v86
  %v414 = vunpack.c.l.b16 %v87
  %v415 = vunpack.c.l.b16 %v88
  %v416 = vunpack.c.h.b16 %v88
  %v417 = vunpack.c.l.b16 %v89
  %v418 = vunpack.c.l.b16 %v90
  %v419 = vunpack.c.h.b16 %v90
  %v420 = vunpack.c.l.b16 %v91
  %v421 = vunpack.c.l.b16 %v92
  %v422 = vunpack.c.h.b16 %v92
  %v423 = vunpack.c.l.b16 %v93
  %v424 = vunpack.c.l.b16 %v94
  %v425 = vunpack.c.h.b16 %v94
  %v426 = vunpack.c.l.b16 %v95
  %v427 = vunpack.c.l.b16 %v96
  %v428 = vunpack.c.h.b16 %v96
  %v429 = vunpack.c.l.b16 %v97
  %v430 = vunpack.c.l.b16 %v98
  %v431 = vunpack.c.h.b16 %v98
  %v432 = vunpack.c.l.b16 %v99
  %v433 = vunpack.c.l.b16 %v100
  %v434 = vunpack.c.h.b16 %v100
  %v435 = vunpack.c.l.b16 %v101
  %v436 = vunpack.c.l.b16 %v102
  %v437 = vunpack.c.h.b16 %v102
  %v438 = vunpack.c.l.b16 %v103
  %v439 = vunpack.c.l.b16 %v104
  %v440 = vunpack.c.h.b16 %v104
  %v441 = vunpack.c.l.b16 %v105
  %v442 = vunpack.c.l.b16 %v106
  %v443 = vunpack.c.h.b16 %v106
  %v444 = vunpack.c.l.b16 %v107
  %v445 = vunpack.c.l.b16 %v108
  %v446 = vunpack.c.h.b16 %v108
  %v447 = vunpack.c.l.b16 %v109
  %v448 = vunpack.c.l.b16 %v110
  %v449 = vunpack.c.h.b16 %v110
  %v450 = vunpack.c.l.b16 %v111
  %v451 = vunpack.c.l.b16 %v112
  %v452 = vunpack.c.h.b16 %v112
  %v453 = vunpack.c.l.b16 %v113
  %v454 = vunpack.c.l.b16 %v114
  %v455 = vunpack.c.h.b16 %v114
  %v456 = vunpack.c.l.b16 %v115
  %v457 = vunpack.c.l.b16 %v116
  %v458 = vunpack.c.h.b16 %v116
  %v459 = vunpack.c.l.b16 %v117
  %v460 = vunpack.c.l.b16 %v118
  %v461 = vunpack.c.h.b16 %v118
  %v462 = vunpack.c.l.b16 %v119
  %v463 = vunpack.c.l.b16 %v120
  %v464 = vunpack.c.h.b16 %v120
  %v465 = vunpack.c.l.b16 %v121
  %v466 = vunpack.c.l.b16 %v122
  %v467 = vunpack.c.h.b16 %v122
  %v468 = vunpack.c.l.b16 %v123
  %v469 = vunpack.c.l.b16 %v124
  %v470 = vunpack.c.h.b16 %v124
  %v471 = vunpack.c.l.b16 %v125
  %v472 = vunpack.c.l.b16 %v126
  %v473 = vunpack.c.h.b16 %v126
  %v474 = vunpack.c.l.b16 %v127
  %v475 = vunpack.c.l.b16 %v128
  %v476 = vunpack.c.h.b16 %v128
  %v477 = vunpack.c.l.b16 %v129
  %v478 = vunpack.c.l.b16 %v130
  %v479 = vunpack.c.h.b16 %v130
  %v480 = vunpack.c.l.b16 %v131
  %v481 = vunpack.c.l.b16 %v132
  %v482 = vunpack.c.h.b16 %v132
  %v483 = vunpack.c.l.b16 %v133
  %v484 = vunpack.c.l.b16 %v134
  %v485 = vunpack.c.h.b16 %v134
  %v486 = vunpack.c.l.b16 %v135
  %v487 = vunpack.c.l.b16 %v136
  %v488 = vunpack.c.h.b16 %v136
  %v489 = vunpack.c.l.b16 %v137
  %v490 = vunpack.c.l.b16 %v138
  %v491 = vunpack.c.h.b16 %v138
  %v492 = vunpack.c.l.b16 %v139
  %v493 = vunpack.c.l.b16 %v140
  %v494 = vunpack.c.h.b16 %v140
  %v495 = vunpack.c.l.b16 %v141
  %v496 = vunpack.c.l.b16 %v142
  %v497 = vunpack.c.h.b16 %v142
  %v498 = vunpack.c.l.b16 %v143
  %v499 = vunpack.c.l.b16 %v144
  %v500 = vunpack.c.h.b16 %v144
  %v501 = vunpack.c.l.b16 %v145
  %v502 = vpack.c.b16 %v313, %v310
  %v503 = vpack.c.b16 %v314, %v311
  %v504 = vpack.c.b16 %v315, %v312
  %v505 = vpack.c.b16 %v319, %v316
  %v506 = vpack.c.b16 %v320, %v317
  %v507 = vpack.c.b16 %v321, %v318
  %v508 = vpack.c.b16 %v325, %v322
  %v509 = vpack.c.b16 %v326, %v323
  %v510 = vpack.c.b16 %v327, %v324
  %v511 = vpack.c.b16 %v331, %v328
  %v512 = vpack.c.b16 %v332, %v329
  %v513 = vpack.c.b16 %v333, %v330
  %v514 = vpack.c.b16 %v337, %v334
  %v515 = vpack.c.b16 %v338, %v335
  %v516 = vpack.c.b16 %v339, %v336
  %v517 = vpack.c.b16 %v343, %v340
  %v518 = vpack.c.b16 %v344, %v341
  %v519 = vpack.c.b16 %v345, %v342
  %v520 = vpack.c.b16 %v349, %v346
  %v521 = vpack.c.b16 %v350, %v347
  %v522 = vpack.c.b16 %v351, %v348
  %v523 = vpack.c.b16 %v355, %v352
  %v524 = vpack.c.b16 %v356, %v353
  %v525 = vpack.c.b16 %v357, %v354
  %v526 = vpack.c.b16 %v361, %v358
  %v527 = vpack.c.b16 %v362, %v359
  %v528 = vpack.c.b16 %v363, %v360
  %v529 = vpack.c.b16 %v367, %v364
  %v530 = vpack.c.b16 %v368, %v365
  %v531 = vpack.c.b16 %v369, %v366
  %v532 = vpack.c.b16 %v373, %v370
  %v533 = vpack.c.b16 %v374, %v371
  %v534 = vpack.c.b16 %v375, %v372
  %v535 = vpack.c.b16 %v379, %v376
  %v536 = vpack.c.b16 %v380, %v377
  %v537 = vpack.c.b16 %v381, %v378
  %v538 = vpack.c.b16 %v385, %v382
  %v539 = vpack.c.b16 %v386, %v383
  %v540 = vpack.c.b16 %v387, %v384
  %v541 = vpack.c.b16 %v391, %v388
  %v542 = vpack.c.b16 %v392, %v389
  %v543 = vpack.c.b16 %v393, %v390
  %v544 = vpack.c.b16 %v397, %v394
  %v545 = vpack.c.b16 %v398, %v395
  %v546 = vpack.c.b16 %v399, %v396
  %v547 = vpack.c.b16 %v403, %v400
  %v548 = vpack.c.b16 %v404, %v401
  %v549 = vpack.c.b16 %v405, %v402
  %v550 = vpack.c.b16 %v409, %v406
  %v551 = vpack.c.b16 %v410, %v407
  %v552 = vpack.c.b16 %v411, %v408
  %v553 = vpack.c.b16 %v415, %v412
  %v554 = vpack.c.b16 %v416, %v413
  %v555 = vpack.c.b16 %v417, %v414
  %v556 = vpack.c.b16 %v421, %v418
  %v557 = vpack.c.b16 %v422, %v419
  %v558 = vpack.c.b16 %v423, %v420
  %v559 = vpack.c.b16 %v427, %v424
  %v560 = vpack.c.b16 %v428, %v425
  %v561 = vpack.c.b16 %v429, %v426
  %v562 = vpack.c.b16 %v433, %v430
  %v563 = vpack.c.b16 %v434, %v431
  %v564 = vpack.c.b16 %v435, %v432
  %v565 = vpack.c.b16 %v439, %v436
  %v566 = vpack.c.b16 %v440, %v437
  %v567 = vpack.c.b16 %v441, %v438
  %v568 = vpack.c.b16 %v445, %v442
  %v569 = vpack.c.b16 %v446, %v443
  %v570 = vpack.c.b16 %v447, %v444
  %v571 = vpack.c.b16 %v451, %v448
  %v572 = vpack.c.b16 %v452, %v449
  %v573 = vpack.c.b16 %v453, %v450
  %v574 = vpack.c.b16 %v457, %v454
  %v575 = vpack.c.b16 %v458, %v455
  %v576 = vpack.c.b16 %v459, %v456
  %v577 = vpack.c.b16 %v463, %v460
  %v578 = vpack.c.b16 %v464, %v461
  %v579 = vpack.c.b16 %v465, %v462
  %v580 = vpack.c.b16 %v469, %v466
  %v581 = vpack.c.b16 %v470, %v467
  %v582 = vpack.c.b16 %v471, %v468
  %v583 = vpack.c.b16 %v475, %v472
  %v584 = vpack.c.b16 %v476, %v473
  %v585 = vpack.c.b16 %v477, %v474
  %v586 = vpack.c.b16 %v481, %v478
  %v587 = vpack.c.b16 %v482, %v479
  %v588 = vpack.c.b16 %v483, %v480
  %v589 = vpack.c.b16 %v487, %v484
  %v590 = vpack.c.b16 %v488, %v485
  %v591 = vpack.c.b16 %v489, %v486
  %v592 = vpack.c.b16 %v493, %v490
  %v593 = vpack.c.b16 %v494, %v491
  %v594 = vpack.c.b16 %v495, %v492
  %v595 = vpack.c.b16 %v499, %v496
  %v596 = vpack.c.b16 %v500, %v497
  %v597 = vpack.c.b16 %v501, %v498
  %v698 = vunpack.c.l.b16 %v146
  %v699 = vunpack.c.l.b16 %v147
  %v700 = vunpack.c.l.b16 %v148
  %v701 = vunpack.c.l.b16 %v149
  %v702 = vunpack.c.l.b16 %v150
  %v703 = vunpack.c.l.b16 %v151
  %v704 = vunpack.c.l.b16 %v152
  %v705 = vunpack.c.l.b16 %v153
  %v706 = vunpack.c.l.b16 %v154
  %v707 = vunpack.c.l.b16 %v155
  %v708 = vunpack.c.l.b16 %v156
  %v709 = vunpack.c.l.b16 %v157
  %v710 = vunpack.c.l.b16 %v158
  %v711 = vunpack.c.l.b16 %v159
  %v712 = vunpack.c.l.b16 %v160
  %v713 = vunpack.c.l.b16 %v161
  %v714 = vunpack.c.l.b16 %v162
  %v715 = vunpack.c.l.b16 %v163
  %v716 = vunpack.c.l.b16 %v164
  %v717 = vunpack.c.l.b16 %v165
  %v718 = vunpack.c.l.b16 %v166
  %v719 = vunpack.c.l.b16 %v167
  %v720 = vunpack.c.l.b16 %v168
  %v721 = vunpack.c.l.b16 %v169
  %v722 = vunpack.c.l.b16 %v170
  %v723 = vunpack.c.l.b16 %v171
  %v724 = vunpack.c.l.b16 %v172
  %v725 = vunpack.c.l.b16 %v173
  %v726 = vunpack.c.l.b16 %v174
  %v727 = vunpack.c.l.b16 %v175
  %v728 = vunpack.c.l.b16 %v176
  %v729 = vunpack.c.l.b16 %v177
  %v730 = vunpack.c.l.b16 %v178
  %v731 = vunpack.c.l.b16 %v179
  %v732 = vunpack.c.l.b16 %v180
  %v733 = vunpack.c.l.b16 %v181
  %v734 = vpack.c.b16 %v699, %v698
  %v735 = vpack.c.b16 %v701, %v700
  %v736 = vpack.c.b16 %v703, %v702
  %v737 = vpack.c.b16 %v705, %v704
  %v738 = vpack.c.b16 %v707, %v706
  %v739 = vpack.c.b16 %v709, %v708
  %v740 = vpack.c.b16 %v711, %v710
  %v741 = vpack.c.b16 %v713, %v712
  %v742 = vpack.c.b16 %v715, %v714
  %v743 = vpack.c.b16 %v717, %v716
  %v744 = vpack.c.b16 %v719, %v718
  %v745 = vpack.c.b16 %v721, %v720
  %v746 = vpack.c.b16 %v723, %v722
  %v747 = vpack.c.b16 %v725, %v724
  %v748 = vpack.c.b16 %v727, %v726
  %v749 = vpack.c.b16 %v729, %v728
  %v750 = vpack.c.b16 %v731, %v730
  %v751 = vpack.c.b16 %v733, %v732
  %vm770 = vcmask 261120
  %v772 = vsel %vm770, %v504, 0
  %v775 = vsel %vm770, %v507, 0
  %v778 = vsel %vm770, %v510, 0
  %v781 = vsel %vm770, %v513, 0
  %v784 = vsel %vm770, %v516, 0
  %v787 = vsel %vm770, %v519, 0
  %v790 = vsel %vm770, %v522, 0
  %v793 = vsel %vm770, %v525, 0
  %v796 = vsel %vm770, %v528, 0
  %v799 = vsel %vm770, %v531, 0
  %v802 = vsel %vm770, %v534, 0
  %v805 = vsel %vm770, %v537, 0
  %v808 = vsel %vm770, %v540, 0
  %v811 = vsel %vm770, %v543, 0
  %v814 = vsel %vm770, %v546, 0
  %v817 = vsel %vm770, %v549, 0
  %v820 = vsel %vm770, %v552, 0
  %v823 = vsel %vm770, %v555, 0
  %v826 = vsel %vm770, %v558, 0
  %v829 = vsel %vm770, %v561, 0
  %v832 = vsel %vm770, %v564, 0
  %v835 = vsel %vm770, %v567, 0
  %v838 = vsel %vm770, %v570, 0
  %v841 = vsel %vm770, %v573, 0
  %v844 = vsel %vm770, %v576, 0
  %v847 = vsel %vm770, %v579, 0
  %v850 = vsel %vm770, %v582, 0
  %v853 = vsel %vm770, %v585, 0
  %v856 = vsel %vm770, %v588, 0
  %v859 = vsel %vm770, %v591, 0
  %v862 = vsel %vm770, %v594, 0
  %v865 = vsel %vm770, %v597, 0
  %867 = vmatpush.bf16.msra.mxu0 %v741
  %868 = vmatpush.bf16.msra.mxu0 %v740
  %869 = vmatpush.bf16.msra.mxu0 %v739
  %870 = vmatpush.bf16.msra.mxu0 %v738
  %871 = vmatpush.bf16.msra.mxu0 %v737
  %872 = vmatpush.bf16.msra.mxu0 %v736
  %873 = vmatpush.bf16.msra.mxu0 %v735
  %874 = vmatpush.bf16.msra.mxu0 %v734
  %875 = vmatmul.bf16.gmra.mxu0 %v502
  %v876 = vpop.f32.mrf.mxu0
  %v877 = vadd.f32 0.0, %v876
  %v878 = vpop.f32.mrf.mxu0
  %v879 = vadd.f32 0.0, %v878
  %880 = vmatmul.bf16.gmra.mxu0 %v505
  %v881 = vpop.f32.mrf.mxu0
  %v882 = vadd.f32 0.0, %v881
  %v883 = vpop.f32.mrf.mxu0
  %v884 = vadd.f32 0.0, %v883
  %885 = vmatmul.bf16.gmra.mxu0 %v508
  %v886 = vpop.f32.mrf.mxu0
  %v887 = vadd.f32 0.0, %v886
  %v888 = vpop.f32.mrf.mxu0
  %v889 = vadd.f32 0.0, %v888
  %890 = vmatmul.bf16.gmra.mxu0 %v511
  %v891 = vpop.f32.mrf.mxu0
  %v892 = vadd.f32 0.0, %v891
  %v893 = vpop.f32.mrf.mxu0
  %v894 = vadd.f32 0.0, %v893
  %895 = vmatmul.bf16.gmra.mxu0 %v514
  %v896 = vpop.f32.mrf.mxu0
  %v897 = vadd.f32 0.0, %v896
  %v898 = vpop.f32.mrf.mxu0
  %v899 = vadd.f32 0.0, %v898
  %900 = vmatmul.bf16.gmra.mxu0 %v517
  %v901 = vpop.f32.mrf.mxu0
  %v902 = vadd.f32 0.0, %v901
  %v903 = vpop.f32.mrf.mxu0
  %v904 = vadd.f32 0.0, %v903
  %905 = vmatmul.bf16.gmra.mxu0 %v520
  %v906 = vpop.f32.mrf.mxu0
  %v907 = vadd.f32 0.0, %v906
  %v908 = vpop.f32.mrf.mxu0
  %v909 = vadd.f32 0.0, %v908
  %910 = vmatmul.bf16.gmra.mxu0 %v523
  %v911 = vpop.f32.mrf.mxu0
  %v912 = vadd.f32 0.0, %v911
  %v913 = vpop.f32.mrf.mxu0
  %v914 = vadd.f32 0.0, %v913
  %915 = vmatmul.bf16.gmra.mxu0 %v526
  %v916 = vpop.f32.mrf.mxu0
  %v917 = vadd.f32 0.0, %v916
  %v918 = vpop.f32.mrf.mxu0
  %v919 = vadd.f32 0.0, %v918
  %920 = vmatmul.bf16.gmra.mxu0 %v529
  %v921 = vpop.f32.mrf.mxu0
  %v922 = vadd.f32 0.0, %v921
  %v923 = vpop.f32.mrf.mxu0
  %v924 = vadd.f32 0.0, %v923
  %925 = vmatmul.bf16.gmra.mxu0 %v532
  %v926 = vpop.f32.mrf.mxu0
  %v927 = vadd.f32 0.0, %v926
  %v928 = vpop.f32.mrf.mxu0
  %v929 = vadd.f32 0.0, %v928
  %930 = vmatmul.bf16.gmra.mxu0 %v535
  %v931 = vpop.f32.mrf.mxu0
  %v932 = vadd.f32 0.0, %v931
  %v933 = vpop.f32.mrf.mxu0
  %v934 = vadd.f32 0.0, %v933
  %935 = vmatmul.bf16.gmra.mxu0 %v538
  %v936 = vpop.f32.mrf.mxu0
  %v937 = vadd.f32 0.0, %v936
  %v938 = vpop.f32.mrf.mxu0
  %v939 = vadd.f32 0.0, %v938
  %940 = vmatmul.bf16.gmra.mxu0 %v541
  %v941 = vpop.f32.mrf.mxu0
  %v942 = vadd.f32 0.0, %v941
  %v943 = vpop.f32.mrf.mxu0
  %v944 = vadd.f32 0.0, %v943
  %945 = vmatmul.bf16.gmra.mxu0 %v544
  %v946 = vpop.f32.mrf.mxu0
  %v947 = vadd.f32 0.0, %v946
  %v948 = vpop.f32.mrf.mxu0
  %v949 = vadd.f32 0.0, %v948
  %950 = vmatmul.bf16.gmra.mxu0 %v547
  %v951 = vpop.f32.mrf.mxu0
  %v952 = vadd.f32 0.0, %v951
  %v953 = vpop.f32.mrf.mxu0
  %v954 = vadd.f32 0.0, %v953
  %955 = vmatmul.bf16.gmra.mxu0 %v550
  %v956 = vpop.f32.mrf.mxu0
  %v957 = vadd.f32 0.0, %v956
  %v958 = vpop.f32.mrf.mxu0
  %v959 = vadd.f32 0.0, %v958
  %960 = vmatmul.bf16.gmra.mxu0 %v553
  %v961 = vpop.f32.mrf.mxu0
  %v962 = vadd.f32 0.0, %v961
  %v963 = vpop.f32.mrf.mxu0
  %v964 = vadd.f32 0.0, %v963
  %965 = vmatmul.bf16.gmra.mxu0 %v556
  %v966 = vpop.f32.mrf.mxu0
  %v967 = vadd.f32 0.0, %v966
  %v968 = vpop.f32.mrf.mxu0
  %v969 = vadd.f32 0.0, %v968
  %970 = vmatmul.bf16.gmra.mxu0 %v559
  %v971 = vpop.f32.mrf.mxu0
  %v972 = vadd.f32 0.0, %v971
  %v973 = vpop.f32.mrf.mxu0
  %v974 = vadd.f32 0.0, %v973
  %975 = vmatmul.bf16.gmra.mxu0 %v562
  %v976 = vpop.f32.mrf.mxu0
  %v977 = vadd.f32 0.0, %v976
  %v978 = vpop.f32.mrf.mxu0
  %v979 = vadd.f32 0.0, %v978
  %980 = vmatmul.bf16.gmra.mxu0 %v565
  %v981 = vpop.f32.mrf.mxu0
  %v982 = vadd.f32 0.0, %v981
  %v983 = vpop.f32.mrf.mxu0
  %v984 = vadd.f32 0.0, %v983
  %985 = vmatmul.bf16.gmra.mxu0 %v568
  %v986 = vpop.f32.mrf.mxu0
  %v987 = vadd.f32 0.0, %v986
  %v988 = vpop.f32.mrf.mxu0
  %v989 = vadd.f32 0.0, %v988
  %990 = vmatmul.bf16.gmra.mxu0 %v571
  %v991 = vpop.f32.mrf.mxu0
  %v992 = vadd.f32 0.0, %v991
  %v993 = vpop.f32.mrf.mxu0
  %v994 = vadd.f32 0.0, %v993
  %995 = vmatmul.bf16.gmra.mxu0 %v574
  %v996 = vpop.f32.mrf.mxu0
  %v997 = vadd.f32 0.0, %v996
  %v998 = vpop.f32.mrf.mxu0
  %v999 = vadd.f32 0.0, %v998
  %1000 = vmatmul.bf16.gmra.mxu0 %v577
  %v1001 = vpop.f32.mrf.mxu0
  %v1002 = vadd.f32 0.0, %v1001
  %v1003 = vpop.f32.mrf.mxu0
  %v1004 = vadd.f32 0.0, %v1003
  %1005 = vmatmul.bf16.gmra.mxu0 %v580
  %v1006 = vpop.f32.mrf.mxu0
  %v1007 = vadd.f32 0.0, %v1006
  %v1008 = vpop.f32.mrf.mxu0
  %v1009 = vadd.f32 0.0, %v1008
  %1010 = vmatmul.bf16.gmra.mxu0 %v583
  %v1011 = vpop.f32.mrf.mxu0
  %v1012 = vadd.f32 0.0, %v1011
  %v1013 = vpop.f32.mrf.mxu0
  %v1014 = vadd.f32 0.0, %v1013
  %1015 = vmatmul.bf16.gmra.mxu0 %v586
  %v1016 = vpop.f32.mrf.mxu0
  %v1017 = vadd.f32 0.0, %v1016
  %v1018 = vpop.f32.mrf.mxu0
  %v1019 = vadd.f32 0.0, %v1018
  %1020 = vmatmul.bf16.gmra.mxu0 %v589
  %v1021 = vpop.f32.mrf.mxu0
  %v1022 = vadd.f32 0.0, %v1021
  %v1023 = vpop.f32.mrf.mxu0
  %v1024 = vadd.f32 0.0, %v1023
  %1025 = vmatmul.bf16.gmra.mxu0 %v592
  %v1026 = vpop.f32.mrf.mxu0
  %v1027 = vadd.f32 0.0, %v1026
  %v1028 = vpop.f32.mrf.mxu0
  %v1029 = vadd.f32 0.0, %v1028
  %1030 = vmatmul.bf16.gmra.mxu0 %v595
  %v1031 = vpop.f32.mrf.mxu0
  %v1032 = vadd.f32 0.0, %v1031
  %v1033 = vpop.f32.mrf.mxu0
  %v1034 = vadd.f32 0.0, %v1033
  %1035 = vdwg.mxu0
  %1036 = vmatpush.bf16.msra.mxu0 %v749
  %1037 = vmatpush.bf16.msra.mxu0 %v748
  %1038 = vmatpush.bf16.msra.mxu0 %v747
  %1039 = vmatpush.bf16.msra.mxu0 %v746
  %1040 = vmatpush.bf16.msra.mxu0 %v745
  %1041 = vmatpush.bf16.msra.mxu0 %v744
  %1042 = vmatpush.bf16.msra.mxu0 %v743
  %1043 = vmatpush.bf16.msra.mxu0 %v742
  %1044 = vmatmul.bf16.gmra.mxu0 %v503
  %v1045 = vpop.f32.mrf.mxu0
  %v1046 = vadd.f32 %v877, %v1045
  %v1047 = vpop.f32.mrf.mxu0
  %v1048 = vadd.f32 %v879, %v1047
  %1049 = vmatmul.bf16.gmra.mxu0 %v506
  %v1050 = vpop.f32.mrf.mxu0
  %v1051 = vadd.f32 %v882, %v1050
  %v1052 = vpop.f32.mrf.mxu0
  %v1053 = vadd.f32 %v884, %v1052
  %1054 = vmatmul.bf16.gmra.mxu0 %v509
  %v1055 = vpop.f32.mrf.mxu0
  %v1056 = vadd.f32 %v887, %v1055
  %v1057 = vpop.f32.mrf.mxu0
  %v1058 = vadd.f32 %v889, %v1057
  %1059 = vmatmul.bf16.gmra.mxu0 %v512
  %v1060 = vpop.f32.mrf.mxu0
  %v1061 = vadd.f32 %v892, %v1060
  %v1062 = vpop.f32.mrf.mxu0
  %v1063 = vadd.f32 %v894, %v1062
  %1064 = vmatmul.bf16.gmra.mxu0 %v515
  %v1065 = vpop.f32.mrf.mxu0
  %v1066 = vadd.f32 %v897, %v1065
  %v1067 = vpop.f32.mrf.mxu0
  %v1068 = vadd.f32 %v899, %v1067
  %1069 = vmatmul.bf16.gmra.mxu0 %v518
  %v1070 = vpop.f32.mrf.mxu0
  %v1071 = vadd.f32 %v902, %v1070
  %v1072 = vpop.f32.mrf.mxu0
  %v1073 = vadd.f32 %v904, %v1072
  %1074 = vmatmul.bf16.gmra.mxu0 %v521
  %v1075 = vpop.f32.mrf.mxu0
  %v1076 = vadd.f32 %v907, %v1075
  %v1077 = vpop.f32.mrf.mxu0
  %v1078 = vadd.f32 %v909, %v1077
  %1079 = vmatmul.bf16.gmra.mxu0 %v524
  %v1080 = vpop.f32.mrf.mxu0
  %v1081 = vadd.f32 %v912, %v1080
  %v1082 = vpop.f32.mrf.mxu0
  %v1083 = vadd.f32 %v914, %v1082
  %1084 = vmatmul.bf16.gmra.mxu0 %v527
  %v1085 = vpop.f32.mrf.mxu0
  %v1086 = vadd.f32 %v917, %v1085
  %v1087 = vpop.f32.mrf.mxu0
  %v1088 = vadd.f32 %v919, %v1087
  %1089 = vmatmul.bf16.gmra.mxu0 %v530
  %v1090 = vpop.f32.mrf.mxu0
  %v1091 = vadd.f32 %v922, %v1090
  %v1092 = vpop.f32.mrf.mxu0
  %v1093 = vadd.f32 %v924, %v1092
  %1094 = vmatmul.bf16.gmra.mxu0 %v533
  %v1095 = vpop.f32.mrf.mxu0
  %v1096 = vadd.f32 %v927, %v1095
  %v1097 = vpop.f32.mrf.mxu0
  %v1098 = vadd.f32 %v929, %v1097
  %1099 = vmatmul.bf16.gmra.mxu0 %v536
  %v1100 = vpop.f32.mrf.mxu0
  %v1101 = vadd.f32 %v932, %v1100
  %v1102 = vpop.f32.mrf.mxu0
  %v1103 = vadd.f32 %v934, %v1102
  %1104 = vmatmul.bf16.gmra.mxu0 %v539
  %v1105 = vpop.f32.mrf.mxu0
  %v1106 = vadd.f32 %v937, %v1105
  %v1107 = vpop.f32.mrf.mxu0
  %v1108 = vadd.f32 %v939, %v1107
  %1109 = vmatmul.bf16.gmra.mxu0 %v542
  %v1110 = vpop.f32.mrf.mxu0
  %v1111 = vadd.f32 %v942, %v1110
  %v1112 = vpop.f32.mrf.mxu0
  %v1113 = vadd.f32 %v944, %v1112
  %1114 = vmatmul.bf16.gmra.mxu0 %v545
  %v1115 = vpop.f32.mrf.mxu0
  %v1116 = vadd.f32 %v947, %v1115
  %v1117 = vpop.f32.mrf.mxu0
  %v1118 = vadd.f32 %v949, %v1117
  %1119 = vmatmul.bf16.gmra.mxu0 %v548
  %v1120 = vpop.f32.mrf.mxu0
  %v1121 = vadd.f32 %v952, %v1120
  %v1122 = vpop.f32.mrf.mxu0
  %v1123 = vadd.f32 %v954, %v1122
  %1124 = vmatmul.bf16.gmra.mxu0 %v551
  %v1125 = vpop.f32.mrf.mxu0
  %v1126 = vadd.f32 %v957, %v1125
  %v1127 = vpop.f32.mrf.mxu0
  %v1128 = vadd.f32 %v959, %v1127
  %1129 = vmatmul.bf16.gmra.mxu0 %v554
  %v1130 = vpop.f32.mrf.mxu0
  %v1131 = vadd.f32 %v962, %v1130
  %v1132 = vpop.f32.mrf.mxu0
  %v1133 = vadd.f32 %v964, %v1132
  %1134 = vmatmul.bf16.gmra.mxu0 %v557
  %v1135 = vpop.f32.mrf.mxu0
  %v1136 = vadd.f32 %v967, %v1135
  %v1137 = vpop.f32.mrf.mxu0
  %v1138 = vadd.f32 %v969, %v1137
  %1139 = vmatmul.bf16.gmra.mxu0 %v560
  %v1140 = vpop.f32.mrf.mxu0
  %v1141 = vadd.f32 %v972, %v1140
  %v1142 = vpop.f32.mrf.mxu0
  %v1143 = vadd.f32 %v974, %v1142
  %1144 = vmatmul.bf16.gmra.mxu0 %v563
  %v1145 = vpop.f32.mrf.mxu0
  %v1146 = vadd.f32 %v977, %v1145
  %v1147 = vpop.f32.mrf.mxu0
  %v1148 = vadd.f32 %v979, %v1147
  %1149 = vmatmul.bf16.gmra.mxu0 %v566
  %v1150 = vpop.f32.mrf.mxu0
  %v1151 = vadd.f32 %v982, %v1150
  %v1152 = vpop.f32.mrf.mxu0
  %v1153 = vadd.f32 %v984, %v1152
  %1154 = vmatmul.bf16.gmra.mxu0 %v569
  %v1155 = vpop.f32.mrf.mxu0
  %v1156 = vadd.f32 %v987, %v1155
  %v1157 = vpop.f32.mrf.mxu0
  %v1158 = vadd.f32 %v989, %v1157
  %1159 = vmatmul.bf16.gmra.mxu0 %v572
  %v1160 = vpop.f32.mrf.mxu0
  %v1161 = vadd.f32 %v992, %v1160
  %v1162 = vpop.f32.mrf.mxu0
  %v1163 = vadd.f32 %v994, %v1162
  %1164 = vmatmul.bf16.gmra.mxu0 %v575
  %v1165 = vpop.f32.mrf.mxu0
  %v1166 = vadd.f32 %v997, %v1165
  %v1167 = vpop.f32.mrf.mxu0
  %v1168 = vadd.f32 %v999, %v1167
  %1169 = vmatmul.bf16.gmra.mxu0 %v578
  %v1170 = vpop.f32.mrf.mxu0
  %v1171 = vadd.f32 %v1002, %v1170
  %v1172 = vpop.f32.mrf.mxu0
  %v1173 = vadd.f32 %v1004, %v1172
  %1174 = vmatmul.bf16.gmra.mxu0 %v581
  %v1175 = vpop.f32.mrf.mxu0
  %v1176 = vadd.f32 %v1007, %v1175
  %v1177 = vpop.f32.mrf.mxu0
  %v1178 = vadd.f32 %v1009, %v1177
  %1179 = vmatmul.bf16.gmra.mxu0 %v584
  %v1180 = vpop.f32.mrf.mxu0
  %v1181 = vadd.f32 %v1012, %v1180
  %v1182 = vpop.f32.mrf.mxu0
  %v1183 = vadd.f32 %v1014, %v1182
  %1184 = vmatmul.bf16.gmra.mxu0 %v587
  %v1185 = vpop.f32.mrf.mxu0
  %v1186 = vadd.f32 %v1017, %v1185
  %v1187 = vpop.f32.mrf.mxu0
  %v1188 = vadd.f32 %v1019, %v1187
  %1189 = vmatmul.bf16.gmra.mxu0 %v590
  %v1190 = vpop.f32.mrf.mxu0
  %v1191 = vadd.f32 %v1022, %v1190
  %v1192 = vpop.f32.mrf.mxu0
  %v1193 = vadd.f32 %v1024, %v1192
  %1194 = vmatmul.bf16.gmra.mxu0 %v593
  %v1195 = vpop.f32.mrf.mxu0
  %v1196 = vadd.f32 %v1027, %v1195
  %v1197 = vpop.f32.mrf.mxu0
  %v1198 = vadd.f32 %v1029, %v1197
  %1199 = vmatmul.bf16.gmra.mxu0 %v596
  %v1200 = vpop.f32.mrf.mxu0
  %v1201 = vadd.f32 %v1032, %v1200
  %v1202 = vpop.f32.mrf.mxu0
  %v1203 = vadd.f32 %v1034, %v1202
  %1204 = vdwg.mxu0
  %1205 = vmatpush.bf16.msra.mxu0 0
  %1206 = vmatpush.bf16.msra.mxu0 0
  %1207 = vmatpush.bf16.msra.mxu0 0
  %1208 = vmatpush.bf16.msra.mxu0 0
  %1209 = vmatpush.bf16.msra.mxu0 0
  %1210 = vmatpush.bf16.msra.mxu0 0
  %1211 = vmatpush.bf16.msra.mxu0 %v751
  %1212 = vmatpush.bf16.msra.mxu0 %v750
  %1213 = vmatmul.bf16.gmra.mxu0 %v772
  %v1214 = vpop.f32.mrf.mxu0
  %v1215 = vadd.f32 %v1046, %v1214
  %v1216 = vpop.f32.mrf.mxu0
  %v1217 = vadd.f32 %v1048, %v1216
  %1218 = vmatmul.bf16.gmra.mxu0 %v775
  %v1219 = vpop.f32.mrf.mxu0
  %v1220 = vadd.f32 %v1051, %v1219
  %v1221 = vpop.f32.mrf.mxu0
  %v1222 = vadd.f32 %v1053, %v1221
  %1223 = vmatmul.bf16.gmra.mxu0 %v778
  %v1224 = vpop.f32.mrf.mxu0
  %v1225 = vadd.f32 %v1056, %v1224
  %v1226 = vpop.f32.mrf.mxu0
  %v1227 = vadd.f32 %v1058, %v1226
  %1228 = vmatmul.bf16.gmra.mxu0 %v781
  %v1229 = vpop.f32.mrf.mxu0
  %v1230 = vadd.f32 %v1061, %v1229
  %v1231 = vpop.f32.mrf.mxu0
  %v1232 = vadd.f32 %v1063, %v1231
  %1233 = vmatmul.bf16.gmra.mxu0 %v784
  %v1234 = vpop.f32.mrf.mxu0
  %v1235 = vadd.f32 %v1066, %v1234
  %v1236 = vpop.f32.mrf.mxu0
  %v1237 = vadd.f32 %v1068, %v1236
  %1238 = vmatmul.bf16.gmra.mxu0 %v787
  %v1239 = vpop.f32.mrf.mxu0
  %v1240 = vadd.f32 %v1071, %v1239
  %v1241 = vpop.f32.mrf.mxu0
  %v1242 = vadd.f32 %v1073, %v1241
  %1243 = vmatmul.bf16.gmra.mxu0 %v790
  %v1244 = vpop.f32.mrf.mxu0
  %v1245 = vadd.f32 %v1076, %v1244
  %v1246 = vpop.f32.mrf.mxu0
  %v1247 = vadd.f32 %v1078, %v1246
  %1248 = vmatmul.bf16.gmra.mxu0 %v793
  %v1249 = vpop.f32.mrf.mxu0
  %v1250 = vadd.f32 %v1081, %v1249
  %v1251 = vpop.f32.mrf.mxu0
  %v1252 = vadd.f32 %v1083, %v1251
  %1253 = vmatmul.bf16.gmra.mxu0 %v796
  %v1254 = vpop.f32.mrf.mxu0
  %v1255 = vadd.f32 %v1086, %v1254
  %v1256 = vpop.f32.mrf.mxu0
  %v1257 = vadd.f32 %v1088, %v1256
  %1258 = vmatmul.bf16.gmra.mxu0 %v799
  %v1259 = vpop.f32.mrf.mxu0
  %v1260 = vadd.f32 %v1091, %v1259
  %v1261 = vpop.f32.mrf.mxu0
  %v1262 = vadd.f32 %v1093, %v1261
  %1263 = vmatmul.bf16.gmra.mxu0 %v802
  %v1264 = vpop.f32.mrf.mxu0
  %v1265 = vadd.f32 %v1096, %v1264
  %v1266 = vpop.f32.mrf.mxu0
  %v1267 = vadd.f32 %v1098, %v1266
  %1268 = vmatmul.bf16.gmra.mxu0 %v805
  %v1269 = vpop.f32.mrf.mxu0
  %v1270 = vadd.f32 %v1101, %v1269
  %v1271 = vpop.f32.mrf.mxu0
  %v1272 = vadd.f32 %v1103, %v1271
  %1273 = vmatmul.bf16.gmra.mxu0 %v808
  %v1274 = vpop.f32.mrf.mxu0
  %v1275 = vadd.f32 %v1106, %v1274
  %v1276 = vpop.f32.mrf.mxu0
  %v1277 = vadd.f32 %v1108, %v1276
  %1278 = vmatmul.bf16.gmra.mxu0 %v811
  %v1279 = vpop.f32.mrf.mxu0
  %v1280 = vadd.f32 %v1111, %v1279
  %v1281 = vpop.f32.mrf.mxu0
  %v1282 = vadd.f32 %v1113, %v1281
  %1283 = vmatmul.bf16.gmra.mxu0 %v814
  %v1284 = vpop.f32.mrf.mxu0
  %v1285 = vadd.f32 %v1116, %v1284
  %v1286 = vpop.f32.mrf.mxu0
  %v1287 = vadd.f32 %v1118, %v1286
  %1288 = vmatmul.bf16.gmra.mxu0 %v817
  %v1289 = vpop.f32.mrf.mxu0
  %v1290 = vadd.f32 %v1121, %v1289
  %v1291 = vpop.f32.mrf.mxu0
  %v1292 = vadd.f32 %v1123, %v1291
  %1293 = vmatmul.bf16.gmra.mxu0 %v820
  %v1294 = vpop.f32.mrf.mxu0
  %v1295 = vadd.f32 %v1126, %v1294
  %v1296 = vpop.f32.mrf.mxu0
  %v1297 = vadd.f32 %v1128, %v1296
  %1298 = vmatmul.bf16.gmra.mxu0 %v823
  %v1299 = vpop.f32.mrf.mxu0
  %v1300 = vadd.f32 %v1131, %v1299
  %v1301 = vpop.f32.mrf.mxu0
  %v1302 = vadd.f32 %v1133, %v1301
  %1303 = vmatmul.bf16.gmra.mxu0 %v826
  %v1304 = vpop.f32.mrf.mxu0
  %v1305 = vadd.f32 %v1136, %v1304
  %v1306 = vpop.f32.mrf.mxu0
  %v1307 = vadd.f32 %v1138, %v1306
  %1308 = vmatmul.bf16.gmra.mxu0 %v829
  %v1309 = vpop.f32.mrf.mxu0
  %v1310 = vadd.f32 %v1141, %v1309
  %v1311 = vpop.f32.mrf.mxu0
  %v1312 = vadd.f32 %v1143, %v1311
  %1313 = vmatmul.bf16.gmra.mxu0 %v832
  %v1314 = vpop.f32.mrf.mxu0
  %v1315 = vadd.f32 %v1146, %v1314
  %v1316 = vpop.f32.mrf.mxu0
  %v1317 = vadd.f32 %v1148, %v1316
  %1318 = vmatmul.bf16.gmra.mxu0 %v835
  %v1319 = vpop.f32.mrf.mxu0
  %v1320 = vadd.f32 %v1151, %v1319
  %v1321 = vpop.f32.mrf.mxu0
  %v1322 = vadd.f32 %v1153, %v1321
  %1323 = vmatmul.bf16.gmra.mxu0 %v838
  %v1324 = vpop.f32.mrf.mxu0
  %v1325 = vadd.f32 %v1156, %v1324
  %v1326 = vpop.f32.mrf.mxu0
  %v1327 = vadd.f32 %v1158, %v1326
  %1328 = vmatmul.bf16.gmra.mxu0 %v841
  %v1329 = vpop.f32.mrf.mxu0
  %v1330 = vadd.f32 %v1161, %v1329
  %v1331 = vpop.f32.mrf.mxu0
  %v1332 = vadd.f32 %v1163, %v1331
  %1333 = vmatmul.bf16.gmra.mxu0 %v844
  %v1334 = vpop.f32.mrf.mxu0
  %v1335 = vadd.f32 %v1166, %v1334
  %v1336 = vpop.f32.mrf.mxu0
  %v1337 = vadd.f32 %v1168, %v1336
  %1338 = vmatmul.bf16.gmra.mxu0 %v847
  %v1339 = vpop.f32.mrf.mxu0
  %v1340 = vadd.f32 %v1171, %v1339
  %v1341 = vpop.f32.mrf.mxu0
  %v1342 = vadd.f32 %v1173, %v1341
  %1343 = vmatmul.bf16.gmra.mxu0 %v850
  %v1344 = vpop.f32.mrf.mxu0
  %v1345 = vadd.f32 %v1176, %v1344
  %v1346 = vpop.f32.mrf.mxu0
  %v1347 = vadd.f32 %v1178, %v1346
  %1348 = vmatmul.bf16.gmra.mxu0 %v853
  %v1349 = vpop.f32.mrf.mxu0
  %v1350 = vadd.f32 %v1181, %v1349
  %v1351 = vpop.f32.mrf.mxu0
  %v1352 = vadd.f32 %v1183, %v1351
  %1353 = vmatmul.bf16.gmra.mxu0 %v856
  %v1354 = vpop.f32.mrf.mxu0
  %v1355 = vadd.f32 %v1186, %v1354
  %v1356 = vpop.f32.mrf.mxu0
  %v1357 = vadd.f32 %v1188, %v1356
  %1358 = vmatmul.bf16.gmra.mxu0 %v859
  %v1359 = vpop.f32.mrf.mxu0
  %v1360 = vadd.f32 %v1191, %v1359
  %v1361 = vpop.f32.mrf.mxu0
  %v1362 = vadd.f32 %v1193, %v1361
  %1363 = vmatmul.bf16.gmra.mxu0 %v862
  %v1364 = vpop.f32.mrf.mxu0
  %v1365 = vadd.f32 %v1196, %v1364
  %v1366 = vpop.f32.mrf.mxu0
  %v1367 = vadd.f32 %v1198, %v1366
  %1368 = vmatmul.bf16.gmra.mxu0 %v865
  %v1369 = vpop.f32.mrf.mxu0
  %v1370 = vadd.f32 %v1201, %v1369
  %v1371 = vpop.f32.mrf.mxu0
  %v1372 = vadd.f32 %v1203, %v1371
  %1373 = vdwg.mxu0
  %v1374 = vld [vmem:[%s2] sm:$0x1]
  %v1376 = vperm.slane %v1374, 0
  %v1378 = vmul.f32 %v1215, %v1376
  %v1379 = vmul.f32 %v1217, %v1376
  %v1380 = vmul.f32 %v1220, %v1376
  %v1381 = vmul.f32 %v1222, %v1376
  %v1382 = vmul.f32 %v1225, %v1376
  %v1383 = vmul.f32 %v1227, %v1376
  %v1384 = vmul.f32 %v1230, %v1376
  %v1385 = vmul.f32 %v1232, %v1376
  %v1386 = vmul.f32 %v1235, %v1376
  %v1387 = vmul.f32 %v1237, %v1376
  %v1388 = vmul.f32 %v1240, %v1376
  %v1389 = vmul.f32 %v1242, %v1376
  %v1390 = vmul.f32 %v1245, %v1376
  %v1391 = vmul.f32 %v1247, %v1376
  %v1392 = vmul.f32 %v1250, %v1376
  %v1393 = vmul.f32 %v1252, %v1376
  %v1394 = vmul.f32 %v1255, %v1376
  %v1395 = vmul.f32 %v1257, %v1376
  %v1396 = vmul.f32 %v1260, %v1376
  %v1397 = vmul.f32 %v1262, %v1376
  %v1398 = vmul.f32 %v1265, %v1376
  %v1399 = vmul.f32 %v1267, %v1376
  %v1400 = vmul.f32 %v1270, %v1376
  %v1401 = vmul.f32 %v1272, %v1376
  %v1402 = vmul.f32 %v1275, %v1376
  %v1403 = vmul.f32 %v1277, %v1376
  %v1404 = vmul.f32 %v1280, %v1376
  %v1405 = vmul.f32 %v1282, %v1376
  %v1406 = vmul.f32 %v1285, %v1376
  %v1407 = vmul.f32 %v1287, %v1376
  %v1408 = vmul.f32 %v1290, %v1376
  %v1409 = vmul.f32 %v1292, %v1376
  %v1410 = vmul.f32 %v1295, %v1376
  %v1411 = vmul.f32 %v1297, %v1376
  %v1412 = vmul.f32 %v1300, %v1376
  %v1413 = vmul.f32 %v1302, %v1376
  %v1414 = vmul.f32 %v1305, %v1376
  %v1415 = vmul.f32 %v1307, %v1376
  %v1416 = vmul.f32 %v1310, %v1376
  %v1417 = vmul.f32 %v1312, %v1376
  %v1418 = vmul.f32 %v1315, %v1376
  %v1419 = vmul.f32 %v1317, %v1376
  %v1420 = vmul.f32 %v1320, %v1376
  %v1421 = vmul.f32 %v1322, %v1376
  %v1422 = vmul.f32 %v1325, %v1376
  %v1423 = vmul.f32 %v1327, %v1376
  %v1424 = vmul.f32 %v1330, %v1376
  %v1425 = vmul.f32 %v1332, %v1376
  %v1426 = vmul.f32 %v1335, %v1376
  %v1427 = vmul.f32 %v1337, %v1376
  %v1428 = vmul.f32 %v1340, %v1376
  %v1429 = vmul.f32 %v1342, %v1376
  %v1430 = vmul.f32 %v1345, %v1376
  %v1431 = vmul.f32 %v1347, %v1376
  %v1432 = vmul.f32 %v1350, %v1376
  %v1433 = vmul.f32 %v1352, %v1376
  %v1434 = vmul.f32 %v1355, %v1376
  %v1435 = vmul.f32 %v1357, %v1376
  %v1436 = vmul.f32 %v1360, %v1376
  %v1437 = vmul.f32 %v1362, %v1376
  %v1438 = vmul.f32 %v1365, %v1376
  %v1439 = vmul.f32 %v1367, %v1376
  %v1440 = vmul.f32 %v1370, %v1376
  %v1441 = vmul.f32 %v1372, %v1376
  %v1442 = vld [vmem:[%s3] sm:$0x1]
  %v1444 = vperm.slane %v1442, 0
  %v1446 = vadd.f32 %v1378, %v1444
  %v1447 = vadd.f32 %v1379, %v1444
  %v1448 = vadd.f32 %v1380, %v1444
  %v1449 = vadd.f32 %v1381, %v1444
  %v1450 = vadd.f32 %v1382, %v1444
  %v1451 = vadd.f32 %v1383, %v1444
  %v1452 = vadd.f32 %v1384, %v1444
  %v1453 = vadd.f32 %v1385, %v1444
  %v1454 = vadd.f32 %v1386, %v1444
  %v1455 = vadd.f32 %v1387, %v1444
  %v1456 = vadd.f32 %v1388, %v1444
  %v1457 = vadd.f32 %v1389, %v1444
  %v1458 = vadd.f32 %v1390, %v1444
  %v1459 = vadd.f32 %v1391, %v1444
  %v1460 = vadd.f32 %v1392, %v1444
  %v1461 = vadd.f32 %v1393, %v1444
  %v1462 = vadd.f32 %v1394, %v1444
  %v1463 = vadd.f32 %v1395, %v1444
  %v1464 = vadd.f32 %v1396, %v1444
  %v1465 = vadd.f32 %v1397, %v1444
  %v1466 = vadd.f32 %v1398, %v1444
  %v1467 = vadd.f32 %v1399, %v1444
  %v1468 = vadd.f32 %v1400, %v1444
  %v1469 = vadd.f32 %v1401, %v1444
  %v1470 = vadd.f32 %v1402, %v1444
  %v1471 = vadd.f32 %v1403, %v1444
  %v1472 = vadd.f32 %v1404, %v1444
  %v1473 = vadd.f32 %v1405, %v1444
  %v1474 = vadd.f32 %v1406, %v1444
  %v1475 = vadd.f32 %v1407, %v1444
  %v1476 = vadd.f32 %v1408, %v1444
  %v1477 = vadd.f32 %v1409, %v1444
  %v1478 = vadd.f32 %v1410, %v1444
  %v1479 = vadd.f32 %v1411, %v1444
  %v1480 = vadd.f32 %v1412, %v1444
  %v1481 = vadd.f32 %v1413, %v1444
  %v1482 = vadd.f32 %v1414, %v1444
  %v1483 = vadd.f32 %v1415, %v1444
  %v1484 = vadd.f32 %v1416, %v1444
  %v1485 = vadd.f32 %v1417, %v1444
  %v1486 = vadd.f32 %v1418, %v1444
  %v1487 = vadd.f32 %v1419, %v1444
  %v1488 = vadd.f32 %v1420, %v1444
  %v1489 = vadd.f32 %v1421, %v1444
  %v1490 = vadd.f32 %v1422, %v1444
  %v1491 = vadd.f32 %v1423, %v1444
  %v1492 = vadd.f32 %v1424, %v1444
  %v1493 = vadd.f32 %v1425, %v1444
  %v1494 = vadd.f32 %v1426, %v1444
  %v1495 = vadd.f32 %v1427, %v1444
  %v1496 = vadd.f32 %v1428, %v1444
  %v1497 = vadd.f32 %v1429, %v1444
  %v1498 = vadd.f32 %v1430, %v1444
  %v1499 = vadd.f32 %v1431, %v1444
  %v1500 = vadd.f32 %v1432, %v1444
  %v1501 = vadd.f32 %v1433, %v1444
  %v1502 = vadd.f32 %v1434, %v1444
  %v1503 = vadd.f32 %v1435, %v1444
  %v1504 = vadd.f32 %v1436, %v1444
  %v1505 = vadd.f32 %v1437, %v1444
  %v1506 = vadd.f32 %v1438, %v1444
  %v1507 = vadd.f32 %v1439, %v1444
  %v1508 = vadd.f32 %v1440, %v1444
  %v1509 = vadd.f32 %v1441, %v1444
  %v1510 = vpack.c.bf16 %v1446, %v1446
  %v1511 = vpack.c.bf16 %v1447, %v1447
  %v1512 = vpack.c.bf16 %v1448, %v1448
  %v1513 = vpack.c.bf16 %v1449, %v1449
  %v1514 = vpack.c.bf16 %v1450, %v1450
  %v1515 = vpack.c.bf16 %v1451, %v1451
  %v1516 = vpack.c.bf16 %v1452, %v1452
  %v1517 = vpack.c.bf16 %v1453, %v1453
  %v1518 = vpack.c.bf16 %v1454, %v1454
  %v1519 = vpack.c.bf16 %v1455, %v1455
  %v1520 = vpack.c.bf16 %v1456, %v1456
  %v1521 = vpack.c.bf16 %v1457, %v1457
  %v1522 = vpack.c.bf16 %v1458, %v1458
  %v1523 = vpack.c.bf16 %v1459, %v1459
  %v1524 = vpack.c.bf16 %v1460, %v1460
  %v1525 = vpack.c.bf16 %v1461, %v1461
  %v1526 = vpack.c.bf16 %v1462, %v1462
  %v1527 = vpack.c.bf16 %v1463, %v1463
  %v1528 = vpack.c.bf16 %v1464, %v1464
  %v1529 = vpack.c.bf16 %v1465, %v1465
  %v1530 = vpack.c.bf16 %v1466, %v1466
  %v1531 = vpack.c.bf16 %v1467, %v1467
  %v1532 = vpack.c.bf16 %v1468, %v1468
  %v1533 = vpack.c.bf16 %v1469, %v1469
  %v1534 = vpack.c.bf16 %v1470, %v1470
  %v1535 = vpack.c.bf16 %v1471, %v1471
  %v1536 = vpack.c.bf16 %v1472, %v1472
  %v1537 = vpack.c.bf16 %v1473, %v1473
  %v1538 = vpack.c.bf16 %v1474, %v1474
  %v1539 = vpack.c.bf16 %v1475, %v1475
  %v1540 = vpack.c.bf16 %v1476, %v1476
  %v1541 = vpack.c.bf16 %v1477, %v1477
  %v1542 = vpack.c.bf16 %v1478, %v1478
  %v1543 = vpack.c.bf16 %v1479, %v1479
  %v1544 = vpack.c.bf16 %v1480, %v1480
  %v1545 = vpack.c.bf16 %v1481, %v1481
  %v1546 = vpack.c.bf16 %v1482, %v1482
  %v1547 = vpack.c.bf16 %v1483, %v1483
  %v1548 = vpack.c.bf16 %v1484, %v1484
  %v1549 = vpack.c.bf16 %v1485, %v1485
  %v1550 = vpack.c.bf16 %v1486, %v1486
  %v1551 = vpack.c.bf16 %v1487, %v1487
  %v1552 = vpack.c.bf16 %v1488, %v1488
  %v1553 = vpack.c.bf16 %v1489, %v1489
  %v1554 = vpack.c.bf16 %v1490, %v1490
  %v1555 = vpack.c.bf16 %v1491, %v1491
  %v1556 = vpack.c.bf16 %v1492, %v1492
  %v1557 = vpack.c.bf16 %v1493, %v1493
  %v1558 = vpack.c.bf16 %v1494, %v1494
  %v1559 = vpack.c.bf16 %v1495, %v1495
  %v1560 = vpack.c.bf16 %v1496, %v1496
  %v1561 = vpack.c.bf16 %v1497, %v1497
  %v1562 = vpack.c.bf16 %v1498, %v1498
  %v1563 = vpack.c.bf16 %v1499, %v1499
  %v1564 = vpack.c.bf16 %v1500, %v1500
  %v1565 = vpack.c.bf16 %v1501, %v1501
  %v1566 = vpack.c.bf16 %v1502, %v1502
  %v1567 = vpack.c.bf16 %v1503, %v1503
  %v1568 = vpack.c.bf16 %v1504, %v1504
  %v1569 = vpack.c.bf16 %v1505, %v1505
  %v1570 = vpack.c.bf16 %v1506, %v1506
  %v1571 = vpack.c.bf16 %v1507, %v1507
  %v1572 = vpack.c.bf16 %v1508, %v1508
  %v1573 = vpack.c.bf16 %v1509, %v1509
  %vm1574 = vcmask 519168
  %1575 = vst.msk [vmem:[%s4] sm:$0xf] %vm1574, %v1510
  %1576 = vst.msk [vmem:[%s4 + $0x4] sm:$0xf] %vm1574, %v1511
  %1577 = vst.msk [vmem:[%s4 + $0x8] sm:$0xf] %vm1574, %v1512
  %1578 = vst.msk [vmem:[%s4 + $0xc] sm:$0xf] %vm1574, %v1513
  %1579 = vst.msk [vmem:[%s4 + $0x10] sm:$0xf] %vm1574, %v1514
  %1580 = vst.msk [vmem:[%s4 + $0x14] sm:$0xf] %vm1574, %v1515
  %1581 = vst.msk [vmem:[%s4 + $0x18] sm:$0xf] %vm1574, %v1516
  %1582 = vst.msk [vmem:[%s4 + $0x1c] sm:$0xf] %vm1574, %v1517
  %1583 = vst.msk [vmem:[%s4 + $0x20] sm:$0xf] %vm1574, %v1518
  %1584 = vst.msk [vmem:[%s4 + $0x24] sm:$0xf] %vm1574, %v1519
  %1585 = vst.msk [vmem:[%s4 + $0x28] sm:$0xf] %vm1574, %v1520
  %1586 = vst.msk [vmem:[%s4 + $0x2c] sm:$0xf] %vm1574, %v1521
  %1587 = vst.msk [vmem:[%s4 + $0x30] sm:$0xf] %vm1574, %v1522
  %1588 = vst.msk [vmem:[%s4 + $0x34] sm:$0xf] %vm1574, %v1523
  %1589 = vst.msk [vmem:[%s4 + $0x38] sm:$0xf] %vm1574, %v1524
  %1590 = vst.msk [vmem:[%s4 + $0x3c] sm:$0xf] %vm1574, %v1525
  %1591 = vst.msk [vmem:[%s4 + $0x40] sm:$0xf] %vm1574, %v1526
  %1592 = vst.msk [vmem:[%s4 + $0x44] sm:$0xf] %vm1574, %v1527
  %1593 = vst.msk [vmem:[%s4 + $0x48] sm:$0xf] %vm1574, %v1528
  %1594 = vst.msk [vmem:[%s4 + $0x4c] sm:$0xf] %vm1574, %v1529
  %1595 = vst.msk [vmem:[%s4 + $0x50] sm:$0xf] %vm1574, %v1530
  %1596 = vst.msk [vmem:[%s4 + $0x54] sm:$0xf] %vm1574, %v1531
  %1597 = vst.msk [vmem:[%s4 + $0x58] sm:$0xf] %vm1574, %v1532
  %1598 = vst.msk [vmem:[%s4 + $0x5c] sm:$0xf] %vm1574, %v1533
  %1599 = vst.msk [vmem:[%s4 + $0x60] sm:$0xf] %vm1574, %v1534
  %1600 = vst.msk [vmem:[%s4 + $0x64] sm:$0xf] %vm1574, %v1535
  %1601 = vst.msk [vmem:[%s4 + $0x68] sm:$0xf] %vm1574, %v1536
  %1602 = vst.msk [vmem:[%s4 + $0x6c] sm:$0xf] %vm1574, %v1537
  %1603 = vst.msk [vmem:[%s4 + $0x70] sm:$0xf] %vm1574, %v1538
  %1604 = vst.msk [vmem:[%s4 + $0x74] sm:$0xf] %vm1574, %v1539
  %1605 = vst.msk [vmem:[%s4 + $0x78] sm:$0xf] %vm1574, %v1540
  %1606 = vst.msk [vmem:[%s4 + $0x7c] sm:$0xf] %vm1574, %v1541
  %1607 = vst.msk [vmem:[%s4 + $0x80] sm:$0xf] %vm1574, %v1542
  %1608 = vst.msk [vmem:[%s4 + $0x84] sm:$0xf] %vm1574, %v1543
  %1609 = vst.msk [vmem:[%s4 + $0x88] sm:$0xf] %vm1574, %v1544
  %1610 = vst.msk [vmem:[%s4 + $0x8c] sm:$0xf] %vm1574, %v1545
  %1611 = vst.msk [vmem:[%s4 + $0x90] sm:$0xf] %vm1574, %v1546
  %1612 = vst.msk [vmem:[%s4 + $0x94] sm:$0xf] %vm1574, %v1547
  %1613 = vst.msk [vmem:[%s4 + $0x98] sm:$0xf] %vm1574, %v1548
  %1614 = vst.msk [vmem:[%s4 + $0x9c] sm:$0xf] %vm1574, %v1549
  %1615 = vst.msk [vmem:[%s4 + $0xa0] sm:$0xf] %vm1574, %v1550
  %1616 = vst.msk [vmem:[%s4 + $0xa4] sm:$0xf] %vm1574, %v1551
  %1617 = vst.msk [vmem:[%s4 + $0xa8] sm:$0xf] %vm1574, %v1552
  %1618 = vst.msk [vmem:[%s4 + $0xac] sm:$0xf] %vm1574, %v1553
  %1619 = vst.msk [vmem:[%s4 + $0xb0] sm:$0xf] %vm1574, %v1554
  %1620 = vst.msk [vmem:[%s4 + $0xb4] sm:$0xf] %vm1574, %v1555
  %1621 = vst.msk [vmem:[%s4 + $0xb8] sm:$0xf] %vm1574, %v1556
  %1622 = vst.msk [vmem:[%s4 + $0xbc] sm:$0xf] %vm1574, %v1557
  %1623 = vst.msk [vmem:[%s4 + $0xc0] sm:$0xf] %vm1574, %v1558
  %1624 = vst.msk [vmem:[%s4 + $0xc4] sm:$0xf] %vm1574, %v1559
  %1625 = vst.msk [vmem:[%s4 + $0xc8] sm:$0xf] %vm1574, %v1560
  %1626 = vst.msk [vmem:[%s4 + $0xcc] sm:$0xf] %vm1574, %v1561
  %1627 = vst.msk [vmem:[%s4 + $0xd0] sm:$0xf] %vm1574, %v1562
  %1628 = vst.msk [vmem:[%s4 + $0xd4] sm:$0xf] %vm1574, %v1563
  %1629 = vst.msk [vmem:[%s4 + $0xd8] sm:$0xf] %vm1574, %v1564
  %1630 = vst.msk [vmem:[%s4 + $0xdc] sm:$0xf] %vm1574, %v1565
  %1631 = vst.msk [vmem:[%s4 + $0xe0] sm:$0xf] %vm1574, %v1566
  %1632 = vst.msk [vmem:[%s4 + $0xe4] sm:$0xf] %vm1574, %v1567
  %1633 = vst.msk [vmem:[%s4 + $0xe8] sm:$0xf] %vm1574, %v1568
  %1634 = vst.msk [vmem:[%s4 + $0xec] sm:$0xf] %vm1574, %v1569
  %1635 = vst.msk [vmem:[%s4 + $0xf0] sm:$0xf] %vm1574, %v1570
  %1636 = vst.msk [vmem:[%s4 + $0xf4] sm:$0xf] %vm1574, %v1571
  %1637 = vst.msk [vmem:[%s4 + $0xf8] sm:$0xf] %vm1574, %v1572
  %1638 = vst.msk [vmem:[%s4 + $0xfc] sm:$0xf] %vm1574, %v1573
  // Predicated region
  $region18: #{audio_cnn_forward.8} parent=0 // pred_check
    _
  $region19: #{audio_cnn_forward.8} parent=0 // pred_check_branch
    %1640 = sbr.rel (0) target = $region21
  $region20: #{audio_cnn_forward.8} parent=0 // pred_region
    _
  $region21: #{audio_cnn_forward.8} parent=0 // pred_fallthru
    _
  // Predicated region
  $region22: #{audio_cnn_forward.8} parent=0 // pred_check
    _
  $region23: #{audio_cnn_forward.8} parent=0 // pred_check_branch
    %1642 = sbr.rel (0) target = $region25
  $region24: #{audio_cnn_forward.8} parent=0 // pred_region
    _
  $region25: #{audio_cnn_forward.8} parent=0 // pred_fallthru
    _

// kernel: audio_cnn_forward.9
$region0: #{audio_cnn_forward.9}
  #allocation0 [shape = 'u32[]', space=smem, size = 0x4, offset = 0x4, fixed_abs, tag = 'smem constant byte address 0x4 - core index']
  #allocation1 [shape = 'u32[72,128]{1,0:T(1,128)}', space=vmem, size = 0x9000, scoped, tag = 'internal scratch']
  %s0 = inlined_call_operand.vmem [shape: bf16[128,576], index: 0, kind: input, shape index: {}]
  %s1 = inlined_call_operand.vmem [shape: bf16[576,64], index: 1, kind: input, shape index: {}]
  %s2 = inlined_call_operand.vmem [shape: f32[1,64], index: 2, kind: input, shape index: {}]
  %s3 = inlined_call_operand.vmem [shape: f32[1,64], index: 3, kind: input, shape index: {}]
  %s4 = inlined_call_operand.vmem [shape: bf16[128,64], index: 4, kind: output, shape index: {}]
  %s5 = sld [smem:[#allocation0]]
  $region26: #{audio_cnn_forward.9} parent=0
    _
  %s7 = ssub.s32 1, %s5
  %s8 = scalar_select 0, %s7, %s5
  // Predicated region
  $region2: #{audio_cnn_forward.9} parent=0 // pred_check
    _
  $region3: #{audio_cnn_forward.9} parent=0 // pred_check_branch
    %10 = sbr.rel (0) target = $region5
  $region4: #{audio_cnn_forward.9} parent=0 // pred_region
    _
  $region5: #{audio_cnn_forward.9} parent=0 // pred_fallthru
    _
  // Predicated region
  $region6: #{audio_cnn_forward.9} parent=0 // pred_check
    _
  $region7: #{audio_cnn_forward.9} parent=0 // pred_check_branch
    %12 = sbr.rel (0) target = $region9
  $region8: #{audio_cnn_forward.9} parent=0 // pred_region
    _
  $region9: #{audio_cnn_forward.9} parent=0 // pred_fallthru
    _
  // Predicated region
  $region10: #{audio_cnn_forward.9} parent=0 // pred_check
    _
  $region11: #{audio_cnn_forward.9} parent=0 // pred_check_branch
    %14 = sbr.rel (0) target = $region13
  $region12: #{audio_cnn_forward.9} parent=0 // pred_region
    _
  $region13: #{audio_cnn_forward.9} parent=0 // pred_fallthru
    _
  // Predicated region
  $region14: #{audio_cnn_forward.9} parent=0 // pred_check
    _
  $region15: #{audio_cnn_forward.9} parent=0 // pred_check_branch
    %16 = sbr.rel (0) target = $region17
  $region16: #{audio_cnn_forward.9} parent=0 // pred_region
    _
  $region17: #{audio_cnn_forward.9} parent=0 // pred_fallthru
    _
  %v18 = vld [vmem:[%s0] sm:$0xff]
  %v19 = vld [vmem:[%s0 + $0x8] sm:$0xff]
  %v20 = vld [vmem:[%s0 + $0x10] sm:$0xf]
  %v21 = vld [vmem:[%s0 + $0x14] sm:$0xff]
  %v22 = vld [vmem:[%s0 + $0x1c] sm:$0xff]
  %v23 = vld [vmem:[%s0 + $0x24] sm:$0xf]
  %v24 = vld [vmem:[%s0 + $0x28] sm:$0xff]
  %v25 = vld [vmem:[%s0 + $0x30] sm:$0xff]
  %v26 = vld [vmem:[%s0 + $0x38] sm:$0xf]
  %v27 = vld [vmem:[%s0 + $0x3c] sm:$0xff]
  %v28 = vld [vmem:[%s0 + $0x44] sm:$0xff]
  %v29 = vld [vmem:[%s0 + $0x4c] sm:$0xf]
  %v30 = vld [vmem:[%s0 + $0x50] sm:$0xff]
  %v31 = vld [vmem:[%s0 + $0x58] sm:$0xff]
  %v32 = vld [vmem:[%s0 + $0x60] sm:$0xf]
  %v33 = vld [vmem:[%s0 + $0x64] sm:$0xff]
  %v34 = vld [vmem:[%s0 + $0x6c] sm:$0xff]
  %v35 = vld [vmem:[%s0 + $0x74] sm:$0xf]
  %v36 = vld [vmem:[%s0 + $0x78] sm:$0xff]
  %v37 = vld [vmem:[%s0 + $0x80] sm:$0xff]
  %v38 = vld [vmem:[%s0 + $0x88] sm:$0xf]
  %v39 = vld [vmem:[%s0 + $0x8c] sm:$0xff]
  %v40 = vld [vmem:[%s0 + $0x94] sm:$0xff]
  %v41 = vld [vmem:[%s0 + $0x9c] sm:$0xf]
  %v42 = vld [vmem:[%s0 + $0xa0] sm:$0xff]
  %v43 = vld [vmem:[%s0 + $0xa8] sm:$0xff]
  %v44 = vld [vmem:[%s0 + $0xb0] sm:$0xf]
  %v45 = vld [vmem:[%s0 + $0xb4] sm:$0xff]
  %v46 = vld [vmem:[%s0 + $0xbc] sm:$0xff]
  %v47 = vld [vmem:[%s0 + $0xc4] sm:$0xf]
  %v48 = vld [vmem:[%s0 + $0xc8] sm:$0xff]
  %v49 = vld [vmem:[%s0 + $0xd0] sm:$0xff]
  %v50 = vld [vmem:[%s0 + $0xd8] sm:$0xf]
  %v51 = vld [vmem:[%s0 + $0xdc] sm:$0xff]
  %v52 = vld [vmem:[%s0 + $0xe4] sm:$0xff]
  %v53 = vld [vmem:[%s0 + $0xec] sm:$0xf]
  %v54 = vld [vmem:[%s0 + $0xf0] sm:$0xff]
  %v55 = vld [vmem:[%s0 + $0xf8] sm:$0xff]
  %v56 = vld [vmem:[%s0 + $0x100] sm:$0xf]
  %v57 = vld [vmem:[%s0 + $0x104] sm:$0xff]
  %v58 = vld [vmem:[%s0 + $0x10c] sm:$0xff]
  %v59 = vld [vmem:[%s0 + $0x114] sm:$0xf]
  %v60 = vld [vmem:[%s0 + $0x118] sm:$0xff]
  %v61 = vld [vmem:[%s0 + $0x120] sm:$0xff]
  %v62 = vld [vmem:[%s0 + $0x128] sm:$0xf]
  %v63 = vld [vmem:[%s0 + $0x12c] sm:$0xff]
  %v64 = vld [vmem:[%s0 + $0x134] sm:$0xff]
  %v65 = vld [vmem:[%s0 + $0x13c] sm:$0xf]
  %v66 = vld [vmem:[%s1] sm:$0xf]
  %v67 = vld [vmem:[%s1 + $0x4] sm:$0xf]
  %v68 = vld [vmem:[%s1 + $0x8] sm:$0xf]
  %v69 = vld [vmem:[%s1 + $0xc] sm:$0xf]
  %v70 = vld [vmem:[%s1 + $0x10] sm:$0xf]
  %v71 = vld [vmem:[%s1 + $0x14] sm:$0xf]
  %v72 = vld [vmem:[%s1 + $0x18] sm:$0xf]
  %v73 = vld [vmem:[%s1 + $0x1c] sm:$0xf]
  %v74 = vld [vmem:[%s1 + $0x20] sm:$0xf]
  %v75 = vld [vmem:[%s1 + $0x24] sm:$0xf]
  %v76 = vld [vmem:[%s1 + $0x28] sm:$0xf]
  %v77 = vld [vmem:[%s1 + $0x2c] sm:$0xf]
  %v78 = vld [vmem:[%s1 + $0x30] sm:$0xf]
  %v79 = vld [vmem:[%s1 + $0x34] sm:$0xf]
  %v80 = vld [vmem:[%s1 + $0x38] sm:$0xf]
  %v81 = vld [vmem:[%s1 + $0x3c] sm:$0xf]
  %v82 = vld [vmem:[%s1 + $0x40] sm:$0xf]
  %v83 = vld [vmem:[%s1 + $0x44] sm:$0xf]
  %v84 = vld [vmem:[%s1 + $0x48] sm:$0xf]
  %v85 = vld [vmem:[%s1 + $0x4c] sm:$0xf]
  %v86 = vld [vmem:[%s1 + $0x50] sm:$0xf]
  %v87 = vld [vmem:[%s1 + $0x54] sm:$0xf]
  %v88 = vld [vmem:[%s1 + $0x58] sm:$0xf]
  %v89 = vld [vmem:[%s1 + $0x5c] sm:$0xf]
  %v90 = vld [vmem:[%s1 + $0x60] sm:$0xf]
  %v91 = vld [vmem:[%s1 + $0x64] sm:$0xf]
  %v92 = vld [vmem:[%s1 + $0x68] sm:$0xf]
  %v93 = vld [vmem:[%s1 + $0x6c] sm:$0xf]
  %v94 = vld [vmem:[%s1 + $0x70] sm:$0xf]
  %v95 = vld [vmem:[%s1 + $0x74] sm:$0xf]
  %v96 = vld [vmem:[%s1 + $0x78] sm:$0xf]
  %v97 = vld [vmem:[%s1 + $0x7c] sm:$0xf]
  %v98 = vld [vmem:[%s1 + $0x80] sm:$0xf]
  %v99 = vld [vmem:[%s1 + $0x84] sm:$0xf]
  %v100 = vld [vmem:[%s1 + $0x88] sm:$0xf]
  %v101 = vld [vmem:[%s1 + $0x8c] sm:$0xf]
  %v102 = vld [vmem:[%s1 + $0x90] sm:$0xf]
  %v103 = vld [vmem:[%s1 + $0x94] sm:$0xf]
  %v104 = vld [vmem:[%s1 + $0x98] sm:$0xf]
  %v105 = vld [vmem:[%s1 + $0x9c] sm:$0xf]
  %v106 = vld [vmem:[%s1 + $0xa0] sm:$0xf]
  %v107 = vld [vmem:[%s1 + $0xa4] sm:$0xf]
  %v108 = vld [vmem:[%s1 + $0xa8] sm:$0xf]
  %v109 = vld [vmem:[%s1 + $0xac] sm:$0xf]
  %v110 = vld [vmem:[%s1 + $0xb0] sm:$0xf]
  %v111 = vld [vmem:[%s1 + $0xb4] sm:$0xf]
  %v112 = vld [vmem:[%s1 + $0xb8] sm:$0xf]
  %v113 = vld [vmem:[%s1 + $0xbc] sm:$0xf]
  %v114 = vld [vmem:[%s1 + $0xc0] sm:$0xf]
  %v115 = vld [vmem:[%s1 + $0xc4] sm:$0xf]
  %v116 = vld [vmem:[%s1 + $0xc8] sm:$0xf]
  %v117 = vld [vmem:[%s1 + $0xcc] sm:$0xf]
  %v118 = vld [vmem:[%s1 + $0xd0] sm:$0xf]
  %v119 = vld [vmem:[%s1 + $0xd4] sm:$0xf]
  %v120 = vld [vmem:[%s1 + $0xd8] sm:$0xf]
  %v121 = vld [vmem:[%s1 + $0xdc] sm:$0xf]
  %v122 = vld [vmem:[%s1 + $0xe0] sm:$0xf]
  %v123 = vld [vmem:[%s1 + $0xe4] sm:$0xf]
  %v124 = vld [vmem:[%s1 + $0xe8] sm:$0xf]
  %v125 = vld [vmem:[%s1 + $0xec] sm:$0xf]
  %v126 = vld [vmem:[%s1 + $0xf0] sm:$0xf]
  %v127 = vld [vmem:[%s1 + $0xf4] sm:$0xf]
  %v128 = vld [vmem:[%s1 + $0xf8] sm:$0xf]
  %v129 = vld [vmem:[%s1 + $0xfc] sm:$0xf]
  %v130 = vld [vmem:[%s1 + $0x100] sm:$0xf]
  %v131 = vld [vmem:[%s1 + $0x104] sm:$0xf]
  %v132 = vld [vmem:[%s1 + $0x108] sm:$0xf]
  %v133 = vld [vmem:[%s1 + $0x10c] sm:$0xf]
  %v134 = vld [vmem:[%s1 + $0x110] sm:$0xf]
  %v135 = vld [vmem:[%s1 + $0x114] sm:$0xf]
  %v136 = vld [vmem:[%s1 + $0x118] sm:$0xf]
  %v137 = vld [vmem:[%s1 + $0x11c] sm:$0xf]
  %v186 = vunpack.c.l.b16 %v18
  %v187 = vunpack.c.h.b16 %v18
  %v188 = vunpack.c.l.b16 %v19
  %v189 = vunpack.c.h.b16 %v19
  %v190 = vunpack.c.l.b16 %v20
  %v191 = vunpack.c.l.b16 %v21
  %v192 = vunpack.c.h.b16 %v21
  %v193 = vunpack.c.l.b16 %v22
  %v194 = vunpack.c.h.b16 %v22
  %v195 = vunpack.c.l.b16 %v23
  %v196 = vunpack.c.l.b16 %v24
  %v197 = vunpack.c.h.b16 %v24
  %v198 = vunpack.c.l.b16 %v25
  %v199 = vunpack.c.h.b16 %v25
  %v200 = vunpack.c.l.b16 %v26
  %v201 = vunpack.c.l.b16 %v27
  %v202 = vunpack.c.h.b16 %v27
  %v203 = vunpack.c.l.b16 %v28
  %v204 = vunpack.c.h.b16 %v28
  %v205 = vunpack.c.l.b16 %v29
  %v206 = vunpack.c.l.b16 %v30
  %v207 = vunpack.c.h.b16 %v30
  %v208 = vunpack.c.l.b16 %v31
  %v209 = vunpack.c.h.b16 %v31
  %v210 = vunpack.c.l.b16 %v32
  %v211 = vunpack.c.l.b16 %v33
  %v212 = vunpack.c.h.b16 %v33
  %v213 = vunpack.c.l.b16 %v34
  %v214 = vunpack.c.h.b16 %v34
  %v215 = vunpack.c.l.b16 %v35
  %v216 = vunpack.c.l.b16 %v36
  %v217 = vunpack.c.h.b16 %v36
  %v218 = vunpack.c.l.b16 %v37
  %v219 = vunpack.c.h.b16 %v37
  %v220 = vunpack.c.l.b16 %v38
  %v221 = vunpack.c.l.b16 %v39
  %v222 = vunpack.c.h.b16 %v39
  %v223 = vunpack.c.l.b16 %v40
  %v224 = vunpack.c.h.b16 %v40
  %v225 = vunpack.c.l.b16 %v41
  %v226 = vunpack.c.l.b16 %v42
  %v227 = vunpack.c.h.b16 %v42
  %v228 = vunpack.c.l.b16 %v43
  %v229 = vunpack.c.h.b16 %v43
  %v230 = vunpack.c.l.b16 %v44
  %v231 = vunpack.c.l.b16 %v45
  %v232 = vunpack.c.h.b16 %v45
  %v233 = vunpack.c.l.b16 %v46
  %v234 = vunpack.c.h.b16 %v46
  %v235 = vunpack.c.l.b16 %v47
  %v236 = vunpack.c.l.b16 %v48
  %v237 = vunpack.c.h.b16 %v48
  %v238 = vunpack.c.l.b16 %v49
  %v239 = vunpack.c.h.b16 %v49
  %v240 = vunpack.c.l.b16 %v50
  %v241 = vunpack.c.l.b16 %v51
  %v242 = vunpack.c.h.b16 %v51
  %v243 = vunpack.c.l.b16 %v52
  %v244 = vunpack.c.h.b16 %v52
  %v245 = vunpack.c.l.b16 %v53
  %v246 = vunpack.c.l.b16 %v54
  %v247 = vunpack.c.h.b16 %v54
  %v248 = vunpack.c.l.b16 %v55
  %v249 = vunpack.c.h.b16 %v55
  %v250 = vunpack.c.l.b16 %v56
  %v251 = vunpack.c.l.b16 %v57
  %v252 = vunpack.c.h.b16 %v57
  %v253 = vunpack.c.l.b16 %v58
  %v254 = vunpack.c.h.b16 %v58
  %v255 = vunpack.c.l.b16 %v59
  %v256 = vunpack.c.l.b16 %v60
  %v257 = vunpack.c.h.b16 %v60
  %v258 = vunpack.c.l.b16 %v61
  %v259 = vunpack.c.h.b16 %v61
  %v260 = vunpack.c.l.b16 %v62
  %v261 = vunpack.c.l.b16 %v63
  %v262 = vunpack.c.h.b16 %v63
  %v263 = vunpack.c.l.b16 %v64
  %v264 = vunpack.c.h.b16 %v64
  %v265 = vunpack.c.l.b16 %v65
  %v266 = vpack.c.b16 %v191, %v186
  %v267 = vpack.c.b16 %v192, %v187
  %v268 = vpack.c.b16 %v193, %v188
  %v269 = vpack.c.b16 %v194, %v189
  %v270 = vpack.c.b16 %v195, %v190
  %v271 = vpack.c.b16 %v201, %v196
  %v272 = vpack.c.b16 %v202, %v197
  %v273 = vpack.c.b16 %v203, %v198
  %v274 = vpack.c.b16 %v204, %v199
  %v275 = vpack.c.b16 %v205, %v200
  %v276 = vpack.c.b16 %v211, %v206
  %v277 = vpack.c.b16 %v212, %v207
  %v278 = vpack.c.b16 %v213, %v208
  %v279 = vpack.c.b16 %v214, %v209
  %v280 = vpack.c.b16 %v215, %v210
  %v281 = vpack.c.b16 %v221, %v216
  %v282 = vpack.c.b16 %v222, %v217
  %v283 = vpack.c.b16 %v223, %v218
  %v284 = vpack.c.b16 %v224, %v219
  %v285 = vpack.c.b16 %v225, %v220
  %v286 = vpack.c.b16 %v231, %v226
  %v287 = vpack.c.b16 %v232, %v227
  %v288 = vpack.c.b16 %v233, %v228
  %v289 = vpack.c.b16 %v234, %v229
  %v290 = vpack.c.b16 %v235, %v230
  %v291 = vpack.c.b16 %v241, %v236
  %v292 = vpack.c.b16 %v242, %v237
  %v293 = vpack.c.b16 %v243, %v238
  %v294 = vpack.c.b16 %v244, %v239
  %v295 = vpack.c.b16 %v245, %v240
  %v296 = vpack.c.b16 %v251, %v246
  %v297 = vpack.c.b16 %v252, %v247
  %v298 = vpack.c.b16 %v253, %v248
  %v299 = vpack.c.b16 %v254, %v249
  %v300 = vpack.c.b16 %v255, %v250
  %v301 = vpack.c.b16 %v261, %v256
  %v302 = vpack.c.b16 %v262, %v257
  %v303 = vpack.c.b16 %v263, %v258
  %v304 = vpack.c.b16 %v264, %v259
  %v305 = vpack.c.b16 %v265, %v260
  %v410 = vunpack.c.l.b16 %v66
  %v411 = vunpack.c.l.b16 %v67
  %v412 = vunpack.c.l.b16 %v68
  %v413 = vunpack.c.l.b16 %v69
  %v414 = vunpack.c.l.b16 %v70
  %v415 = vunpack.c.l.b16 %v71
  %v416 = vunpack.c.l.b16 %v72
  %v417 = vunpack.c.l.b16 %v73
  %v418 = vunpack.c.l.b16 %v74
  %v419 = vunpack.c.l.b16 %v75
  %v420 = vunpack.c.l.b16 %v76
  %v421 = vunpack.c.l.b16 %v77
  %v422 = vunpack.c.l.b16 %v78
  %v423 = vunpack.c.l.b16 %v79
  %v424 = vunpack.c.l.b16 %v80
  %v425 = vunpack.c.l.b16 %v81
  %v426 = vunpack.c.l.b16 %v82
  %v427 = vunpack.c.l.b16 %v83
  %v428 = vunpack.c.l.b16 %v84
  %v429 = vunpack.c.l.b16 %v85
  %v430 = vunpack.c.l.b16 %v86
  %v431 = vunpack.c.l.b16 %v87
  %v432 = vunpack.c.l.b16 %v88
  %v433 = vunpack.c.l.b16 %v89
  %v434 = vunpack.c.l.b16 %v90
  %v435 = vunpack.c.l.b16 %v91
  %v436 = vunpack.c.l.b16 %v92
  %v437 = vunpack.c.l.b16 %v93
  %v438 = vunpack.c.l.b16 %v94
  %v439 = vunpack.c.l.b16 %v95
  %v440 = vunpack.c.l.b16 %v96
  %v441 = vunpack.c.l.b16 %v97
  %v442 = vunpack.c.l.b16 %v98
  %v443 = vunpack.c.l.b16 %v99
  %v444 = vunpack.c.l.b16 %v100
  %v445 = vunpack.c.l.b16 %v101
  %v446 = vunpack.c.l.b16 %v102
  %v447 = vunpack.c.l.b16 %v103
  %v448 = vunpack.c.l.b16 %v104
  %v449 = vunpack.c.l.b16 %v105
  %v450 = vunpack.c.l.b16 %v106
  %v451 = vunpack.c.l.b16 %v107
  %v452 = vunpack.c.l.b16 %v108
  %v453 = vunpack.c.l.b16 %v109
  %v454 = vunpack.c.l.b16 %v110
  %v455 = vunpack.c.l.b16 %v111
  %v456 = vunpack.c.l.b16 %v112
  %v457 = vunpack.c.l.b16 %v113
  %v458 = vunpack.c.l.b16 %v114
  %v459 = vunpack.c.l.b16 %v115
  %v460 = vunpack.c.l.b16 %v116
  %v461 = vunpack.c.l.b16 %v117
  %v462 = vunpack.c.l.b16 %v118
  %v463 = vunpack.c.l.b16 %v119
  %v464 = vunpack.c.l.b16 %v120
  %v465 = vunpack.c.l.b16 %v121
  %v466 = vunpack.c.l.b16 %v122
  %v467 = vunpack.c.l.b16 %v123
  %v468 = vunpack.c.l.b16 %v124
  %v469 = vunpack.c.l.b16 %v125
  %v470 = vunpack.c.l.b16 %v126
  %v471 = vunpack.c.l.b16 %v127
  %v472 = vunpack.c.l.b16 %v128
  %v473 = vunpack.c.l.b16 %v129
  %v474 = vunpack.c.l.b16 %v130
  %v475 = vunpack.c.l.b16 %v131
  %v476 = vunpack.c.l.b16 %v132
  %v477 = vunpack.c.l.b16 %v133
  %v478 = vunpack.c.l.b16 %v134
  %v479 = vunpack.c.l.b16 %v135
  %v480 = vunpack.c.l.b16 %v136
  %v481 = vunpack.c.l.b16 %v137
  %v482 = vpack.c.b16 %v411, %v410
  %v483 = vpack.c.b16 %v413, %v412
  %v484 = vpack.c.b16 %v415, %v414
  %v485 = vpack.c.b16 %v417, %v416
  %v486 = vpack.c.b16 %v419, %v418
  %v487 = vpack.c.b16 %v421, %v420
  %v488 = vpack.c.b16 %v423, %v422
  %v489 = vpack.c.b16 %v425, %v424
  %v490 = vpack.c.b16 %v427, %v426
  %v491 = vpack.c.b16 %v429, %v428
  %v492 = vpack.c.b16 %v431, %v430
  %v493 = vpack.c.b16 %v433, %v432
  %v494 = vpack.c.b16 %v435, %v434
  %v495 = vpack.c.b16 %v437, %v436
  %v496 = vpack.c.b16 %v439, %v438
  %v497 = vpack.c.b16 %v441, %v440
  %v498 = vpack.c.b16 %v443, %v442
  %v499 = vpack.c.b16 %v445, %v444
  %v500 = vpack.c.b16 %v447, %v446
  %v501 = vpack.c.b16 %v449, %v448
  %v502 = vpack.c.b16 %v451, %v450
  %v503 = vpack.c.b16 %v453, %v452
  %v504 = vpack.c.b16 %v455, %v454
  %v505 = vpack.c.b16 %v457, %v456
  %v506 = vpack.c.b16 %v459, %v458
  %v507 = vpack.c.b16 %v461, %v460
  %v508 = vpack.c.b16 %v463, %v462
  %v509 = vpack.c.b16 %v465, %v464
  %v510 = vpack.c.b16 %v467, %v466
  %v511 = vpack.c.b16 %v469, %v468
  %v512 = vpack.c.b16 %v471, %v470
  %v513 = vpack.c.b16 %v473, %v472
  %v514 = vpack.c.b16 %v475, %v474
  %v515 = vpack.c.b16 %v477, %v476
  %v516 = vpack.c.b16 %v479, %v478
  %v517 = vpack.c.b16 %v481, %v480
  %vm554 = vcmask 523264
  %v556 = vsel %vm554, %v270, 0
  %v559 = vsel %vm554, %v275, 0
  %v562 = vsel %vm554, %v280, 0
  %v565 = vsel %vm554, %v285, 0
  %v568 = vsel %vm554, %v290, 0
  %v571 = vsel %vm554, %v295, 0
  %v574 = vsel %vm554, %v300, 0
  %v577 = vsel %vm554, %v305, 0
  %579 = vmatpush.bf16.msra.mxu0 %v489
  %580 = vmatpush.bf16.msra.mxu0 %v488
  %581 = vmatpush.bf16.msra.mxu0 %v487
  %582 = vmatpush.bf16.msra.mxu0 %v486
  %583 = vmatpush.bf16.msra.mxu0 %v485
  %584 = vmatpush.bf16.msra.mxu0 %v484
  %585 = vmatpush.bf16.msra.mxu0 %v483
  %586 = vmatpush.bf16.msra.mxu0 %v482
  %587 = vmatmul.bf16.gmra.mxu0 %v266
  %v588 = vpop.f32.mrf.mxu0
  %v589 = vadd.f32 0.0, %v588
  %v590 = vpop.f32.mrf.mxu0
  %v591 = vadd.f32 0.0, %v590
  %592 = vmatmul.bf16.gmra.mxu0 %v271
  %v593 = vpop.f32.mrf.mxu0
  %v594 = vadd.f32 0.0, %v593
  %v595 = vpop.f32.mrf.mxu0
  %v596 = vadd.f32 0.0, %v595
  %597 = vmatmul.bf16.gmra.mxu0 %v276
  %v598 = vpop.f32.mrf.mxu0
  %v599 = vadd.f32 0.0, %v598
  %v600 = vpop.f32.mrf.mxu0
  %v601 = vadd.f32 0.0, %v600
  %602 = vmatmul.bf16.gmra.mxu0 %v281
  %v603 = vpop.f32.mrf.mxu0
  %v604 = vadd.f32 0.0, %v603
  %v605 = vpop.f32.mrf.mxu0
  %v606 = vadd.f32 0.0, %v605
  %607 = vmatmul.bf16.gmra.mxu0 %v286
  %v608 = vpop.f32.mrf.mxu0
  %v609 = vadd.f32 0.0, %v608
  %v610 = vpop.f32.mrf.mxu0
  %v611 = vadd.f32 0.0, %v610
  %612 = vmatmul.bf16.gmra.mxu0 %v291
  %v613 = vpop.f32.mrf.mxu0
  %v614 = vadd.f32 0.0, %v613
  %v615 = vpop.f32.mrf.mxu0
  %v616 = vadd.f32 0.0, %v615
  %617 = vmatmul.bf16.gmra.mxu0 %v296
  %v618 = vpop.f32.mrf.mxu0
  %v619 = vadd.f32 0.0, %v618
  %v620 = vpop.f32.mrf.mxu0
  %v621 = vadd.f32 0.0, %v620
  %622 = vmatmul.bf16.gmra.mxu0 %v301
  %v623 = vpop.f32.mrf.mxu0
  %v624 = vadd.f32 0.0, %v623
  %v625 = vpop.f32.mrf.mxu0
  %v626 = vadd.f32 0.0, %v625
  %627 = vdwg.mxu0
  %628 = vmatpush.bf16.msra.mxu0 %v497
  %629 = vmatpush.bf16.msra.mxu0 %v496
  %630 = vmatpush.bf16.msra.mxu0 %v495
  %631 = vmatpush.bf16.msra.mxu0 %v494
  %632 = vmatpush.bf16.msra.mxu0 %v493
  %633 = vmatpush.bf16.msra.mxu0 %v492
  %634 = vmatpush.bf16.msra.mxu0 %v491
  %635 = vmatpush.bf16.msra.mxu0 %v490
  %636 = vmatmul.bf16.gmra.mxu0 %v267
  %v637 = vpop.f32.mrf.mxu0
  %v638 = vadd.f32 %v589, %v637
  %v639 = vpop.f32.mrf.mxu0
  %v640 = vadd.f32 %v591, %v639
  %641 = vmatmul.bf16.gmra.mxu0 %v272
  %v642 = vpop.f32.mrf.mxu0
  %v643 = vadd.f32 %v594, %v642
  %v644 = vpop.f32.mrf.mxu0
  %v645 = vadd.f32 %v596, %v644
  %646 = vmatmul.bf16.gmra.mxu0 %v277
  %v647 = vpop.f32.mrf.mxu0
  %v648 = vadd.f32 %v599, %v647
  %v649 = vpop.f32.mrf.mxu0
  %v650 = vadd.f32 %v601, %v649
  %651 = vmatmul.bf16.gmra.mxu0 %v282
  %v652 = vpop.f32.mrf.mxu0
  %v653 = vadd.f32 %v604, %v652
  %v654 = vpop.f32.mrf.mxu0
  %v655 = vadd.f32 %v606, %v654
  %656 = vmatmul.bf16.gmra.mxu0 %v287
  %v657 = vpop.f32.mrf.mxu0
  %v658 = vadd.f32 %v609, %v657
  %v659 = vpop.f32.mrf.mxu0
  %v660 = vadd.f32 %v611, %v659
  %661 = vmatmul.bf16.gmra.mxu0 %v292
  %v662 = vpop.f32.mrf.mxu0
  %v663 = vadd.f32 %v614, %v662
  %v664 = vpop.f32.mrf.mxu0
  %v665 = vadd.f32 %v616, %v664
  %666 = vmatmul.bf16.gmra.mxu0 %v297
  %v667 = vpop.f32.mrf.mxu0
  %v668 = vadd.f32 %v619, %v667
  %v669 = vpop.f32.mrf.mxu0
  %v670 = vadd.f32 %v621, %v669
  %671 = vmatmul.bf16.gmra.mxu0 %v302
  %v672 = vpop.f32.mrf.mxu0
  %v673 = vadd.f32 %v624, %v672
  %v674 = vpop.f32.mrf.mxu0
  %v675 = vadd.f32 %v626, %v674
  %676 = vdwg.mxu0
  %677 = vmatpush.bf16.msra.mxu0 %v505
  %678 = vmatpush.bf16.msra.mxu0 %v504
  %679 = vmatpush.bf16.msra.mxu0 %v503
  %680 = vmatpush.bf16.msra.mxu0 %v502
  %681 = vmatpush.bf16.msra.mxu0 %v501
  %682 = vmatpush.bf16.msra.mxu0 %v500
  %683 = vmatpush.bf16.msra.mxu0 %v499
  %684 = vmatpush.bf16.msra.mxu0 %v498
  %685 = vmatmul.bf16.gmra.mxu0 %v268
  %v686 = vpop.f32.mrf.mxu0
  %v687 = vadd.f32 %v638, %v686
  %v688 = vpop.f32.mrf.mxu0
  %v689 = vadd.f32 %v640, %v688
  %690 = vmatmul.bf16.gmra.mxu0 %v273
  %v691 = vpop.f32.mrf.mxu0
  %v692 = vadd.f32 %v643, %v691
  %v693 = vpop.f32.mrf.mxu0
  %v694 = vadd.f32 %v645, %v693
  %695 = vmatmul.bf16.gmra.mxu0 %v278
  %v696 = vpop.f32.mrf.mxu0
  %v697 = vadd.f32 %v648, %v696
  %v698 = vpop.f32.mrf.mxu0
  %v699 = vadd.f32 %v650, %v698
  %700 = vmatmul.bf16.gmra.mxu0 %v283
  %v701 = vpop.f32.mrf.mxu0
  %v702 = vadd.f32 %v653, %v701
  %v703 = vpop.f32.mrf.mxu0
  %v704 = vadd.f32 %v655, %v703
  %705 = vmatmul.bf16.gmra.mxu0 %v288
  %v706 = vpop.f32.mrf.mxu0
  %v707 = vadd.f32 %v658, %v706
  %v708 = vpop.f32.mrf.mxu0
  %v709 = vadd.f32 %v660, %v708
  %710 = vmatmul.bf16.gmra.mxu0 %v293
  %v711 = vpop.f32.mrf.mxu0
  %v712 = vadd.f32 %v663, %v711
  %v713 = vpop.f32.mrf.mxu0
  %v714 = vadd.f32 %v665, %v713
  %715 = vmatmul.bf16.gmra.mxu0 %v298
  %v716 = vpop.f32.mrf.mxu0
  %v717 = vadd.f32 %v668, %v716
  %v718 = vpop.f32.mrf.mxu0
  %v719 = vadd.f32 %v670, %v718
  %720 = vmatmul.bf16.gmra.mxu0 %v303
  %v721 = vpop.f32.mrf.mxu0
  %v722 = vadd.f32 %v673, %v721
  %v723 = vpop.f32.mrf.mxu0
  %v724 = vadd.f32 %v675, %v723
  %725 = vdwg.mxu0
  %726 = vmatpush.bf16.msra.mxu0 %v513
  %727 = vmatpush.bf16.msra.mxu0 %v512
  %728 = vmatpush.bf16.msra.mxu0 %v511
  %729 = vmatpush.bf16.msra.mxu0 %v510
  %730 = vmatpush.bf16.msra.mxu0 %v509
  %731 = vmatpush.bf16.msra.mxu0 %v508
  %732 = vmatpush.bf16.msra.mxu0 %v507
  %733 = vmatpush.bf16.msra.mxu0 %v506
  %734 = vmatmul.bf16.gmra.mxu0 %v269
  %v735 = vpop.f32.mrf.mxu0
  %v736 = vadd.f32 %v687, %v735
  %v737 = vpop.f32.mrf.mxu0
  %v738 = vadd.f32 %v689, %v737
  %739 = vmatmul.bf16.gmra.mxu0 %v274
  %v740 = vpop.f32.mrf.mxu0
  %v741 = vadd.f32 %v692, %v740
  %v742 = vpop.f32.mrf.mxu0
  %v743 = vadd.f32 %v694, %v742
  %744 = vmatmul.bf16.gmra.mxu0 %v279
  %v745 = vpop.f32.mrf.mxu0
  %v746 = vadd.f32 %v697, %v745
  %v747 = vpop.f32.mrf.mxu0
  %v748 = vadd.f32 %v699, %v747
  %749 = vmatmul.bf16.gmra.mxu0 %v284
  %v750 = vpop.f32.mrf.mxu0
  %v751 = vadd.f32 %v702, %v750
  %v752 = vpop.f32.mrf.mxu0
  %v753 = vadd.f32 %v704, %v752
  %754 = vmatmul.bf16.gmra.mxu0 %v289
  %v755 = vpop.f32.mrf.mxu0
  %v756 = vadd.f32 %v707, %v755
  %v757 = vpop.f32.mrf.mxu0
  %v758 = vadd.f32 %v709, %v757
  %759 = vmatmul.bf16.gmra.mxu0 %v294
  %v760 = vpop.f32.mrf.mxu0
  %v761 = vadd.f32 %v712, %v760
  %v762 = vpop.f32.mrf.mxu0
  %v763 = vadd.f32 %v714, %v762
  %764 = vmatmul.bf16.gmra.mxu0 %v299
  %v765 = vpop.f32.mrf.mxu0
  %v766 = vadd.f32 %v717, %v765
  %v767 = vpop.f32.mrf.mxu0
  %v768 = vadd.f32 %v719, %v767
  %769 = vmatmul.bf16.gmra.mxu0 %v304
  %v770 = vpop.f32.mrf.mxu0
  %v771 = vadd.f32 %v722, %v770
  %v772 = vpop.f32.mrf.mxu0
  %v773 = vadd.f32 %v724, %v772
  %774 = vdwg.mxu0
  %775 = vmatpush.bf16.msra.mxu0 0
  %776 = vmatpush.bf16.msra.mxu0 0
  %777 = vmatpush.bf16.msra.mxu0 0
  %778 = vmatpush.bf16.msra.mxu0 0
  %779 = vmatpush.bf16.msra.mxu0 %v517
  %780 = vmatpush.bf16.msra.mxu0 %v516
  %781 = vmatpush.bf16.msra.mxu0 %v515
  %782 = vmatpush.bf16.msra.mxu0 %v514
  %783 = vmatmul.bf16.gmra.mxu0 %v556
  %v784 = vpop.f32.mrf.mxu0
  %v785 = vadd.f32 %v736, %v784
  %v786 = vpop.f32.mrf.mxu0
  %v787 = vadd.f32 %v738, %v786
  %788 = vmatmul.bf16.gmra.mxu0 %v559
  %v789 = vpop.f32.mrf.mxu0
  %v790 = vadd.f32 %v741, %v789
  %v791 = vpop.f32.mrf.mxu0
  %v792 = vadd.f32 %v743, %v791
  %793 = vmatmul.bf16.gmra.mxu0 %v562
  %v794 = vpop.f32.mrf.mxu0
  %v795 = vadd.f32 %v746, %v794
  %v796 = vpop.f32.mrf.mxu0
  %v797 = vadd.f32 %v748, %v796
  %798 = vmatmul.bf16.gmra.mxu0 %v565
  %v799 = vpop.f32.mrf.mxu0
  %v800 = vadd.f32 %v751, %v799
  %v801 = vpop.f32.mrf.mxu0
  %v802 = vadd.f32 %v753, %v801
  %803 = vmatmul.bf16.gmra.mxu0 %v568
  %v804 = vpop.f32.mrf.mxu0
  %v805 = vadd.f32 %v756, %v804
  %v806 = vpop.f32.mrf.mxu0
  %v807 = vadd.f32 %v758, %v806
  %808 = vmatmul.bf16.gmra.mxu0 %v571
  %v809 = vpop.f32.mrf.mxu0
  %v810 = vadd.f32 %v761, %v809
  %v811 = vpop.f32.mrf.mxu0
  %v812 = vadd.f32 %v763, %v811
  %813 = vmatmul.bf16.gmra.mxu0 %v574
  %v814 = vpop.f32.mrf.mxu0
  %v815 = vadd.f32 %v766, %v814
  %v816 = vpop.f32.mrf.mxu0
  %v817 = vadd.f32 %v768, %v816
  %818 = vmatmul.bf16.gmra.mxu0 %v577
  %v819 = vpop.f32.mrf.mxu0
  %v820 = vadd.f32 %v771, %v819
  %v821 = vpop.f32.mrf.mxu0
  %v822 = vadd.f32 %v773, %v821
  %823 = vdwg.mxu0
  %v824 = vld [vmem:[%s2] sm:$0x1]
  %v826 = vperm.slane %v824, 0
  %v828 = vmul.f32 %v785, %v826
  %v829 = vmul.f32 %v787, %v826
  %v830 = vmul.f32 %v790, %v826
  %v831 = vmul.f32 %v792, %v826
  %v832 = vmul.f32 %v795, %v826
  %v833 = vmul.f32 %v797, %v826
  %v834 = vmul.f32 %v800, %v826
  %v835 = vmul.f32 %v802, %v826
  %v836 = vmul.f32 %v805, %v826
  %v837 = vmul.f32 %v807, %v826
  %v838 = vmul.f32 %v810, %v826
  %v839 = vmul.f32 %v812, %v826
  %v840 = vmul.f32 %v815, %v826
  %v841 = vmul.f32 %v817, %v826
  %v842 = vmul.f32 %v820, %v826
  %v843 = vmul.f32 %v822, %v826
  %v844 = vld [vmem:[%s3] sm:$0x1]
  %v846 = vperm.slane %v844, 0
  %v848 = vadd.f32 %v828, %v846
  %v849 = vadd.f32 %v829, %v846
  %v850 = vadd.f32 %v830, %v846
  %v851 = vadd.f32 %v831, %v846
  %v852 = vadd.f32 %v832, %v846
  %v853 = vadd.f32 %v833, %v846
  %v854 = vadd.f32 %v834, %v846
  %v855 = vadd.f32 %v835, %v846
  %v856 = vadd.f32 %v836, %v846
  %v857 = vadd.f32 %v837, %v846
  %v858 = vadd.f32 %v838, %v846
  %v859 = vadd.f32 %v839, %v846
  %v860 = vadd.f32 %v840, %v846
  %v861 = vadd.f32 %v841, %v846
  %v862 = vadd.f32 %v842, %v846
  %v863 = vadd.f32 %v843, %v846
  %v864 = vpack.c.bf16 %v848, %v848
  %v865 = vpack.c.bf16 %v849, %v849
  %v866 = vpack.c.bf16 %v850, %v850
  %v867 = vpack.c.bf16 %v851, %v851
  %v868 = vpack.c.bf16 %v852, %v852
  %v869 = vpack.c.bf16 %v853, %v853
  %v870 = vpack.c.bf16 %v854, %v854
  %v871 = vpack.c.bf16 %v855, %v855
  %v872 = vpack.c.bf16 %v856, %v856
  %v873 = vpack.c.bf16 %v857, %v857
  %v874 = vpack.c.bf16 %v858, %v858
  %v875 = vpack.c.bf16 %v859, %v859
  %v876 = vpack.c.bf16 %v860, %v860
  %v877 = vpack.c.bf16 %v861, %v861
  %v878 = vpack.c.bf16 %v862, %v862
  %v879 = vpack.c.bf16 %v863, %v863
  %vm880 = vcmask 519168
  %881 = vst.msk [vmem:[%s4] sm:$0xf] %vm880, %v864
  %882 = vst.msk [vmem:[%s4 + $0x4] sm:$0xf] %vm880, %v865
  %883 = vst.msk [vmem:[%s4 + $0x8] sm:$0xf] %vm880, %v866
  %884 = vst.msk [vmem:[%s4 + $0xc] sm:$0xf] %vm880, %v867
  %885 = vst.msk [vmem:[%s4 + $0x10] sm:$0xf] %vm880, %v868
  %886 = vst.msk [vmem:[%s4 + $0x14] sm:$0xf] %vm880, %v869
  %887 = vst.msk [vmem:[%s4 + $0x18] sm:$0xf] %vm880, %v870
  %888 = vst.msk [vmem:[%s4 + $0x1c] sm:$0xf] %vm880, %v871
  %889 = vst.msk [vmem:[%s4 + $0x20] sm:$0xf] %vm880, %v872
  %890 = vst.msk [vmem:[%s4 + $0x24] sm:$0xf] %vm880, %v873
  %891 = vst.msk [vmem:[%s4 + $0x28] sm:$0xf] %vm880, %v874
  %892 = vst.msk [vmem:[%s4 + $0x2c] sm:$0xf] %vm880, %v875
  %893 = vst.msk [vmem:[%s4 + $0x30] sm:$0xf] %vm880, %v876
  %894 = vst.msk [vmem:[%s4 + $0x34] sm:$0xf] %vm880, %v877
  %895 = vst.msk [vmem:[%s4 + $0x38] sm:$0xf] %vm880, %v878
  %896 = vst.msk [vmem:[%s4 + $0x3c] sm:$0xf] %vm880, %v879
  // Predicated region
  $region18: #{audio_cnn_forward.9} parent=0 // pred_check
    _
  $region19: #{audio_cnn_forward.9} parent=0 // pred_check_branch
    %898 = sbr.rel (0) target = $region21
  $region20: #{audio_cnn_forward.9} parent=0 // pred_region
    _
  $region21: #{audio_cnn_forward.9} parent=0 // pred_fallthru
    _
  // Predicated region
  $region22: #{audio_cnn_forward.9} parent=0 // pred_check
    _
  $region23: #{audio_cnn_forward.9} parent=0 // pred_check_branch
    %900 = sbr.rel (0) target = $region25
  $region24: #{audio_cnn_forward.9} parent=0 // pred_region
    _
  $region25: #{audio_cnn_forward.9} parent=0 // pred_fallthru
    _

// kernel: audio_cnn_forward.10
$region0: #{audio_cnn_forward.10}
  #allocation0 [shape = 'u32[]', space=smem, size = 0x4, offset = 0x4, fixed_abs, tag = 'smem constant byte address 0x4 - core index']
  #allocation1 [shape = 'u32[72,128]{1,0:T(1,128)}', space=vmem, size = 0x9000, scoped, tag = 'internal scratch']
  %s0 = inlined_call_operand.vmem [shape: bf16[32,576], index: 0, kind: input, shape index: {}]
  %s1 = inlined_call_operand.vmem [shape: bf16[576,48], index: 1, kind: input, shape index: {}]
  %s2 = inlined_call_operand.vmem [shape: f32[1,48], index: 2, kind: input, shape index: {}]
  %s3 = inlined_call_operand.vmem [shape: f32[1,48], index: 3, kind: input, shape index: {}]
  %s4 = inlined_call_operand.vmem [shape: bf16[32,48], index: 4, kind: output, shape index: {}]
  %s5 = sld [smem:[#allocation0]]
  $region26: #{audio_cnn_forward.10} parent=0
    _
  %s7 = ssub.s32 1, %s5
  %s8 = scalar_select 0, %s7, %s5
  // Predicated region
  $region2: #{audio_cnn_forward.10} parent=0 // pred_check
    _
  $region3: #{audio_cnn_forward.10} parent=0 // pred_check_branch
    %10 = sbr.rel (0) target = $region5
  $region4: #{audio_cnn_forward.10} parent=0 // pred_region
    _
  $region5: #{audio_cnn_forward.10} parent=0 // pred_fallthru
    _
  // Predicated region
  $region6: #{audio_cnn_forward.10} parent=0 // pred_check
    _
  $region7: #{audio_cnn_forward.10} parent=0 // pred_check_branch
    %12 = sbr.rel (0) target = $region9
  $region8: #{audio_cnn_forward.10} parent=0 // pred_region
    _
  $region9: #{audio_cnn_forward.10} parent=0 // pred_fallthru
    _
  // Predicated region
  $region10: #{audio_cnn_forward.10} parent=0 // pred_check
    _
  $region11: #{audio_cnn_forward.10} parent=0 // pred_check_branch
    %14 = sbr.rel (0) target = $region13
  $region12: #{audio_cnn_forward.10} parent=0 // pred_region
    _
  $region13: #{audio_cnn_forward.10} parent=0 // pred_fallthru
    _
  // Predicated region
  $region14: #{audio_cnn_forward.10} parent=0 // pred_check
    _
  $region15: #{audio_cnn_forward.10} parent=0 // pred_check_branch
    %16 = sbr.rel (0) target = $region17
  $region16: #{audio_cnn_forward.10} parent=0 // pred_region
    _
  $region17: #{audio_cnn_forward.10} parent=0 // pred_fallthru
    _
  %v18 = vld [vmem:[%s0] sm:$0xff]
  %v19 = vld [vmem:[%s0 + $0x8] sm:$0xff]
  %v20 = vld [vmem:[%s0 + $0x10] sm:$0xf]
  %v21 = vld [vmem:[%s0 + $0x14] sm:$0xff]
  %v22 = vld [vmem:[%s0 + $0x1c] sm:$0xff]
  %v23 = vld [vmem:[%s0 + $0x24] sm:$0xf]
  %v24 = vld [vmem:[%s0 + $0x28] sm:$0xff]
  %v25 = vld [vmem:[%s0 + $0x30] sm:$0xff]
  %v26 = vld [vmem:[%s0 + $0x38] sm:$0xf]
  %v27 = vld [vmem:[%s0 + $0x3c] sm:$0xff]
  %v28 = vld [vmem:[%s0 + $0x44] sm:$0xff]
  %v29 = vld [vmem:[%s0 + $0x4c] sm:$0xf]
  %v30 = vld [vmem:[%s1] sm:$0xf]
  %v31 = vld [vmem:[%s1 + $0x4] sm:$0xf]
  %v32 = vld [vmem:[%s1 + $0x8] sm:$0xf]
  %v33 = vld [vmem:[%s1 + $0xc] sm:$0xf]
  %v34 = vld [vmem:[%s1 + $0x10] sm:$0xf]
  %v35 = vld [vmem:[%s1 + $0x14] sm:$0xf]
  %v36 = vld [vmem:[%s1 + $0x18] sm:$0xf]
  %v37 = vld [vmem:[%s1 + $0x1c] sm:$0xf]
  %v38 = vld [vmem:[%s1 + $0x20] sm:$0xf]
  %v39 = vld [vmem:[%s1 + $0x24] sm:$0xf]
  %v40 = vld [vmem:[%s1 + $0x28] sm:$0xf]
  %v41 = vld [vmem:[%s1 + $0x2c] sm:$0xf]
  %v42 = vld [vmem:[%s1 + $0x30] sm:$0xf]
  %v43 = vld [vmem:[%s1 + $0x34] sm:$0xf]
  %v44 = vld [vmem:[%s1 + $0x38] sm:$0xf]
  %v45 = vld [vmem:[%s1 + $0x3c] sm:$0xf]
  %v46 = vld [vmem:[%s1 + $0x40] sm:$0xf]
  %v47 = vld [vmem:[%s1 + $0x44] sm:$0xf]
  %v48 = vld [vmem:[%s1 + $0x48] sm:$0xf]
  %v49 = vld [vmem:[%s1 + $0x4c] sm:$0xf]
  %v50 = vld [vmem:[%s1 + $0x50] sm:$0xf]
  %v51 = vld [vmem:[%s1 + $0x54] sm:$0xf]
  %v52 = vld [vmem:[%s1 + $0x58] sm:$0xf]
  %v53 = vld [vmem:[%s1 + $0x5c] sm:$0xf]
  %v54 = vld [vmem:[%s1 + $0x60] sm:$0xf]
  %v55 = vld [vmem:[%s1 + $0x64] sm:$0xf]
  %v56 = vld [vmem:[%s1 + $0x68] sm:$0xf]
  %v57 = vld [vmem:[%s1 + $0x6c] sm:$0xf]
  %v58 = vld [vmem:[%s1 + $0x70] sm:$0xf]
  %v59 = vld [vmem:[%s1 + $0x74] sm:$0xf]
  %v60 = vld [vmem:[%s1 + $0x78] sm:$0xf]
  %v61 = vld [vmem:[%s1 + $0x7c] sm:$0xf]
  %v62 = vld [vmem:[%s1 + $0x80] sm:$0xf]
  %v63 = vld [vmem:[%s1 + $0x84] sm:$0xf]
  %v64 = vld [vmem:[%s1 + $0x88] sm:$0xf]
  %v65 = vld [vmem:[%s1 + $0x8c] sm:$0xf]
  %v66 = vld [vmem:[%s1 + $0x90] sm:$0xf]
  %v67 = vld [vmem:[%s1 + $0x94] sm:$0xf]
  %v68 = vld [vmem:[%s1 + $0x98] sm:$0xf]
  %v69 = vld [vmem:[%s1 + $0x9c] sm:$0xf]
  %v70 = vld [vmem:[%s1 + $0xa0] sm:$0xf]
  %v71 = vld [vmem:[%s1 + $0xa4] sm:$0xf]
  %v72 = vld [vmem:[%s1 + $0xa8] sm:$0xf]
  %v73 = vld [vmem:[%s1 + $0xac] sm:$0xf]
  %v74 = vld [vmem:[%s1 + $0xb0] sm:$0xf]
  %v75 = vld [vmem:[%s1 + $0xb4] sm:$0xf]
  %v76 = vld [vmem:[%s1 + $0xb8] sm:$0xf]
  %v77 = vld [vmem:[%s1 + $0xbc] sm:$0xf]
  %v78 = vld [vmem:[%s1 + $0xc0] sm:$0xf]
  %v79 = vld [vmem:[%s1 + $0xc4] sm:$0xf]
  %v80 = vld [vmem:[%s1 + $0xc8] sm:$0xf]
  %v81 = vld [vmem:[%s1 + $0xcc] sm:$0xf]
  %v82 = vld [vmem:[%s1 + $0xd0] sm:$0xf]
  %v83 = vld [vmem:[%s1 + $0xd4] sm:$0xf]
  %v84 = vld [vmem:[%s1 + $0xd8] sm:$0xf]
  %v85 = vld [vmem:[%s1 + $0xdc] sm:$0xf]
  %v86 = vld [vmem:[%s1 + $0xe0] sm:$0xf]
  %v87 = vld [vmem:[%s1 + $0xe4] sm:$0xf]
  %v88 = vld [vmem:[%s1 + $0xe8] sm:$0xf]
  %v89 = vld [vmem:[%s1 + $0xec] sm:$0xf]
  %v90 = vld [vmem:[%s1 + $0xf0] sm:$0xf]
  %v91 = vld [vmem:[%s1 + $0xf4] sm:$0xf]
  %v92 = vld [vmem:[%s1 + $0xf8] sm:$0xf]
  %v93 = vld [vmem:[%s1 + $0xfc] sm:$0xf]
  %v94 = vld [vmem:[%s1 + $0x100] sm:$0xf]
  %v95 = vld [vmem:[%s1 + $0x104] sm:$0xf]
  %v96 = vld [vmem:[%s1 + $0x108] sm:$0xf]
  %v97 = vld [vmem:[%s1 + $0x10c] sm:$0xf]
  %v98 = vld [vmem:[%s1 + $0x110] sm:$0xf]
  %v99 = vld [vmem:[%s1 + $0x114] sm:$0xf]
  %v100 = vld [vmem:[%s1 + $0x118] sm:$0xf]
  %v101 = vld [vmem:[%s1 + $0x11c] sm:$0xf]
  %v114 = vunpack.c.l.b16 %v18
  %v115 = vunpack.c.h.b16 %v18
  %v116 = vunpack.c.l.b16 %v19
  %v117 = vunpack.c.h.b16 %v19
  %v118 = vunpack.c.l.b16 %v20
  %v119 = vunpack.c.l.b16 %v21
  %v120 = vunpack.c.h.b16 %v21
  %v121 = vunpack.c.l.b16 %v22
  %v122 = vunpack.c.h.b16 %v22
  %v123 = vunpack.c.l.b16 %v23
  %v124 = vunpack.c.l.b16 %v24
  %v125 = vunpack.c.h.b16 %v24
  %v126 = vunpack.c.l.b16 %v25
  %v127 = vunpack.c.h.b16 %v25
  %v128 = vunpack.c.l.b16 %v26
  %v129 = vunpack.c.l.b16 %v27
  %v130 = vunpack.c.h.b16 %v27
  %v131 = vunpack.c.l.b16 %v28
  %v132 = vunpack.c.h.b16 %v28
  %v133 = vunpack.c.l.b16 %v29
  %v134 = vpack.c.b16 %v119, %v114
  %v135 = vpack.c.b16 %v120, %v115
  %v136 = vpack.c.b16 %v121, %v116
  %v137 = vpack.c.b16 %v122, %v117
  %v138 = vpack.c.b16 %v123, %v118
  %v139 = vpack.c.b16 %v129, %v124
  %v140 = vpack.c.b16 %v130, %v125
  %v141 = vpack.c.b16 %v131, %v126
  %v142 = vpack.c.b16 %v132, %v127
  %v143 = vpack.c.b16 %v133, %v128
  %v224 = vunpack.c.l.b16 %v30
  %v225 = vunpack.c.l.b16 %v31
  %v226 = vunpack.c.l.b16 %v32
  %v227 = vunpack.c.l.b16 %v33
  %v228 = vunpack.c.l.b16 %v34
  %v229 = vunpack.c.l.b16 %v35
  %v230 = vunpack.c.l.b16 %v36
  %v231 = vunpack.c.l.b16 %v37
  %v232 = vunpack.c.l.b16 %v38
  %v233 = vunpack.c.l.b16 %v39
  %v234 = vunpack.c.l.b16 %v40
  %v235 = vunpack.c.l.b16 %v41
  %v236 = vunpack.c.l.b16 %v42
  %v237 = vunpack.c.l.b16 %v43
  %v238 = vunpack.c.l.b16 %v44
  %v239 = vunpack.c.l.b16 %v45
  %v240 = vunpack.c.l.b16 %v46
  %v241 = vunpack.c.l.b16 %v47
  %v242 = vunpack.c.l.b16 %v48
  %v243 = vunpack.c.l.b16 %v49
  %v244 = vunpack.c.l.b16 %v50
  %v245 = vunpack.c.l.b16 %v51
  %v246 = vunpack.c.l.b16 %v52
  %v247 = vunpack.c.l.b16 %v53
  %v248 = vunpack.c.l.b16 %v54
  %v249 = vunpack.c.l.b16 %v55
  %v250 = vunpack.c.l.b16 %v56
  %v251 = vunpack.c.l.b16 %v57
  %v252 = vunpack.c.l.b16 %v58
  %v253 = vunpack.c.l.b16 %v59
  %v254 = vunpack.c.l.b16 %v60
  %v255 = vunpack.c.l.b16 %v61
  %v256 = vunpack.c.l.b16 %v62
  %v257 = vunpack.c.l.b16 %v63
  %v258 = vunpack.c.l.b16 %v64
  %v259 = vunpack.c.l.b16 %v65
  %v260 = vunpack.c.l.b16 %v66
  %v261 = vunpack.c.l.b16 %v67
  %v262 = vunpack.c.l.b16 %v68
  %v263 = vunpack.c.l.b16 %v69
  %v264 = vunpack.c.l.b16 %v70
  %v265 = vunpack.c.l.b16 %v71
  %v266 = vunpack.c.l.b16 %v72
  %v267 = vunpack.c.l.b16 %v73
  %v268 = vunpack.c.l.b16 %v74
  %v269 = vunpack.c.l.b16 %v75
  %v270 = vunpack.c.l.b16 %v76
  %v271 = vunpack.c.l.b16 %v77
  %v272 = vunpack.c.l.b16 %v78
  %v273 = vunpack.c.l.b16 %v79
  %v274 = vunpack.c.l.b16 %v80
  %v275 = vunpack.c.l.b16 %v81
  %v276 = vunpack.c.l.b16 %v82
  %v277 = vunpack.c.l.b16 %v83
  %v278 = vunpack.c.l.b16 %v84
  %v279 = vunpack.c.l.b16 %v85
  %v280 = vunpack.c.l.b16 %v86
  %v281 = vunpack.c.l.b16 %v87
  %v282 = vunpack.c.l.b16 %v88
  %v283 = vunpack.c.l.b16 %v89
  %v284 = vunpack.c.l.b16 %v90
  %v285 = vunpack.c.l.b16 %v91
  %v286 = vunpack.c.l.b16 %v92
  %v287 = vunpack.c.l.b16 %v93
  %v288 = vunpack.c.l.b16 %v94
  %v289 = vunpack.c.l.b16 %v95
  %v290 = vunpack.c.l.b16 %v96
  %v291 = vunpack.c.l.b16 %v97
  %v292 = vunpack.c.l.b16 %v98
  %v293 = vunpack.c.l.b16 %v99
  %v294 = vunpack.c.l.b16 %v100
  %v295 = vunpack.c.l.b16 %v101
  %v296 = vpack.c.b16 %v225, %v224
  %v297 = vpack.c.b16 %v227, %v226
  %v298 = vpack.c.b16 %v229, %v228
  %v299 = vpack.c.b16 %v231, %v230
  %v300 = vpack.c.b16 %v233, %v232
  %v301 = vpack.c.b16 %v235, %v234
  %v302 = vpack.c.b16 %v237, %v236
  %v303 = vpack.c.b16 %v239, %v238
  %v304 = vpack.c.b16 %v241, %v240
  %v305 = vpack.c.b16 %v243, %v242
  %v306 = vpack.c.b16 %v245, %v244
  %v307 = vpack.c.b16 %v247, %v246
  %v308 = vpack.c.b16 %v249, %v248
  %v309 = vpack.c.b16 %v251, %v250
  %v310 = vpack.c.b16 %v253, %v252
  %v311 = vpack.c.b16 %v255, %v254
  %v312 = vpack.c.b16 %v257, %v256
  %v313 = vpack.c.b16 %v259, %v258
  %v314 = vpack.c.b16 %v261, %v260
  %v315 = vpack.c.b16 %v263, %v262
  %v316 = vpack.c.b16 %v265, %v264
  %v317 = vpack.c.b16 %v267, %v266
  %v318 = vpack.c.b16 %v269, %v268
  %v319 = vpack.c.b16 %v271, %v270
  %v320 = vpack.c.b16 %v273, %v272
  %v321 = vpack.c.b16 %v275, %v274
  %v322 = vpack.c.b16 %v277, %v276
  %v323 = vpack.c.b16 %v279, %v278
  %v324 = vpack.c.b16 %v281, %v280
  %v325 = vpack.c.b16 %v283, %v282
  %v326 = vpack.c.b16 %v285, %v284
  %v327 = vpack.c.b16 %v287, %v286
  %v328 = vpack.c.b16 %v289, %v288
  %v329 = vpack.c.b16 %v291, %v290
  %v330 = vpack.c.b16 %v293, %v292
  %v331 = vpack.c.b16 %v295, %v294
  %vm368 = vcmask 523264
  %v370 = vsel %vm368, %v138, 0
  %v373 = vsel %vm368, %v143, 0
  %375 = vmatpush.bf16.msra.mxu0 %v303
  %376 = vmatpush.bf16.msra.mxu0 %v302
  %377 = vmatpush.bf16.msra.mxu0 %v301
  %378 = vmatpush.bf16.msra.mxu0 %v300
  %379 = vmatpush.bf16.msra.mxu0 %v299
  %380 = vmatpush.bf16.msra.mxu0 %v298
  %381 = vmatpush.bf16.msra.mxu0 %v297
  %382 = vmatpush.bf16.msra.mxu0 %v296
  %383 = vmatmul.bf16.gmra.mxu0 %v134
  %v384 = vpop.f32.mrf.mxu0
  %v385 = vadd.f32 0.0, %v384
  %v386 = vpop.f32.mrf.mxu0
  %v387 = vadd.f32 0.0, %v386
  %388 = vmatmul.bf16.gmra.mxu0 %v139
  %v389 = vpop.f32.mrf.mxu0
  %v390 = vadd.f32 0.0, %v389
  %v391 = vpop.f32.mrf.mxu0
  %v392 = vadd.f32 0.0, %v391
  %393 = vdwg.mxu0
  %394 = vmatpush.bf16.msra.mxu0 %v311
  %395 = vmatpush.bf16.msra.mxu0 %v310
  %396 = vmatpush.bf16.msra.mxu0 %v309
  %397 = vmatpush.bf16.msra.mxu0 %v308
  %398 = vmatpush.bf16.msra.mxu0 %v307
  %399 = vmatpush.bf16.msra.mxu0 %v306
  %400 = vmatpush.bf16.msra.mxu0 %v305
  %401 = vmatpush.bf16.msra.mxu0 %v304
  %402 = vmatmul.bf16.gmra.mxu0 %v135
  %v403 = vpop.f32.mrf.mxu0
  %v404 = vadd.f32 %v385, %v403
  %v405 = vpop.f32.mrf.mxu0
  %v406 = vadd.f32 %v387, %v405
  %407 = vmatmul.bf16.gmra.mxu0 %v140
  %v408 = vpop.f32.mrf.mxu0
  %v409 = vadd.f32 %v390, %v408
  %v410 = vpop.f32.mrf.mxu0
  %v411 = vadd.f32 %v392, %v410
  %412 = vdwg.mxu0
  %413 = vmatpush.bf16.msra.mxu0 %v319
  %414 = vmatpush.bf16.msra.mxu0 %v318
  %415 = vmatpush.bf16.msra.mxu0 %v317
  %416 = vmatpush.bf16.msra.mxu0 %v316
  %417 = vmatpush.bf16.msra.mxu0 %v315
  %418 = vmatpush.bf16.msra.mxu0 %v314
  %419 = vmatpush.bf16.msra.mxu0 %v313
  %420 = vmatpush.bf16.msra.mxu0 %v312
  %421 = vmatmul.bf16.gmra.mxu0 %v136
  %v422 = vpop.f32.mrf.mxu0
  %v423 = vadd.f32 %v404, %v422
  %v424 = vpop.f32.mrf.mxu0
  %v425 = vadd.f32 %v406, %v424
  %426 = vmatmul.bf16.gmra.mxu0 %v141
  %v427 = vpop.f32.mrf.mxu0
  %v428 = vadd.f32 %v409, %v427
  %v429 = vpop.f32.mrf.mxu0
  %v430 = vadd.f32 %v411, %v429
  %431 = vdwg.mxu0
  %432 = vmatpush.bf16.msra.mxu0 %v327
  %433 = vmatpush.bf16.msra.mxu0 %v326
  %434 = vmatpush.bf16.msra.mxu0 %v325
  %435 = vmatpush.bf16.msra.mxu0 %v324
  %436 = vmatpush.bf16.msra.mxu0 %v323
  %437 = vmatpush.bf16.msra.mxu0 %v322
  %438 = vmatpush.bf16.msra.mxu0 %v321
  %439 = vmatpush.bf16.msra.mxu0 %v320
  %440 = vmatmul.bf16.gmra.mxu0 %v137
  %v441 = vpop.f32.mrf.mxu0
  %v442 = vadd.f32 %v423, %v441
  %v443 = vpop.f32.mrf.mxu0
  %v444 = vadd.f32 %v425, %v443
  %445 = vmatmul.bf16.gmra.mxu0 %v142
  %v446 = vpop.f32.mrf.mxu0
  %v447 = vadd.f32 %v428, %v446
  %v448 = vpop.f32.mrf.mxu0
  %v449 = vadd.f32 %v430, %v448
  %450 = vdwg.mxu0
  %451 = vmatpush.bf16.msra.mxu0 0
  %452 = vmatpush.bf16.msra.mxu0 0
  %453 = vmatpush.bf16.msra.mxu0 0
  %454 = vmatpush.bf16.msra.mxu0 0
  %455 = vmatpush.bf16.msra.mxu0 %v331
  %456 = vmatpush.bf16.msra.mxu0 %v330
  %457 = vmatpush.bf16.msra.mxu0 %v329
  %458 = vmatpush.bf16.msra.mxu0 %v328
  %459 = vmatmul.bf16.gmra.mxu0 %v370
  %v460 = vpop.f32.mrf.mxu0
  %v461 = vadd.f32 %v442, %v460
  %v462 = vpop.f32.mrf.mxu0
  %v463 = vadd.f32 %v444, %v462
  %464 = vmatmul.bf16.gmra.mxu0 %v373
  %v465 = vpop.f32.mrf.mxu0
  %v466 = vadd.f32 %v447, %v465
  %v467 = vpop.f32.mrf.mxu0
  %v468 = vadd.f32 %v449, %v467
  %469 = vdwg.mxu0
  %v470 = vld [vmem:[%s2] sm:$0x1]
  %v472 = vperm.slane %v470, 0
  %v474 = vmul.f32 %v461, %v472
  %v475 = vmul.f32 %v463, %v472
  %v476 = vmul.f32 %v466, %v472
  %v477 = vmul.f32 %v468, %v472
  %v478 = vld [vmem:[%s3] sm:$0x1]
  %v480 = vperm.slane %v478, 0
  %v482 = vadd.f32 %v474, %v480
  %v483 = vadd.f32 %v475, %v480
  %v484 = vadd.f32 %v476, %v480
  %v485 = vadd.f32 %v477, %v480
  %v486 = vpack.c.bf16 %v482, %v482
  %v487 = vpack.c.bf16 %v483, %v483
  %v488 = vpack.c.bf16 %v484, %v484
  %v489 = vpack.c.bf16 %v485, %v485
  %vm490 = vcmask 388096
  %491 = vst.msk [vmem:[%s4] sm:$0xf] %vm490, %v486
  %492 = vst.msk [vmem:[%s4 + $0x4] sm:$0xf] %vm490, %v487
  %493 = vst.msk [vmem:[%s4 + $0x8] sm:$0xf] %vm490, %v488
  %494 = vst.msk [vmem:[%s4 + $0xc] sm:$0xf] %vm490, %v489
  // Predicated region
  $region18: #{audio_cnn_forward.10} parent=0 // pred_check
    _
  $region19: #{audio_cnn_forward.10} parent=0 // pred_check_branch
    %496 = sbr.rel (0) target = $region21
  $region20: #{audio_cnn_forward.10} parent=0 // pred_region
    _
  $region21: #{audio_cnn_forward.10} parent=0 // pred_fallthru
    _
  // Predicated region
  $region22: #{audio_cnn_forward.10} parent=0 // pred_check
    _
  $region23: #{audio_cnn_forward.10} parent=0 // pred_check_branch
    %498 = sbr.rel (0) target = $region25
  $region24: #{audio_cnn_forward.10} parent=0 // pred_region
    _
  $region25: #{audio_cnn_forward.10} parent=0 // pred_fallthru
    _

// kernel: audio_cnn_forward.11
$region0: #{audio_cnn_forward.11}
  #allocation0 [shape = 'u32[]', space=smem, size = 0x4, offset = 0x4, fixed_abs, tag = 'smem constant byte address 0x4 - core index']
  #allocation1 [shape = 'u32[72,128]{1,0:T(1,128)}', space=vmem, size = 0x9000, scoped, tag = 'internal scratch']
  %s0 = inlined_call_operand.vmem [shape: bf16[8,768], index: 0, kind: input, shape index: {}]
  %s1 = inlined_call_operand.vmem [shape: bf16[768,768], index: 1, kind: input, shape index: {}]
  %s2 = inlined_call_operand.vmem [shape: f32[1,768], index: 2, kind: input, shape index: {}]
  %s3 = inlined_call_operand.vmem [shape: f32[1,768], index: 3, kind: input, shape index: {}]
  %s4 = inlined_call_operand.vmem [shape: bf16[768,384], index: 4, kind: input, shape index: {}]
  %s5 = inlined_call_operand.vmem [shape: f32[1,384], index: 5, kind: input, shape index: {}]
  %s6 = inlined_call_operand.vmem [shape: f32[1,384], index: 6, kind: input, shape index: {}]
  %s7 = inlined_call_operand.vmem [shape: bf16[384,128], index: 7, kind: input, shape index: {}]
  %s8 = inlined_call_operand.vmem [shape: f32[1,128], index: 8, kind: input, shape index: {}]
  %s9 = inlined_call_operand.vmem [shape: f32[8,128], index: 9, kind: output, shape index: {}]
  %s10 = sld [smem:[#allocation0]]
  $region46: #{audio_cnn_forward.11} parent=0
    _
  %s12 = ssub.s32 1, %s10
  %s13 = scalar_select 0, %s12, %s10
  // Predicated region
  $region2: #{audio_cnn_forward.11} parent=0 // pred_check
    _
  $region3: #{audio_cnn_forward.11} parent=0 // pred_check_branch
    %15 = sbr.rel (0) target = $region5
  $region4: #{audio_cnn_forward.11} parent=0 // pred_region
    _
  $region5: #{audio_cnn_forward.11} parent=0 // pred_fallthru
    _
  // Predicated region
  $region6: #{audio_cnn_forward.11} parent=0 // pred_check
    _
  $region7: #{audio_cnn_forward.11} parent=0 // pred_check_branch
    %17 = sbr.rel (0) target = $region9
  $region8: #{audio_cnn_forward.11} parent=0 // pred_region
    _
  $region9: #{audio_cnn_forward.11} parent=0 // pred_fallthru
    _
  // Predicated region
  $region10: #{audio_cnn_forward.11} parent=0 // pred_check
    _
  $region11: #{audio_cnn_forward.11} parent=0 // pred_check_branch
    %19 = sbr.rel (0) target = $region13
  $region12: #{audio_cnn_forward.11} parent=0 // pred_region
    _
  $region13: #{audio_cnn_forward.11} parent=0 // pred_fallthru
    _
  // Predicated region
  $region14: #{audio_cnn_forward.11} parent=0 // pred_check
    _
  $region15: #{audio_cnn_forward.11} parent=0 // pred_check_branch
    %21 = sbr.rel (0) target = $region17
  $region16: #{audio_cnn_forward.11} parent=0 // pred_region
    _
  $region17: #{audio_cnn_forward.11} parent=0 // pred_fallthru
    _
  // Predicated region
  $region18: #{audio_cnn_forward.11} parent=0 // pred_check
    _
  $region19: #{audio_cnn_forward.11} parent=0 // pred_check_branch
    %23 = sbr.rel (0) target = $region21
  $region20: #{audio_cnn_forward.11} parent=0 // pred_region
    _
  $region21: #{audio_cnn_forward.11} parent=0 // pred_fallthru
    _
  // Predicated region
  $region22: #{audio_cnn_forward.11} parent=0 // pred_check
    _
  $region23: #{audio_cnn_forward.11} parent=0 // pred_check_branch
    %25 = sbr.rel (0) target = $region25
  $region24: #{audio_cnn_forward.11} parent=0 // pred_region
    _
  $region25: #{audio_cnn_forward.11} parent=0 // pred_fallthru
    _
  // Predicated region
  $region26: #{audio_cnn_forward.11} parent=0 // pred_check
    _
  $region27: #{audio_cnn_forward.11} parent=0 // pred_check_branch
    %27 = sbr.rel (0) target = $region29
  $region28: #{audio_cnn_forward.11} parent=0 // pred_region
    _
  $region29: #{audio_cnn_forward.11} parent=0 // pred_fallthru
    _
  // Predicated region
  $region30: #{audio_cnn_forward.11} parent=0 // pred_check
    _
  $region31: #{audio_cnn_forward.11} parent=0 // pred_check_branch
    %29 = sbr.rel (0) target = $region33
  $region32: #{audio_cnn_forward.11} parent=0 // pred_region
    _
  $region33: #{audio_cnn_forward.11} parent=0 // pred_fallthru
    _
  // Predicated region
  $region34: #{audio_cnn_forward.11} parent=0 // pred_check
    _
  $region35: #{audio_cnn_forward.11} parent=0 // pred_check_branch
    %31 = sbr.rel (0) target = $region37
  $region36: #{audio_cnn_forward.11} parent=0 // pred_region
    _
  $region37: #{audio_cnn_forward.11} parent=0 // pred_fallthru
    _
  %v32 = vld [vmem:[%s0] sm:$0xff]
  %v33 = vld [vmem:[%s0 + $0x8] sm:$0xff]
  %v34 = vld [vmem:[%s0 + $0x10] sm:$0xff]
  %v35 = vld [vmem:[%s1] sm:$0xff]
  %v36 = vld [vmem:[%s1 + $0x8] sm:$0xff]
  %v37 = vld [vmem:[%s1 + $0x10] sm:$0xff]
  %v38 = vld [vmem:[%s1 + $0x18] sm:$0xff]
  %v39 = vld [vmem:[%s1 + $0x20] sm:$0xff]
  %v40 = vld [vmem:[%s1 + $0x28] sm:$0xff]
  %v41 = vld [vmem:[%s1 + $0x30] sm:$0xff]
  %v42 = vld [vmem:[%s1 + $0x38] sm:$0xff]
  %v43 = vld [vmem:[%s1 + $0x40] sm:$0xff]
  %v44 = vld [vmem:[%s1 + $0x48] sm:$0xff]
  %v45 = vld [vmem:[%s1 + $0x50] sm:$0xff]
  %v46 = vld [vmem:[%s1 + $0x58] sm:$0xff]
  %v47 = vld [vmem:[%s1 + $0x60] sm:$0xff]
  %v48 = vld [vmem:[%s1 + $0x68] sm:$0xff]
  %v49 = vld [vmem:[%s1 + $0x70] sm:$0xff]
  %v50 = vld [vmem:[%s1 + $0x78] sm:$0xff]
  %v51 = vld [vmem:[%s1 + $0x80] sm:$0xff]
  %v52 = vld [vmem:[%s1 + $0x88] sm:$0xff]
  %v53 = vld [vmem:[%s1 + $0x90] sm:$0xff]
  %v54 = vld [vmem:[%s1 + $0x98] sm:$0xff]
  %v55 = vld [vmem:[%s1 + $0xa0] sm:$0xff]
  %v56 = vld [vmem:[%s1 + $0xa8] sm:$0xff]
  %v57 = vld [vmem:[%s1 + $0xb0] sm:$0xff]
  %v58 = vld [vmem:[%s1 + $0xb8] sm:$0xff]
  %v59 = vld [vmem:[%s1 + $0xc0] sm:$0xff]
  %v60 = vld [vmem:[%s1 + $0xc8] sm:$0xff]
  %v61 = vld [vmem:[%s1 + $0xd0] sm:$0xff]
  %v62 = vld [vmem:[%s1 + $0xd8] sm:$0xff]
  %v63 = vld [vmem:[%s1 + $0xe0] sm:$0xff]
  %v64 = vld [vmem:[%s1 + $0xe8] sm:$0xff]
  %v65 = vld [vmem:[%s1 + $0xf0] sm:$0xff]
  %v66 = vld [vmem:[%s1 + $0xf8] sm:$0xff]
  %v67 = vld [vmem:[%s1 + $0x100] sm:$0xff]
  %v68 = vld [vmem:[%s1 + $0x108] sm:$0xff]
  %v69 = vld [vmem:[%s1 + $0x110] sm:$0xff]
  %v70 = vld [vmem:[%s1 + $0x118] sm:$0xff]
  %v71 = vld [vmem:[%s1 + $0x120] sm:$0xff]
  %v72 = vld [vmem:[%s1 + $0x128] sm:$0xff]
  %v73 = vld [vmem:[%s1 + $0x130] sm:$0xff]
  %v74 = vld [vmem:[%s1 + $0x138] sm:$0xff]
  %v75 = vld [vmem:[%s1 + $0x140] sm:$0xff]
  %v76 = vld [vmem:[%s1 + $0x148] sm:$0xff]
  %v77 = vld [vmem:[%s1 + $0x150] sm:$0xff]
  %v78 = vld [vmem:[%s1 + $0x158] sm:$0xff]
  %v79 = vld [vmem:[%s1 + $0x160] sm:$0xff]
  %v80 = vld [vmem:[%s1 + $0x168] sm:$0xff]
  %v81 = vld [vmem:[%s1 + $0x170] sm:$0xff]
  %v82 = vld [vmem:[%s1 + $0x178] sm:$0xff]
  %v83 = vld [vmem:[%s1 + $0x180] sm:$0xff]
  %v84 = vld [vmem:[%s1 + $0x188] sm:$0xff]
  %v85 = vld [vmem:[%s1 + $0x190] sm:$0xff]
  %v86 = vld [vmem:[%s1 + $0x198] sm:$0xff]
  %v87 = vld [vmem:[%s1 + $0x1a0] sm:$0xff]
  %v88 = vld [vmem:[%s1 + $0x1a8] sm:$0xff]
  %v89 = vld [vmem:[%s1 + $0x1b0] sm:$0xff]
  %v90 = vld [vmem:[%s1 + $0x1b8] sm:$0xff]
  %v91 = vld [vmem:[%s1 + $0x1c0] sm:$0xff]
  %v92 = vld [vmem:[%s1 + $0x1c8] sm:$0xff]
  %v93 = vld [vmem:[%s1 + $0x1d0] sm:$0xff]
  %v94 = vld [vmem:[%s1 + $0x1d8] sm:$0xff]
  %v95 = vld [vmem:[%s1 + $0x1e0] sm:$0xff]
  %v96 = vld [vmem:[%s1 + $0x1e8] sm:$0xff]
  %v97 = vld [vmem:[%s1 + $0x1f0] sm:$0xff]
  %v98 = vld [vmem:[%s1 + $0x1f8] sm:$0xff]
  %v99 = vld [vmem:[%s1 + $0x200] sm:$0xff]
  %v100 = vld [vmem:[%s1 + $0x208] sm:$0xff]
  %v101 = vld [vmem:[%s1 + $0x210] sm:$0xff]
  %v102 = vld [vmem:[%s1 + $0x218] sm:$0xff]
  %v103 = vld [vmem:[%s1 + $0x220] sm:$0xff]
  %v104 = vld [vmem:[%s1 + $0x228] sm:$0xff]
  %v105 = vld [vmem:[%s1 + $0x230] sm:$0xff]
  %v106 = vld [vmem:[%s1 + $0x238] sm:$0xff]
  %v107 = vld [vmem:[%s1 + $0x240] sm:$0xff]
  %v108 = vld [vmem:[%s1 + $0x248] sm:$0xff]
  %v109 = vld [vmem:[%s1 + $0x250] sm:$0xff]
  %v110 = vld [vmem:[%s1 + $0x258] sm:$0xff]
  %v111 = vld [vmem:[%s1 + $0x260] sm:$0xff]
  %v112 = vld [vmem:[%s1 + $0x268] sm:$0xff]
  %v113 = vld [vmem:[%s1 + $0x270] sm:$0xff]
  %v114 = vld [vmem:[%s1 + $0x278] sm:$0xff]
  %v115 = vld [vmem:[%s1 + $0x280] sm:$0xff]
  %v116 = vld [vmem:[%s1 + $0x288] sm:$0xff]
  %v117 = vld [vmem:[%s1 + $0x290] sm:$0xff]
  %v118 = vld [vmem:[%s1 + $0x298] sm:$0xff]
  %v119 = vld [vmem:[%s1 + $0x2a0] sm:$0xff]
  %v120 = vld [vmem:[%s1 + $0x2a8] sm:$0xff]
  %v121 = vld [vmem:[%s1 + $0x2b0] sm:$0xff]
  %v122 = vld [vmem:[%s1 + $0x2b8] sm:$0xff]
  %v123 = vld [vmem:[%s1 + $0x2c0] sm:$0xff]
  %v124 = vld [vmem:[%s1 + $0x2c8] sm:$0xff]
  %v125 = vld [vmem:[%s1 + $0x2d0] sm:$0xff]
  %v126 = vld [vmem:[%s1 + $0x2d8] sm:$0xff]
  %v127 = vld [vmem:[%s1 + $0x2e0] sm:$0xff]
  %v128 = vld [vmem:[%s1 + $0x2e8] sm:$0xff]
  %v129 = vld [vmem:[%s1 + $0x2f0] sm:$0xff]
  %v130 = vld [vmem:[%s1 + $0x2f8] sm:$0xff]
  %v131 = vld [vmem:[%s1 + $0x300] sm:$0xff]
  %v132 = vld [vmem:[%s1 + $0x308] sm:$0xff]
  %v133 = vld [vmem:[%s1 + $0x310] sm:$0xff]
  %v134 = vld [vmem:[%s1 + $0x318] sm:$0xff]
  %v135 = vld [vmem:[%s1 + $0x320] sm:$0xff]
  %v136 = vld [vmem:[%s1 + $0x328] sm:$0xff]
  %v137 = vld [vmem:[%s1 + $0x330] sm:$0xff]
  %v138 = vld [vmem:[%s1 + $0x338] sm:$0xff]
  %v139 = vld [vmem:[%s1 + $0x340] sm:$0xff]
  %v140 = vld [vmem:[%s1 + $0x348] sm:$0xff]
  %v141 = vld [vmem:[%s1 + $0x350] sm:$0xff]
  %v142 = vld [vmem:[%s1 + $0x358] sm:$0xff]
  %v143 = vld [vmem:[%s1 + $0x360] sm:$0xff]
  %v144 = vld [vmem:[%s1 + $0x368] sm:$0xff]
  %v145 = vld [vmem:[%s1 + $0x370] sm:$0xff]
  %v146 = vld [vmem:[%s1 + $0x378] sm:$0xff]
  %v147 = vld [vmem:[%s1 + $0x380] sm:$0xff]
  %v148 = vld [vmem:[%s1 + $0x388] sm:$0xff]
  %v149 = vld [vmem:[%s1 + $0x390] sm:$0xff]
  %v150 = vld [vmem:[%s1 + $0x398] sm:$0xff]
  %v151 = vld [vmem:[%s1 + $0x3a0] sm:$0xff]
  %v152 = vld [vmem:[%s1 + $0x3a8] sm:$0xff]
  %v153 = vld [vmem:[%s1 + $0x3b0] sm:$0xff]
  %v154 = vld [vmem:[%s1 + $0x3b8] sm:$0xff]
  %v155 = vld [vmem:[%s1 + $0x3c0] sm:$0xff]
  %v156 = vld [vmem:[%s1 + $0x3c8] sm:$0xff]
  %v157 = vld [vmem:[%s1 + $0x3d0] sm:$0xff]
  %v158 = vld [vmem:[%s1 + $0x3d8] sm:$0xff]
  %v159 = vld [vmem:[%s1 + $0x3e0] sm:$0xff]
  %v160 = vld [vmem:[%s1 + $0x3e8] sm:$0xff]
  %v161 = vld [vmem:[%s1 + $0x3f0] sm:$0xff]
  %v162 = vld [vmem:[%s1 + $0x3f8] sm:$0xff]
  %v163 = vld [vmem:[%s1 + $0x400] sm:$0xff]
  %v164 = vld [vmem:[%s1 + $0x408] sm:$0xff]
  %v165 = vld [vmem:[%s1 + $0x410] sm:$0xff]
  %v166 = vld [vmem:[%s1 + $0x418] sm:$0xff]
  %v167 = vld [vmem:[%s1 + $0x420] sm:$0xff]
  %v168 = vld [vmem:[%s1 + $0x428] sm:$0xff]
  %v169 = vld [vmem:[%s1 + $0x430] sm:$0xff]
  %v170 = vld [vmem:[%s1 + $0x438] sm:$0xff]
  %v171 = vld [vmem:[%s1 + $0x440] sm:$0xff]
  %v172 = vld [vmem:[%s1 + $0x448] sm:$0xff]
  %v173 = vld [vmem:[%s1 + $0x450] sm:$0xff]
  %v174 = vld [vmem:[%s1 + $0x458] sm:$0xff]
  %v175 = vld [vmem:[%s1 + $0x460] sm:$0xff]
  %v176 = vld [vmem:[%s1 + $0x468] sm:$0xff]
  %v177 = vld [vmem:[%s1 + $0x470] sm:$0xff]
  %v178 = vld [vmem:[%s1 + $0x478] sm:$0xff]
  %v179 = vld [vmem:[%s1 + $0x480] sm:$0xff]
  %v180 = vld [vmem:[%s1 + $0x488] sm:$0xff]
  %v181 = vld [vmem:[%s1 + $0x490] sm:$0xff]
  %v182 = vld [vmem:[%s1 + $0x498] sm:$0xff]
  %v183 = vld [vmem:[%s1 + $0x4a0] sm:$0xff]
  %v184 = vld [vmem:[%s1 + $0x4a8] sm:$0xff]
  %v185 = vld [vmem:[%s1 + $0x4b0] sm:$0xff]
  %v186 = vld [vmem:[%s1 + $0x4b8] sm:$0xff]
  %v187 = vld [vmem:[%s1 + $0x4c0] sm:$0xff]
  %v188 = vld [vmem:[%s1 + $0x4c8] sm:$0xff]
  %v189 = vld [vmem:[%s1 + $0x4d0] sm:$0xff]
  %v190 = vld [vmem:[%s1 + $0x4d8] sm:$0xff]
  %v191 = vld [vmem:[%s1 + $0x4e0] sm:$0xff]
  %v192 = vld [vmem:[%s1 + $0x4e8] sm:$0xff]
  %v193 = vld [vmem:[%s1 + $0x4f0] sm:$0xff]
  %v194 = vld [vmem:[%s1 + $0x4f8] sm:$0xff]
  %v195 = vld [vmem:[%s1 + $0x500] sm:$0xff]
  %v196 = vld [vmem:[%s1 + $0x508] sm:$0xff]
  %v197 = vld [vmem:[%s1 + $0x510] sm:$0xff]
  %v198 = vld [vmem:[%s1 + $0x518] sm:$0xff]
  %v199 = vld [vmem:[%s1 + $0x520] sm:$0xff]
  %v200 = vld [vmem:[%s1 + $0x528] sm:$0xff]
  %v201 = vld [vmem:[%s1 + $0x530] sm:$0xff]
  %v202 = vld [vmem:[%s1 + $0x538] sm:$0xff]
  %v203 = vld [vmem:[%s1 + $0x540] sm:$0xff]
  %v204 = vld [vmem:[%s1 + $0x548] sm:$0xff]
  %v205 = vld [vmem:[%s1 + $0x550] sm:$0xff]
  %v206 = vld [vmem:[%s1 + $0x558] sm:$0xff]
  %v207 = vld [vmem:[%s1 + $0x560] sm:$0xff]
  %v208 = vld [vmem:[%s1 + $0x568] sm:$0xff]
  %v209 = vld [vmem:[%s1 + $0x570] sm:$0xff]
  %v210 = vld [vmem:[%s1 + $0x578] sm:$0xff]
  %v211 = vld [vmem:[%s1 + $0x580] sm:$0xff]
  %v212 = vld [vmem:[%s1 + $0x588] sm:$0xff]
  %v213 = vld [vmem:[%s1 + $0x590] sm:$0xff]
  %v214 = vld [vmem:[%s1 + $0x598] sm:$0xff]
  %v215 = vld [vmem:[%s1 + $0x5a0] sm:$0xff]
  %v216 = vld [vmem:[%s1 + $0x5a8] sm:$0xff]
  %v217 = vld [vmem:[%s1 + $0x5b0] sm:$0xff]
  %v218 = vld [vmem:[%s1 + $0x5b8] sm:$0xff]
  %v219 = vld [vmem:[%s1 + $0x5c0] sm:$0xff]
  %v220 = vld [vmem:[%s1 + $0x5c8] sm:$0xff]
  %v221 = vld [vmem:[%s1 + $0x5d0] sm:$0xff]
  %v222 = vld [vmem:[%s1 + $0x5d8] sm:$0xff]
  %v223 = vld [vmem:[%s1 + $0x5e0] sm:$0xff]
  %v224 = vld [vmem:[%s1 + $0x5e8] sm:$0xff]
  %v225 = vld [vmem:[%s1 + $0x5f0] sm:$0xff]
  %v226 = vld [vmem:[%s1 + $0x5f8] sm:$0xff]
  %v227 = vld [vmem:[%s1 + $0x600] sm:$0xff]
  %v228 = vld [vmem:[%s1 + $0x608] sm:$0xff]
  %v229 = vld [vmem:[%s1 + $0x610] sm:$0xff]
  %v230 = vld [vmem:[%s1 + $0x618] sm:$0xff]
  %v231 = vld [vmem:[%s1 + $0x620] sm:$0xff]
  %v232 = vld [vmem:[%s1 + $0x628] sm:$0xff]
  %v233 = vld [vmem:[%s1 + $0x630] sm:$0xff]
  %v234 = vld [vmem:[%s1 + $0x638] sm:$0xff]
  %v235 = vld [vmem:[%s1 + $0x640] sm:$0xff]
  %v236 = vld [vmem:[%s1 + $0x648] sm:$0xff]
  %v237 = vld [vmem:[%s1 + $0x650] sm:$0xff]
  %v238 = vld [vmem:[%s1 + $0x658] sm:$0xff]
  %v239 = vld [vmem:[%s1 + $0x660] sm:$0xff]
  %v240 = vld [vmem:[%s1 + $0x668] sm:$0xff]
  %v241 = vld [vmem:[%s1 + $0x670] sm:$0xff]
  %v242 = vld [vmem:[%s1 + $0x678] sm:$0xff]
  %v243 = vld [vmem:[%s1 + $0x680] sm:$0xff]
  %v244 = vld [vmem:[%s1 + $0x688] sm:$0xff]
  %v245 = vld [vmem:[%s1 + $0x690] sm:$0xff]
  %v246 = vld [vmem:[%s1 + $0x698] sm:$0xff]
  %v247 = vld [vmem:[%s1 + $0x6a0] sm:$0xff]
  %v248 = vld [vmem:[%s1 + $0x6a8] sm:$0xff]
  %v249 = vld [vmem:[%s1 + $0x6b0] sm:$0xff]
  %v250 = vld [vmem:[%s1 + $0x6b8] sm:$0xff]
  %v251 = vld [vmem:[%s1 + $0x6c0] sm:$0xff]
  %v252 = vld [vmem:[%s1 + $0x6c8] sm:$0xff]
  %v253 = vld [vmem:[%s1 + $0x6d0] sm:$0xff]
  %v254 = vld [vmem:[%s1 + $0x6d8] sm:$0xff]
  %v255 = vld [vmem:[%s1 + $0x6e0] sm:$0xff]
  %v256 = vld [vmem:[%s1 + $0x6e8] sm:$0xff]
  %v257 = vld [vmem:[%s1 + $0x6f0] sm:$0xff]
  %v258 = vld [vmem:[%s1 + $0x6f8] sm:$0xff]
  %v259 = vld [vmem:[%s1 + $0x700] sm:$0xff]
  %v260 = vld [vmem:[%s1 + $0x708] sm:$0xff]
  %v261 = vld [vmem:[%s1 + $0x710] sm:$0xff]
  %v262 = vld [vmem:[%s1 + $0x718] sm:$0xff]
  %v263 = vld [vmem:[%s1 + $0x720] sm:$0xff]
  %v264 = vld [vmem:[%s1 + $0x728] sm:$0xff]
  %v265 = vld [vmem:[%s1 + $0x730] sm:$0xff]
  %v266 = vld [vmem:[%s1 + $0x738] sm:$0xff]
  %v267 = vld [vmem:[%s1 + $0x740] sm:$0xff]
  %v268 = vld [vmem:[%s1 + $0x748] sm:$0xff]
  %v269 = vld [vmem:[%s1 + $0x750] sm:$0xff]
  %v270 = vld [vmem:[%s1 + $0x758] sm:$0xff]
  %v271 = vld [vmem:[%s1 + $0x760] sm:$0xff]
  %v272 = vld [vmem:[%s1 + $0x768] sm:$0xff]
  %v273 = vld [vmem:[%s1 + $0x770] sm:$0xff]
  %v274 = vld [vmem:[%s1 + $0x778] sm:$0xff]
  %v275 = vld [vmem:[%s1 + $0x780] sm:$0xff]
  %v276 = vld [vmem:[%s1 + $0x788] sm:$0xff]
  %v277 = vld [vmem:[%s1 + $0x790] sm:$0xff]
  %v278 = vld [vmem:[%s1 + $0x798] sm:$0xff]
  %v279 = vld [vmem:[%s1 + $0x7a0] sm:$0xff]
  %v280 = vld [vmem:[%s1 + $0x7a8] sm:$0xff]
  %v281 = vld [vmem:[%s1 + $0x7b0] sm:$0xff]
  %v282 = vld [vmem:[%s1 + $0x7b8] sm:$0xff]
  %v283 = vld [vmem:[%s1 + $0x7c0] sm:$0xff]
  %v284 = vld [vmem:[%s1 + $0x7c8] sm:$0xff]
  %v285 = vld [vmem:[%s1 + $0x7d0] sm:$0xff]
  %v286 = vld [vmem:[%s1 + $0x7d8] sm:$0xff]
  %v287 = vld [vmem:[%s1 + $0x7e0] sm:$0xff]
  %v288 = vld [vmem:[%s1 + $0x7e8] sm:$0xff]
  %v289 = vld [vmem:[%s1 + $0x7f0] sm:$0xff]
  %v290 = vld [vmem:[%s1 + $0x7f8] sm:$0xff]
  %v291 = vld [vmem:[%s1 + $0x800] sm:$0xff]
  %v292 = vld [vmem:[%s1 + $0x808] sm:$0xff]
  %v293 = vld [vmem:[%s1 + $0x810] sm:$0xff]
  %v294 = vld [vmem:[%s1 + $0x818] sm:$0xff]
  %v295 = vld [vmem:[%s1 + $0x820] sm:$0xff]
  %v296 = vld [vmem:[%s1 + $0x828] sm:$0xff]
  %v297 = vld [vmem:[%s1 + $0x830] sm:$0xff]
  %v298 = vld [vmem:[%s1 + $0x838] sm:$0xff]
  %v299 = vld [vmem:[%s1 + $0x840] sm:$0xff]
  %v300 = vld [vmem:[%s1 + $0x848] sm:$0xff]
  %v301 = vld [vmem:[%s1 + $0x850] sm:$0xff]
  %v302 = vld [vmem:[%s1 + $0x858] sm:$0xff]
  %v303 = vld [vmem:[%s1 + $0x860] sm:$0xff]
  %v304 = vld [vmem:[%s1 + $0x868] sm:$0xff]
  %v305 = vld [vmem:[%s1 + $0x870] sm:$0xff]
  %v306 = vld [vmem:[%s1 + $0x878] sm:$0xff]
  %v307 = vld [vmem:[%s1 + $0x880] sm:$0xff]
  %v308 = vld [vmem:[%s1 + $0x888] sm:$0xff]
  %v309 = vld [vmem:[%s1 + $0x890] sm:$0xff]
  %v310 = vld [vmem:[%s1 + $0x898] sm:$0xff]
  %v311 = vld [vmem:[%s1 + $0x8a0] sm:$0xff]
  %v312 = vld [vmem:[%s1 + $0x8a8] sm:$0xff]
  %v313 = vld [vmem:[%s1 + $0x8b0] sm:$0xff]
  %v314 = vld [vmem:[%s1 + $0x8b8] sm:$0xff]
  %v315 = vld [vmem:[%s1 + $0x8c0] sm:$0xff]
  %v316 = vld [vmem:[%s1 + $0x8c8] sm:$0xff]
  %v317 = vld [vmem:[%s1 + $0x8d0] sm:$0xff]
  %v318 = vld [vmem:[%s1 + $0x8d8] sm:$0xff]
  %v319 = vld [vmem:[%s1 + $0x8e0] sm:$0xff]
  %v320 = vld [vmem:[%s1 + $0x8e8] sm:$0xff]
  %v321 = vld [vmem:[%s1 + $0x8f0] sm:$0xff]
  %v322 = vld [vmem:[%s1 + $0x8f8] sm:$0xff]
  %v326 = vunpack.c.l.b16 %v32
  %v327 = vunpack.c.h.b16 %v32
  %v328 = vunpack.c.l.b16 %v33
  %v329 = vunpack.c.h.b16 %v33
  %v330 = vunpack.c.l.b16 %v34
  %v331 = vunpack.c.h.b16 %v34
  %v332 = vpack.c.b16 %v326, %v326
  %v333 = vpack.c.b16 %v327, %v327
  %v334 = vpack.c.b16 %v328, %v328
  %v335 = vpack.c.b16 %v329, %v329
  %v336 = vpack.c.b16 %v330, %v330
  %v337 = vpack.c.b16 %v331, %v331
  %v632 = vunpack.c.l.b16 %v35
  %v633 = vunpack.c.h.b16 %v35
  %v634 = vunpack.c.l.b16 %v36
  %v635 = vunpack.c.h.b16 %v36
  %v636 = vunpack.c.l.b16 %v37
  %v637 = vunpack.c.h.b16 %v37
  %v638 = vunpack.c.l.b16 %v38
  %v639 = vunpack.c.h.b16 %v38
  %v640 = vunpack.c.l.b16 %v39
  %v641 = vunpack.c.h.b16 %v39
  %v642 = vunpack.c.l.b16 %v40
  %v643 = vunpack.c.h.b16 %v40
  %v644 = vunpack.c.l.b16 %v41
  %v645 = vunpack.c.h.b16 %v41
  %v646 = vunpack.c.l.b16 %v42
  %v647 = vunpack.c.h.b16 %v42
  %v648 = vunpack.c.l.b16 %v43
  %v649 = vunpack.c.h.b16 %v43
  %v650 = vunpack.c.l.b16 %v44
  %v651 = vunpack.c.h.b16 %v44
  %v652 = vunpack.c.l.b16 %v45
  %v653 = vunpack.c.h.b16 %v45
  %v654 = vunpack.c.l.b16 %v46
  %v655 = vunpack.c.h.b16 %v46
  %v656 = vunpack.c.l.b16 %v47
  %v657 = vunpack.c.h.b16 %v47
  %v658 = vunpack.c.l.b16 %v48
  %v659 = vunpack.c.h.b16 %v48
  %v660 = vunpack.c.l.b16 %v49
  %v661 = vunpack.c.h.b16 %v49
  %v662 = vunpack.c.l.b16 %v50
  %v663 = vunpack.c.h.b16 %v50
  %v664 = vunpack.c.l.b16 %v51
  %v665 = vunpack.c.h.b16 %v51
  %v666 = vunpack.c.l.b16 %v52
  %v667 = vunpack.c.h.b16 %v52
  %v668 = vunpack.c.l.b16 %v53
  %v669 = vunpack.c.h.b16 %v53
  %v670 = vunpack.c.l.b16 %v54
  %v671 = vunpack.c.h.b16 %v54
  %v672 = vunpack.c.l.b16 %v55
  %v673 = vunpack.c.h.b16 %v55
  %v674 = vunpack.c.l.b16 %v56
  %v675 = vunpack.c.h.b16 %v56
  %v676 = vunpack.c.l.b16 %v57
  %v677 = vunpack.c.h.b16 %v57
  %v678 = vunpack.c.l.b16 %v58
  %v679 = vunpack.c.h.b16 %v58
  %v680 = vunpack.c.l.b16 %v59
  %v681 = vunpack.c.h.b16 %v59
  %v682 = vunpack.c.l.b16 %v60
  %v683 = vunpack.c.h.b16 %v60
  %v684 = vunpack.c.l.b16 %v61
  %v685 = vunpack.c.h.b16 %v61
  %v686 = vunpack.c.l.b16 %v62
  %v687 = vunpack.c.h.b16 %v62
  %v688 = vunpack.c.l.b16 %v63
  %v689 = vunpack.c.h.b16 %v63
  %v690 = vunpack.c.l.b16 %v64
  %v691 = vunpack.c.h.b16 %v64
  %v692 = vunpack.c.l.b16 %v65
  %v693 = vunpack.c.h.b16 %v65
  %v694 = vunpack.c.l.b16 %v66
  %v695 = vunpack.c.h.b16 %v66
  %v696 = vunpack.c.l.b16 %v67
  %v697 = vunpack.c.h.b16 %v67
  %v698 = vunpack.c.l.b16 %v68
  %v699 = vunpack.c.h.b16 %v68
  %v700 = vunpack.c.l.b16 %v69
  %v701 = vunpack.c.h.b16 %v69
  %v702 = vunpack.c.l.b16 %v70
  %v703 = vunpack.c.h.b16 %v70
  %v704 = vunpack.c.l.b16 %v71
  %v705 = vunpack.c.h.b16 %v71
  %v706 = vunpack.c.l.b16 %v72
  %v707 = vunpack.c.h.b16 %v72
  %v708 = vunpack.c.l.b16 %v73
  %v709 = vunpack.c.h.b16 %v73
  %v710 = vunpack.c.l.b16 %v74
  %v711 = vunpack.c.h.b16 %v74
  %v712 = vunpack.c.l.b16 %v75
  %v713 = vunpack.c.h.b16 %v75
  %v714 = vunpack.c.l.b16 %v76
  %v715 = vunpack.c.h.b16 %v76
  %v716 = vunpack.c.l.b16 %v77
  %v717 = vunpack.c.h.b16 %v77
  %v718 = vunpack.c.l.b16 %v78
  %v719 = vunpack.c.h.b16 %v78
  %v720 = vunpack.c.l.b16 %v79
  %v721 = vunpack.c.h.b16 %v79
  %v722 = vunpack.c.l.b16 %v80
  %v723 = vunpack.c.h.b16 %v80
  %v724 = vunpack.c.l.b16 %v81
  %v725 = vunpack.c.h.b16 %v81
  %v726 = vunpack.c.l.b16 %v82
  %v727 = vunpack.c.h.b16 %v82
  %v728 = vunpack.c.l.b16 %v83
  %v729 = vunpack.c.h.b16 %v83
  %v730 = vunpack.c.l.b16 %v84
  %v731 = vunpack.c.h.b16 %v84
  %v732 = vunpack.c.l.b16 %v85
  %v733 = vunpack.c.h.b16 %v85
  %v734 = vunpack.c.l.b16 %v86
  %v735 = vunpack.c.h.b16 %v86
  %v736 = vunpack.c.l.b16 %v87
  %v737 = vunpack.c.h.b16 %v87
  %v738 = vunpack.c.l.b16 %v88
  %v739 = vunpack.c.h.b16 %v88
  %v740 = vunpack.c.l.b16 %v89
  %v741 = vunpack.c.h.b16 %v89
  %v742 = vunpack.c.l.b16 %v90
  %v743 = vunpack.c.h.b16 %v90
  %v744 = vunpack.c.l.b16 %v91
  %v745 = vunpack.c.h.b16 %v91
  %v746 = vunpack.c.l.b16 %v92
  %v747 = vunpack.c.h.b16 %v92
  %v748 = vunpack.c.l.b16 %v93
  %v749 = vunpack.c.h.b16 %v93
  %v750 = vunpack.c.l.b16 %v94
  %v751 = vunpack.c.h.b16 %v94
  %v752 = vunpack.c.l.b16 %v95
  %v753 = vunpack.c.h.b16 %v95
  %v754 = vunpack.c.l.b16 %v96
  %v755 = vunpack.c.h.b16 %v96
  %v756 = vunpack.c.l.b16 %v97
  %v757 = vunpack.c.h.b16 %v97
  %v758 = vunpack.c.l.b16 %v98
  %v759 = vunpack.c.h.b16 %v98
  %v760 = vunpack.c.l.b16 %v99
  %v761 = vunpack.c.h.b16 %v99
  %v762 = vunpack.c.l.b16 %v100
  %v763 = vunpack.c.h.b16 %v100
  %v764 = vunpack.c.l.b16 %v101
  %v765 = vunpack.c.h.b16 %v101
  %v766 = vunpack.c.l.b16 %v102
  %v767 = vunpack.c.h.b16 %v102
  %v768 = vunpack.c.l.b16 %v103
  %v769 = vunpack.c.h.b16 %v103
  %v770 = vunpack.c.l.b16 %v104
  %v771 = vunpack.c.h.b16 %v104
  %v772 = vunpack.c.l.b16 %v105
  %v773 = vunpack.c.h.b16 %v105
  %v774 = vunpack.c.l.b16 %v106
  %v775 = vunpack.c.h.b16 %v106
  %v776 = vunpack.c.l.b16 %v107
  %v777 = vunpack.c.h.b16 %v107
  %v778 = vunpack.c.l.b16 %v108
  %v779 = vunpack.c.h.b16 %v108
  %v780 = vunpack.c.l.b16 %v109
  %v781 = vunpack.c.h.b16 %v109
  %v782 = vunpack.c.l.b16 %v110
  %v783 = vunpack.c.h.b16 %v110
  %v784 = vunpack.c.l.b16 %v111
  %v785 = vunpack.c.h.b16 %v111
  %v786 = vunpack.c.l.b16 %v112
  %v787 = vunpack.c.h.b16 %v112
  %v788 = vunpack.c.l.b16 %v113
  %v789 = vunpack.c.h.b16 %v113
  %v790 = vunpack.c.l.b16 %v114
  %v791 = vunpack.c.h.b16 %v114
  %v792 = vunpack.c.l.b16 %v115
  %v793 = vunpack.c.h.b16 %v115
  %v794 = vunpack.c.l.b16 %v116
  %v795 = vunpack.c.h.b16 %v116
  %v796 = vunpack.c.l.b16 %v117
  %v797 = vunpack.c.h.b16 %v117
  %v798 = vunpack.c.l.b16 %v118
  %v799 = vunpack.c.h.b16 %v118
  %v800 = vunpack.c.l.b16 %v119
  %v801 = vunpack.c.h.b16 %v119
  %v802 = vunpack.c.l.b16 %v120
  %v803 = vunpack.c.h.b16 %v120
  %v804 = vunpack.c.l.b16 %v121
  %v805 = vunpack.c.h.b16 %v121
  %v806 = vunpack.c.l.b16 %v122
  %v807 = vunpack.c.h.b16 %v122
  %v808 = vunpack.c.l.b16 %v123
  %v809 = vunpack.c.h.b16 %v123
  %v810 = vunpack.c.l.b16 %v124
  %v811 = vunpack.c.h.b16 %v124
  %v812 = vunpack.c.l.b16 %v125
  %v813 = vunpack.c.h.b16 %v125
  %v814 = vunpack.c.l.b16 %v126
  %v815 = vunpack.c.h.b16 %v126
  %v816 = vunpack.c.l.b16 %v127
  %v817 = vunpack.c.h.b16 %v127
  %v818 = vunpack.c.l.b16 %v128
  %v819 = vunpack.c.h.b16 %v128
  %v820 = vunpack.c.l.b16 %v129
  %v821 = vunpack.c.h.b16 %v129
  %v822 = vunpack.c.l.b16 %v130
  %v823 = vunpack.c.h.b16 %v130
  %v824 = vunpack.c.l.b16 %v131
  %v825 = vunpack.c.h.b16 %v131
  %v826 = vunpack.c.l.b16 %v132
  %v827 = vunpack.c.h.b16 %v132
  %v828 = vunpack.c.l.b16 %v133
  %v829 = vunpack.c.h.b16 %v133
  %v830 = vunpack.c.l.b16 %v134
  %v831 = vunpack.c.h.b16 %v134
  %v832 = vunpack.c.l.b16 %v135
  %v833 = vunpack.c.h.b16 %v135
  %v834 = vunpack.c.l.b16 %v136
  %v835 = vunpack.c.h.b16 %v136
  %v836 = vunpack.c.l.b16 %v137
  %v837 = vunpack.c.h.b16 %v137
  %v838 = vunpack.c.l.b16 %v138
  %v839 = vunpack.c.h.b16 %v138
  %v840 = vunpack.c.l.b16 %v139
  %v841 = vunpack.c.h.b16 %v139
  %v842 = vunpack.c.l.b16 %v140
  %v843 = vunpack.c.h.b16 %v140
  %v844 = vunpack.c.l.b16 %v141
  %v845 = vunpack.c.h.b16 %v141
  %v846 = vunpack.c.l.b16 %v142
  %v847 = vunpack.c.h.b16 %v142
  %v848 = vunpack.c.l.b16 %v143
  %v849 = vunpack.c.h.b16 %v143
  %v850 = vunpack.c.l.b16 %v144
  %v851 = vunpack.c.h.b16 %v144
  %v852 = vunpack.c.l.b16 %v145
  %v853 = vunpack.c.h.b16 %v145
  %v854 = vunpack.c.l.b16 %v146
  %v855 = vunpack.c.h.b16 %v146
  %v856 = vunpack.c.l.b16 %v147
  %v857 = vunpack.c.h.b16 %v147
  %v858 = vunpack.c.l.b16 %v148
  %v859 = vunpack.c.h.b16 %v148
  %v860 = vunpack.c.l.b16 %v149
  %v861 = vunpack.c.h.b16 %v149
  %v862 = vunpack.c.l.b16 %v150
  %v863 = vunpack.c.h.b16 %v150
  %v864 = vunpack.c.l.b16 %v151
  %v865 = vunpack.c.h.b16 %v151
  %v866 = vunpack.c.l.b16 %v152
  %v867 = vunpack.c.h.b16 %v152
  %v868 = vunpack.c.l.b16 %v153
  %v869 = vunpack.c.h.b16 %v153
  %v870 = vunpack.c.l.b16 %v154
  %v871 = vunpack.c.h.b16 %v154
  %v872 = vunpack.c.l.b16 %v155
  %v873 = vunpack.c.h.b16 %v155
  %v874 = vunpack.c.l.b16 %v156
  %v875 = vunpack.c.h.b16 %v156
  %v876 = vunpack.c.l.b16 %v157
  %v877 = vunpack.c.h.b16 %v157
  %v878 = vunpack.c.l.b16 %v158
  %v879 = vunpack.c.h.b16 %v158
  %v880 = vunpack.c.l.b16 %v159
  %v881 = vunpack.c.h.b16 %v159
  %v882 = vunpack.c.l.b16 %v160
  %v883 = vunpack.c.h.b16 %v160
  %v884 = vunpack.c.l.b16 %v161
  %v885 = vunpack.c.h.b16 %v161
  %v886 = vunpack.c.l.b16 %v162
  %v887 = vunpack.c.h.b16 %v162
  %v888 = vunpack.c.l.b16 %v163
  %v889 = vunpack.c.h.b16 %v163
  %v890 = vunpack.c.l.b16 %v164
  %v891 = vunpack.c.h.b16 %v164
  %v892 = vunpack.c.l.b16 %v165
  %v893 = vunpack.c.h.b16 %v165
  %v894 = vunpack.c.l.b16 %v166
  %v895 = vunpack.c.h.b16 %v166
  %v896 = vunpack.c.l.b16 %v167
  %v897 = vunpack.c.h.b16 %v167
  %v898 = vunpack.c.l.b16 %v168
  %v899 = vunpack.c.h.b16 %v168
  %v900 = vunpack.c.l.b16 %v169
  %v901 = vunpack.c.h.b16 %v169
  %v902 = vunpack.c.l.b16 %v170
  %v903 = vunpack.c.h.b16 %v170
  %v904 = vunpack.c.l.b16 %v171
  %v905 = vunpack.c.h.b16 %v171
  %v906 = vunpack.c.l.b16 %v172
  %v907 = vunpack.c.h.b16 %v172
  %v908 = vunpack.c.l.b16 %v173
  %v909 = vunpack.c.h.b16 %v173
  %v910 = vunpack.c.l.b16 %v174
  %v911 = vunpack.c.h.b16 %v174
  %v912 = vunpack.c.l.b16 %v175
  %v913 = vunpack.c.h.b16 %v175
  %v914 = vunpack.c.l.b16 %v176
  %v915 = vunpack.c.h.b16 %v176
  %v916 = vunpack.c.l.b16 %v177
  %v917 = vunpack.c.h.b16 %v177
  %v918 = vunpack.c.l.b16 %v178
  %v919 = vunpack.c.h.b16 %v178
  %v920 = vunpack.c.l.b16 %v179
  %v921 = vunpack.c.h.b16 %v179
  %v922 = vunpack.c.l.b16 %v180
  %v923 = vunpack.c.h.b16 %v180
  %v924 = vunpack.c.l.b16 %v181
  %v925 = vunpack.c.h.b16 %v181
  %v926 = vunpack.c.l.b16 %v182
  %v927 = vunpack.c.h.b16 %v182
  %v928 = vunpack.c.l.b16 %v183
  %v929 = vunpack.c.h.b16 %v183
  %v930 = vunpack.c.l.b16 %v184
  %v931 = vunpack.c.h.b16 %v184
  %v932 = vunpack.c.l.b16 %v185
  %v933 = vunpack.c.h.b16 %v185
  %v934 = vunpack.c.l.b16 %v186
  %v935 = vunpack.c.h.b16 %v186
  %v936 = vunpack.c.l.b16 %v187
  %v937 = vunpack.c.h.b16 %v187
  %v938 = vunpack.c.l.b16 %v188
  %v939 = vunpack.c.h.b16 %v188
  %v940 = vunpack.c.l.b16 %v189
  %v941 = vunpack.c.h.b16 %v189
  %v942 = vunpack.c.l.b16 %v190
  %v943 = vunpack.c.h.b16 %v190
  %v944 = vunpack.c.l.b16 %v191
  %v945 = vunpack.c.h.b16 %v191
  %v946 = vunpack.c.l.b16 %v192
  %v947 = vunpack.c.h.b16 %v192
  %v948 = vunpack.c.l.b16 %v193
  %v949 = vunpack.c.h.b16 %v193
  %v950 = vunpack.c.l.b16 %v194
  %v951 = vunpack.c.h.b16 %v194
  %v952 = vunpack.c.l.b16 %v195
  %v953 = vunpack.c.h.b16 %v195
  %v954 = vunpack.c.l.b16 %v196
  %v955 = vunpack.c.h.b16 %v196
  %v956 = vunpack.c.l.b16 %v197
  %v957 = vunpack.c.h.b16 %v197
  %v958 = vunpack.c.l.b16 %v198
  %v959 = vunpack.c.h.b16 %v198
  %v960 = vunpack.c.l.b16 %v199
  %v961 = vunpack.c.h.b16 %v199
  %v962 = vunpack.c.l.b16 %v200
  %v963 = vunpack.c.h.b16 %v200
  %v964 = vunpack.c.l.b16 %v201
  %v965 = vunpack.c.h.b16 %v201
  %v966 = vunpack.c.l.b16 %v202
  %v967 = vunpack.c.h.b16 %v202
  %v968 = vunpack.c.l.b16 %v203
  %v969 = vunpack.c.h.b16 %v203
  %v970 = vunpack.c.l.b16 %v204
  %v971 = vunpack.c.h.b16 %v204
  %v972 = vunpack.c.l.b16 %v205
  %v973 = vunpack.c.h.b16 %v205
  %v974 = vunpack.c.l.b16 %v206
  %v975 = vunpack.c.h.b16 %v206
  %v976 = vunpack.c.l.b16 %v207
  %v977 = vunpack.c.h.b16 %v207
  %v978 = vunpack.c.l.b16 %v208
  %v979 = vunpack.c.h.b16 %v208
  %v980 = vunpack.c.l.b16 %v209
  %v981 = vunpack.c.h.b16 %v209
  %v982 = vunpack.c.l.b16 %v210
  %v983 = vunpack.c.h.b16 %v210
  %v984 = vunpack.c.l.b16 %v211
  %v985 = vunpack.c.h.b16 %v211
  %v986 = vunpack.c.l.b16 %v212
  %v987 = vunpack.c.h.b16 %v212
  %v988 = vunpack.c.l.b16 %v213
  %v989 = vunpack.c.h.b16 %v213
  %v990 = vunpack.c.l.b16 %v214
  %v991 = vunpack.c.h.b16 %v214
  %v992 = vunpack.c.l.b16 %v215
  %v993 = vunpack.c.h.b16 %v215
  %v994 = vunpack.c.l.b16 %v216
  %v995 = vunpack.c.h.b16 %v216
  %v996 = vunpack.c.l.b16 %v217
  %v997 = vunpack.c.h.b16 %v217
  %v998 = vunpack.c.l.b16 %v218
  %v999 = vunpack.c.h.b16 %v218
  %v1000 = vunpack.c.l.b16 %v219
  %v1001 = vunpack.c.h.b16 %v219
  %v1002 = vunpack.c.l.b16 %v220
  %v1003 = vunpack.c.h.b16 %v220
  %v1004 = vunpack.c.l.b16 %v221
  %v1005 = vunpack.c.h.b16 %v221
  %v1006 = vunpack.c.l.b16 %v222
  %v1007 = vunpack.c.h.b16 %v222
  %v1008 = vunpack.c.l.b16 %v223
  %v1009 = vunpack.c.h.b16 %v223
  %v1010 = vunpack.c.l.b16 %v224
  %v1011 = vunpack.c.h.b16 %v224
  %v1012 = vunpack.c.l.b16 %v225
  %v1013 = vunpack.c.h.b16 %v225
  %v1014 = vunpack.c.l.b16 %v226
  %v1015 = vunpack.c.h.b16 %v226
  %v1016 = vunpack.c.l.b16 %v227
  %v1017 = vunpack.c.h.b16 %v227
  %v1018 = vunpack.c.l.b16 %v228
  %v1019 = vunpack.c.h.b16 %v228
  %v1020 = vunpack.c.l.b16 %v229
  %v1021 = vunpack.c.h.b16 %v229
  %v1022 = vunpack.c.l.b16 %v230
  %v1023 = vunpack.c.h.b16 %v230
  %v1024 = vunpack.c.l.b16 %v231
  %v1025 = vunpack.c.h.b16 %v231
  %v1026 = vunpack.c.l.b16 %v232
  %v1027 = vunpack.c.h.b16 %v232
  %v1028 = vunpack.c.l.b16 %v233
  %v1029 = vunpack.c.h.b16 %v233
  %v1030 = vunpack.c.l.b16 %v234
  %v1031 = vunpack.c.h.b16 %v234
  %v1032 = vunpack.c.l.b16 %v235
  %v1033 = vunpack.c.h.b16 %v235
  %v1034 = vunpack.c.l.b16 %v236
  %v1035 = vunpack.c.h.b16 %v236
  %v1036 = vunpack.c.l.b16 %v237
  %v1037 = vunpack.c.h.b16 %v237
  %v1038 = vunpack.c.l.b16 %v238
  %v1039 = vunpack.c.h.b16 %v238
  %v1040 = vunpack.c.l.b16 %v239
  %v1041 = vunpack.c.h.b16 %v239
  %v1042 = vunpack.c.l.b16 %v240
  %v1043 = vunpack.c.h.b16 %v240
  %v1044 = vunpack.c.l.b16 %v241
  %v1045 = vunpack.c.h.b16 %v241
  %v1046 = vunpack.c.l.b16 %v242
  %v1047 = vunpack.c.h.b16 %v242
  %v1048 = vunpack.c.l.b16 %v243
  %v1049 = vunpack.c.h.b16 %v243
  %v1050 = vunpack.c.l.b16 %v244
  %v1051 = vunpack.c.h.b16 %v244
  %v1052 = vunpack.c.l.b16 %v245
  %v1053 = vunpack.c.h.b16 %v245
  %v1054 = vunpack.c.l.b16 %v246
  %v1055 = vunpack.c.h.b16 %v246
  %v1056 = vunpack.c.l.b16 %v247
  %v1057 = vunpack.c.h.b16 %v247
  %v1058 = vunpack.c.l.b16 %v248
  %v1059 = vunpack.c.h.b16 %v248
  %v1060 = vunpack.c.l.b16 %v249
  %v1061 = vunpack.c.h.b16 %v249
  %v1062 = vunpack.c.l.b16 %v250
  %v1063 = vunpack.c.h.b16 %v250
  %v1064 = vunpack.c.l.b16 %v251
  %v1065 = vunpack.c.h.b16 %v251
  %v1066 = vunpack.c.l.b16 %v252
  %v1067 = vunpack.c.h.b16 %v252
  %v1068 = vunpack.c.l.b16 %v253
  %v1069 = vunpack.c.h.b16 %v253
  %v1070 = vunpack.c.l.b16 %v254
  %v1071 = vunpack.c.h.b16 %v254
  %v1072 = vunpack.c.l.b16 %v255
  %v1073 = vunpack.c.h.b16 %v255
  %v1074 = vunpack.c.l.b16 %v256
  %v1075 = vunpack.c.h.b16 %v256
  %v1076 = vunpack.c.l.b16 %v257
  %v1077 = vunpack.c.h.b16 %v257
  %v1078 = vunpack.c.l.b16 %v258
  %v1079 = vunpack.c.h.b16 %v258
  %v1080 = vunpack.c.l.b16 %v259
  %v1081 = vunpack.c.h.b16 %v259
  %v1082 = vunpack.c.l.b16 %v260
  %v1083 = vunpack.c.h.b16 %v260
  %v1084 = vunpack.c.l.b16 %v261
  %v1085 = vunpack.c.h.b16 %v261
  %v1086 = vunpack.c.l.b16 %v262
  %v1087 = vunpack.c.h.b16 %v262
  %v1088 = vunpack.c.l.b16 %v263
  %v1089 = vunpack.c.h.b16 %v263
  %v1090 = vunpack.c.l.b16 %v264
  %v1091 = vunpack.c.h.b16 %v264
  %v1092 = vunpack.c.l.b16 %v265
  %v1093 = vunpack.c.h.b16 %v265
  %v1094 = vunpack.c.l.b16 %v266
  %v1095 = vunpack.c.h.b16 %v266
  %v1096 = vunpack.c.l.b16 %v267
  %v1097 = vunpack.c.h.b16 %v267
  %v1098 = vunpack.c.l.b16 %v268
  %v1099 = vunpack.c.h.b16 %v268
  %v1100 = vunpack.c.l.b16 %v269
  %v1101 = vunpack.c.h.b16 %v269
  %v1102 = vunpack.c.l.b16 %v270
  %v1103 = vunpack.c.h.b16 %v270
  %v1104 = vunpack.c.l.b16 %v271
  %v1105 = vunpack.c.h.b16 %v271
  %v1106 = vunpack.c.l.b16 %v272
  %v1107 = vunpack.c.h.b16 %v272
  %v1108 = vunpack.c.l.b16 %v273
  %v1109 = vunpack.c.h.b16 %v273
  %v1110 = vunpack.c.l.b16 %v274
  %v1111 = vunpack.c.h.b16 %v274
  %v1112 = vunpack.c.l.b16 %v275
  %v1113 = vunpack.c.h.b16 %v275
  %v1114 = vunpack.c.l.b16 %v276
  %v1115 = vunpack.c.h.b16 %v276
  %v1116 = vunpack.c.l.b16 %v277
  %v1117 = vunpack.c.h.b16 %v277
  %v1118 = vunpack.c.l.b16 %v278
  %v1119 = vunpack.c.h.b16 %v278
  %v1120 = vunpack.c.l.b16 %v279
  %v1121 = vunpack.c.h.b16 %v279
  %v1122 = vunpack.c.l.b16 %v280
  %v1123 = vunpack.c.h.b16 %v280
  %v1124 = vunpack.c.l.b16 %v281
  %v1125 = vunpack.c.h.b16 %v281
  %v1126 = vunpack.c.l.b16 %v282
  %v1127 = vunpack.c.h.b16 %v282
  %v1128 = vunpack.c.l.b16 %v283
  %v1129 = vunpack.c.h.b16 %v283
  %v1130 = vunpack.c.l.b16 %v284
  %v1131 = vunpack.c.h.b16 %v284
  %v1132 = vunpack.c.l.b16 %v285
  %v1133 = vunpack.c.h.b16 %v285
  %v1134 = vunpack.c.l.b16 %v286
  %v1135 = vunpack.c.h.b16 %v286
  %v1136 = vunpack.c.l.b16 %v287
  %v1137 = vunpack.c.h.b16 %v287
  %v1138 = vunpack.c.l.b16 %v288
  %v1139 = vunpack.c.h.b16 %v288
  %v1140 = vunpack.c.l.b16 %v289
  %v1141 = vunpack.c.h.b16 %v289
  %v1142 = vunpack.c.l.b16 %v290
  %v1143 = vunpack.c.h.b16 %v290
  %v1144 = vunpack.c.l.b16 %v291
  %v1145 = vunpack.c.h.b16 %v291
  %v1146 = vunpack.c.l.b16 %v292
  %v1147 = vunpack.c.h.b16 %v292
  %v1148 = vunpack.c.l.b16 %v293
  %v1149 = vunpack.c.h.b16 %v293
  %v1150 = vunpack.c.l.b16 %v294
  %v1151 = vunpack.c.h.b16 %v294
  %v1152 = vunpack.c.l.b16 %v295
  %v1153 = vunpack.c.h.b16 %v295
  %v1154 = vunpack.c.l.b16 %v296
  %v1155 = vunpack.c.h.b16 %v296
  %v1156 = vunpack.c.l.b16 %v297
  %v1157 = vunpack.c.h.b16 %v297
  %v1158 = vunpack.c.l.b16 %v298
  %v1159 = vunpack.c.h.b16 %v298
  %v1160 = vunpack.c.l.b16 %v299
  %v1161 = vunpack.c.h.b16 %v299
  %v1162 = vunpack.c.l.b16 %v300
  %v1163 = vunpack.c.h.b16 %v300
  %v1164 = vunpack.c.l.b16 %v301
  %v1165 = vunpack.c.h.b16 %v301
  %v1166 = vunpack.c.l.b16 %v302
  %v1167 = vunpack.c.h.b16 %v302
  %v1168 = vunpack.c.l.b16 %v303
  %v1169 = vunpack.c.h.b16 %v303
  %v1170 = vunpack.c.l.b16 %v304
  %v1171 = vunpack.c.h.b16 %v304
  %v1172 = vunpack.c.l.b16 %v305
  %v1173 = vunpack.c.h.b16 %v305
  %v1174 = vunpack.c.l.b16 %v306
  %v1175 = vunpack.c.h.b16 %v306
  %v1176 = vunpack.c.l.b16 %v307
  %v1177 = vunpack.c.h.b16 %v307
  %v1178 = vunpack.c.l.b16 %v308
  %v1179 = vunpack.c.h.b16 %v308
  %v1180 = vunpack.c.l.b16 %v309
  %v1181 = vunpack.c.h.b16 %v309
  %v1182 = vunpack.c.l.b16 %v310
  %v1183 = vunpack.c.h.b16 %v310
  %v1184 = vunpack.c.l.b16 %v311
  %v1185 = vunpack.c.h.b16 %v311
  %v1186 = vunpack.c.l.b16 %v312
  %v1187 = vunpack.c.h.b16 %v312
  %v1188 = vunpack.c.l.b16 %v313
  %v1189 = vunpack.c.h.b16 %v313
  %v1190 = vunpack.c.l.b16 %v314
  %v1191 = vunpack.c.h.b16 %v314
  %v1192 = vunpack.c.l.b16 %v315
  %v1193 = vunpack.c.h.b16 %v315
  %v1194 = vunpack.c.l.b16 %v316
  %v1195 = vunpack.c.h.b16 %v316
  %v1196 = vunpack.c.l.b16 %v317
  %v1197 = vunpack.c.h.b16 %v317
  %v1198 = vunpack.c.l.b16 %v318
  %v1199 = vunpack.c.h.b16 %v318
  %v1200 = vunpack.c.l.b16 %v319
  %v1201 = vunpack.c.h.b16 %v319
  %v1202 = vunpack.c.l.b16 %v320
  %v1203 = vunpack.c.h.b16 %v320
  %v1204 = vunpack.c.l.b16 %v321
  %v1205 = vunpack.c.h.b16 %v321
  %v1206 = vunpack.c.l.b16 %v322
  %v1207 = vunpack.c.h.b16 %v322
  %v1208 = vpack.c.b16 %v638, %v632
  %v1209 = vpack.c.b16 %v639, %v633
  %v1210 = vpack.c.b16 %v640, %v634
  %v1211 = vpack.c.b16 %v641, %v635
  %v1212 = vpack.c.b16 %v642, %v636
  %v1213 = vpack.c.b16 %v643, %v637
  %v1214 = vpack.c.b16 %v650, %v644
  %v1215 = vpack.c.b16 %v651, %v645
  %v1216 = vpack.c.b16 %v652, %v646
  %v1217 = vpack.c.b16 %v653, %v647
  %v1218 = vpack.c.b16 %v654, %v648
  %v1219 = vpack.c.b16 %v655, %v649
  %v1220 = vpack.c.b16 %v662, %v656
  %v1221 = vpack.c.b16 %v663, %v657
  %v1222 = vpack.c.b16 %v664, %v658
  %v1223 = vpack.c.b16 %v665, %v659
  %v1224 = vpack.c.b16 %v666, %v660
  %v1225 = vpack.c.b16 %v667, %v661
  %v1226 = vpack.c.b16 %v674, %v668
  %v1227 = vpack.c.b16 %v675, %v669
  %v1228 = vpack.c.b16 %v676, %v670
  %v1229 = vpack.c.b16 %v677, %v671
  %v1230 = vpack.c.b16 %v678, %v672
  %v1231 = vpack.c.b16 %v679, %v673
  %v1232 = vpack.c.b16 %v686, %v680
  %v1233 = vpack.c.b16 %v687, %v681
  %v1234 = vpack.c.b16 %v688, %v682
  %v1235 = vpack.c.b16 %v689, %v683
  %v1236 = vpack.c.b16 %v690, %v684
  %v1237 = vpack.c.b16 %v691, %v685
  %v1238 = vpack.c.b16 %v698, %v692
  %v1239 = vpack.c.b16 %v699, %v693
  %v1240 = vpack.c.b16 %v700, %v694
  %v1241 = vpack.c.b16 %v701, %v695
  %v1242 = vpack.c.b16 %v702, %v696
  %v1243 = vpack.c.b16 %v703, %v697
  %v1244 = vpack.c.b16 %v710, %v704
  %v1245 = vpack.c.b16 %v711, %v705
  %v1246 = vpack.c.b16 %v712, %v706
  %v1247 = vpack.c.b16 %v713, %v707
  %v1248 = vpack.c.b16 %v714, %v708
  %v1249 = vpack.c.b16 %v715, %v709
  %v1250 = vpack.c.b16 %v722, %v716
  %v1251 = vpack.c.b16 %v723, %v717
  %v1252 = vpack.c.b16 %v724, %v718
  %v1253 = vpack.c.b16 %v725, %v719
  %v1254 = vpack.c.b16 %v726, %v720
  %v1255 = vpack.c.b16 %v727, %v721
  %v1256 = vpack.c.b16 %v734, %v728
  %v1257 = vpack.c.b16 %v735, %v729
  %v1258 = vpack.c.b16 %v736, %v730
  %v1259 = vpack.c.b16 %v737, %v731
  %v1260 = vpack.c.b16 %v738, %v732
  %v1261 = vpack.c.b16 %v739, %v733
  %v1262 = vpack.c.b16 %v746, %v740
  %v1263 = vpack.c.b16 %v747, %v741
  %v1264 = vpack.c.b16 %v748, %v742
  %v1265 = vpack.c.b16 %v749, %v743
  %v1266 = vpack.c.b16 %v750, %v744
  %v1267 = vpack.c.b16 %v751, %v745
  %v1268 = vpack.c.b16 %v758, %v752
  %v1269 = vpack.c.b16 %v759, %v753
  %v1270 = vpack.c.b16 %v760, %v754
  %v1271 = vpack.c.b16 %v761, %v755
  %v1272 = vpack.c.b16 %v762, %v756
  %v1273 = vpack.c.b16 %v763, %v757
  %v1274 = vpack.c.b16 %v770, %v764
  %v1275 = vpack.c.b16 %v771, %v765
  %v1276 = vpack.c.b16 %v772, %v766
  %v1277 = vpack.c.b16 %v773, %v767
  %v1278 = vpack.c.b16 %v774, %v768
  %v1279 = vpack.c.b16 %v775, %v769
  %v1280 = vpack.c.b16 %v782, %v776
  %v1281 = vpack.c.b16 %v783, %v777
  %v1282 = vpack.c.b16 %v784, %v778
  %v1283 = vpack.c.b16 %v785, %v779
  %v1284 = vpack.c.b16 %v786, %v780
  %v1285 = vpack.c.b16 %v787, %v781
  %v1286 = vpack.c.b16 %v794, %v788
  %v1287 = vpack.c.b16 %v795, %v789
  %v1288 = vpack.c.b16 %v796, %v790
  %v1289 = vpack.c.b16 %v797, %v791
  %v1290 = vpack.c.b16 %v798, %v792
  %v1291 = vpack.c.b16 %v799, %v793
  %v1292 = vpack.c.b16 %v806, %v800
  %v1293 = vpack.c.b16 %v807, %v801
  %v1294 = vpack.c.b16 %v808, %v802
  %v1295 = vpack.c.b16 %v809, %v803
  %v1296 = vpack.c.b16 %v810, %v804
  %v1297 = vpack.c.b16 %v811, %v805
  %v1298 = vpack.c.b16 %v818, %v812
  %v1299 = vpack.c.b16 %v819, %v813
  %v1300 = vpack.c.b16 %v820, %v814
  %v1301 = vpack.c.b16 %v821, %v815
  %v1302 = vpack.c.b16 %v822, %v816
  %v1303 = vpack.c.b16 %v823, %v817
  %v1304 = vpack.c.b16 %v830, %v824
  %v1305 = vpack.c.b16 %v831, %v825
  %v1306 = vpack.c.b16 %v832, %v826
  %v1307 = vpack.c.b16 %v833, %v827
  %v1308 = vpack.c.b16 %v834, %v828
  %v1309 = vpack.c.b16 %v835, %v829
  %v1310 = vpack.c.b16 %v842, %v836
  %v1311 = vpack.c.b16 %v843, %v837
  %v1312 = vpack.c.b16 %v844, %v838
  %v1313 = vpack.c.b16 %v845, %v839
  %v1314 = vpack.c.b16 %v846, %v840
  %v1315 = vpack.c.b16 %v847, %v841
  %v1316 = vpack.c.b16 %v854, %v848
  %v1317 = vpack.c.b16 %v855, %v849
  %v1318 = vpack.c.b16 %v856, %v850
  %v1319 = vpack.c.b16 %v857, %v851
  %v1320 = vpack.c.b16 %v858, %v852
  %v1321 = vpack.c.b16 %v859, %v853
  %v1322 = vpack.c.b16 %v866, %v860
  %v1323 = vpack.c.b16 %v867, %v861
  %v1324 = vpack.c.b16 %v868, %v862
  %v1325 = vpack.c.b16 %v869, %v863
  %v1326 = vpack.c.b16 %v870, %v864
  %v1327 = vpack.c.b16 %v871, %v865
  %v1328 = vpack.c.b16 %v878, %v872
  %v1329 = vpack.c.b16 %v879, %v873
  %v1330 = vpack.c.b16 %v880, %v874
  %v1331 = vpack.c.b16 %v881, %v875
  %v1332 = vpack.c.b16 %v882, %v876
  %v1333 = vpack.c.b16 %v883, %v877
  %v1334 = vpack.c.b16 %v890, %v884
  %v1335 = vpack.c.b16 %v891, %v885
  %v1336 = vpack.c.b16 %v892, %v886
  %v1337 = vpack.c.b16 %v893, %v887
  %v1338 = vpack.c.b16 %v894, %v888
  %v1339 = vpack.c.b16 %v895, %v889
  %v1340 = vpack.c.b16 %v902, %v896
  %v1341 = vpack.c.b16 %v903, %v897
  %v1342 = vpack.c.b16 %v904, %v898
  %v1343 = vpack.c.b16 %v905, %v899
  %v1344 = vpack.c.b16 %v906, %v900
  %v1345 = vpack.c.b16 %v907, %v901
  %v1346 = vpack.c.b16 %v914, %v908
  %v1347 = vpack.c.b16 %v915, %v909
  %v1348 = vpack.c.b16 %v916, %v910
  %v1349 = vpack.c.b16 %v917, %v911
  %v1350 = vpack.c.b16 %v918, %v912
  %v1351 = vpack.c.b16 %v919, %v913
  %v1352 = vpack.c.b16 %v926, %v920
  %v1353 = vpack.c.b16 %v927, %v921
  %v1354 = vpack.c.b16 %v928, %v922
  %v1355 = vpack.c.b16 %v929, %v923
  %v1356 = vpack.c.b16 %v930, %v924
  %v1357 = vpack.c.b16 %v931, %v925
  %v1358 = vpack.c.b16 %v938, %v932
  %v1359 = vpack.c.b16 %v939, %v933
  %v1360 = vpack.c.b16 %v940, %v934
  %v1361 = vpack.c.b16 %v941, %v935
  %v1362 = vpack.c.b16 %v942, %v936
  %v1363 = vpack.c.b16 %v943, %v937
  %v1364 = vpack.c.b16 %v950, %v944
  %v1365 = vpack.c.b16 %v951, %v945
  %v1366 = vpack.c.b16 %v952, %v946
  %v1367 = vpack.c.b16 %v953, %v947
  %v1368 = vpack.c.b16 %v954, %v948
  %v1369 = vpack.c.b16 %v955, %v949
  %v1370 = vpack.c.b16 %v962, %v956
  %v1371 = vpack.c.b16 %v963, %v957
  %v1372 = vpack.c.b16 %v964, %v958
  %v1373 = vpack.c.b16 %v965, %v959
  %v1374 = vpack.c.b16 %v966, %v960
  %v1375 = vpack.c.b16 %v967, %v961
  %v1376 = vpack.c.b16 %v974, %v968
  %v1377 = vpack.c.b16 %v975, %v969
  %v1378 = vpack.c.b16 %v976, %v970
  %v1379 = vpack.c.b16 %v977, %v971
  %v1380 = vpack.c.b16 %v978, %v972
  %v1381 = vpack.c.b16 %v979, %v973
  %v1382 = vpack.c.b16 %v986, %v980
  %v1383 = vpack.c.b16 %v987, %v981
  %v1384 = vpack.c.b16 %v988, %v982
  %v1385 = vpack.c.b16 %v989, %v983
  %v1386 = vpack.c.b16 %v990, %v984
  %v1387 = vpack.c.b16 %v991, %v985
  %v1388 = vpack.c.b16 %v998, %v992
  %v1389 = vpack.c.b16 %v999, %v993
  %v1390 = vpack.c.b16 %v1000, %v994
  %v1391 = vpack.c.b16 %v1001, %v995
  %v1392 = vpack.c.b16 %v1002, %v996
  %v1393 = vpack.c.b16 %v1003, %v997
  %v1394 = vpack.c.b16 %v1010, %v1004
  %v1395 = vpack.c.b16 %v1011, %v1005
  %v1396 = vpack.c.b16 %v1012, %v1006
  %v1397 = vpack.c.b16 %v1013, %v1007
  %v1398 = vpack.c.b16 %v1014, %v1008
  %v1399 = vpack.c.b16 %v1015, %v1009
  %v1400 = vpack.c.b16 %v1022, %v1016
  %v1401 = vpack.c.b16 %v1023, %v1017
  %v1402 = vpack.c.b16 %v1024, %v1018
  %v1403 = vpack.c.b16 %v1025, %v1019
  %v1404 = vpack.c.b16 %v1026, %v1020
  %v1405 = vpack.c.b16 %v1027, %v1021
  %v1406 = vpack.c.b16 %v1034, %v1028
  %v1407 = vpack.c.b16 %v1035, %v1029
  %v1408 = vpack.c.b16 %v1036, %v1030
  %v1409 = vpack.c.b16 %v1037, %v1031
  %v1410 = vpack.c.b16 %v1038, %v1032
  %v1411 = vpack.c.b16 %v1039, %v1033
  %v1412 = vpack.c.b16 %v1046, %v1040
  %v1413 = vpack.c.b16 %v1047, %v1041
  %v1414 = vpack.c.b16 %v1048, %v1042
  %v1415 = vpack.c.b16 %v1049, %v1043
  %v1416 = vpack.c.b16 %v1050, %v1044
  %v1417 = vpack.c.b16 %v1051, %v1045
  %v1418 = vpack.c.b16 %v1058, %v1052
  %v1419 = vpack.c.b16 %v1059, %v1053
  %v1420 = vpack.c.b16 %v1060, %v1054
  %v1421 = vpack.c.b16 %v1061, %v1055
  %v1422 = vpack.c.b16 %v1062, %v1056
  %v1423 = vpack.c.b16 %v1063, %v1057
  %v1424 = vpack.c.b16 %v1070, %v1064
  %v1425 = vpack.c.b16 %v1071, %v1065
  %v1426 = vpack.c.b16 %v1072, %v1066
  %v1427 = vpack.c.b16 %v1073, %v1067
  %v1428 = vpack.c.b16 %v1074, %v1068
  %v1429 = vpack.c.b16 %v1075, %v1069
  %v1430 = vpack.c.b16 %v1082, %v1076
  %v1431 = vpack.c.b16 %v1083, %v1077
  %v1432 = vpack.c.b16 %v1084, %v1078
  %v1433 = vpack.c.b16 %v1085, %v1079
  %v1434 = vpack.c.b16 %v1086, %v1080
  %v1435 = vpack.c.b16 %v1087, %v1081
  %v1436 = vpack.c.b16 %v1094, %v1088
  %v1437 = vpack.c.b16 %v1095, %v1089
  %v1438 = vpack.c.b16 %v1096, %v1090
  %v1439 = vpack.c.b16 %v1097, %v1091
  %v1440 = vpack.c.b16 %v1098, %v1092
  %v1441 = vpack.c.b16 %v1099, %v1093
  %v1442 = vpack.c.b16 %v1106, %v1100
  %v1443 = vpack.c.b16 %v1107, %v1101
  %v1444 = vpack.c.b16 %v1108, %v1102
  %v1445 = vpack.c.b16 %v1109, %v1103
  %v1446 = vpack.c.b16 %v1110, %v1104
  %v1447 = vpack.c.b16 %v1111, %v1105
  %v1448 = vpack.c.b16 %v1118, %v1112
  %v1449 = vpack.c.b16 %v1119, %v1113
  %v1450 = vpack.c.b16 %v1120, %v1114
  %v1451 = vpack.c.b16 %v1121, %v1115
  %v1452 = vpack.c.b16 %v1122, %v1116
  %v1453 = vpack.c.b16 %v1123, %v1117
  %v1454 = vpack.c.b16 %v1130, %v1124
  %v1455 = vpack.c.b16 %v1131, %v1125
  %v1456 = vpack.c.b16 %v1132, %v1126
  %v1457 = vpack.c.b16 %v1133, %v1127
  %v1458 = vpack.c.b16 %v1134, %v1128
  %v1459 = vpack.c.b16 %v1135, %v1129
  %v1460 = vpack.c.b16 %v1142, %v1136
  %v1461 = vpack.c.b16 %v1143, %v1137
  %v1462 = vpack.c.b16 %v1144, %v1138
  %v1463 = vpack.c.b16 %v1145, %v1139
  %v1464 = vpack.c.b16 %v1146, %v1140
  %v1465 = vpack.c.b16 %v1147, %v1141
  %v1466 = vpack.c.b16 %v1154, %v1148
  %v1467 = vpack.c.b16 %v1155, %v1149
  %v1468 = vpack.c.b16 %v1156, %v1150
  %v1469 = vpack.c.b16 %v1157, %v1151
  %v1470 = vpack.c.b16 %v1158, %v1152
  %v1471 = vpack.c.b16 %v1159, %v1153
  %v1472 = vpack.c.b16 %v1166, %v1160
  %v1473 = vpack.c.b16 %v1167, %v1161
  %v1474 = vpack.c.b16 %v1168, %v1162
  %v1475 = vpack.c.b16 %v1169, %v1163
  %v1476 = vpack.c.b16 %v1170, %v1164
  %v1477 = vpack.c.b16 %v1171, %v1165
  %v1478 = vpack.c.b16 %v1178, %v1172
  %v1479 = vpack.c.b16 %v1179, %v1173
  %v1480 = vpack.c.b16 %v1180, %v1174
  %v1481 = vpack.c.b16 %v1181, %v1175
  %v1482 = vpack.c.b16 %v1182, %v1176
  %v1483 = vpack.c.b16 %v1183, %v1177
  %v1484 = vpack.c.b16 %v1190, %v1184
  %v1485 = vpack.c.b16 %v1191, %v1185
  %v1486 = vpack.c.b16 %v1192, %v1186
  %v1487 = vpack.c.b16 %v1193, %v1187
  %v1488 = vpack.c.b16 %v1194, %v1188
  %v1489 = vpack.c.b16 %v1195, %v1189
  %v1490 = vpack.c.b16 %v1202, %v1196
  %v1491 = vpack.c.b16 %v1203, %v1197
  %v1492 = vpack.c.b16 %v1204, %v1198
  %v1493 = vpack.c.b16 %v1205, %v1199
  %v1494 = vpack.c.b16 %v1206, %v1200
  %v1495 = vpack.c.b16 %v1207, %v1201
  %1784 = vmatpush.bf16.msra.mxu0 %v1250
  %1785 = vmatpush.bf16.msra.mxu0 %v1244
  %1786 = vmatpush.bf16.msra.mxu0 %v1238
  %1787 = vmatpush.bf16.msra.mxu0 %v1232
  %1788 = vmatpush.bf16.msra.mxu0 %v1226
  %1789 = vmatpush.bf16.msra.mxu0 %v1220
  %1790 = vmatpush.bf16.msra.mxu0 %v1214
  %1791 = vmatpush.bf16.msra.mxu0 %v1208
  %1792 = vmatmul.bf16.gmra.mxu0 %v332
  %v1793 = vpop.f32.mrf.mxu0
  %v1794 = vadd.f32 0.0, %v1793
  %v1795 = vpop.f32.mrf.mxu0
  %1796 = vdwg.mxu0
  %1797 = vmatpush.bf16.msra.mxu0 %v1298
  %1798 = vmatpush.bf16.msra.mxu0 %v1292
  %1799 = vmatpush.bf16.msra.mxu0 %v1286
  %1800 = vmatpush.bf16.msra.mxu0 %v1280
  %1801 = vmatpush.bf16.msra.mxu0 %v1274
  %1802 = vmatpush.bf16.msra.mxu0 %v1268
  %1803 = vmatpush.bf16.msra.mxu0 %v1262
  %1804 = vmatpush.bf16.msra.mxu0 %v1256
  %1805 = vmatmul.bf16.gmra.mxu0 %v333
  %v1806 = vpop.f32.mrf.mxu0
  %v1807 = vadd.f32 %v1794, %v1806
  %v1808 = vpop.f32.mrf.mxu0
  %1809 = vdwg.mxu0
  %1810 = vmatpush.bf16.msra.mxu0 %v1346
  %1811 = vmatpush.bf16.msra.mxu0 %v1340
  %1812 = vmatpush.bf16.msra.mxu0 %v1334
  %1813 = vmatpush.bf16.msra.mxu0 %v1328
  %1814 = vmatpush.bf16.msra.mxu0 %v1322
  %1815 = vmatpush.bf16.msra.mxu0 %v1316
  %1816 = vmatpush.bf16.msra.mxu0 %v1310
  %1817 = vmatpush.bf16.msra.mxu0 %v1304
  %1818 = vmatmul.bf16.gmra.mxu0 %v334
  %v1819 = vpop.f32.mrf.mxu0
  %v1820 = vadd.f32 %v1807, %v1819
  %v1821 = vpop.f32.mrf.mxu0
  %1822 = vdwg.mxu0
  %1823 = vmatpush.bf16.msra.mxu0 %v1394
  %1824 = vmatpush.bf16.msra.mxu0 %v1388
  %1825 = vmatpush.bf16.msra.mxu0 %v1382
  %1826 = vmatpush.bf16.msra.mxu0 %v1376
  %1827 = vmatpush.bf16.msra.mxu0 %v1370
  %1828 = vmatpush.bf16.msra.mxu0 %v1364
  %1829 = vmatpush.bf16.msra.mxu0 %v1358
  %1830 = vmatpush.bf16.msra.mxu0 %v1352
  %1831 = vmatmul.bf16.gmra.mxu0 %v335
  %v1832 = vpop.f32.mrf.mxu0
  %v1833 = vadd.f32 %v1820, %v1832
  %v1834 = vpop.f32.mrf.mxu0
  %1835 = vdwg.mxu0
  %1836 = vmatpush.bf16.msra.mxu0 %v1442
  %1837 = vmatpush.bf16.msra.mxu0 %v1436
  %1838 = vmatpush.bf16.msra.mxu0 %v1430
  %1839 = vmatpush.bf16.msra.mxu0 %v1424
  %1840 = vmatpush.bf16.msra.mxu0 %v1418
  %1841 = vmatpush.bf16.msra.mxu0 %v1412
  %1842 = vmatpush.bf16.msra.mxu0 %v1406
  %1843 = vmatpush.bf16.msra.mxu0 %v1400
  %1844 = vmatmul.bf16.gmra.mxu0 %v336
  %v1845 = vpop.f32.mrf.mxu0
  %v1846 = vadd.f32 %v1833, %v1845
  %v1847 = vpop.f32.mrf.mxu0
  %1848 = vdwg.mxu0
  %1849 = vmatpush.bf16.msra.mxu0 %v1490
  %1850 = vmatpush.bf16.msra.mxu0 %v1484
  %1851 = vmatpush.bf16.msra.mxu0 %v1478
  %1852 = vmatpush.bf16.msra.mxu0 %v1472
  %1853 = vmatpush.bf16.msra.mxu0 %v1466
  %1854 = vmatpush.bf16.msra.mxu0 %v1460
  %1855 = vmatpush.bf16.msra.mxu0 %v1454
  %1856 = vmatpush.bf16.msra.mxu0 %v1448
  %1857 = vmatmul.bf16.gmra.mxu0 %v337
  %v1858 = vpop.f32.mrf.mxu0
  %v1859 = vadd.f32 %v1846, %v1858
  %v1860 = vpop.f32.mrf.mxu0
  %1861 = vdwg.mxu0
  %1862 = vmatpush.bf16.msra.mxu0 %v1251
  %1863 = vmatpush.bf16.msra.mxu0 %v1245
  %1864 = vmatpush.bf16.msra.mxu0 %v1239
  %1865 = vmatpush.bf16.msra.mxu0 %v1233
  %1866 = vmatpush.bf16.msra.mxu0 %v1227
  %1867 = vmatpush.bf16.msra.mxu0 %v1221
  %1868 = vmatpush.bf16.msra.mxu0 %v1215
  %1869 = vmatpush.bf16.msra.mxu0 %v1209
  %1870 = vmatmul.bf16.gmra.mxu0 %v332
  %v1871 = vpop.f32.mrf.mxu0
  %v1872 = vadd.f32 0.0, %v1871
  %v1873 = vpop.f32.mrf.mxu0
  %1874 = vdwg.mxu0
  %1875 = vmatpush.bf16.msra.mxu0 %v1299
  %1876 = vmatpush.bf16.msra.mxu0 %v1293
  %1877 = vmatpush.bf16.msra.mxu0 %v1287
  %1878 = vmatpush.bf16.msra.mxu0 %v1281
  %1879 = vmatpush.bf16.msra.mxu0 %v1275
  %1880 = vmatpush.bf16.msra.mxu0 %v1269
  %1881 = vmatpush.bf16.msra.mxu0 %v1263
  %1882 = vmatpush.bf16.msra.mxu0 %v1257
  %1883 = vmatmul.bf16.gmra.mxu0 %v333
  %v1884 = vpop.f32.mrf.mxu0
  %v1885 = vadd.f32 %v1872, %v1884
  %v1886 = vpop.f32.mrf.mxu0
  %1887 = vdwg.mxu0
  %1888 = vmatpush.bf16.msra.mxu0 %v1347
  %1889 = vmatpush.bf16.msra.mxu0 %v1341
  %1890 = vmatpush.bf16.msra.mxu0 %v1335
  %1891 = vmatpush.bf16.msra.mxu0 %v1329
  %1892 = vmatpush.bf16.msra.mxu0 %v1323
  %1893 = vmatpush.bf16.msra.mxu0 %v1317
  %1894 = vmatpush.bf16.msra.mxu0 %v1311
  %1895 = vmatpush.bf16.msra.mxu0 %v1305
  %1896 = vmatmul.bf16.gmra.mxu0 %v334
  %v1897 = vpop.f32.mrf.mxu0
  %v1898 = vadd.f32 %v1885, %v1897
  %v1899 = vpop.f32.mrf.mxu0
  %1900 = vdwg.mxu0
  %1901 = vmatpush.bf16.msra.mxu0 %v1395
  %1902 = vmatpush.bf16.msra.mxu0 %v1389
  %1903 = vmatpush.bf16.msra.mxu0 %v1383
  %1904 = vmatpush.bf16.msra.mxu0 %v1377
  %1905 = vmatpush.bf16.msra.mxu0 %v1371
  %1906 = vmatpush.bf16.msra.mxu0 %v1365
  %1907 = vmatpush.bf16.msra.mxu0 %v1359
  %1908 = vmatpush.bf16.msra.mxu0 %v1353
  %1909 = vmatmul.bf16.gmra.mxu0 %v335
  %v1910 = vpop.f32.mrf.mxu0
  %v1911 = vadd.f32 %v1898, %v1910
  %v1912 = vpop.f32.mrf.mxu0
  %1913 = vdwg.mxu0
  %1914 = vmatpush.bf16.msra.mxu0 %v1443
  %1915 = vmatpush.bf16.msra.mxu0 %v1437
  %1916 = vmatpush.bf16.msra.mxu0 %v1431
  %1917 = vmatpush.bf16.msra.mxu0 %v1425
  %1918 = vmatpush.bf16.msra.mxu0 %v1419
  %1919 = vmatpush.bf16.msra.mxu0 %v1413
  %1920 = vmatpush.bf16.msra.mxu0 %v1407
  %1921 = vmatpush.bf16.msra.mxu0 %v1401
  %1922 = vmatmul.bf16.gmra.mxu0 %v336
  %v1923 = vpop.f32.mrf.mxu0
  %v1924 = vadd.f32 %v1911, %v1923
  %v1925 = vpop.f32.mrf.mxu0
  %1926 = vdwg.mxu0
  %1927 = vmatpush.bf16.msra.mxu0 %v1491
  %1928 = vmatpush.bf16.msra.mxu0 %v1485
  %1929 = vmatpush.bf16.msra.mxu0 %v1479
  %1930 = vmatpush.bf16.msra.mxu0 %v1473
  %1931 = vmatpush.bf16.msra.mxu0 %v1467
  %1932 = vmatpush.bf16.msra.mxu0 %v1461
  %1933 = vmatpush.bf16.msra.mxu0 %v1455
  %1934 = vmatpush.bf16.msra.mxu0 %v1449
  %1935 = vmatmul.bf16.gmra.mxu0 %v337
  %v1936 = vpop.f32.mrf.mxu0
  %v1937 = vadd.f32 %v1924, %v1936
  %v1938 = vpop.f32.mrf.mxu0
  %1939 = vdwg.mxu0
  %1940 = vmatpush.bf16.msra.mxu0 %v1252
  %1941 = vmatpush.bf16.msra.mxu0 %v1246
  %1942 = vmatpush.bf16.msra.mxu0 %v1240
  %1943 = vmatpush.bf16.msra.mxu0 %v1234
  %1944 = vmatpush.bf16.msra.mxu0 %v1228
  %1945 = vmatpush.bf16.msra.mxu0 %v1222
  %1946 = vmatpush.bf16.msra.mxu0 %v1216
  %1947 = vmatpush.bf16.msra.mxu0 %v1210
  %1948 = vmatmul.bf16.gmra.mxu0 %v332
  %v1949 = vpop.f32.mrf.mxu0
  %v1950 = vadd.f32 0.0, %v1949
  %v1951 = vpop.f32.mrf.mxu0
  %1952 = vdwg.mxu0
  %1953 = vmatpush.bf16.msra.mxu0 %v1300
  %1954 = vmatpush.bf16.msra.mxu0 %v1294
  %1955 = vmatpush.bf16.msra.mxu0 %v1288
  %1956 = vmatpush.bf16.msra.mxu0 %v1282
  %1957 = vmatpush.bf16.msra.mxu0 %v1276
  %1958 = vmatpush.bf16.msra.mxu0 %v1270
  %1959 = vmatpush.bf16.msra.mxu0 %v1264
  %1960 = vmatpush.bf16.msra.mxu0 %v1258
  %1961 = vmatmul.bf16.gmra.mxu0 %v333
  %v1962 = vpop.f32.mrf.mxu0
  %v1963 = vadd.f32 %v1950, %v1962
  %v1964 = vpop.f32.mrf.mxu0
  %1965 = vdwg.mxu0
  %1966 = vmatpush.bf16.msra.mxu0 %v1348
  %1967 = vmatpush.bf16.msra.mxu0 %v1342
  %1968 = vmatpush.bf16.msra.mxu0 %v1336
  %1969 = vmatpush.bf16.msra.mxu0 %v1330
  %1970 = vmatpush.bf16.msra.mxu0 %v1324
  %1971 = vmatpush.bf16.msra.mxu0 %v1318
  %1972 = vmatpush.bf16.msra.mxu0 %v1312
  %1973 = vmatpush.bf16.msra.mxu0 %v1306
  %1974 = vmatmul.bf16.gmra.mxu0 %v334
  %v1975 = vpop.f32.mrf.mxu0
  %v1976 = vadd.f32 %v1963, %v1975
  %v1977 = vpop.f32.mrf.mxu0
  %1978 = vdwg.mxu0
  %1979 = vmatpush.bf16.msra.mxu0 %v1396
  %1980 = vmatpush.bf16.msra.mxu0 %v1390
  %1981 = vmatpush.bf16.msra.mxu0 %v1384
  %1982 = vmatpush.bf16.msra.mxu0 %v1378
  %1983 = vmatpush.bf16.msra.mxu0 %v1372
  %1984 = vmatpush.bf16.msra.mxu0 %v1366
  %1985 = vmatpush.bf16.msra.mxu0 %v1360
  %1986 = vmatpush.bf16.msra.mxu0 %v1354
  %1987 = vmatmul.bf16.gmra.mxu0 %v335
  %v1988 = vpop.f32.mrf.mxu0
  %v1989 = vadd.f32 %v1976, %v1988
  %v1990 = vpop.f32.mrf.mxu0
  %1991 = vdwg.mxu0
  %1992 = vmatpush.bf16.msra.mxu0 %v1444
  %1993 = vmatpush.bf16.msra.mxu0 %v1438
  %1994 = vmatpush.bf16.msra.mxu0 %v1432
  %1995 = vmatpush.bf16.msra.mxu0 %v1426
  %1996 = vmatpush.bf16.msra.mxu0 %v1420
  %1997 = vmatpush.bf16.msra.mxu0 %v1414
  %1998 = vmatpush.bf16.msra.mxu0 %v1408
  %1999 = vmatpush.bf16.msra.mxu0 %v1402
  %2000 = vmatmul.bf16.gmra.mxu0 %v336
  %v2001 = vpop.f32.mrf.mxu0
  %v2002 = vadd.f32 %v1989, %v2001
  %v2003 = vpop.f32.mrf.mxu0
  %2004 = vdwg.mxu0
  %2005 = vmatpush.bf16.msra.mxu0 %v1492
  %2006 = vmatpush.bf16.msra.mxu0 %v1486
  %2007 = vmatpush.bf16.msra.mxu0 %v1480
  %2008 = vmatpush.bf16.msra.mxu0 %v1474
  %2009 = vmatpush.bf16.msra.mxu0 %v1468
  %2010 = vmatpush.bf16.msra.mxu0 %v1462
  %2011 = vmatpush.bf16.msra.mxu0 %v1456
  %2012 = vmatpush.bf16.msra.mxu0 %v1450
  %2013 = vmatmul.bf16.gmra.mxu0 %v337
  %v2014 = vpop.f32.mrf.mxu0
  %v2015 = vadd.f32 %v2002, %v2014
  %v2016 = vpop.f32.mrf.mxu0
  %2017 = vdwg.mxu0
  %2018 = vmatpush.bf16.msra.mxu0 %v1253
  %2019 = vmatpush.bf16.msra.mxu0 %v1247
  %2020 = vmatpush.bf16.msra.mxu0 %v1241
  %2021 = vmatpush.bf16.msra.mxu0 %v1235
  %2022 = vmatpush.bf16.msra.mxu0 %v1229
  %2023 = vmatpush.bf16.msra.mxu0 %v1223
  %2024 = vmatpush.bf16.msra.mxu0 %v1217
  %2025 = vmatpush.bf16.msra.mxu0 %v1211
  %2026 = vmatmul.bf16.gmra.mxu0 %v332
  %v2027 = vpop.f32.mrf.mxu0
  %v2028 = vadd.f32 0.0, %v2027
  %v2029 = vpop.f32.mrf.mxu0
  %2030 = vdwg.mxu0
  %2031 = vmatpush.bf16.msra.mxu0 %v1301
  %2032 = vmatpush.bf16.msra.mxu0 %v1295
  %2033 = vmatpush.bf16.msra.mxu0 %v1289
  %2034 = vmatpush.bf16.msra.mxu0 %v1283
  %2035 = vmatpush.bf16.msra.mxu0 %v1277
  %2036 = vmatpush.bf16.msra.mxu0 %v1271
  %2037 = vmatpush.bf16.msra.mxu0 %v1265
  %2038 = vmatpush.bf16.msra.mxu0 %v1259
  %2039 = vmatmul.bf16.gmra.mxu0 %v333
  %v2040 = vpop.f32.mrf.mxu0
  %v2041 = vadd.f32 %v2028, %v2040
  %v2042 = vpop.f32.mrf.mxu0
  %2043 = vdwg.mxu0
  %2044 = vmatpush.bf16.msra.mxu0 %v1349
  %2045 = vmatpush.bf16.msra.mxu0 %v1343
  %2046 = vmatpush.bf16.msra.mxu0 %v1337
  %2047 = vmatpush.bf16.msra.mxu0 %v1331
  %2048 = vmatpush.bf16.msra.mxu0 %v1325
  %2049 = vmatpush.bf16.msra.mxu0 %v1319
  %2050 = vmatpush.bf16.msra.mxu0 %v1313
  %2051 = vmatpush.bf16.msra.mxu0 %v1307
  %2052 = vmatmul.bf16.gmra.mxu0 %v334
  %v2053 = vpop.f32.mrf.mxu0
  %v2054 = vadd.f32 %v2041, %v2053
  %v2055 = vpop.f32.mrf.mxu0
  %2056 = vdwg.mxu0
  %2057 = vmatpush.bf16.msra.mxu0 %v1397
  %2058 = vmatpush.bf16.msra.mxu0 %v1391
  %2059 = vmatpush.bf16.msra.mxu0 %v1385
  %2060 = vmatpush.bf16.msra.mxu0 %v1379
  %2061 = vmatpush.bf16.msra.mxu0 %v1373
  %2062 = vmatpush.bf16.msra.mxu0 %v1367
  %2063 = vmatpush.bf16.msra.mxu0 %v1361
  %2064 = vmatpush.bf16.msra.mxu0 %v1355
  %2065 = vmatmul.bf16.gmra.mxu0 %v335
  %v2066 = vpop.f32.mrf.mxu0
  %v2067 = vadd.f32 %v2054, %v2066
  %v2068 = vpop.f32.mrf.mxu0
  %2069 = vdwg.mxu0
  %2070 = vmatpush.bf16.msra.mxu0 %v1445
  %2071 = vmatpush.bf16.msra.mxu0 %v1439
  %2072 = vmatpush.bf16.msra.mxu0 %v1433
  %2073 = vmatpush.bf16.msra.mxu0 %v1427
  %2074 = vmatpush.bf16.msra.mxu0 %v1421
  %2075 = vmatpush.bf16.msra.mxu0 %v1415
  %2076 = vmatpush.bf16.msra.mxu0 %v1409
  %2077 = vmatpush.bf16.msra.mxu0 %v1403
  %2078 = vmatmul.bf16.gmra.mxu0 %v336
  %v2079 = vpop.f32.mrf.mxu0
  %v2080 = vadd.f32 %v2067, %v2079
  %v2081 = vpop.f32.mrf.mxu0
  %2082 = vdwg.mxu0
  %2083 = vmatpush.bf16.msra.mxu0 %v1493
  %2084 = vmatpush.bf16.msra.mxu0 %v1487
  %2085 = vmatpush.bf16.msra.mxu0 %v1481
  %2086 = vmatpush.bf16.msra.mxu0 %v1475
  %2087 = vmatpush.bf16.msra.mxu0 %v1469
  %2088 = vmatpush.bf16.msra.mxu0 %v1463
  %2089 = vmatpush.bf16.msra.mxu0 %v1457
  %2090 = vmatpush.bf16.msra.mxu0 %v1451
  %2091 = vmatmul.bf16.gmra.mxu0 %v337
  %v2092 = vpop.f32.mrf.mxu0
  %v2093 = vadd.f32 %v2080, %v2092
  %v2094 = vpop.f32.mrf.mxu0
  %2095 = vdwg.mxu0
  %2096 = vmatpush.bf16.msra.mxu0 %v1254
  %2097 = vmatpush.bf16.msra.mxu0 %v1248
  %2098 = vmatpush.bf16.msra.mxu0 %v1242
  %2099 = vmatpush.bf16.msra.mxu0 %v1236
  %2100 = vmatpush.bf16.msra.mxu0 %v1230
  %2101 = vmatpush.bf16.msra.mxu0 %v1224
  %2102 = vmatpush.bf16.msra.mxu0 %v1218
  %2103 = vmatpush.bf16.msra.mxu0 %v1212
  %2104 = vmatmul.bf16.gmra.mxu0 %v332
  %v2105 = vpop.f32.mrf.mxu0
  %v2106 = vadd.f32 0.0, %v2105
  %v2107 = vpop.f32.mrf.mxu0
  %2108 = vdwg.mxu0
  %2109 = vmatpush.bf16.msra.mxu0 %v1302
  %2110 = vmatpush.bf16.msra.mxu0 %v1296
  %2111 = vmatpush.bf16.msra.mxu0 %v1290
  %2112 = vmatpush.bf16.msra.mxu0 %v1284
  %2113 = vmatpush.bf16.msra.mxu0 %v1278
  %2114 = vmatpush.bf16.msra.mxu0 %v1272
  %2115 = vmatpush.bf16.msra.mxu0 %v1266
  %2116 = vmatpush.bf16.msra.mxu0 %v1260
  %2117 = vmatmul.bf16.gmra.mxu0 %v333
  %v2118 = vpop.f32.mrf.mxu0
  %v2119 = vadd.f32 %v2106, %v2118
  %v2120 = vpop.f32.mrf.mxu0
  %2121 = vdwg.mxu0
  %2122 = vmatpush.bf16.msra.mxu0 %v1350
  %2123 = vmatpush.bf16.msra.mxu0 %v1344
  %2124 = vmatpush.bf16.msra.mxu0 %v1338
  %2125 = vmatpush.bf16.msra.mxu0 %v1332
  %2126 = vmatpush.bf16.msra.mxu0 %v1326
  %2127 = vmatpush.bf16.msra.mxu0 %v1320
  %2128 = vmatpush.bf16.msra.mxu0 %v1314
  %2129 = vmatpush.bf16.msra.mxu0 %v1308
  %2130 = vmatmul.bf16.gmra.mxu0 %v334
  %v2131 = vpop.f32.mrf.mxu0
  %v2132 = vadd.f32 %v2119, %v2131
  %v2133 = vpop.f32.mrf.mxu0
  %2134 = vdwg.mxu0
  %2135 = vmatpush.bf16.msra.mxu0 %v1398
  %2136 = vmatpush.bf16.msra.mxu0 %v1392
  %2137 = vmatpush.bf16.msra.mxu0 %v1386
  %2138 = vmatpush.bf16.msra.mxu0 %v1380
  %2139 = vmatpush.bf16.msra.mxu0 %v1374
  %2140 = vmatpush.bf16.msra.mxu0 %v1368
  %2141 = vmatpush.bf16.msra.mxu0 %v1362
  %2142 = vmatpush.bf16.msra.mxu0 %v1356
  %2143 = vmatmul.bf16.gmra.mxu0 %v335
  %v2144 = vpop.f32.mrf.mxu0
  %v2145 = vadd.f32 %v2132, %v2144
  %v2146 = vpop.f32.mrf.mxu0
  %2147 = vdwg.mxu0
  %2148 = vmatpush.bf16.msra.mxu0 %v1446
  %2149 = vmatpush.bf16.msra.mxu0 %v1440
  %2150 = vmatpush.bf16.msra.mxu0 %v1434
  %2151 = vmatpush.bf16.msra.mxu0 %v1428
  %2152 = vmatpush.bf16.msra.mxu0 %v1422
  %2153 = vmatpush.bf16.msra.mxu0 %v1416
  %2154 = vmatpush.bf16.msra.mxu0 %v1410
  %2155 = vmatpush.bf16.msra.mxu0 %v1404
  %2156 = vmatmul.bf16.gmra.mxu0 %v336
  %v2157 = vpop.f32.mrf.mxu0
  %v2158 = vadd.f32 %v2145, %v2157
  %v2159 = vpop.f32.mrf.mxu0
  %2160 = vdwg.mxu0
  %2161 = vmatpush.bf16.msra.mxu0 %v1494
  %2162 = vmatpush.bf16.msra.mxu0 %v1488
  %2163 = vmatpush.bf16.msra.mxu0 %v1482
  %2164 = vmatpush.bf16.msra.mxu0 %v1476
  %2165 = vmatpush.bf16.msra.mxu0 %v1470
  %2166 = vmatpush.bf16.msra.mxu0 %v1464
  %2167 = vmatpush.bf16.msra.mxu0 %v1458
  %2168 = vmatpush.bf16.msra.mxu0 %v1452
  %2169 = vmatmul.bf16.gmra.mxu0 %v337
  %v2170 = vpop.f32.mrf.mxu0
  %v2171 = vadd.f32 %v2158, %v2170
  %v2172 = vpop.f32.mrf.mxu0
  %2173 = vdwg.mxu0
  %2174 = vmatpush.bf16.msra.mxu0 %v1255
  %2175 = vmatpush.bf16.msra.mxu0 %v1249
  %2176 = vmatpush.bf16.msra.mxu0 %v1243
  %2177 = vmatpush.bf16.msra.mxu0 %v1237
  %2178 = vmatpush.bf16.msra.mxu0 %v1231
  %2179 = vmatpush.bf16.msra.mxu0 %v1225
  %2180 = vmatpush.bf16.msra.mxu0 %v1219
  %2181 = vmatpush.bf16.msra.mxu0 %v1213
  %2182 = vmatmul.bf16.gmra.mxu0 %v332
  %v2183 = vpop.f32.mrf.mxu0
  %v2184 = vadd.f32 0.0, %v2183
  %v2185 = vpop.f32.mrf.mxu0
  %2186 = vdwg.mxu0
  %2187 = vmatpush.bf16.msra.mxu0 %v1303
  %2188 = vmatpush.bf16.msra.mxu0 %v1297
  %2189 = vmatpush.bf16.msra.mxu0 %v1291
  %2190 = vmatpush.bf16.msra.mxu0 %v1285
  %2191 = vmatpush.bf16.msra.mxu0 %v1279
  %2192 = vmatpush.bf16.msra.mxu0 %v1273
  %2193 = vmatpush.bf16.msra.mxu0 %v1267
  %2194 = vmatpush.bf16.msra.mxu0 %v1261
  %2195 = vmatmul.bf16.gmra.mxu0 %v333
  %v2196 = vpop.f32.mrf.mxu0
  %v2197 = vadd.f32 %v2184, %v2196
  %v2198 = vpop.f32.mrf.mxu0
  %2199 = vdwg.mxu0
  %2200 = vmatpush.bf16.msra.mxu0 %v1351
  %2201 = vmatpush.bf16.msra.mxu0 %v1345
  %2202 = vmatpush.bf16.msra.mxu0 %v1339
  %2203 = vmatpush.bf16.msra.mxu0 %v1333
  %2204 = vmatpush.bf16.msra.mxu0 %v1327
  %2205 = vmatpush.bf16.msra.mxu0 %v1321
  %2206 = vmatpush.bf16.msra.mxu0 %v1315
  %2207 = vmatpush.bf16.msra.mxu0 %v1309
  %2208 = vmatmul.bf16.gmra.mxu0 %v334
  %v2209 = vpop.f32.mrf.mxu0
  %v2210 = vadd.f32 %v2197, %v2209
  %v2211 = vpop.f32.mrf.mxu0
  %2212 = vdwg.mxu0
  %2213 = vmatpush.bf16.msra.mxu0 %v1399
  %2214 = vmatpush.bf16.msra.mxu0 %v1393
  %2215 = vmatpush.bf16.msra.mxu0 %v1387
  %2216 = vmatpush.bf16.msra.mxu0 %v1381
  %2217 = vmatpush.bf16.msra.mxu0 %v1375
  %2218 = vmatpush.bf16.msra.mxu0 %v1369
  %2219 = vmatpush.bf16.msra.mxu0 %v1363
  %2220 = vmatpush.bf16.msra.mxu0 %v1357
  %2221 = vmatmul.bf16.gmra.mxu0 %v335
  %v2222 = vpop.f32.mrf.mxu0
  %v2223 = vadd.f32 %v2210, %v2222
  %v2224 = vpop.f32.mrf.mxu0
  %2225 = vdwg.mxu0
  %2226 = vmatpush.bf16.msra.mxu0 %v1447
  %2227 = vmatpush.bf16.msra.mxu0 %v1441
  %2228 = vmatpush.bf16.msra.mxu0 %v1435
  %2229 = vmatpush.bf16.msra.mxu0 %v1429
  %2230 = vmatpush.bf16.msra.mxu0 %v1423
  %2231 = vmatpush.bf16.msra.mxu0 %v1417
  %2232 = vmatpush.bf16.msra.mxu0 %v1411
  %2233 = vmatpush.bf16.msra.mxu0 %v1405
  %2234 = vmatmul.bf16.gmra.mxu0 %v336
  %v2235 = vpop.f32.mrf.mxu0
  %v2236 = vadd.f32 %v2223, %v2235
  %v2237 = vpop.f32.mrf.mxu0
  %2238 = vdwg.mxu0
  %2239 = vmatpush.bf16.msra.mxu0 %v1495
  %2240 = vmatpush.bf16.msra.mxu0 %v1489
  %2241 = vmatpush.bf16.msra.mxu0 %v1483
  %2242 = vmatpush.bf16.msra.mxu0 %v1477
  %2243 = vmatpush.bf16.msra.mxu0 %v1471
  %2244 = vmatpush.bf16.msra.mxu0 %v1465
  %2245 = vmatpush.bf16.msra.mxu0 %v1459
  %2246 = vmatpush.bf16.msra.mxu0 %v1453
  %2247 = vmatmul.bf16.gmra.mxu0 %v337
  %v2248 = vpop.f32.mrf.mxu0
  %v2249 = vadd.f32 %v2236, %v2248
  %v2250 = vpop.f32.mrf.mxu0
  %2251 = vdwg.mxu0
  %v2252 = vld [vmem:[%s2] sm:$0x3f]
  %v2254 = vperm.slane %v2252, 0
  %v2255 = vperm.slane %v2252, 1
  %v2256 = vperm.slane %v2252, 2
  %v2257 = vperm.slane %v2252, 3
  %v2258 = vperm.slane %v2252, 4
  %v2259 = vperm.slane %v2252, 5
  %v2266 = vmul.f32 %v1859, %v2254
  %v2267 = vmul.f32 %v1937, %v2255
  %v2268 = vmul.f32 %v2015, %v2256
  %v2269 = vmul.f32 %v2093, %v2257
  %v2270 = vmul.f32 %v2171, %v2258
  %v2271 = vmul.f32 %v2249, %v2259
  %v2272 = vld [vmem:[%s3] sm:$0x3f]
  %v2274 = vperm.slane %v2272, 0
  %v2275 = vperm.slane %v2272, 1
  %v2276 = vperm.slane %v2272, 2
  %v2277 = vperm.slane %v2272, 3
  %v2278 = vperm.slane %v2272, 4
  %v2279 = vperm.slane %v2272, 5
  %v2286 = vadd.f32 %v2266, %v2274
  %v2287 = vadd.f32 %v2267, %v2275
  %v2288 = vadd.f32 %v2268, %v2276
  %v2289 = vadd.f32 %v2269, %v2277
  %v2290 = vadd.f32 %v2270, %v2278
  %v2291 = vadd.f32 %v2271, %v2279
  %v2292 = vmax.f32 %v2286, 0.0
  %v2293 = vmax.f32 %v2287, 0.0
  %v2294 = vmax.f32 %v2288, 0.0
  %v2295 = vmax.f32 %v2289, 0.0
  %v2296 = vmax.f32 %v2290, 0.0
  %v2297 = vmax.f32 %v2291, 0.0
  %v2298 = vpack.c.bf16 %v2292, %v2292
  %v2299 = vpack.c.bf16 %v2293, %v2293
  %v2300 = vpack.c.bf16 %v2294, %v2294
  %v2301 = vpack.c.bf16 %v2295, %v2295
  %v2302 = vpack.c.bf16 %v2296, %v2296
  %v2303 = vpack.c.bf16 %v2297, %v2297
  %v2304 = vld [vmem:[%s4] sm:$0xff]
  %v2305 = vld [vmem:[%s4 + $0x8] sm:$0xf]
  %v2306 = vld [vmem:[%s4 + $0xc] sm:$0xff]
  %v2307 = vld [vmem:[%s4 + $0x14] sm:$0xf]
  %v2308 = vld [vmem:[%s4 + $0x18] sm:$0xff]
  %v2309 = vld [vmem:[%s4 + $0x20] sm:$0xf]
  %v2310 = vld [vmem:[%s4 + $0x24] sm:$0xff]
  %v2311 = vld [vmem:[%s4 + $0x2c] sm:$0xf]
  %v2312 = vld [vmem:[%s4 + $0x30] sm:$0xff]
  %v2313 = vld [vmem:[%s4 + $0x38] sm:$0xf]
  %v2314 = vld [vmem:[%s4 + $0x3c] sm:$0xff]
  %v2315 = vld [vmem:[%s4 + $0x44] sm:$0xf]
  %v2316 = vld [vmem:[%s4 + $0x48] sm:$0xff]
  %v2317 = vld [vmem:[%s4 + $0x50] sm:$0xf]
  %v2318 = vld [vmem:[%s4 + $0x54] sm:$0xff]
  %v2319 = vld [vmem:[%s4 + $0x5c] sm:$0xf]
  %v2320 = vld [vmem:[%s4 + $0x60] sm:$0xff]
  %v2321 = vld [vmem:[%s4 + $0x68] sm:$0xf]
  %v2322 = vld [vmem:[%s4 + $0x6c] sm:$0xff]
  %v2323 = vld [vmem:[%s4 + $0x74] sm:$0xf]
  %v2324 = vld [vmem:[%s4 + $0x78] sm:$0xff]
  %v2325 = vld [vmem:[%s4 + $0x80] sm:$0xf]
  %v2326 = vld [vmem:[%s4 + $0x84] sm:$0xff]
  %v2327 = vld [vmem:[%s4 + $0x8c] sm:$0xf]
  %v2328 = vld [vmem:[%s4 + $0x90] sm:$0xff]
  %v2329 = vld [vmem:[%s4 + $0x98] sm:$0xf]
  %v2330 = vld [vmem:[%s4 + $0x9c] sm:$0xff]
  %v2331 = vld [vmem:[%s4 + $0xa4] sm:$0xf]
  %v2332 = vld [vmem:[%s4 + $0xa8] sm:$0xff]
  %v2333 = vld [vmem:[%s4 + $0xb0] sm:$0xf]
  %v2334 = vld [vmem:[%s4 + $0xb4] sm:$0xff]
  %v2335 = vld [vmem:[%s4 + $0xbc] sm:$0xf]
  %v2336 = vld [vmem:[%s4 + $0xc0] sm:$0xff]
  %v2337 = vld [vmem:[%s4 + $0xc8] sm:$0xf]
  %v2338 = vld [vmem:[%s4 + $0xcc] sm:$0xff]
  %v2339 = vld [vmem:[%s4 + $0xd4] sm:$0xf]
  %v2340 = vld [vmem:[%s4 + $0xd8] sm:$0xff]
  %v2341 = vld [vmem:[%s4 + $0xe0] sm:$0xf]
  %v2342 = vld [vmem:[%s4 + $0xe4] sm:$0xff]
  %v2343 = vld [vmem:[%s4 + $0xec] sm:$0xf]
  %v2344 = vld [vmem:[%s4 + $0xf0] sm:$0xff]
  %v2345 = vld [vmem:[%s4 + $0xf8] sm:$0xf]
  %v2346 = vld [vmem:[%s4 + $0xfc] sm:$0xff]
  %v2347 = vld [vmem:[%s4 + $0x104] sm:$0xf]
  %v2348 = vld [vmem:[%s4 + $0x108] sm:$0xff]
  %v2349 = vld [vmem:[%s4 + $0x110] sm:$0xf]
  %v2350 = vld [vmem:[%s4 + $0x114] sm:$0xff]
  %v2351 = vld [vmem:[%s4 + $0x11c] sm:$0xf]
  %v2352 = vld [vmem:[%s4 + $0x120] sm:$0xff]
  %v2353 = vld [vmem:[%s4 + $0x128] sm:$0xf]
  %v2354 = vld [vmem:[%s4 + $0x12c] sm:$0xff]
  %v2355 = vld [vmem:[%s4 + $0x134] sm:$0xf]
  %v2356 = vld [vmem:[%s4 + $0x138] sm:$0xff]
  %v2357 = vld [vmem:[%s4 + $0x140] sm:$0xf]
  %v2358 = vld [vmem:[%s4 + $0x144] sm:$0xff]
  %v2359 = vld [vmem:[%s4 + $0x14c] sm:$0xf]
  %v2360 = vld [vmem:[%s4 + $0x150] sm:$0xff]
  %v2361 = vld [vmem:[%s4 + $0x158] sm:$0xf]
  %v2362 = vld [vmem:[%s4 + $0x15c] sm:$0xff]
  %v2363 = vld [vmem:[%s4 + $0x164] sm:$0xf]
  %v2364 = vld [vmem:[%s4 + $0x168] sm:$0xff]
  %v2365 = vld [vmem:[%s4 + $0x170] sm:$0xf]
  %v2366 = vld [vmem:[%s4 + $0x174] sm:$0xff]
  %v2367 = vld [vmem:[%s4 + $0x17c] sm:$0xf]
  %v2368 = vld [vmem:[%s4 + $0x180] sm:$0xff]
  %v2369 = vld [vmem:[%s4 + $0x188] sm:$0xf]
  %v2370 = vld [vmem:[%s4 + $0x18c] sm:$0xff]
  %v2371 = vld [vmem:[%s4 + $0x194] sm:$0xf]
  %v2372 = vld [vmem:[%s4 + $0x198] sm:$0xff]
  %v2373 = vld [vmem:[%s4 + $0x1a0] sm:$0xf]
  %v2374 = vld [vmem:[%s4 + $0x1a4] sm:$0xff]
  %v2375 = vld [vmem:[%s4 + $0x1ac] sm:$0xf]
  %v2376 = vld [vmem:[%s4 + $0x1b0] sm:$0xff]
  %v2377 = vld [vmem:[%s4 + $0x1b8] sm:$0xf]
  %v2378 = vld [vmem:[%s4 + $0x1bc] sm:$0xff]
  %v2379 = vld [vmem:[%s4 + $0x1c4] sm:$0xf]
  %v2380 = vld [vmem:[%s4 + $0x1c8] sm:$0xff]
  %v2381 = vld [vmem:[%s4 + $0x1d0] sm:$0xf]
  %v2382 = vld [vmem:[%s4 + $0x1d4] sm:$0xff]
  %v2383 = vld [vmem:[%s4 + $0x1dc] sm:$0xf]
  %v2384 = vld [vmem:[%s4 + $0x1e0] sm:$0xff]
  %v2385 = vld [vmem:[%s4 + $0x1e8] sm:$0xf]
  %v2386 = vld [vmem:[%s4 + $0x1ec] sm:$0xff]
  %v2387 = vld [vmem:[%s4 + $0x1f4] sm:$0xf]
  %v2388 = vld [vmem:[%s4 + $0x1f8] sm:$0xff]
  %v2389 = vld [vmem:[%s4 + $0x200] sm:$0xf]
  %v2390 = vld [vmem:[%s4 + $0x204] sm:$0xff]
  %v2391 = vld [vmem:[%s4 + $0x20c] sm:$0xf]
  %v2392 = vld [vmem:[%s4 + $0x210] sm:$0xff]
  %v2393 = vld [vmem:[%s4 + $0x218] sm:$0xf]
  %v2394 = vld [vmem:[%s4 + $0x21c] sm:$0xff]
  %v2395 = vld [vmem:[%s4 + $0x224] sm:$0xf]
  %v2396 = vld [vmem:[%s4 + $0x228] sm:$0xff]
  %v2397 = vld [vmem:[%s4 + $0x230] sm:$0xf]
  %v2398 = vld [vmem:[%s4 + $0x234] sm:$0xff]
  %v2399 = vld [vmem:[%s4 + $0x23c] sm:$0xf]
  %v2400 = vld [vmem:[%s4 + $0x240] sm:$0xff]
  %v2401 = vld [vmem:[%s4 + $0x248] sm:$0xf]
  %v2402 = vld [vmem:[%s4 + $0x24c] sm:$0xff]
  %v2403 = vld [vmem:[%s4 + $0x254] sm:$0xf]
  %v2404 = vld [vmem:[%s4 + $0x258] sm:$0xff]
  %v2405 = vld [vmem:[%s4 + $0x260] sm:$0xf]
  %v2406 = vld [vmem:[%s4 + $0x264] sm:$0xff]
  %v2407 = vld [vmem:[%s4 + $0x26c] sm:$0xf]
  %v2408 = vld [vmem:[%s4 + $0x270] sm:$0xff]
  %v2409 = vld [vmem:[%s4 + $0x278] sm:$0xf]
  %v2410 = vld [vmem:[%s4 + $0x27c] sm:$0xff]
  %v2411 = vld [vmem:[%s4 + $0x284] sm:$0xf]
  %v2412 = vld [vmem:[%s4 + $0x288] sm:$0xff]
  %v2413 = vld [vmem:[%s4 + $0x290] sm:$0xf]
  %v2414 = vld [vmem:[%s4 + $0x294] sm:$0xff]
  %v2415 = vld [vmem:[%s4 + $0x29c] sm:$0xf]
  %v2416 = vld [vmem:[%s4 + $0x2a0] sm:$0xff]
  %v2417 = vld [vmem:[%s4 + $0x2a8] sm:$0xf]
  %v2418 = vld [vmem:[%s4 + $0x2ac] sm:$0xff]
  %v2419 = vld [vmem:[%s4 + $0x2b4] sm:$0xf]
  %v2420 = vld [vmem:[%s4 + $0x2b8] sm:$0xff]
  %v2421 = vld [vmem:[%s4 + $0x2c0] sm:$0xf]
  %v2422 = vld [vmem:[%s4 + $0x2c4] sm:$0xff]
  %v2423 = vld [vmem:[%s4 + $0x2cc] sm:$0xf]
  %v2424 = vld [vmem:[%s4 + $0x2d0] sm:$0xff]
  %v2425 = vld [vmem:[%s4 + $0x2d8] sm:$0xf]
  %v2426 = vld [vmem:[%s4 + $0x2dc] sm:$0xff]
  %v2427 = vld [vmem:[%s4 + $0x2e4] sm:$0xf]
  %v2428 = vld [vmem:[%s4 + $0x2e8] sm:$0xff]
  %v2429 = vld [vmem:[%s4 + $0x2f0] sm:$0xf]
  %v2430 = vld [vmem:[%s4 + $0x2f4] sm:$0xff]
  %v2431 = vld [vmem:[%s4 + $0x2fc] sm:$0xf]
  %v2432 = vld [vmem:[%s4 + $0x300] sm:$0xff]
  %v2433 = vld [vmem:[%s4 + $0x308] sm:$0xf]
  %v2434 = vld [vmem:[%s4 + $0x30c] sm:$0xff]
  %v2435 = vld [vmem:[%s4 + $0x314] sm:$0xf]
  %v2436 = vld [vmem:[%s4 + $0x318] sm:$0xff]
  %v2437 = vld [vmem:[%s4 + $0x320] sm:$0xf]
  %v2438 = vld [vmem:[%s4 + $0x324] sm:$0xff]
  %v2439 = vld [vmem:[%s4 + $0x32c] sm:$0xf]
  %v2440 = vld [vmem:[%s4 + $0x330] sm:$0xff]
  %v2441 = vld [vmem:[%s4 + $0x338] sm:$0xf]
  %v2442 = vld [vmem:[%s4 + $0x33c] sm:$0xff]
  %v2443 = vld [vmem:[%s4 + $0x344] sm:$0xf]
  %v2444 = vld [vmem:[%s4 + $0x348] sm:$0xff]
  %v2445 = vld [vmem:[%s4 + $0x350] sm:$0xf]
  %v2446 = vld [vmem:[%s4 + $0x354] sm:$0xff]
  %v2447 = vld [vmem:[%s4 + $0x35c] sm:$0xf]
  %v2448 = vld [vmem:[%s4 + $0x360] sm:$0xff]
  %v2449 = vld [vmem:[%s4 + $0x368] sm:$0xf]
  %v2450 = vld [vmem:[%s4 + $0x36c] sm:$0xff]
  %v2451 = vld [vmem:[%s4 + $0x374] sm:$0xf]
  %v2452 = vld [vmem:[%s4 + $0x378] sm:$0xff]
  %v2453 = vld [vmem:[%s4 + $0x380] sm:$0xf]
  %v2454 = vld [vmem:[%s4 + $0x384] sm:$0xff]
  %v2455 = vld [vmem:[%s4 + $0x38c] sm:$0xf]
  %v2456 = vld [vmem:[%s4 + $0x390] sm:$0xff]
  %v2457 = vld [vmem:[%s4 + $0x398] sm:$0xf]
  %v2458 = vld [vmem:[%s4 + $0x39c] sm:$0xff]
  %v2459 = vld [vmem:[%s4 + $0x3a4] sm:$0xf]
  %v2460 = vld [vmem:[%s4 + $0x3a8] sm:$0xff]
  %v2461 = vld [vmem:[%s4 + $0x3b0] sm:$0xf]
  %v2462 = vld [vmem:[%s4 + $0x3b4] sm:$0xff]
  %v2463 = vld [vmem:[%s4 + $0x3bc] sm:$0xf]
  %v2464 = vld [vmem:[%s4 + $0x3c0] sm:$0xff]
  %v2465 = vld [vmem:[%s4 + $0x3c8] sm:$0xf]
  %v2466 = vld [vmem:[%s4 + $0x3cc] sm:$0xff]
  %v2467 = vld [vmem:[%s4 + $0x3d4] sm:$0xf]
  %v2468 = vld [vmem:[%s4 + $0x3d8] sm:$0xff]
  %v2469 = vld [vmem:[%s4 + $0x3e0] sm:$0xf]
  %v2470 = vld [vmem:[%s4 + $0x3e4] sm:$0xff]
  %v2471 = vld [vmem:[%s4 + $0x3ec] sm:$0xf]
  %v2472 = vld [vmem:[%s4 + $0x3f0] sm:$0xff]
  %v2473 = vld [vmem:[%s4 + $0x3f8] sm:$0xf]
  %v2474 = vld [vmem:[%s4 + $0x3fc] sm:$0xff]
  %v2475 = vld [vmem:[%s4 + $0x404] sm:$0xf]
  %v2476 = vld [vmem:[%s4 + $0x408] sm:$0xff]
  %v2477 = vld [vmem:[%s4 + $0x410] sm:$0xf]
  %v2478 = vld [vmem:[%s4 + $0x414] sm:$0xff]
  %v2479 = vld [vmem:[%s4 + $0x41c] sm:$0xf]
  %v2480 = vld [vmem:[%s4 + $0x420] sm:$0xff]
  %v2481 = vld [vmem:[%s4 + $0x428] sm:$0xf]
  %v2482 = vld [vmem:[%s4 + $0x42c] sm:$0xff]
  %v2483 = vld [vmem:[%s4 + $0x434] sm:$0xf]
  %v2484 = vld [vmem:[%s4 + $0x438] sm:$0xff]
  %v2485 = vld [vmem:[%s4 + $0x440] sm:$0xf]
  %v2486 = vld [vmem:[%s4 + $0x444] sm:$0xff]
  %v2487 = vld [vmem:[%s4 + $0x44c] sm:$0xf]
  %v2488 = vld [vmem:[%s4 + $0x450] sm:$0xff]
  %v2489 = vld [vmem:[%s4 + $0x458] sm:$0xf]
  %v2490 = vld [vmem:[%s4 + $0x45c] sm:$0xff]
  %v2491 = vld [vmem:[%s4 + $0x464] sm:$0xf]
  %v2492 = vld [vmem:[%s4 + $0x468] sm:$0xff]
  %v2493 = vld [vmem:[%s4 + $0x470] sm:$0xf]
  %v2494 = vld [vmem:[%s4 + $0x474] sm:$0xff]
  %v2495 = vld [vmem:[%s4 + $0x47c] sm:$0xf]
  %v2688 = vunpack.c.l.b16 %v2304
  %v2689 = vunpack.c.h.b16 %v2304
  %v2690 = vunpack.c.l.b16 %v2305
  %v2691 = vunpack.c.l.b16 %v2306
  %v2692 = vunpack.c.h.b16 %v2306
  %v2693 = vunpack.c.l.b16 %v2307
  %v2694 = vunpack.c.l.b16 %v2308
  %v2695 = vunpack.c.h.b16 %v2308
  %v2696 = vunpack.c.l.b16 %v2309
  %v2697 = vunpack.c.l.b16 %v2310
  %v2698 = vunpack.c.h.b16 %v2310
  %v2699 = vunpack.c.l.b16 %v2311
  %v2700 = vunpack.c.l.b16 %v2312
  %v2701 = vunpack.c.h.b16 %v2312
  %v2702 = vunpack.c.l.b16 %v2313
  %v2703 = vunpack.c.l.b16 %v2314
  %v2704 = vunpack.c.h.b16 %v2314
  %v2705 = vunpack.c.l.b16 %v2315
  %v2706 = vunpack.c.l.b16 %v2316
  %v2707 = vunpack.c.h.b16 %v2316
  %v2708 = vunpack.c.l.b16 %v2317
  %v2709 = vunpack.c.l.b16 %v2318
  %v2710 = vunpack.c.h.b16 %v2318
  %v2711 = vunpack.c.l.b16 %v2319
  %v2712 = vunpack.c.l.b16 %v2320
  %v2713 = vunpack.c.h.b16 %v2320
  %v2714 = vunpack.c.l.b16 %v2321
  %v2715 = vunpack.c.l.b16 %v2322
  %v2716 = vunpack.c.h.b16 %v2322
  %v2717 = vunpack.c.l.b16 %v2323
  %v2718 = vunpack.c.l.b16 %v2324
  %v2719 = vunpack.c.h.b16 %v2324
  %v2720 = vunpack.c.l.b16 %v2325
  %v2721 = vunpack.c.l.b16 %v2326
  %v2722 = vunpack.c.h.b16 %v2326
  %v2723 = vunpack.c.l.b16 %v2327
  %v2724 = vunpack.c.l.b16 %v2328
  %v2725 = vunpack.c.h.b16 %v2328
  %v2726 = vunpack.c.l.b16 %v2329
  %v2727 = vunpack.c.l.b16 %v2330
  %v2728 = vunpack.c.h.b16 %v2330
  %v2729 = vunpack.c.l.b16 %v2331
  %v2730 = vunpack.c.l.b16 %v2332
  %v2731 = vunpack.c.h.b16 %v2332
  %v2732 = vunpack.c.l.b16 %v2333
  %v2733 = vunpack.c.l.b16 %v2334
  %v2734 = vunpack.c.h.b16 %v2334
  %v2735 = vunpack.c.l.b16 %v2335
  %v2736 = vunpack.c.l.b16 %v2336
  %v2737 = vunpack.c.h.b16 %v2336
  %v2738 = vunpack.c.l.b16 %v2337
  %v2739 = vunpack.c.l.b16 %v2338
  %v2740 = vunpack.c.h.b16 %v2338
  %v2741 = vunpack.c.l.b16 %v2339
  %v2742 = vunpack.c.l.b16 %v2340
  %v2743 = vunpack.c.h.b16 %v2340
  %v2744 = vunpack.c.l.b16 %v2341
  %v2745 = vunpack.c.l.b16 %v2342
  %v2746 = vunpack.c.h.b16 %v2342
  %v2747 = vunpack.c.l.b16 %v2343
  %v2748 = vunpack.c.l.b16 %v2344
  %v2749 = vunpack.c.h.b16 %v2344
  %v2750 = vunpack.c.l.b16 %v2345
  %v2751 = vunpack.c.l.b16 %v2346
  %v2752 = vunpack.c.h.b16 %v2346
  %v2753 = vunpack.c.l.b16 %v2347
  %v2754 = vunpack.c.l.b16 %v2348
  %v2755 = vunpack.c.h.b16 %v2348
  %v2756 = vunpack.c.l.b16 %v2349
  %v2757 = vunpack.c.l.b16 %v2350
  %v2758 = vunpack.c.h.b16 %v2350
  %v2759 = vunpack.c.l.b16 %v2351
  %v2760 = vunpack.c.l.b16 %v2352
  %v2761 = vunpack.c.h.b16 %v2352
  %v2762 = vunpack.c.l.b16 %v2353
  %v2763 = vunpack.c.l.b16 %v2354
  %v2764 = vunpack.c.h.b16 %v2354
  %v2765 = vunpack.c.l.b16 %v2355
  %v2766 = vunpack.c.l.b16 %v2356
  %v2767 = vunpack.c.h.b16 %v2356
  %v2768 = vunpack.c.l.b16 %v2357
  %v2769 = vunpack.c.l.b16 %v2358
  %v2770 = vunpack.c.h.b16 %v2358
  %v2771 = vunpack.c.l.b16 %v2359
  %v2772 = vunpack.c.l.b16 %v2360
  %v2773 = vunpack.c.h.b16 %v2360
  %v2774 = vunpack.c.l.b16 %v2361
  %v2775 = vunpack.c.l.b16 %v2362
  %v2776 = vunpack.c.h.b16 %v2362
  %v2777 = vunpack.c.l.b16 %v2363
  %v2778 = vunpack.c.l.b16 %v2364
  %v2779 = vunpack.c.h.b16 %v2364
  %v2780 = vunpack.c.l.b16 %v2365
  %v2781 = vunpack.c.l.b16 %v2366
  %v2782 = vunpack.c.h.b16 %v2366
  %v2783 = vunpack.c.l.b16 %v2367
  %v2784 = vunpack.c.l.b16 %v2368
  %v2785 = vunpack.c.h.b16 %v2368
  %v2786 = vunpack.c.l.b16 %v2369
  %v2787 = vunpack.c.l.b16 %v2370
  %v2788 = vunpack.c.h.b16 %v2370
  %v2789 = vunpack.c.l.b16 %v2371
  %v2790 = vunpack.c.l.b16 %v2372
  %v2791 = vunpack.c.h.b16 %v2372
  %v2792 = vunpack.c.l.b16 %v2373
  %v2793 = vunpack.c.l.b16 %v2374
  %v2794 = vunpack.c.h.b16 %v2374
  %v2795 = vunpack.c.l.b16 %v2375
  %v2796 = vunpack.c.l.b16 %v2376
  %v2797 = vunpack.c.h.b16 %v2376
  %v2798 = vunpack.c.l.b16 %v2377
  %v2799 = vunpack.c.l.b16 %v2378
  %v2800 = vunpack.c.h.b16 %v2378
  %v2801 = vunpack.c.l.b16 %v2379
  %v2802 = vunpack.c.l.b16 %v2380
  %v2803 = vunpack.c.h.b16 %v2380
  %v2804 = vunpack.c.l.b16 %v2381
  %v2805 = vunpack.c.l.b16 %v2382
  %v2806 = vunpack.c.h.b16 %v2382
  %v2807 = vunpack.c.l.b16 %v2383
  %v2808 = vunpack.c.l.b16 %v2384
  %v2809 = vunpack.c.h.b16 %v2384
  %v2810 = vunpack.c.l.b16 %v2385
  %v2811 = vunpack.c.l.b16 %v2386
  %v2812 = vunpack.c.h.b16 %v2386
  %v2813 = vunpack.c.l.b16 %v2387
  %v2814 = vunpack.c.l.b16 %v2388
  %v2815 = vunpack.c.h.b16 %v2388
  %v2816 = vunpack.c.l.b16 %v2389
  %v2817 = vunpack.c.l.b16 %v2390
  %v2818 = vunpack.c.h.b16 %v2390
  %v2819 = vunpack.c.l.b16 %v2391
  %v2820 = vunpack.c.l.b16 %v2392
  %v2821 = vunpack.c.h.b16 %v2392
  %v2822 = vunpack.c.l.b16 %v2393
  %v2823 = vunpack.c.l.b16 %v2394
  %v2824 = vunpack.c.h.b16 %v2394
  %v2825 = vunpack.c.l.b16 %v2395
  %v2826 = vunpack.c.l.b16 %v2396
  %v2827 = vunpack.c.h.b16 %v2396
  %v2828 = vunpack.c.l.b16 %v2397
  %v2829 = vunpack.c.l.b16 %v2398
  %v2830 = vunpack.c.h.b16 %v2398
  %v2831 = vunpack.c.l.b16 %v2399
  %v2832 = vunpack.c.l.b16 %v2400
  %v2833 = vunpack.c.h.b16 %v2400
  %v2834 = vunpack.c.l.b16 %v2401
  %v2835 = vunpack.c.l.b16 %v2402
  %v2836 = vunpack.c.h.b16 %v2402
  %v2837 = vunpack.c.l.b16 %v2403
  %v2838 = vunpack.c.l.b16 %v2404
  %v2839 = vunpack.c.h.b16 %v2404
  %v2840 = vunpack.c.l.b16 %v2405
  %v2841 = vunpack.c.l.b16 %v2406
  %v2842 = vunpack.c.h.b16 %v2406
  %v2843 = vunpack.c.l.b16 %v2407
  %v2844 = vunpack.c.l.b16 %v2408
  %v2845 = vunpack.c.h.b16 %v2408
  %v2846 = vunpack.c.l.b16 %v2409
  %v2847 = vunpack.c.l.b16 %v2410
  %v2848 = vunpack.c.h.b16 %v2410
  %v2849 = vunpack.c.l.b16 %v2411
  %v2850 = vunpack.c.l.b16 %v2412
  %v2851 = vunpack.c.h.b16 %v2412
  %v2852 = vunpack.c.l.b16 %v2413
  %v2853 = vunpack.c.l.b16 %v2414
  %v2854 = vunpack.c.h.b16 %v2414
  %v2855 = vunpack.c.l.b16 %v2415
  %v2856 = vunpack.c.l.b16 %v2416
  %v2857 = vunpack.c.h.b16 %v2416
  %v2858 = vunpack.c.l.b16 %v2417
  %v2859 = vunpack.c.l.b16 %v2418
  %v2860 = vunpack.c.h.b16 %v2418
  %v2861 = vunpack.c.l.b16 %v2419
  %v2862 = vunpack.c.l.b16 %v2420
  %v2863 = vunpack.c.h.b16 %v2420
  %v2864 = vunpack.c.l.b16 %v2421
  %v2865 = vunpack.c.l.b16 %v2422
  %v2866 = vunpack.c.h.b16 %v2422
  %v2867 = vunpack.c.l.b16 %v2423
  %v2868 = vunpack.c.l.b16 %v2424
  %v2869 = vunpack.c.h.b16 %v2424
  %v2870 = vunpack.c.l.b16 %v2425
  %v2871 = vunpack.c.l.b16 %v2426
  %v2872 = vunpack.c.h.b16 %v2426
  %v2873 = vunpack.c.l.b16 %v2427
  %v2874 = vunpack.c.l.b16 %v2428
  %v2875 = vunpack.c.h.b16 %v2428
  %v2876 = vunpack.c.l.b16 %v2429
  %v2877 = vunpack.c.l.b16 %v2430
  %v2878 = vunpack.c.h.b16 %v2430
  %v2879 = vunpack.c.l.b16 %v2431
  %v2880 = vunpack.c.l.b16 %v2432
  %v2881 = vunpack.c.h.b16 %v2432
  %v2882 = vunpack.c.l.b16 %v2433
  %v2883 = vunpack.c.l.b16 %v2434
  %v2884 = vunpack.c.h.b16 %v2434
  %v2885 = vunpack.c.l.b16 %v2435
  %v2886 = vunpack.c.l.b16 %v2436
  %v2887 = vunpack.c.h.b16 %v2436
  %v2888 = vunpack.c.l.b16 %v2437
  %v2889 = vunpack.c.l.b16 %v2438
  %v2890 = vunpack.c.h.b16 %v2438
  %v2891 = vunpack.c.l.b16 %v2439
  %v2892 = vunpack.c.l.b16 %v2440
  %v2893 = vunpack.c.h.b16 %v2440
  %v2894 = vunpack.c.l.b16 %v2441
  %v2895 = vunpack.c.l.b16 %v2442
  %v2896 = vunpack.c.h.b16 %v2442
  %v2897 = vunpack.c.l.b16 %v2443
  %v2898 = vunpack.c.l.b16 %v2444
  %v2899 = vunpack.c.h.b16 %v2444
  %v2900 = vunpack.c.l.b16 %v2445
  %v2901 = vunpack.c.l.b16 %v2446
  %v2902 = vunpack.c.h.b16 %v2446
  %v2903 = vunpack.c.l.b16 %v2447
  %v2904 = vunpack.c.l.b16 %v2448
  %v2905 = vunpack.c.h.b16 %v2448
  %v2906 = vunpack.c.l.b16 %v2449
  %v2907 = vunpack.c.l.b16 %v2450
  %v2908 = vunpack.c.h.b16 %v2450
  %v2909 = vunpack.c.l.b16 %v2451
  %v2910 = vunpack.c.l.b16 %v2452
  %v2911 = vunpack.c.h.b16 %v2452
  %v2912 = vunpack.c.l.b16 %v2453
  %v2913 = vunpack.c.l.b16 %v2454
  %v2914 = vunpack.c.h.b16 %v2454
  %v2915 = vunpack.c.l.b16 %v2455
  %v2916 = vunpack.c.l.b16 %v2456
  %v2917 = vunpack.c.h.b16 %v2456
  %v2918 = vunpack.c.l.b16 %v2457
  %v2919 = vunpack.c.l.b16 %v2458
  %v2920 = vunpack.c.h.b16 %v2458
  %v2921 = vunpack.c.l.b16 %v2459
  %v2922 = vunpack.c.l.b16 %v2460
  %v2923 = vunpack.c.h.b16 %v2460
  %v2924 = vunpack.c.l.b16 %v2461
  %v2925 = vunpack.c.l.b16 %v2462
  %v2926 = vunpack.c.h.b16 %v2462
  %v2927 = vunpack.c.l.b16 %v2463
  %v2928 = vunpack.c.l.b16 %v2464
  %v2929 = vunpack.c.h.b16 %v2464
  %v2930 = vunpack.c.l.b16 %v2465
  %v2931 = vunpack.c.l.b16 %v2466
  %v2932 = vunpack.c.h.b16 %v2466
  %v2933 = vunpack.c.l.b16 %v2467
  %v2934 = vunpack.c.l.b16 %v2468
  %v2935 = vunpack.c.h.b16 %v2468
  %v2936 = vunpack.c.l.b16 %v2469
  %v2937 = vunpack.c.l.b16 %v2470
  %v2938 = vunpack.c.h.b16 %v2470
  %v2939 = vunpack.c.l.b16 %v2471
  %v2940 = vunpack.c.l.b16 %v2472
  %v2941 = vunpack.c.h.b16 %v2472
  %v2942 = vunpack.c.l.b16 %v2473
  %v2943 = vunpack.c.l.b16 %v2474
  %v2944 = vunpack.c.h.b16 %v2474
  %v2945 = vunpack.c.l.b16 %v2475
  %v2946 = vunpack.c.l.b16 %v2476
  %v2947 = vunpack.c.h.b16 %v2476
  %v2948 = vunpack.c.l.b16 %v2477
  %v2949 = vunpack.c.l.b16 %v2478
  %v2950 = vunpack.c.h.b16 %v2478
  %v2951 = vunpack.c.l.b16 %v2479
  %v2952 = vunpack.c.l.b16 %v2480
  %v2953 = vunpack.c.h.b16 %v2480
  %v2954 = vunpack.c.l.b16 %v2481
  %v2955 = vunpack.c.l.b16 %v2482
  %v2956 = vunpack.c.h.b16 %v2482
  %v2957 = vunpack.c.l.b16 %v2483
  %v2958 = vunpack.c.l.b16 %v2484
  %v2959 = vunpack.c.h.b16 %v2484
  %v2960 = vunpack.c.l.b16 %v2485
  %v2961 = vunpack.c.l.b16 %v2486
  %v2962 = vunpack.c.h.b16 %v2486
  %v2963 = vunpack.c.l.b16 %v2487
  %v2964 = vunpack.c.l.b16 %v2488
  %v2965 = vunpack.c.h.b16 %v2488
  %v2966 = vunpack.c.l.b16 %v2489
  %v2967 = vunpack.c.l.b16 %v2490
  %v2968 = vunpack.c.h.b16 %v2490
  %v2969 = vunpack.c.l.b16 %v2491
  %v2970 = vunpack.c.l.b16 %v2492
  %v2971 = vunpack.c.h.b16 %v2492
  %v2972 = vunpack.c.l.b16 %v2493
  %v2973 = vunpack.c.l.b16 %v2494
  %v2974 = vunpack.c.h.b16 %v2494
  %v2975 = vunpack.c.l.b16 %v2495
  %v2976 = vpack.c.b16 %v2691, %v2688
  %v2977 = vpack.c.b16 %v2692, %v2689
  %v2978 = vpack.c.b16 %v2693, %v2690
  %v2979 = vpack.c.b16 %v2697, %v2694
  %v2980 = vpack.c.b16 %v2698, %v2695
  %v2981 = vpack.c.b16 %v2699, %v2696
  %v2982 = vpack.c.b16 %v2703, %v2700
  %v2983 = vpack.c.b16 %v2704, %v2701
  %v2984 = vpack.c.b16 %v2705, %v2702
  %v2985 = vpack.c.b16 %v2709, %v2706
  %v2986 = vpack.c.b16 %v2710, %v2707
  %v2987 = vpack.c.b16 %v2711, %v2708
  %v2988 = vpack.c.b16 %v2715, %v2712
  %v2989 = vpack.c.b16 %v2716, %v2713
  %v2990 = vpack.c.b16 %v2717, %v2714
  %v2991 = vpack.c.b16 %v2721, %v2718
  %v2992 = vpack.c.b16 %v2722, %v2719
  %v2993 = vpack.c.b16 %v2723, %v2720
  %v2994 = vpack.c.b16 %v2727, %v2724
  %v2995 = vpack.c.b16 %v2728, %v2725
  %v2996 = vpack.c.b16 %v2729, %v2726
  %v2997 = vpack.c.b16 %v2733, %v2730
  %v2998 = vpack.c.b16 %v2734, %v2731
  %v2999 = vpack.c.b16 %v2735, %v2732
  %v3000 = vpack.c.b16 %v2739, %v2736
  %v3001 = vpack.c.b16 %v2740, %v2737
  %v3002 = vpack.c.b16 %v2741, %v2738
  %v3003 = vpack.c.b16 %v2745, %v2742
  %v3004 = vpack.c.b16 %v2746, %v2743
  %v3005 = vpack.c.b16 %v2747, %v2744
  %v3006 = vpack.c.b16 %v2751, %v2748
  %v3007 = vpack.c.b16 %v2752, %v2749
  %v3008 = vpack.c.b16 %v2753, %v2750
  %v3009 = vpack.c.b16 %v2757, %v2754
  %v3010 = vpack.c.b16 %v2758, %v2755
  %v3011 = vpack.c.b16 %v2759, %v2756
  %v3012 = vpack.c.b16 %v2763, %v2760
  %v3013 = vpack.c.b16 %v2764, %v2761
  %v3014 = vpack.c.b16 %v2765, %v2762
  %v3015 = vpack.c.b16 %v2769, %v2766
  %v3016 = vpack.c.b16 %v2770, %v2767
  %v3017 = vpack.c.b16 %v2771, %v2768
  %v3018 = vpack.c.b16 %v2775, %v2772
  %v3019 = vpack.c.b16 %v2776, %v2773
  %v3020 = vpack.c.b16 %v2777, %v2774
  %v3021 = vpack.c.b16 %v2781, %v2778
  %v3022 = vpack.c.b16 %v2782, %v2779
  %v3023 = vpack.c.b16 %v2783, %v2780
  %v3024 = vpack.c.b16 %v2787, %v2784
  %v3025 = vpack.c.b16 %v2788, %v2785
  %v3026 = vpack.c.b16 %v2789, %v2786
  %v3027 = vpack.c.b16 %v2793, %v2790
  %v3028 = vpack.c.b16 %v2794, %v2791
  %v3029 = vpack.c.b16 %v2795, %v2792
  %v3030 = vpack.c.b16 %v2799, %v2796
  %v3031 = vpack.c.b16 %v2800, %v2797
  %v3032 = vpack.c.b16 %v2801, %v2798
  %v3033 = vpack.c.b16 %v2805, %v2802
  %v3034 = vpack.c.b16 %v2806, %v2803
  %v3035 = vpack.c.b16 %v2807, %v2804
  %v3036 = vpack.c.b16 %v2811, %v2808
  %v3037 = vpack.c.b16 %v2812, %v2809
  %v3038 = vpack.c.b16 %v2813, %v2810
  %v3039 = vpack.c.b16 %v2817, %v2814
  %v3040 = vpack.c.b16 %v2818, %v2815
  %v3041 = vpack.c.b16 %v2819, %v2816
  %v3042 = vpack.c.b16 %v2823, %v2820
  %v3043 = vpack.c.b16 %v2824, %v2821
  %v3044 = vpack.c.b16 %v2825, %v2822
  %v3045 = vpack.c.b16 %v2829, %v2826
  %v3046 = vpack.c.b16 %v2830, %v2827
  %v3047 = vpack.c.b16 %v2831, %v2828
  %v3048 = vpack.c.b16 %v2835, %v2832
  %v3049 = vpack.c.b16 %v2836, %v2833
  %v3050 = vpack.c.b16 %v2837, %v2834
  %v3051 = vpack.c.b16 %v2841, %v2838
  %v3052 = vpack.c.b16 %v2842, %v2839
  %v3053 = vpack.c.b16 %v2843, %v2840
  %v3054 = vpack.c.b16 %v2847, %v2844
  %v3055 = vpack.c.b16 %v2848, %v2845
  %v3056 = vpack.c.b16 %v2849, %v2846
  %v3057 = vpack.c.b16 %v2853, %v2850
  %v3058 = vpack.c.b16 %v2854, %v2851
  %v3059 = vpack.c.b16 %v2855, %v2852
  %v3060 = vpack.c.b16 %v2859, %v2856
  %v3061 = vpack.c.b16 %v2860, %v2857
  %v3062 = vpack.c.b16 %v2861, %v2858
  %v3063 = vpack.c.b16 %v2865, %v2862
  %v3064 = vpack.c.b16 %v2866, %v2863
  %v3065 = vpack.c.b16 %v2867, %v2864
  %v3066 = vpack.c.b16 %v2871, %v2868
  %v3067 = vpack.c.b16 %v2872, %v2869
  %v3068 = vpack.c.b16 %v2873, %v2870
  %v3069 = vpack.c.b16 %v2877, %v2874
  %v3070 = vpack.c.b16 %v2878, %v2875
  %v3071 = vpack.c.b16 %v2879, %v2876
  %v3072 = vpack.c.b16 %v2883, %v2880
  %v3073 = vpack.c.b16 %v2884, %v2881
  %v3074 = vpack.c.b16 %v2885, %v2882
  %v3075 = vpack.c.b16 %v2889, %v2886
  %v3076 = vpack.c.b16 %v2890, %v2887
  %v3077 = vpack.c.b16 %v2891, %v2888
  %v3078 = vpack.c.b16 %v2895, %v2892
  %v3079 = vpack.c.b16 %v2896, %v2893
  %v3080 = vpack.c.b16 %v2897, %v2894
  %v3081 = vpack.c.b16 %v2901, %v2898
  %v3082 = vpack.c.b16 %v2902, %v2899
  %v3083 = vpack.c.b16 %v2903, %v2900
  %v3084 = vpack.c.b16 %v2907, %v2904
  %v3085 = vpack.c.b16 %v2908, %v2905
  %v3086 = vpack.c.b16 %v2909, %v2906
  %v3087 = vpack.c.b16 %v2913, %v2910
  %v3088 = vpack.c.b16 %v2914, %v2911
  %v3089 = vpack.c.b16 %v2915, %v2912
  %v3090 = vpack.c.b16 %v2919, %v2916
  %v3091 = vpack.c.b16 %v2920, %v2917
  %v3092 = vpack.c.b16 %v2921, %v2918
  %v3093 = vpack.c.b16 %v2925, %v2922
  %v3094 = vpack.c.b16 %v2926, %v2923
  %v3095 = vpack.c.b16 %v2927, %v2924
  %v3096 = vpack.c.b16 %v2931, %v2928
  %v3097 = vpack.c.b16 %v2932, %v2929
  %v3098 = vpack.c.b16 %v2933, %v2930
  %v3099 = vpack.c.b16 %v2937, %v2934
  %v3100 = vpack.c.b16 %v2938, %v2935
  %v3101 = vpack.c.b16 %v2939, %v2936
  %v3102 = vpack.c.b16 %v2943, %v2940
  %v3103 = vpack.c.b16 %v2944, %v2941
  %v3104 = vpack.c.b16 %v2945, %v2942
  %v3105 = vpack.c.b16 %v2949, %v2946
  %v3106 = vpack.c.b16 %v2950, %v2947
  %v3107 = vpack.c.b16 %v2951, %v2948
  %v3108 = vpack.c.b16 %v2955, %v2952
  %v3109 = vpack.c.b16 %v2956, %v2953
  %v3110 = vpack.c.b16 %v2957, %v2954
  %v3111 = vpack.c.b16 %v2961, %v2958
  %v3112 = vpack.c.b16 %v2962, %v2959
  %v3113 = vpack.c.b16 %v2963, %v2960
  %v3114 = vpack.c.b16 %v2967, %v2964
  %v3115 = vpack.c.b16 %v2968, %v2965
  %v3116 = vpack.c.b16 %v2969, %v2966
  %v3117 = vpack.c.b16 %v2973, %v2970
  %v3118 = vpack.c.b16 %v2974, %v2971
  %v3119 = vpack.c.b16 %v2975, %v2972
  %3264 = vmatpush.bf16.msra.mxu0 %v2997
  %3265 = vmatpush.bf16.msra.mxu0 %v2994
  %3266 = vmatpush.bf16.msra.mxu0 %v2991
  %3267 = vmatpush.bf16.msra.mxu0 %v2988
  %3268 = vmatpush.bf16.msra.mxu0 %v2985
  %3269 = vmatpush.bf16.msra.mxu0 %v2982
  %3270 = vmatpush.bf16.msra.mxu0 %v2979
  %3271 = vmatpush.bf16.msra.mxu0 %v2976
  %3272 = vmatmul.bf16.gmra.mxu0 %v2298
  %v3273 = vpop.f32.mrf.mxu0
  %v3274 = vadd.f32 0.0, %v3273
  %v3275 = vpop.f32.mrf.mxu0
  %3276 = vdwg.mxu0
  %3277 = vmatpush.bf16.msra.mxu0 %v3021
  %3278 = vmatpush.bf16.msra.mxu0 %v3018
  %3279 = vmatpush.bf16.msra.mxu0 %v3015
  %3280 = vmatpush.bf16.msra.mxu0 %v3012
  %3281 = vmatpush.bf16.msra.mxu0 %v3009
  %3282 = vmatpush.bf16.msra.mxu0 %v3006
  %3283 = vmatpush.bf16.msra.mxu0 %v3003
  %3284 = vmatpush.bf16.msra.mxu0 %v3000
  %3285 = vmatmul.bf16.gmra.mxu0 %v2299
  %v3286 = vpop.f32.mrf.mxu0
  %v3287 = vadd.f32 %v3274, %v3286
  %v3288 = vpop.f32.mrf.mxu0
  %3289 = vdwg.mxu0
  %3290 = vmatpush.bf16.msra.mxu0 %v3045
  %3291 = vmatpush.bf16.msra.mxu0 %v3042
  %3292 = vmatpush.bf16.msra.mxu0 %v3039
  %3293 = vmatpush.bf16.msra.mxu0 %v3036
  %3294 = vmatpush.bf16.msra.mxu0 %v3033
  %3295 = vmatpush.bf16.msra.mxu0 %v3030
  %3296 = vmatpush.bf16.msra.mxu0 %v3027
  %3297 = vmatpush.bf16.msra.mxu0 %v3024
  %3298 = vmatmul.bf16.gmra.mxu0 %v2300
  %v3299 = vpop.f32.mrf.mxu0
  %v3300 = vadd.f32 %v3287, %v3299
  %v3301 = vpop.f32.mrf.mxu0
  %3302 = vdwg.mxu0
  %3303 = vmatpush.bf16.msra.mxu0 %v3069
  %3304 = vmatpush.bf16.msra.mxu0 %v3066
  %3305 = vmatpush.bf16.msra.mxu0 %v3063
  %3306 = vmatpush.bf16.msra.mxu0 %v3060
  %3307 = vmatpush.bf16.msra.mxu0 %v3057
  %3308 = vmatpush.bf16.msra.mxu0 %v3054
  %3309 = vmatpush.bf16.msra.mxu0 %v3051
  %3310 = vmatpush.bf16.msra.mxu0 %v3048
  %3311 = vmatmul.bf16.gmra.mxu0 %v2301
  %v3312 = vpop.f32.mrf.mxu0
  %v3313 = vadd.f32 %v3300, %v3312
  %v3314 = vpop.f32.mrf.mxu0
  %3315 = vdwg.mxu0
  %3316 = vmatpush.bf16.msra.mxu0 %v3093
  %3317 = vmatpush.bf16.msra.mxu0 %v3090
  %3318 = vmatpush.bf16.msra.mxu0 %v3087
  %3319 = vmatpush.bf16.msra.mxu0 %v3084
  %3320 = vmatpush.bf16.msra.mxu0 %v3081
  %3321 = vmatpush.bf16.msra.mxu0 %v3078
  %3322 = vmatpush.bf16.msra.mxu0 %v3075
  %3323 = vmatpush.bf16.msra.mxu0 %v3072
  %3324 = vmatmul.bf16.gmra.mxu0 %v2302
  %v3325 = vpop.f32.mrf.mxu0
  %v3326 = vadd.f32 %v3313, %v3325
  %v3327 = vpop.f32.mrf.mxu0
  %3328 = vdwg.mxu0
  %3329 = vmatpush.bf16.msra.mxu0 %v3117
  %3330 = vmatpush.bf16.msra.mxu0 %v3114
  %3331 = vmatpush.bf16.msra.mxu0 %v3111
  %3332 = vmatpush.bf16.msra.mxu0 %v3108
  %3333 = vmatpush.bf16.msra.mxu0 %v3105
  %3334 = vmatpush.bf16.msra.mxu0 %v3102
  %3335 = vmatpush.bf16.msra.mxu0 %v3099
  %3336 = vmatpush.bf16.msra.mxu0 %v3096
  %3337 = vmatmul.bf16.gmra.mxu0 %v2303
  %v3338 = vpop.f32.mrf.mxu0
  %v3339 = vadd.f32 %v3326, %v3338
  %v3340 = vpop.f32.mrf.mxu0
  %3341 = vdwg.mxu0
  %3342 = vmatpush.bf16.msra.mxu0 %v2998
  %3343 = vmatpush.bf16.msra.mxu0 %v2995
  %3344 = vmatpush.bf16.msra.mxu0 %v2992
  %3345 = vmatpush.bf16.msra.mxu0 %v2989
  %3346 = vmatpush.bf16.msra.mxu0 %v2986
  %3347 = vmatpush.bf16.msra.mxu0 %v2983
  %3348 = vmatpush.bf16.msra.mxu0 %v2980
  %3349 = vmatpush.bf16.msra.mxu0 %v2977
  %3350 = vmatmul.bf16.gmra.mxu0 %v2298
  %v3351 = vpop.f32.mrf.mxu0
  %v3352 = vadd.f32 0.0, %v3351
  %v3353 = vpop.f32.mrf.mxu0
  %3354 = vdwg.mxu0
  %3355 = vmatpush.bf16.msra.mxu0 %v3022
  %3356 = vmatpush.bf16.msra.mxu0 %v3019
  %3357 = vmatpush.bf16.msra.mxu0 %v3016
  %3358 = vmatpush.bf16.msra.mxu0 %v3013
  %3359 = vmatpush.bf16.msra.mxu0 %v3010
  %3360 = vmatpush.bf16.msra.mxu0 %v3007
  %3361 = vmatpush.bf16.msra.mxu0 %v3004
  %3362 = vmatpush.bf16.msra.mxu0 %v3001
  %3363 = vmatmul.bf16.gmra.mxu0 %v2299
  %v3364 = vpop.f32.mrf.mxu0
  %v3365 = vadd.f32 %v3352, %v3364
  %v3366 = vpop.f32.mrf.mxu0
  %3367 = vdwg.mxu0
  %3368 = vmatpush.bf16.msra.mxu0 %v3046
  %3369 = vmatpush.bf16.msra.mxu0 %v3043
  %3370 = vmatpush.bf16.msra.mxu0 %v3040
  %3371 = vmatpush.bf16.msra.mxu0 %v3037
  %3372 = vmatpush.bf16.msra.mxu0 %v3034
  %3373 = vmatpush.bf16.msra.mxu0 %v3031
  %3374 = vmatpush.bf16.msra.mxu0 %v3028
  %3375 = vmatpush.bf16.msra.mxu0 %v3025
  %3376 = vmatmul.bf16.gmra.mxu0 %v2300
  %v3377 = vpop.f32.mrf.mxu0
  %v3378 = vadd.f32 %v3365, %v3377
  %v3379 = vpop.f32.mrf.mxu0
  %3380 = vdwg.mxu0
  %3381 = vmatpush.bf16.msra.mxu0 %v3070
  %3382 = vmatpush.bf16.msra.mxu0 %v3067
  %3383 = vmatpush.bf16.msra.mxu0 %v3064
  %3384 = vmatpush.bf16.msra.mxu0 %v3061
  %3385 = vmatpush.bf16.msra.mxu0 %v3058
  %3386 = vmatpush.bf16.msra.mxu0 %v3055
  %3387 = vmatpush.bf16.msra.mxu0 %v3052
  %3388 = vmatpush.bf16.msra.mxu0 %v3049
  %3389 = vmatmul.bf16.gmra.mxu0 %v2301
  %v3390 = vpop.f32.mrf.mxu0
  %v3391 = vadd.f32 %v3378, %v3390
  %v3392 = vpop.f32.mrf.mxu0
  %3393 = vdwg.mxu0
  %3394 = vmatpush.bf16.msra.mxu0 %v3094
  %3395 = vmatpush.bf16.msra.mxu0 %v3091
  %3396 = vmatpush.bf16.msra.mxu0 %v3088
  %3397 = vmatpush.bf16.msra.mxu0 %v3085
  %3398 = vmatpush.bf16.msra.mxu0 %v3082
  %3399 = vmatpush.bf16.msra.mxu0 %v3079
  %3400 = vmatpush.bf16.msra.mxu0 %v3076
  %3401 = vmatpush.bf16.msra.mxu0 %v3073
  %3402 = vmatmul.bf16.gmra.mxu0 %v2302
  %v3403 = vpop.f32.mrf.mxu0
  %v3404 = vadd.f32 %v3391, %v3403
  %v3405 = vpop.f32.mrf.mxu0
  %3406 = vdwg.mxu0
  %3407 = vmatpush.bf16.msra.mxu0 %v3118
  %3408 = vmatpush.bf16.msra.mxu0 %v3115
  %3409 = vmatpush.bf16.msra.mxu0 %v3112
  %3410 = vmatpush.bf16.msra.mxu0 %v3109
  %3411 = vmatpush.bf16.msra.mxu0 %v3106
  %3412 = vmatpush.bf16.msra.mxu0 %v3103
  %3413 = vmatpush.bf16.msra.mxu0 %v3100
  %3414 = vmatpush.bf16.msra.mxu0 %v3097
  %3415 = vmatmul.bf16.gmra.mxu0 %v2303
  %v3416 = vpop.f32.mrf.mxu0
  %v3417 = vadd.f32 %v3404, %v3416
  %v3418 = vpop.f32.mrf.mxu0
  %3419 = vdwg.mxu0
  %3420 = vmatpush.bf16.msra.mxu0 %v2999
  %3421 = vmatpush.bf16.msra.mxu0 %v2996
  %3422 = vmatpush.bf16.msra.mxu0 %v2993
  %3423 = vmatpush.bf16.msra.mxu0 %v2990
  %3424 = vmatpush.bf16.msra.mxu0 %v2987
  %3425 = vmatpush.bf16.msra.mxu0 %v2984
  %3426 = vmatpush.bf16.msra.mxu0 %v2981
  %3427 = vmatpush.bf16.msra.mxu0 %v2978
  %3428 = vmatmul.bf16.gmra.mxu0 %v2298
  %v3429 = vpop.f32.mrf.mxu0
  %v3430 = vadd.f32 0.0, %v3429
  %v3431 = vpop.f32.mrf.mxu0
  %3432 = vdwg.mxu0
  %3433 = vmatpush.bf16.msra.mxu0 %v3023
  %3434 = vmatpush.bf16.msra.mxu0 %v3020
  %3435 = vmatpush.bf16.msra.mxu0 %v3017
  %3436 = vmatpush.bf16.msra.mxu0 %v3014
  %3437 = vmatpush.bf16.msra.mxu0 %v3011
  %3438 = vmatpush.bf16.msra.mxu0 %v3008
  %3439 = vmatpush.bf16.msra.mxu0 %v3005
  %3440 = vmatpush.bf16.msra.mxu0 %v3002
  %3441 = vmatmul.bf16.gmra.mxu0 %v2299
  %v3442 = vpop.f32.mrf.mxu0
  %v3443 = vadd.f32 %v3430, %v3442
  %v3444 = vpop.f32.mrf.mxu0
  %3445 = vdwg.mxu0
  %3446 = vmatpush.bf16.msra.mxu0 %v3047
  %3447 = vmatpush.bf16.msra.mxu0 %v3044
  %3448 = vmatpush.bf16.msra.mxu0 %v3041
  %3449 = vmatpush.bf16.msra.mxu0 %v3038
  %3450 = vmatpush.bf16.msra.mxu0 %v3035
  %3451 = vmatpush.bf16.msra.mxu0 %v3032
  %3452 = vmatpush.bf16.msra.mxu0 %v3029
  %3453 = vmatpush.bf16.msra.mxu0 %v3026
  %3454 = vmatmul.bf16.gmra.mxu0 %v2300
  %v3455 = vpop.f32.mrf.mxu0
  %v3456 = vadd.f32 %v3443, %v3455
  %v3457 = vpop.f32.mrf.mxu0
  %3458 = vdwg.mxu0
  %3459 = vmatpush.bf16.msra.mxu0 %v3071
  %3460 = vmatpush.bf16.msra.mxu0 %v3068
  %3461 = vmatpush.bf16.msra.mxu0 %v3065
  %3462 = vmatpush.bf16.msra.mxu0 %v3062
  %3463 = vmatpush.bf16.msra.mxu0 %v3059
  %3464 = vmatpush.bf16.msra.mxu0 %v3056
  %3465 = vmatpush.bf16.msra.mxu0 %v3053
  %3466 = vmatpush.bf16.msra.mxu0 %v3050
  %3467 = vmatmul.bf16.gmra.mxu0 %v2301
  %v3468 = vpop.f32.mrf.mxu0
  %v3469 = vadd.f32 %v3456, %v3468
  %v3470 = vpop.f32.mrf.mxu0
  %3471 = vdwg.mxu0
  %3472 = vmatpush.bf16.msra.mxu0 %v3095
  %3473 = vmatpush.bf16.msra.mxu0 %v3092
  %3474 = vmatpush.bf16.msra.mxu0 %v3089
  %3475 = vmatpush.bf16.msra.mxu0 %v3086
  %3476 = vmatpush.bf16.msra.mxu0 %v3083
  %3477 = vmatpush.bf16.msra.mxu0 %v3080
  %3478 = vmatpush.bf16.msra.mxu0 %v3077
  %3479 = vmatpush.bf16.msra.mxu0 %v3074
  %3480 = vmatmul.bf16.gmra.mxu0 %v2302
  %v3481 = vpop.f32.mrf.mxu0
  %v3482 = vadd.f32 %v3469, %v3481
  %v3483 = vpop.f32.mrf.mxu0
  %3484 = vdwg.mxu0
  %3485 = vmatpush.bf16.msra.mxu0 %v3119
  %3486 = vmatpush.bf16.msra.mxu0 %v3116
  %3487 = vmatpush.bf16.msra.mxu0 %v3113
  %3488 = vmatpush.bf16.msra.mxu0 %v3110
  %3489 = vmatpush.bf16.msra.mxu0 %v3107
  %3490 = vmatpush.bf16.msra.mxu0 %v3104
  %3491 = vmatpush.bf16.msra.mxu0 %v3101
  %3492 = vmatpush.bf16.msra.mxu0 %v3098
  %3493 = vmatmul.bf16.gmra.mxu0 %v2303
  %v3494 = vpop.f32.mrf.mxu0
  %v3495 = vadd.f32 %v3482, %v3494
  %v3496 = vpop.f32.mrf.mxu0
  %3497 = vdwg.mxu0
  %v3498 = vld [vmem:[%s5] sm:$0x7]
  %v3500 = vperm.slane %v3498, 0
  %v3501 = vperm.slane %v3498, 1
  %v3502 = vperm.slane %v3498, 2
  %v3506 = vmul.f32 %v3339, %v3500
  %v3507 = vmul.f32 %v3417, %v3501
  %v3508 = vmul.f32 %v3495, %v3502
  %v3509 = vld [vmem:[%s6] sm:$0x7]
  %v3511 = vperm.slane %v3509, 0
  %v3512 = vperm.slane %v3509, 1
  %v3513 = vperm.slane %v3509, 2
  %v3517 = vadd.f32 %v3506, %v3511
  %v3518 = vadd.f32 %v3507, %v3512
  %v3519 = vadd.f32 %v3508, %v3513
  %v3520 = vmax.f32 %v3517, 0.0
  %v3521 = vmax.f32 %v3518, 0.0
  %v3522 = vmax.f32 %v3519, 0.0
  %v3523 = vpack.c.bf16 %v3520, %v3520
  %v3524 = vpack.c.bf16 %v3521, %v3521
  %v3525 = vpack.c.bf16 %v3522, %v3522
  %v3526 = vld [vmem:[%s7] sm:$0xf]
  %v3527 = vld [vmem:[%s7 + $0x4] sm:$0xf]
  %v3528 = vld [vmem:[%s7 + $0x8] sm:$0xf]
  %v3529 = vld [vmem:[%s7 + $0xc] sm:$0xf]
  %v3530 = vld [vmem:[%s7 + $0x10] sm:$0xf]
  %v3531 = vld [vmem:[%s7 + $0x14] sm:$0xf]
  %v3532 = vld [vmem:[%s7 + $0x18] sm:$0xf]
  %v3533 = vld [vmem:[%s7 + $0x1c] sm:$0xf]
  %v3534 = vld [vmem:[%s7 + $0x20] sm:$0xf]
  %v3535 = vld [vmem:[%s7 + $0x24] sm:$0xf]
  %v3536 = vld [vmem:[%s7 + $0x28] sm:$0xf]
  %v3537 = vld [vmem:[%s7 + $0x2c] sm:$0xf]
  %v3538 = vld [vmem:[%s7 + $0x30] sm:$0xf]
  %v3539 = vld [vmem:[%s7 + $0x34] sm:$0xf]
  %v3540 = vld [vmem:[%s7 + $0x38] sm:$0xf]
  %v3541 = vld [vmem:[%s7 + $0x3c] sm:$0xf]
  %v3542 = vld [vmem:[%s7 + $0x40] sm:$0xf]
  %v3543 = vld [vmem:[%s7 + $0x44] sm:$0xf]
  %v3544 = vld [vmem:[%s7 + $0x48] sm:$0xf]
  %v3545 = vld [vmem:[%s7 + $0x4c] sm:$0xf]
  %v3546 = vld [vmem:[%s7 + $0x50] sm:$0xf]
  %v3547 = vld [vmem:[%s7 + $0x54] sm:$0xf]
  %v3548 = vld [vmem:[%s7 + $0x58] sm:$0xf]
  %v3549 = vld [vmem:[%s7 + $0x5c] sm:$0xf]
  %v3550 = vld [vmem:[%s7 + $0x60] sm:$0xf]
  %v3551 = vld [vmem:[%s7 + $0x64] sm:$0xf]
  %v3552 = vld [vmem:[%s7 + $0x68] sm:$0xf]
  %v3553 = vld [vmem:[%s7 + $0x6c] sm:$0xf]
  %v3554 = vld [vmem:[%s7 + $0x70] sm:$0xf]
  %v3555 = vld [vmem:[%s7 + $0x74] sm:$0xf]
  %v3556 = vld [vmem:[%s7 + $0x78] sm:$0xf]
  %v3557 = vld [vmem:[%s7 + $0x7c] sm:$0xf]
  %v3558 = vld [vmem:[%s7 + $0x80] sm:$0xf]
  %v3559 = vld [vmem:[%s7 + $0x84] sm:$0xf]
  %v3560 = vld [vmem:[%s7 + $0x88] sm:$0xf]
  %v3561 = vld [vmem:[%s7 + $0x8c] sm:$0xf]
  %v3562 = vld [vmem:[%s7 + $0x90] sm:$0xf]
  %v3563 = vld [vmem:[%s7 + $0x94] sm:$0xf]
  %v3564 = vld [vmem:[%s7 + $0x98] sm:$0xf]
  %v3565 = vld [vmem:[%s7 + $0x9c] sm:$0xf]
  %v3566 = vld [vmem:[%s7 + $0xa0] sm:$0xf]
  %v3567 = vld [vmem:[%s7 + $0xa4] sm:$0xf]
  %v3568 = vld [vmem:[%s7 + $0xa8] sm:$0xf]
  %v3569 = vld [vmem:[%s7 + $0xac] sm:$0xf]
  %v3570 = vld [vmem:[%s7 + $0xb0] sm:$0xf]
  %v3571 = vld [vmem:[%s7 + $0xb4] sm:$0xf]
  %v3572 = vld [vmem:[%s7 + $0xb8] sm:$0xf]
  %v3573 = vld [vmem:[%s7 + $0xbc] sm:$0xf]
  %v3574 = vld [vmem:[%s8] sm:$0x1]
  %v3576 = vperm.slane %v3574, 0
  %v3626 = vunpack.c.l.b16 %v3526
  %v3627 = vunpack.c.l.b16 %v3527
  %v3628 = vunpack.c.l.b16 %v3528
  %v3629 = vunpack.c.l.b16 %v3529
  %v3630 = vunpack.c.l.b16 %v3530
  %v3631 = vunpack.c.l.b16 %v3531
  %v3632 = vunpack.c.l.b16 %v3532
  %v3633 = vunpack.c.l.b16 %v3533
  %v3634 = vunpack.c.l.b16 %v3534
  %v3635 = vunpack.c.l.b16 %v3535
  %v3636 = vunpack.c.l.b16 %v3536
  %v3637 = vunpack.c.l.b16 %v3537
  %v3638 = vunpack.c.l.b16 %v3538
  %v3639 = vunpack.c.l.b16 %v3539
  %v3640 = vunpack.c.l.b16 %v3540
  %v3641 = vunpack.c.l.b16 %v3541
  %v3642 = vunpack.c.l.b16 %v3542
  %v3643 = vunpack.c.l.b16 %v3543
  %v3644 = vunpack.c.l.b16 %v3544
  %v3645 = vunpack.c.l.b16 %v3545
  %v3646 = vunpack.c.l.b16 %v3546
  %v3647 = vunpack.c.l.b16 %v3547
  %v3648 = vunpack.c.l.b16 %v3548
  %v3649 = vunpack.c.l.b16 %v3549
  %v3650 = vunpack.c.l.b16 %v3550
  %v3651 = vunpack.c.l.b16 %v3551
  %v3652 = vunpack.c.l.b16 %v3552
  %v3653 = vunpack.c.l.b16 %v3553
  %v3654 = vunpack.c.l.b16 %v3554
  %v3655 = vunpack.c.l.b16 %v3555
  %v3656 = vunpack.c.l.b16 %v3556
  %v3657 = vunpack.c.l.b16 %v3557
  %v3658 = vunpack.c.l.b16 %v3558
  %v3659 = vunpack.c.l.b16 %v3559
  %v3660 = vunpack.c.l.b16 %v3560
  %v3661 = vunpack.c.l.b16 %v3561
  %v3662 = vunpack.c.l.b16 %v3562
  %v3663 = vunpack.c.l.b16 %v3563
  %v3664 = vunpack.c.l.b16 %v3564
  %v3665 = vunpack.c.l.b16 %v3565
  %v3666 = vunpack.c.l.b16 %v3566
  %v3667 = vunpack.c.l.b16 %v3567
  %v3668 = vunpack.c.l.b16 %v3568
  %v3669 = vunpack.c.l.b16 %v3569
  %v3670 = vunpack.c.l.b16 %v3570
  %v3671 = vunpack.c.l.b16 %v3571
  %v3672 = vunpack.c.l.b16 %v3572
  %v3673 = vunpack.c.l.b16 %v3573
  %v3674 = vpack.c.b16 %v3627, %v3626
  %v3675 = vpack.c.b16 %v3629, %v3628
  %v3676 = vpack.c.b16 %v3631, %v3630
  %v3677 = vpack.c.b16 %v3633, %v3632
  %v3678 = vpack.c.b16 %v3635, %v3634
  %v3679 = vpack.c.b16 %v3637, %v3636
  %v3680 = vpack.c.b16 %v3639, %v3638
  %v3681 = vpack.c.b16 %v3641, %v3640
  %v3682 = vpack.c.b16 %v3643, %v3642
  %v3683 = vpack.c.b16 %v3645, %v3644
  %v3684 = vpack.c.b16 %v3647, %v3646
  %v3685 = vpack.c.b16 %v3649, %v3648
  %v3686 = vpack.c.b16 %v3651, %v3650
  %v3687 = vpack.c.b16 %v3653, %v3652
  %v3688 = vpack.c.b16 %v3655, %v3654
  %v3689 = vpack.c.b16 %v3657, %v3656
  %v3690 = vpack.c.b16 %v3659, %v3658
  %v3691 = vpack.c.b16 %v3661, %v3660
  %v3692 = vpack.c.b16 %v3663, %v3662
  %v3693 = vpack.c.b16 %v3665, %v3664
  %v3694 = vpack.c.b16 %v3667, %v3666
  %v3695 = vpack.c.b16 %v3669, %v3668
  %v3696 = vpack.c.b16 %v3671, %v3670
  %v3697 = vpack.c.b16 %v3673, %v3672
  %3722 = vmatpush.bf16.msra.mxu0 %v3681
  %3723 = vmatpush.bf16.msra.mxu0 %v3680
  %3724 = vmatpush.bf16.msra.mxu0 %v3679
  %3725 = vmatpush.bf16.msra.mxu0 %v3678
  %3726 = vmatpush.bf16.msra.mxu0 %v3677
  %3727 = vmatpush.bf16.msra.mxu0 %v3676
  %3728 = vmatpush.bf16.msra.mxu0 %v3675
  %3729 = vmatpush.bf16.msra.mxu0 %v3674
  %3730 = vmatmul.bf16.gmra.mxu0 %v3523
  %v3731 = vpop.f32.mrf.mxu0
  %v3732 = vadd.f32 %v3576, %v3731
  %v3733 = vpop.f32.mrf.mxu0
  %3734 = vdwg.mxu0
  %3735 = vmatpush.bf16.msra.mxu0 %v3689
  %3736 = vmatpush.bf16.msra.mxu0 %v3688
  %3737 = vmatpush.bf16.msra.mxu0 %v3687
  %3738 = vmatpush.bf16.msra.mxu0 %v3686
  %3739 = vmatpush.bf16.msra.mxu0 %v3685
  %3740 = vmatpush.bf16.msra.mxu0 %v3684
  %3741 = vmatpush.bf16.msra.mxu0 %v3683
  %3742 = vmatpush.bf16.msra.mxu0 %v3682
  %3743 = vmatmul.bf16.gmra.mxu0 %v3524
  %v3744 = vpop.f32.mrf.mxu0
  %v3745 = vadd.f32 %v3732, %v3744
  %v3746 = vpop.f32.mrf.mxu0
  %3747 = vdwg.mxu0
  %3748 = vmatpush.bf16.msra.mxu0 %v3697
  %3749 = vmatpush.bf16.msra.mxu0 %v3696
  %3750 = vmatpush.bf16.msra.mxu0 %v3695
  %3751 = vmatpush.bf16.msra.mxu0 %v3694
  %3752 = vmatpush.bf16.msra.mxu0 %v3693
  %3753 = vmatpush.bf16.msra.mxu0 %v3692
  %3754 = vmatpush.bf16.msra.mxu0 %v3691
  %3755 = vmatpush.bf16.msra.mxu0 %v3690
  %3756 = vmatmul.bf16.gmra.mxu0 %v3525
  %v3757 = vpop.f32.mrf.mxu0
  %v3758 = vadd.f32 %v3745, %v3757
  %v3759 = vpop.f32.mrf.mxu0
  %3760 = vdwg.mxu0
  %3761 = vst [vmem:[%s9] sm:$0xff] %v3758
  // Predicated region
  $region38: #{audio_cnn_forward.11} parent=0 // pred_check
    _
  $region39: #{audio_cnn_forward.11} parent=0 // pred_check_branch
    %3763 = sbr.rel (0) target = $region41
  $region40: #{audio_cnn_forward.11} parent=0 // pred_region
    _
  $region41: #{audio_cnn_forward.11} parent=0 // pred_fallthru
    _
  // Predicated region
  $region42: #{audio_cnn_forward.11} parent=0 // pred_check
    _
  $region43: #{audio_cnn_forward.11} parent=0 // pred_check_branch
    %3765 = sbr.rel (0) target = $region45
  $region44: #{audio_cnn_forward.11} parent=0 // pred_region
    _
  $region45: #{audio_cnn_forward.11} parent=0 // pred_fallthru
    _

</llo_original>
